<compile_context>
chip_gen: v7x
topology: tpu7x:2x2x1
jax: 0.10.0
libtpu: 0.0.40
codegen_flags: <defaults>
</compile_context>

<pallas_src>
import functools

import jax
import jax.numpy as jnp
from jax.experimental import pallas as pl
from jax.experimental.pallas import tpu as pltpu

MID = 64               # LAN.mid_ch
REDUCTION = 16         # CALayer reduction
MAX_TILE_ROWS = 2048   # packed pixel rows per grid step for the 1x1 / NRB path
MAX_C3_ROWS = 1024     # packed pixel rows per row tile of the 3x3 path
EXTRA = 1              # guard rows around the padded packed image (+-1 pair shift)


def _cdiv(a, b):
    return (a + b - 1) // b


def _round_up(x, m):
    return (x + m - 1) // m * m


def _blockdiag2(w):
    """(cin, cout) -> (2*cin, 2*cout) block-diagonal [[w, 0], [0, w]]."""
    z = jnp.zeros_like(w)
    return jnp.concatenate(
        [jnp.concatenate([w, z], axis=1), jnp.concatenate([z, w], axis=1)],
        axis=0)


def _tile2(b):
    """(1, c) -> (1, 2*c): per-channel bias replicated for the pixel pair."""
    return jnp.concatenate([b, b], axis=1)


def _pack_c3_weights(w9):
    """(3,3,cin,cout) spatial taps -> (9, 2*cin, 2*cout) pair-shift matrices.

    Order t = 3*ky + s with s: 0 = left pair (j-1), 1 = center pair (j),
    2 = right pair (j+1).  Row blocks = [even-in; odd-in], column blocks =
    [even-out; odd-out] of the pixel-pair packed layout.
    """
    cin, cout = w9.shape[2], w9.shape[3]
    z = jnp.zeros((cin, cout), w9.dtype)
    mats = []
    for ky in range(3):
        wl, wc, wr = w9[ky, 0], w9[ky, 1], w9[ky, 2]
        mats.append(jnp.block([[z, z], [wl, z]]))          # pair j-1
        mats.append(jnp.block([[wc, wl], [wr, wc]]))       # pair j
        mats.append(jnp.block([[z, wr], [z, z]]))          # pair j+1
    return jnp.stack(mats, axis=0)


def _vmem_limit_bytes():
    try:
        cap = int(pltpu.get_tpu_info().vmem_capacity_bytes)
    except Exception:
        cap = 64 * 1024 * 1024
    return max(32 * 1024 * 1024, int(cap * 0.8))


# ----------------------------------------------------------------------------
# Feature probe: is pipeline_mode=pl.Buffered(1) available on this jax build?
# ----------------------------------------------------------------------------
_BUFFERED_OK = None


def _copy_kernel(x_ref, o_ref):
    o_ref[...] = x_ref[...]


def _buffered_single_ok():
    global _BUFFERED_OK
    if _BUFFERED_OK is None:
        try:
            x = jnp.zeros((8, 128), jnp.float32)
            y = pl.pallas_call(
                _copy_kernel,
                out_shape=jax.ShapeDtypeStruct((8, 128), jnp.float32),
                grid=(1,),
                in_specs=[pl.BlockSpec((8, 128), lambda i: (0, 0),
                                       pipeline_mode=pl.Buffered(1))],
                out_specs=pl.BlockSpec((8, 128), lambda i: (0, 0)),
            )(x)
            jax.block_until_ready(y)
            _BUFFERED_OK = True
        except Exception:
            _BUFFERED_OK = False
    return _BUFFERED_OK


# ----------------------------------------------------------------------------
# Kernels
# ----------------------------------------------------------------------------
def _head_kernel(x_ref, w_ref, b_ref, o_ref):
    # x_ref: (1, tile_p, 2*in_ch) bf16, w_ref: (2*in_ch, 128) bf16, b: (1,128) f32
    acc = jnp.dot(x_ref[0], w_ref[...], preferred_element_type=jnp.float32)
    o_ref[0] = jnp.maximum(acc + b_ref[...], 0.0).astype(o_ref.dtype)


def _c3_matmuls(operand, w_ref, b_ref, trows, wh):
    """Nine (trows,128)@(128,128) MXU matmuls = one 3x3 conv tile + bias + ReLU."""
    rj = jax.lax.broadcasted_iota(jnp.int32, (trows, 128), 0) % wh
    left_ok = rj != 0            # pair j-1 wraps across image rows at j == 0
    right_ok = rj != (wh - 1)    # pair j+1 wraps across image rows at j == wh-1
    acc = jnp.zeros((trows, 128), jnp.float32)
    for dy in range(3):
        left = operand(dy, -1)
        left = jnp.where(left_ok, left, jnp.zeros_like(left))
        acc = acc + jnp.dot(left, w_ref[3 * dy + 0],
                            preferred_element_type=jnp.float32)
        acc = acc + jnp.dot(operand(dy, 0), w_ref[3 * dy + 1],
                            preferred_element_type=jnp.float32)
        right = operand(dy, 1)
        right = jnp.where(right_ok, right, jnp.zeros_like(right))
        acc = acc + jnp.dot(right, w_ref[3 * dy + 2],
                            preferred_element_type=jnp.float32)
    return jnp.maximum(acc + b_ref[...], 0.0)


def _c3_head_kernel(x_ref, hw_ref, hb_ref, w_ref, b_ref, o_ref, hf_ref,
                    *, tile_h, wh, h, extra):
    # Fused head 1x1 conv + ReLU + 3x3 conv + ReLU on the packed layout.
    # x_ref: (1, PADF, 2*in_ch) raw padded packed image (VMEM resident).
    i = pl.program_id(1)
    trows = tile_h * wh
    win = trows + 2 * wh + 2
    base = i * trows + (extra - 1)
    if trows % 8 == 0 and (extra - 1) % 8 == 0:
        base = pl.multiple_of(base, 8)
    xwin = x_ref[0, pl.ds(base, win), :]                       # (win, 2*in_ch)
    hf = jnp.dot(xwin, hw_ref[...], preferred_element_type=jnp.float32)
    hf = jnp.maximum(hf + hb_ref[...], 0.0)
    # zero the vertical zero-pad rows (head bias + ReLU would otherwise leak in)
    pf = jax.lax.broadcasted_iota(jnp.int32, (win, 128), 0) + base
    valid = (pf >= extra + wh) & (pf < extra + (h + 1) * wh)
    hf_ref[...] = jnp.where(valid, hf, 0.0).astype(hf_ref.dtype)

    def operand(dy, shift):
        return hf_ref[pl.ds(dy * wh + 1 + shift, trows), :]

    o_ref[0] = _c3_matmuls(operand, w_ref, b_ref, trows, wh).astype(o_ref.dtype)


def _c3_kernel(x_ref, w_ref, b_ref, o_ref, *, tile_h, wh, extra):
    # 3x3 conv + ReLU on an already-padded packed feature map (VMEM resident).
    i = pl.program_id(1)
    trows = tile_h * wh

    def operand(dy, shift):
        start = extra + (i * tile_h + dy) * wh + shift
        return x_ref[0, pl.ds(start, trows), :]

    o_ref[0] = _c3_matmuls(operand, w_ref, b_ref, trows, wh).astype(o_ref.dtype)


def _presum_kernel(x_ref, w1_ref, b1_ref, w2_ref, b2_ref, sums_ref):
    # Pooled channel sums of conv2(relu(conv1(x))) for the FIRST RB.
    @pl.when(pl.program_id(1) == 0)
    def _():
        sums_ref[...] = jnp.zeros_like(sums_ref)

    x = x_ref[0]
    t = jnp.dot(x, w1_ref[...], preferred_element_type=jnp.float32) + b1_ref[...]
    t = jnp.maximum(t, 0.0).astype(jnp.bfloat16)
    t2 = jnp.dot(t, w2_ref[...], preferred_element_type=jnp.float32) + b2_ref[...]
    sums_ref[0] = sums_ref[0] + jnp.sum(t2, axis=0, keepdims=True)


def _rb_fused_kernel(x_ref, s_ref, w1_ref, b1_ref, w2_ref, b2_ref,
                     nw1_ref, nb1_ref, nw2_ref, nb2_ref, o_ref, sums_ref):
    # Apply RB_k (recompute conv chain, SE scale, residual) and accumulate the
    # NEXT RB's pooled channel sums from the freshly computed body tile.
    @pl.when(pl.program_id(1) == 0)
    def _():
        sums_ref[...] = jnp.zeros_like(sums_ref)

    x = x_ref[0]                                               # (tile_p, 128) bf16
    t = jnp.dot(x, w1_ref[...], preferred_element_type=jnp.float32) + b1_ref[...]
    t = jnp.maximum(t, 0.0).astype(jnp.bfloat16)
    t2 = jnp.dot(t, w2_ref[...], preferred_element_type=jnp.float32) + b2_ref[...]
    y = t2 * s_ref[0] + x.astype(jnp.float32)                  # SE scale + residual
    yb = y.astype(jnp.bfloat16)
    o_ref[0] = yb
    u = jnp.dot(yb, nw1_ref[...], preferred_element_type=jnp.float32) + nb1_ref[...]
    u = jnp.maximum(u, 0.0).astype(jnp.bfloat16)
    u2 = jnp.dot(u, nw2_ref[...], preferred_element_type=jnp.float32) + nb2_ref[...]
    sums_ref[0] = sums_ref[0] + jnp.sum(u2, axis=0, keepdims=True)


def _rb_tail_kernel(x_ref, skip_ref, s_ref, w1_ref, b1_ref, w2_ref, b2_ref,
                    tw_ref, tb_ref, ow_ref, ob_ref, o_ref):
    # Last RB + NRB tail 1x1 conv + outer residual + final 1x1 conv to out_ch.
    x = x_ref[0]
    t = jnp.dot(x, w1_ref[...], preferred_element_type=jnp.float32) + b1_ref[...]
    t = jnp.maximum(t, 0.0).astype(jnp.bfloat16)
    t2 = jnp.dot(t, w2_ref[...], preferred_element_type=jnp.float32) + b2_ref[...]
    y = (t2 * s_ref[0] + x.astype(jnp.float32)).astype(jnp.bfloat16)
    tl = jnp.dot(y, tw_ref[...], preferred_element_type=jnp.float32) + tb_ref[...]
    r = (tl + skip_ref[0].astype(jnp.float32)).astype(jnp.bfloat16)
    out = jnp.dot(r, ow_ref[...], preferred_element_type=jnp.float32) + ob_ref[...]
    o_ref[0] = out.astype(o_ref.dtype)


# ----------------------------------------------------------------------------
# Pallas wrappers
# ----------------------------------------------------------------------------
def head_conv(x_pk, w_bd, b2, tile_p):
    # Standalone packed 1x1 head conv + ReLU (only used when blindspot == 1).
    n, rpad, cin2 = x_pk.shape
    nt = rpad // tile_p
    return pl.pallas_call(
        _head_kernel,
        out_shape=jax.ShapeDtypeStruct((n, rpad, 2 * MID), jnp.bfloat16),
        grid=(n, nt),
        in_specs=[
            pl.BlockSpec((1, tile_p, cin2), lambda b, i: (b, i, 0)),
            pl.BlockSpec((cin2, 2 * MID), lambda b, i: (0, 0)),
            pl.BlockSpec((1, 2 * MID), lambda b, i: (0, 0)),
        ],
        out_specs=pl.BlockSpec((1, tile_p, 2 * MID), lambda b, i: (b, i, 0)),
        compiler_params=pltpu.CompilerParams(
            dimension_semantics=("parallel", "parallel")),
    )(x_pk, w_bd, b2)


def _pick_tile_h(h, wh):
    """Largest divisor of H whose packed row tile is 8-aligned and fits the cap."""
    best = None
    for d in range(1, h + 1):
        if h % d == 0 and (d * wh) % 8 == 0 and d * wh <= MAX_C3_ROWS:
            best = d
    return best if best is not None else h


def conv3x3(feat_padflat, w9s, b2, head, h, wh):
    """3x3 conv + ReLU in the pixel-pair packed layout.

    feat_padflat: (n, PADF, C) bf16, PADF = (H+2)*wh + 2*EXTRA, vertically
    zero-padded packed map (C = 2*in_ch raw pixels when `head` is given,
    otherwise C = 128 packed features).  Returns (n, H*wh, 128) bf16.
    """
    n, padf, c = feat_padflat.shape
    tile_h = _pick_tile_h(h, wh)
    trows, rimg, nh = tile_h * wh, h * wh, h // tile_h
    win = trows + 2 * wh + 2
    cp = pltpu.CompilerParams(
        dimension_semantics=("parallel", "parallel"),
        vmem_limit_bytes=_vmem_limit_bytes())
    ce = pl.CostEstimate(
        flops=int(2 * n * rimg * 9 * 128 * 128), transcendentals=0,
        bytes_accessed=int(2 * n * (padf * c + rimg * 128) + 9 * 128 * 128 * 2))
    out_shape = jax.ShapeDtypeStruct((n, rimg, 128), jnp.bfloat16)
    out_spec = pl.BlockSpec((1, trows, 128), lambda b, i: (b, i, 0))
    w_specs = [pl.BlockSpec((9, 128, 128), lambda b, i: (0, 0, 0)),
               pl.BlockSpec((1, 128), lambda b, i: (0, 0))]

    def build(img_spec):
        if head is None:
            kern = functools.partial(_c3_kernel, tile_h=tile_h, wh=wh, extra=EXTRA)
            return pl.pallas_call(
                kern, out_shape=out_shape, grid=(n, nh),
                in_specs=[img_spec] + w_specs, out_specs=out_spec,
                compiler_params=cp, cost_estimate=ce,
            )(feat_padflat, w9s, b2)
        hw, hb = head
        kern = functools.partial(_c3_head_kernel, tile_h=tile_h, wh=wh, h=h,
                                 extra=EXTRA)
        return pl.pallas_call(
            kern, out_shape=out_shape, grid=(n, nh),
            in_specs=[img_spec,
                      pl.BlockSpec((hw.shape[0], 128), lambda b, i: (0, 0)),
                      pl.BlockSpec((1, 128), lambda b, i: (0, 0))] + w_specs,
            out_specs=out_spec,
            scratch_shapes=[pltpu.VMEM((win, 128), jnp.bfloat16)],
            compiler_params=cp, cost_estimate=ce,
        )(feat_padflat, hw, hb, w9s, b2)

    # Whole padded packed image stays VMEM resident; single-buffer it when the
    # jax build supports it (it is revisited across the row-tile axis anyway).
    if _buffered_single_ok():
        img_spec = pl.BlockSpec((1, padf, c), lambda b, i: (b, 0, 0),
                                pipeline_mode=pl.Buffered(1))
    else:
        img_spec = pl.BlockSpec((1, padf, c), lambda b, i: (b, 0, 0))
    return build(img_spec)


def nrb_presum(body, rbp, tile_p):
    n, rpad, _ = body.shape
    nt = rpad // tile_p
    return pl.pallas_call(
        _presum_kernel,
        out_shape=jax.ShapeDtypeStruct((n, 1, 128), jnp.float32),
        grid=(n, nt),
        in_specs=[
            pl.BlockSpec((1, tile_p, 128), lambda b, i: (b, i, 0)),
            pl.BlockSpec((128, 128), lambda b, i: (0, 0)),
            pl.BlockSpec((1, 128), lambda b, i: (0, 0)),
            pl.BlockSpec((128, 128), lambda b, i: (0, 0)),
            pl.BlockSpec((1, 128), lambda b, i: (0, 0)),
        ],
        out_specs=pl.BlockSpec((1, 1, 128), lambda b, i: (b, 0, 0)),
        compiler_params=pltpu.CompilerParams(
            dimension_semantics=("parallel", "arbitrary")),
    )(body, rbp["w1"], rbp["b1"], rbp["w2"], rbp["b2"])


def rb_fused(body, s128, rbp, nxt, tile_p):
    n, rpad, _ = body.shape
    nt = rpad // tile_p
    ce = pl.CostEstimate(flops=int(8 * n * rpad * 128 * 128), transcendentals=0,
                         bytes_accessed=int(4 * n * rpad * 128 * 2))
    return pl.pallas_call(
        _rb_fused_kernel,
        out_shape=(jax.ShapeDtypeStruct((n, rpad, 128), jnp.bfloat16),
                   jax.ShapeDtypeStruct((n, 1, 128), jnp.float32)),
        grid=(n, nt),
        in_specs=[
            pl.BlockSpec((1, tile_p, 128), lambda b, i: (b, i, 0)),
            pl.BlockSpec((1, 1, 128), lambda b, i: (b, 0, 0)),
            pl.BlockSpec((128, 128), lambda b, i: (0, 0)),
            pl.BlockSpec((1, 128), lambda b, i: (0, 0)),
            pl.BlockSpec((128, 128), lambda b, i: (0, 0)),
            pl.BlockSpec((1, 128), lambda b, i: (0, 0)),
            pl.BlockSpec((128, 128), lambda b, i: (0, 0)),
            pl.BlockSpec((1, 128), lambda b, i: (0, 0)),
            pl.BlockSpec((128, 128), lambda b, i: (0, 0)),
            pl.BlockSpec((1, 128), lambda b, i: (0, 0)),
        ],
        out_specs=(pl.BlockSpec((1, tile_p, 128), lambda b, i: (b, i, 0)),
                   pl.BlockSpec((1, 1, 128), lambda b, i: (b, 0, 0))),
        compiler_params=pltpu.CompilerParams(
            dimension_semantics=("parallel", "arbitrary")),
        cost_estimate=ce,
    )(body, s128, rbp["w1"], rbp["b1"], rbp["w2"], rbp["b2"],
      nxt["w1"], nxt["b1"], nxt["w2"], nxt["b2"])


def rb_tail(body, skip, s128, rbp, params, tile_p):
    n, rpad, _ = body.shape
    nt = rpad // tile_p
    oc2 = params["out_w"].shape[1]
    return pl.pallas_call(
        _rb_tail_kernel,
        out_shape=jax.ShapeDtypeStruct((n, rpad, oc2), jnp.float32),
        grid=(n, nt),
        in_specs=[
            pl.BlockSpec((1, tile_p, 128), lambda b, i: (b, i, 0)),
            pl.BlockSpec((1, tile_p, 128), lambda b, i: (b, i, 0)),
            pl.BlockSpec((1, 1, 128), lambda b, i: (b, 0, 0)),
            pl.BlockSpec((128, 128), lambda b, i: (0, 0)),
            pl.BlockSpec((1, 128), lambda b, i: (0, 0)),
            pl.BlockSpec((128, 128), lambda b, i: (0, 0)),
            pl.BlockSpec((1, 128), lambda b, i: (0, 0)),
            pl.BlockSpec((128, 128), lambda b, i: (0, 0)),
            pl.BlockSpec((1, 128), lambda b, i: (0, 0)),
            pl.BlockSpec((128, oc2), lambda b, i: (0, 0)),
            pl.BlockSpec((1, oc2), lambda b, i: (0, 0)),
        ],
        out_specs=pl.BlockSpec((1, tile_p, oc2), lambda b, i: (b, i, 0)),
        compiler_params=pltpu.CompilerParams(
            dimension_semantics=("parallel", "parallel")),
    )(body, skip, s128, rbp["w1"], rbp["b1"], rbp["w2"], rbp["b2"],
      params["tail_w"], params["tail_b"], params["out_w"], params["out_b"])


# ----------------------------------------------------------------------------
# Parameter init (deterministic, synthetic) + full LAN forward
# ----------------------------------------------------------------------------
def init_lan_params(key, blindspot, in_ch=3, out_ch=None, rbs=6,
                    mid=MID, reduction=REDUCTION):
    assert blindspot % 2 == 1
    out_ch = in_ch if out_ch is None else out_ch
    n_c3 = blindspot // 2
    red = mid // reduction
    keys = iter(jax.random.split(key, 4 + n_c3 + 4 * rbs))

    def dense(k, cin, cout):
        kw, kb = jax.random.split(k)
        wgt = jax.random.normal(kw, (cin, cout), jnp.float32) / jnp.sqrt(cin)
        bias = jax.random.normal(kb, (1, cout), jnp.float32) * 0.01
        return wgt, bias

    p = {}
    hw_, hb_ = dense(next(keys), in_ch, mid)
    p["head_w"] = _blockdiag2(hw_).astype(jnp.bfloat16)
    p["head_b"] = _tile2(hb_)

    c3 = []
    for _ in range(n_c3):
        kw, kb = jax.random.split(next(keys))
        w9 = jax.random.normal(kw, (3, 3, mid, mid), jnp.float32) / jnp.sqrt(9 * mid)
        b9 = jax.random.normal(kb, (1, mid), jnp.float32) * 0.01
        c3.append((_pack_c3_weights(w9).astype(jnp.bfloat16), _tile2(b9)))
    p["c3"] = c3

    rb_list = []
    for _ in range(rbs):
        w1, b1 = dense(next(keys), mid, mid)
        w2, b2 = dense(next(keys), mid, mid)
        cw1, cb1 = dense(next(keys), mid, red)
        cw2, cb2 = dense(next(keys), red, mid)
        rb_list.append(dict(
            w1=_blockdiag2(w1).astype(jnp.bfloat16), b1=_tile2(b1),
            w2=_blockdiag2(w2).astype(jnp.bfloat16), b2=_tile2(b2),
            cw1=cw1, cb1=cb1, cw2=cw2, cb2=cb2))        # SE path stays f32, 64-wide
    p["rbs"] = rb_list

    tw, tb = dense(next(keys), mid, mid)
    p["tail_w"] = _blockdiag2(tw).astype(jnp.bfloat16)
    p["tail_b"] = _tile2(tb)
    ow, ob = dense(next(keys), mid, out_ch)
    p["out_w"] = _blockdiag2(ow).astype(jnp.bfloat16)
    p["out_b"] = _tile2(ob)
    return p


def lan_forward(x, params):
    """x: (N, H, W, in_ch) NHWC float32.  Returns (N, H, W, out_ch) float32."""
    n, h, w, cin = x.shape
    assert w % 2 == 0, "pixel-pair packed layout needs an even width"
    # TODO(synk): support odd widths by padding a column in the wrapper.
    wh = w // 2
    rimg = h * wh                      # packed rows per image (2 pixels / row)
    pixels = h * w
    n_c3 = len(params["c3"])

    # packed-row tiling for the 1x1 / NRB path (minimal padding, 8-aligned)
    nt = _cdiv(rimg, MAX_TILE_ROWS)
    tile_p = _round_up(_cdiv(rimg, nt), 8)
    rpad = nt * tile_p
    n_pad_rows = rpad - rimg

    x_pk = x.reshape(n, rimg, 2 * cin).astype(jnp.bfloat16)

    # ---- head 1x1 + (blindspot//2) x [3x3 conv + ReLU] ---------------------
    if n_c3 > 0:
        head = (params["head_w"], params["head_b"])
        cur = jnp.pad(x_pk, ((0, 0), (EXTRA + wh, wh + EXTRA), (0, 0)))
        feat = None
        for si, (w9s, b9) in enumerate(params["c3"]):
            feat = conv3x3(cur, w9s, b9, head if si == 0 else None, h, wh)
            if si + 1 < n_c3:
                cur = jnp.pad(feat, ((0, 0), (EXTRA + wh, wh + EXTRA), (0, 0)))
        if n_pad_rows:
            feat = jnp.pad(feat, ((0, 0), (0, n_pad_rows), (0, 0)))
        pad_row0 = jnp.zeros((1, 128), jnp.float32)
    else:
        xh = x_pk
        if n_pad_rows:
            xh = jnp.pad(xh, ((0, 0), (0, n_pad_rows), (0, 0)))
        feat = head_conv(xh, params["head_w"], params["head_b"], tile_p)
        pad_row0 = (jnp.maximum(params["head_b"], 0.0)
                    .astype(jnp.bfloat16).astype(jnp.float32))

    # ---- NRB: fused RB chain + tail + outer residual + final 1x1 -----------
    skip = feat
    body = feat
    rbs_p = params["rbs"]
    sums = nrb_presum(body, rbs_p[0], tile_p)                  # (n, 1, 128) f32
    pad_val = jnp.tile(pad_row0, (n, 1))                       # value of every pad row
    out_pk = None
    for k, rbp in enumerate(rbs_p):
        tot = sums[:, 0, :]                                    # (n, 128)
        if n_pad_rows:
            pv = pad_val.astype(jnp.bfloat16)
            pt_ = jnp.maximum(
                jnp.dot(pv, rbp["w1"], preferred_element_type=jnp.float32)
                + rbp["b1"], 0.0).astype(jnp.bfloat16)
            pad_t2 = (jnp.dot(pt_, rbp["w2"], preferred_element_type=jnp.float32)
                      + rbp["b2"])                             # (n, 128)
            tot = tot - n_pad_rows * pad_t2
        ch = tot[:, :MID] + tot[:, MID:]                       # fold pixel halves
        mean = ch / float(pixels)
        z = jnp.maximum(jnp.dot(mean, rbp["cw1"]) + rbp["cb1"], 0.0)
        sig = jax.nn.sigmoid(jnp.dot(z, rbp["cw2"]) + rbp["cb2"])   # (n, 64)
        s128 = jnp.concatenate([sig, sig], axis=-1)            # (n, 128)
        if n_pad_rows:
            pad_val = ((pad_t2 * s128 + pad_val)
                       .astype(jnp.bfloat16).astype(jnp.float32))
        s3 = s128[:, None, :]                                  # (n, 1, 128)
        if k + 1 < len(rbs_p):
            body, sums = rb_fused(body, s3, rbp, rbs_p[k + 1], tile_p)
        else:
            out_pk = rb_tail(body, skip, s3, rbp, params, tile_p)

    oc = params["out_w"].shape[1] // 2
    return out_pk[:, :rimg, :].reshape(n, h, w, oc)


if __name__ == "__main__":
    BLINDSPOT = 3   # -> one 3x3 conv stage
    IN_CH = 3
    OUT_CH = 3
    RBS = 2
    N, H, W = 2, 16, 16

    key = jax.random.PRNGKey(0)
    kx, kp = jax.random.split(key)
    x = jax.random.normal(kx, (N, H, W, IN_CH), jnp.float32)   # NHWC
    params = init_lan_params(kp, BLINDSPOT, IN_CH, OUT_CH, RBS)

    out = jax.block_until_ready(jax.jit(lan_forward)(x, params))
    assert out.shape == (N, H, W, OUT_CH)
    assert bool(jnp.all(jnp.isfinite(out)))
    print("KERNEL_OK")
</pallas_src>

<mosaic_0001>
module attributes {stable_mosaic.version = 11 : i64} {
  func.func @_presum_kernel(%arg0: i32, %arg1: i32, %arg2: memref<1x128x128xbf16, #tpu.memory_space<vmem>>, %arg3: memref<128x128xbf16, #tpu.memory_space<vmem>>, %arg4: memref<1x128xf32, #tpu.memory_space<vmem>>, %arg5: memref<128x128xbf16, #tpu.memory_space<vmem>>, %arg6: memref<1x128xf32, #tpu.memory_space<vmem>>, %arg7: memref<1x1x128xf32, #tpu.memory_space<vmem>>) attributes {dimension_semantics = [#tpu.dimension_semantics<parallel>, #tpu.dimension_semantics<arbitrary>], iteration_bounds = array<i64: 2, 1>, scalar_prefetch = 0 : i64, scratch_operands = 0 : i64, tpu.core_type = #tpu.core_type<tc>, window_params = [{transform_indices = @transform_0, window_bounds = array<i64: 1, 128, 128>}, {pipeline_mode = #tpu.pipeline_mode<synchronous>, transform_indices = @transform_1, window_bounds = array<i64: 128, 128>}, {pipeline_mode = #tpu.pipeline_mode<synchronous>, transform_indices = @transform_2, window_bounds = array<i64: 1, 128>}, {pipeline_mode = #tpu.pipeline_mode<synchronous>, transform_indices = @transform_3, window_bounds = array<i64: 128, 128>}, {pipeline_mode = #tpu.pipeline_mode<synchronous>, transform_indices = @transform_4, window_bounds = array<i64: 1, 128>}, {transform_indices = @transform_5, window_bounds = array<i64: 1, 1, 128>}]} {
    %c0_i32 = arith.constant 0 : i32
    %0 = arith.cmpi eq, %arg1, %c0_i32 : i32
    %1 = arith.extui %0 : i1 to i32
    %c0_i32_0 = arith.constant 0 : i32
    %2 = arith.cmpi ne, %1, %c0_i32_0 : i32
    scf.if %2 {
      %cst_20 = arith.constant 0.000000e+00 : f32
      %26 = vector.broadcast %cst_20 : f32 to vector<1x1x128xf32>
      %c0_21 = arith.constant 0 : index
      %c0_22 = arith.constant 0 : index
      %c0_23 = arith.constant 0 : index
      %27 = vector.load %arg7[%c0_21, %c0_22, %c0_23] : memref<1x1x128xf32, #tpu.memory_space<vmem>>, vector<1x1x128xf32>
      tpu.vector_store %arg7[%c0_21, %c0_22, %c0_23], %26 {strides = array<i32>} : memref<1x1x128xf32, #tpu.memory_space<vmem>>, vector<1x1x128xf32>,
    } else {
    }
    %c0 = arith.constant 0 : index
    %c0_1 = arith.constant 0 : index
    %c0_2 = arith.constant 0 : index
    %3 = vector.load %arg2[%c0, %c0_1, %c0_2] : memref<1x128x128xbf16, #tpu.memory_space<vmem>>, vector<1x128x128xbf16>
    %4 = vector.shape_cast %3 : vector<1x128x128xbf16> to vector<128x128xbf16>
    %c0_3 = arith.constant 0 : index
    %c0_4 = arith.constant 0 : index
    %5 = vector.load %arg3[%c0_3, %c0_4] : memref<128x128xbf16, #tpu.memory_space<vmem>>, vector<128x128xbf16>
    %cst = arith.constant dense<0.000000e+00> : vector<128x128xf32>
    %6 = tpu.matmul %4, %5, %cst {dimension_numbers = #tpu.dot_dimension_numbers<[1], [0], [0], [1], [0, 0, 1, 1], [], []>} : vector<128x128xbf16>, vector<128x128xbf16>, vector<128x128xf32> -> vector<128x128xf32>
    %c0_5 = arith.constant 0 : index
    %c0_6 = arith.constant 0 : index
    %7 = vector.load %arg4[%c0_5, %c0_6] : memref<1x128xf32, #tpu.memory_space<vmem>>, vector<1x128xf32>
    %8 = vector.broadcast %7 : vector<1x128xf32> to vector<128x128xf32>
    %9 = arith.addf %6, %8 : vector<128x128xf32>
    %cst_7 = arith.constant 0.000000e+00 : f32
    %10 = vector.broadcast %cst_7 : f32 to vector<128x128xf32>
    %11 = arith.maximumf %9, %10 : vector<128x128xf32>
    %12 = arith.truncf %11 : vector<128x128xf32> to vector<128x128xbf16>
    %c0_8 = arith.constant 0 : index
    %c0_9 = arith.constant 0 : index
    %13 = vector.load %arg5[%c0_8, %c0_9] : memref<128x128xbf16, #tpu.memory_space<vmem>>, vector<128x128xbf16>
    %cst_10 = arith.constant dense<0.000000e+00> : vector<128x128xf32>
    %14 = tpu.matmul %12, %13, %cst_10 {dimension_numbers = #tpu.dot_dimension_numbers<[1], [0], [0], [1], [0, 0, 1, 1], [], []>} : vector<128x128xbf16>, vector<128x128xbf16>, vector<128x128xf32> -> vector<128x128xf32>
    %c0_11 = arith.constant 0 : index
    %c0_12 = arith.constant 0 : index
    %15 = vector.load %arg6[%c0_11, %c0_12] : memref<1x128xf32, #tpu.memory_space<vmem>>, vector<1x128xf32>
    %16 = vector.broadcast %15 : vector<1x128xf32> to vector<128x128xf32>
    %17 = arith.addf %14, %16 : vector<128x128xf32>
    %c0_13 = arith.constant 0 : index
    %c0_14 = arith.constant 0 : index
    %c0_15 = arith.constant 0 : index
    %18 = vector.load %arg7[%c0_13, %c0_14, %c0_15] : memref<1x1x128xf32, #tpu.memory_space<vmem>>, vector<1x1x128xf32>
    %19 = vector.shape_cast %18 : vector<1x1x128xf32> to vector<1x128xf32>
    %cst_16 = arith.constant dense<0.000000e+00> : vector<128xf32>
    %20 = vector.multi_reduction <add>, %17, %cst_16 [0] : vector<128x128xf32> to vector<128xf32>
    %21 = vector.shape_cast %20 : vector<128xf32> to vector<1x128xf32>
    %22 = arith.addf %19, %21 : vector<1x128xf32>
    %c0_17 = arith.constant 0 : index
    %c0_18 = arith.constant 0 : index
    %c0_19 = arith.constant 0 : index
    %23 = vector.load %arg7[%c0_17, %c0_18, %c0_19] : memref<1x1x128xf32, #tpu.memory_space<vmem>>, vector<1x1x128xf32>
    %24 = vector.shape_cast %23 : vector<1x1x128xf32> to vector<1x128xf32>
    %25 = vector.shape_cast %22 : vector<1x128xf32> to vector<1x1x128xf32>
    tpu.vector_store %arg7[%c0_17, %c0_18, %c0_19], %25 {strides = array<i32>} : memref<1x1x128xf32, #tpu.memory_space<vmem>>, vector<1x1x128xf32>,
    return
  }
  func.func @transform_0(%arg0: i32, %arg1: i32) -> (i32, i32, i32) {
    %c0_i32 = arith.constant 0 : i32
    %c0_i32_0 = arith.constant 0 : i32
    return %arg0, %arg1, %c0_i32 : i32, i32, i32
  }
  func.func @transform_1(%arg0: i32, %arg1: i32) -> (i32, i32) {
    %c0_i32 = arith.constant 0 : i32
    %c0_i32_0 = arith.constant 0 : i32
    %c0_i32_1 = arith.constant 0 : i32
    return %c0_i32, %c0_i32_0 : i32, i32
  }
  func.func @transform_2(%arg0: i32, %arg1: i32) -> (i32, i32) {
    %c0_i32 = arith.constant 0 : i32
    %c0_i32_0 = arith.constant 0 : i32
    %c0_i32_1 = arith.constant 0 : i32
    return %c0_i32, %c0_i32_0 : i32, i32
  }
  func.func @transform_3(%arg0: i32, %arg1: i32) -> (i32, i32) {
    %c0_i32 = arith.constant 0 : i32
    %c0_i32_0 = arith.constant 0 : i32
    %c0_i32_1 = arith.constant 0 : i32
    return %c0_i32, %c0_i32_0 : i32, i32
  }
  func.func @transform_4(%arg0: i32, %arg1: i32) -> (i32, i32) {
    %c0_i32 = arith.constant 0 : i32
    %c0_i32_0 = arith.constant 0 : i32
    %c0_i32_1 = arith.constant 0 : i32
    return %c0_i32, %c0_i32_0 : i32, i32
  }
  func.func @transform_5(%arg0: i32, %arg1: i32) -> (i32, i32, i32) {
    %c0_i32 = arith.constant 0 : i32
    %c0_i32_0 = arith.constant 0 : i32
    %c0_i32_1 = arith.constant 0 : i32
    return %arg0, %c0_i32, %c0_i32_0 : i32, i32, i32
  }
}

module attributes {stable_mosaic.version = 11 : i64} {
  func.func @_c3_head_kernel(%arg0: i32, %arg1: i32, %arg2: memref<1x146x6xbf16, #tpu.memory_space<vmem>>, %arg3: memref<6x128xbf16, #tpu.memory_space<vmem>>, %arg4: memref<1x128xf32, #tpu.memory_space<vmem>>, %arg5: memref<9x128x128xbf16, #tpu.memory_space<vmem>>, %arg6: memref<1x128xf32, #tpu.memory_space<vmem>>, %arg7: memref<1x128x128xbf16, #tpu.memory_space<vmem>>, %arg8: memref<146x128xbf16, #tpu.memory_space<vmem>>) attributes {dimension_semantics = [#tpu.dimension_semantics<parallel>, #tpu.dimension_semantics<parallel>], iteration_bounds = array<i64: 2, 1>, scalar_prefetch = 0 : i64, scratch_operands = 1 : i64, tpu.core_type = #tpu.core_type<tc>, window_params = [{pipeline_mode = #tpu.pipeline_mode<synchronous>, transform_indices = @transform_0, window_bounds = array<i64: 1, 146, 6>}, {pipeline_mode = #tpu.pipeline_mode<synchronous>, transform_indices = @transform_1, window_bounds = array<i64: 6, 128>}, {pipeline_mode = #tpu.pipeline_mode<synchronous>, transform_indices = @transform_2, window_bounds = array<i64: 1, 128>}, {pipeline_mode = #tpu.pipeline_mode<synchronous>, transform_indices = @transform_3, window_bounds = array<i64: 9, 128, 128>}, {pipeline_mode = #tpu.pipeline_mode<synchronous>, transform_indices = @transform_4, window_bounds = array<i64: 1, 128>}, {transform_indices = @transform_5, window_bounds = array<i64: 1, 128, 128>}]} {
    %c128_i32 = arith.constant 128 : i32
    %0 = arith.muli %arg1, %c128_i32 : i32
    %c0_i32 = arith.constant 0 : i32
    %1 = arith.addi %0, %c0_i32 : i32
    %2 = tpu.assume_multiple %1, 8 : i32
    %c0 = arith.constant 0 : index
    %3 = arith.index_cast %2 : i32 to index
    %c0_0 = arith.constant 0 : index
    %4 = vector.load %arg2[%c0, %3, %c0_0] : memref<1x146x6xbf16, #tpu.memory_space<vmem>>, vector<1x146x6xbf16>
    %5 = vector.shape_cast %4 : vector<1x146x6xbf16> to vector<146x6xbf16>
    %c0_1 = arith.constant 0 : index
    %c0_2 = arith.constant 0 : index
    %6 = vector.load %arg3[%c0_1, %c0_2] : memref<6x128xbf16, #tpu.memory_space<vmem>>, vector<6x128xbf16>
    %cst = arith.constant dense<0.000000e+00> : vector<146x128xf32>
    %7 = tpu.matmul %5, %6, %cst {dimension_numbers = #tpu.dot_dimension_numbers<[1], [0], [0], [1], [0, 0, 1, 1], [], []>} : vector<146x6xbf16>, vector<6x128xbf16>, vector<146x128xf32> -> vector<146x128xf32>
    %c0_3 = arith.constant 0 : index
    %c0_4 = arith.constant 0 : index
    %8 = vector.load %arg4[%c0_3, %c0_4] : memref<1x128xf32, #tpu.memory_space<vmem>>, vector<1x128xf32>
    %9 = vector.broadcast %8 : vector<1x128xf32> to vector<146x128xf32>
    %10 = arith.addf %7, %9 : vector<146x128xf32>
    %cst_5 = arith.constant 0.000000e+00 : f32
    %11 = vector.broadcast %cst_5 : f32 to vector<146x128xf32>
    %12 = arith.maximumf %10, %11 : vector<146x128xf32>
    %13 = tpu.iota {dimensions = array<i32: 0>} : vector<146x128xi32>
    %14 = vector.broadcast %2 : i32 to vector<146x128xi32>
    %15 = arith.addi %13, %14 : vector<146x128xi32>
    %c9_i32 = arith.constant 9 : i32
    %16 = vector.broadcast %c9_i32 : i32 to vector<146x128xi32>
    %17 = arith.cmpi sge, %15, %16 : vector<146x128xi32>
    %c137_i32 = arith.constant 137 : i32
    %18 = vector.broadcast %c137_i32 : i32 to vector<146x128xi32>
    %19 = arith.cmpi slt, %15, %18 : vector<146x128xi32>
    %20 = arith.andi %17, %19 : vector<146x128xi1>
    %cst_6 = arith.constant 0.000000e+00 : f32
    %21 = vector.broadcast %cst_6 : f32 to vector<146x128xf32>
    %22 = arith.select %20, %12, %21 : vector<146x128xi1>, vector<146x128xf32>
    %23 = arith.truncf %22 : vector<146x128xf32> to vector<146x128xbf16>
    %c0_7 = arith.constant 0 : index
    %c0_8 = arith.constant 0 : index
    %24 = vector.load %arg8[%c0_7, %c0_8] : memref<146x128xbf16, #tpu.memory_space<vmem>>, vector<146x128xbf16>
    tpu.vector_store %arg8[%c0_7, %c0_8], %23 {strides = array<i32>} : memref<146x128xbf16, #tpu.memory_space<vmem>>, vector<146x128xbf16>,
    %25 = tpu.iota {dimensions = array<i32: 0>} : vector<128x128xi32>
    %c8_i32 = arith.constant 8 : i32
    %c0_i32_9 = arith.constant 0 : i32
    %26 = arith.cmpi eq, %c8_i32, %c0_i32_9 : i32
    %c1_i32 = arith.constant 1 : i32
    %27 = arith.select %26, %c1_i32, %c8_i32 : i32
    %28 = vector.broadcast %27 : i32 to vector<128x128xi32>
    %29 = arith.remsi %25, %28 : vector<128x128xi32>
    %c0_i32_10 = arith.constant 0 : i32
    %30 = vector.broadcast %c0_i32_10 : i32 to vector<128x128xi32>
    %31 = arith.cmpi ne, %29, %30 : vector<128x128xi32>
    %c0_i32_11 = arith.constant 0 : i32
    %32 = vector.broadcast %c0_i32_11 : i32 to vector<128x128xi32>
    %33 = arith.cmpi slt, %29, %32 : vector<128x128xi32>
    %c0_i32_12 = arith.constant 0 : i32
    %34 = arith.cmpi slt, %27, %c0_i32_12 : i32
    %35 = vector.broadcast %34 : i1 to vector<128x128xi1>
    %36 = vector.broadcast %35 : vector<128x128xi1> to vector<128x128xi1>
    %37 = arith.xori %33, %36 : vector<128x128xi1>
    %38 = arith.andi %37, %31 : vector<128x128xi1>
    %39 = vector.broadcast %27 : i32 to vector<128x128xi32>
    %40 = arith.addi %29, %39 : vector<128x128xi32>
    %41 = arith.select %38, %40, %29 : vector<128x128xi1>, vector<128x128xi32>
    %c0_i32_13 = arith.constant 0 : i32
    %42 = vector.broadcast %c0_i32_13 : i32 to vector<128x128xi32>
    %43 = arith.cmpi ne, %41, %42 : vector<128x128xi32>
    %c7_i32 = arith.constant 7 : i32
    %44 = vector.broadcast %c7_i32 : i32 to vector<128x128xi32>
    %45 = arith.cmpi ne, %41, %44 : vector<128x128xi32>
    %cst_14 = arith.constant 0.000000e+00 : f32
    %46 = vector.broadcast %cst_14 : f32 to vector<128x128xf32>
    %c0_15 = arith.constant 0 : index
    %c0_16 = arith.constant 0 : index
    %47 = vector.load %arg8[%c0_15, %c0_16] : memref<146x128xbf16, #tpu.memory_space<vmem>>, vector<128x128xbf16>
    %cst_17 = arith.constant 0.000000e+00 : bf16
    %48 = vector.broadcast %cst_17 : bf16 to vector<128x128xbf16>
    %49 = arith.select %43, %47, %48 : vector<128x128xi1>, vector<128x128xbf16>
    %c0_18 = arith.constant 0 : index
    %c0_19 = arith.constant 0 : index
    %c0_20 = arith.constant 0 : index
    %50 = vector.load %arg5[%c0_18, %c0_19, %c0_20] : memref<9x128x128xbf16, #tpu.memory_space<vmem>>, vector<1x128x128xbf16>
    %51 = vector.shape_cast %50 : vector<1x128x128xbf16> to vector<128x128xbf16>
    %cst_21 = arith.constant dense<0.000000e+00> : vector<128x128xf32>
    %52 = tpu.matmul %49, %51, %cst_21 {dimension_numbers = #tpu.dot_dimension_numbers<[1], [0], [0], [1], [0, 0, 1, 1], [], []>} : vector<128x128xbf16>, vector<128x128xbf16>, vector<128x128xf32> -> vector<128x128xf32>
    %53 = arith.addf %46, %52 : vector<128x128xf32>
    %c1 = arith.constant 1 : index
    %c0_22 = arith.constant 0 : index
    %54 = vector.load %arg8[%c1, %c0_22] : memref<146x128xbf16, #tpu.memory_space<vmem>>, vector<128x128xbf16>
    %c1_23 = arith.constant 1 : index
    %c0_24 = arith.constant 0 : index
    %c0_25 = arith.constant 0 : index
    %55 = vector.load %arg5[%c1_23, %c0_24, %c0_25] : memref<9x128x128xbf16, #tpu.memory_space<vmem>>, vector<1x128x128xbf16>
    %56 = vector.shape_cast %55 : vector<1x128x128xbf16> to vector<128x128xbf16>
    %cst_26 = arith.constant dense<0.000000e+00> : vector<128x128xf32>
    %57 = tpu.matmul %54, %56, %cst_26 {dimension_numbers = #tpu.dot_dimension_numbers<[1], [0], [0], [1], [0, 0, 1, 1], [], []>} : vector<128x128xbf16>, vector<128x128xbf16>, vector<128x128xf32> -> vector<128x128xf32>
    %58 = arith.addf %53, %57 : vector<128x128xf32>
    %c2 = arith.constant 2 : index
    %c0_27 = arith.constant 0 : index
    %59 = vector.load %arg8[%c2, %c0_27] : memref<146x128xbf16, #tpu.memory_space<vmem>>, vector<128x128xbf16>
    %cst_28 = arith.constant 0.000000e+00 : bf16
    %60 = vector.broadcast %cst_28 : bf16 to vector<128x128xbf16>
    %61 = arith.select %45, %59, %60 : vector<128x128xi1>, vector<128x128xbf16>
    %c2_29 = arith.constant 2 : index
    %c0_30 = arith.constant 0 : index
    %c0_31 = arith.constant 0 : index
    %62 = vector.load %arg5[%c2_29, %c0_30, %c0_31] : memref<9x128x128xbf16, #tpu.memory_space<vmem>>, vector<1x128x128xbf16>
    %63 = vector.shape_cast %62 : vector<1x128x128xbf16> to vector<128x128xbf16>
    %cst_32 = arith.constant dense<0.000000e+00> : vector<128x128xf32>
    %64 = tpu.matmul %61, %63, %cst_32 {dimension_numbers = #tpu.dot_dimension_numbers<[1], [0], [0], [1], [0, 0, 1, 1], [], []>} : vector<128x128xbf16>, vector<128x128xbf16>, vector<128x128xf32> -> vector<128x128xf32>
    %65 = arith.addf %58, %64 : vector<128x128xf32>
    %c8 = arith.constant 8 : index
    %c0_33 = arith.constant 0 : index
    %66 = vector.load %arg8[%c8, %c0_33] : memref<146x128xbf16, #tpu.memory_space<vmem>>, vector<128x128xbf16>
    %cst_34 = arith.constant 0.000000e+00 : bf16
    %67 = vector.broadcast %cst_34 : bf16 to vector<128x128xbf16>
    %68 = arith.select %43, %66, %67 : vector<128x128xi1>, vector<128x128xbf16>
    %c3 = arith.constant 3 : index
    %c0_35 = arith.constant 0 : index
    %c0_36 = arith.constant 0 : index
    %69 = vector.load %arg5[%c3, %c0_35, %c0_36] : memref<9x128x128xbf16, #tpu.memory_space<vmem>>, vector<1x128x128xbf16>
    %70 = vector.shape_cast %69 : vector<1x128x128xbf16> to vector<128x128xbf16>
    %cst_37 = arith.constant dense<0.000000e+00> : vector<128x128xf32>
    %71 = tpu.matmul %68, %70, %cst_37 {dimension_numbers = #tpu.dot_dimension_numbers<[1], [0], [0], [1], [0, 0, 1, 1], [], []>} : vector<128x128xbf16>, vector<128x128xbf16>, vector<128x128xf32> -> vector<128x128xf32>
    %72 = arith.addf %65, %71 : vector<128x128xf32>
    %c9 = arith.constant 9 : index
    %c0_38 = arith.constant 0 : index
    %73 = vector.load %arg8[%c9, %c0_38] : memref<146x128xbf16, #tpu.memory_space<vmem>>, vector<128x128xbf16>
    %c4 = arith.constant 4 : index
    %c0_39 = arith.constant 0 : index
    %c0_40 = arith.constant 0 : index
    %74 = vector.load %arg5[%c4, %c0_39, %c0_40] : memref<9x128x128xbf16, #tpu.memory_space<vmem>>, vector<1x128x128xbf16>
    %75 = vector.shape_cast %74 : vector<1x128x128xbf16> to vector<128x128xbf16>
    %cst_41 = arith.constant dense<0.000000e+00> : vector<128x128xf32>
    %76 = tpu.matmul %73, %75, %cst_41 {dimension_numbers = #tpu.dot_dimension_numbers<[1], [0], [0], [1], [0, 0, 1, 1], [], []>} : vector<128x128xbf16>, vector<128x128xbf16>, vector<128x128xf32> -> vector<128x128xf32>
    %77 = arith.addf %72, %76 : vector<128x128xf32>
    %c10 = arith.constant 10 : index
    %c0_42 = arith.constant 0 : index
    %78 = vector.load %arg8[%c10, %c0_42] : memref<146x128xbf16, #tpu.memory_space<vmem>>, vector<128x128xbf16>
    %cst_43 = arith.constant 0.000000e+00 : bf16
    %79 = vector.broadcast %cst_43 : bf16 to vector<128x128xbf16>
    %80 = arith.select %45, %78, %79 : vector<128x128xi1>, vector<128x128xbf16>
    %c5 = arith.constant 5 : index
    %c0_44 = arith.constant 0 : index
    %c0_45 = arith.constant 0 : index
    %81 = vector.load %arg5[%c5, %c0_44, %c0_45] : memref<9x128x128xbf16, #tpu.memory_space<vmem>>, vector<1x128x128xbf16>
    %82 = vector.shape_cast %81 : vector<1x128x128xbf16> to vector<128x128xbf16>
    %cst_46 = arith.constant dense<0.000000e+00> : vector<128x128xf32>
    %83 = tpu.matmul %80, %82, %cst_46 {dimension_numbers = #tpu.dot_dimension_numbers<[1], [0], [0], [1], [0, 0, 1, 1], [], []>} : vector<128x128xbf16>, vector<128x128xbf16>, vector<128x128xf32> -> vector<128x128xf32>
    %84 = arith.addf %77, %83 : vector<128x128xf32>
    %c16 = arith.constant 16 : index
    %c0_47 = arith.constant 0 : index
    %85 = vector.load %arg8[%c16, %c0_47] : memref<146x128xbf16, #tpu.memory_space<vmem>>, vector<128x128xbf16>
    %cst_48 = arith.constant 0.000000e+00 : bf16
    %86 = vector.broadcast %cst_48 : bf16 to vector<128x128xbf16>
    %87 = arith.select %43, %85, %86 : vector<128x128xi1>, vector<128x128xbf16>
    %c6 = arith.constant 6 : index
    %c0_49 = arith.constant 0 : index
    %c0_50 = arith.constant 0 : index
    %88 = vector.load %arg5[%c6, %c0_49, %c0_50] : memref<9x128x128xbf16, #tpu.memory_space<vmem>>, vector<1x128x128xbf16>
    %89 = vector.shape_cast %88 : vector<1x128x128xbf16> to vector<128x128xbf16>
    %cst_51 = arith.constant dense<0.000000e+00> : vector<128x128xf32>
    %90 = tpu.matmul %87, %89, %cst_51 {dimension_numbers = #tpu.dot_dimension_numbers<[1], [0], [0], [1], [0, 0, 1, 1], [], []>} : vector<128x128xbf16>, vector<128x128xbf16>, vector<128x128xf32> -> vector<128x128xf32>
    %91 = arith.addf %84, %90 : vector<128x128xf32>
    %c17 = arith.constant 17 : index
    %c0_52 = arith.constant 0 : index
    %92 = vector.load %arg8[%c17, %c0_52] : memref<146x128xbf16, #tpu.memory_space<vmem>>, vector<128x128xbf16>
    %c7 = arith.constant 7 : index
    %c0_53 = arith.constant 0 : index
    %c0_54 = arith.constant 0 : index
    %93 = vector.load %arg5[%c7, %c0_53, %c0_54] : memref<9x128x128xbf16, #tpu.memory_space<vmem>>, vector<1x128x128xbf16>
    %94 = vector.shape_cast %93 : vector<1x128x128xbf16> to vector<128x128xbf16>
    %cst_55 = arith.constant dense<0.000000e+00> : vector<128x128xf32>
    %95 = tpu.matmul %92, %94, %cst_55 {dimension_numbers = #tpu.dot_dimension_numbers<[1], [0], [0], [1], [0, 0, 1, 1], [], []>} : vector<128x128xbf16>, vector<128x128xbf16>, vector<128x128xf32> -> vector<128x128xf32>
    %96 = arith.addf %91, %95 : vector<128x128xf32>
    %c18 = arith.constant 18 : index
    %c0_56 = arith.constant 0 : index
    %97 = vector.load %arg8[%c18, %c0_56] : memref<146x128xbf16, #tpu.memory_space<vmem>>, vector<128x128xbf16>
    %cst_57 = arith.constant 0.000000e+00 : bf16
    %98 = vector.broadcast %cst_57 : bf16 to vector<128x128xbf16>
    %99 = arith.select %45, %97, %98 : vector<128x128xi1>, vector<128x128xbf16>
    %c8_58 = arith.constant 8 : index
    %c0_59 = arith.constant 0 : index
    %c0_60 = arith.constant 0 : index
    %100 = vector.load %arg5[%c8_58, %c0_59, %c0_60] : memref<9x128x128xbf16, #tpu.memory_space<vmem>>, vector<1x128x128xbf16>
    %101 = vector.shape_cast %100 : vector<1x128x128xbf16> to vector<128x128xbf16>
    %cst_61 = arith.constant dense<0.000000e+00> : vector<128x128xf32>
    %102 = tpu.matmul %99, %101, %cst_61 {dimension_numbers = #tpu.dot_dimension_numbers<[1], [0], [0], [1], [0, 0, 1, 1], [], []>} : vector<128x128xbf16>, vector<128x128xbf16>, vector<128x128xf32> -> vector<128x128xf32>
    %103 = arith.addf %96, %102 : vector<128x128xf32>
    %c0_62 = arith.constant 0 : index
    %c0_63 = arith.constant 0 : index
    %104 = vector.load %arg6[%c0_62, %c0_63] : memref<1x128xf32, #tpu.memory_space<vmem>>, vector<1x128xf32>
    %105 = vector.broadcast %104 : vector<1x128xf32> to vector<128x128xf32>
    %106 = arith.addf %103, %105 : vector<128x128xf32>
    %cst_64 = arith.constant 0.000000e+00 : f32
    %107 = vector.broadcast %cst_64 : f32 to vector<128x128xf32>
    %108 = arith.maximumf %106, %107 : vector<128x128xf32>
    %109 = arith.truncf %108 : vector<128x128xf32> to vector<128x128xbf16>
    %c0_65 = arith.constant 0 : index
    %c0_66 = arith.constant 0 : index
    %c0_67 = arith.constant 0 : index
    %110 = vector.load %arg7[%c0_65, %c0_66, %c0_67] : memref<1x128x128xbf16, #tpu.memory_space<vmem>>, vector<1x128x128xbf16>
    %111 = vector.shape_cast %110 : vector<1x128x128xbf16> to vector<128x128xbf16>
    %112 = vector.shape_cast %109 : vector<128x128xbf16> to vector<1x128x128xbf16>
    tpu.vector_store %arg7[%c0_65, %c0_66, %c0_67], %112 {strides = array<i32>} : memref<1x128x128xbf16, #tpu.memory_space<vmem>>, vector<1x128x128xbf16>,
    return
  }
  func.func @transform_0(%arg0: i32, %arg1: i32) -> (i32, i32, i32) {
    %c0_i32 = arith.constant 0 : i32
    %c0_i32_0 = arith.constant 0 : i32
    %c0_i32_1 = arith.constant 0 : i32
    return %arg0, %c0_i32, %c0_i32_0 : i32, i32, i32
  }
  func.func @transform_1(%arg0: i32, %arg1: i32) -> (i32, i32) {
    %c0_i32 = arith.constant 0 : i32
    %c0_i32_0 = arith.constant 0 : i32
    %c0_i32_1 = arith.constant 0 : i32
    return %c0_i32, %c0_i32_0 : i32, i32
  }
  func.func @transform_2(%arg0: i32, %arg1: i32) -> (i32, i32) {
    %c0_i32 = arith.constant 0 : i32
    %c0_i32_0 = arith.constant 0 : i32
    %c0_i32_1 = arith.constant 0 : i32
    return %c0_i32, %c0_i32_0 : i32, i32
  }
  func.func @transform_3(%arg0: i32, %arg1: i32) -> (i32, i32, i32) {
    %c0_i32 = arith.constant 0 : i32
    %c0_i32_0 = arith.constant 0 : i32
    %c0_i32_1 = arith.constant 0 : i32
    %c0_i32_2 = arith.constant 0 : i32
    return %c0_i32, %c0_i32_0, %c0_i32_1 : i32, i32, i32
  }
  func.func @transform_4(%arg0: i32, %arg1: i32) -> (i32, i32) {
    %c0_i32 = arith.constant 0 : i32
    %c0_i32_0 = arith.constant 0 : i32
    %c0_i32_1 = arith.constant 0 : i32
    return %c0_i32, %c0_i32_0 : i32, i32
  }
  func.func @transform_5(%arg0: i32, %arg1: i32) -> (i32, i32, i32) {
    %c0_i32 = arith.constant 0 : i32
    %c0_i32_0 = arith.constant 0 : i32
    return %arg0, %arg1, %c0_i32 : i32, i32, i32
  }
}

module attributes {stable_mosaic.version = 11 : i64} {
  func.func @_rb_tail_kernel(%arg0: i32, %arg1: i32, %arg2: memref<1x128x128xbf16, #tpu.memory_space<vmem>>, %arg3: memref<1x128x128xbf16, #tpu.memory_space<vmem>>, %arg4: memref<1x1x128xf32, #tpu.memory_space<vmem>>, %arg5: memref<128x128xbf16, #tpu.memory_space<vmem>>, %arg6: memref<1x128xf32, #tpu.memory_space<vmem>>, %arg7: memref<128x128xbf16, #tpu.memory_space<vmem>>, %arg8: memref<1x128xf32, #tpu.memory_space<vmem>>, %arg9: memref<128x128xbf16, #tpu.memory_space<vmem>>, %arg10: memref<1x128xf32, #tpu.memory_space<vmem>>, %arg11: memref<128x6xbf16, #tpu.memory_space<vmem>>, %arg12: memref<1x6xf32, #tpu.memory_space<vmem>>, %arg13: memref<1x128x6xf32, #tpu.memory_space<vmem>>) attributes {dimension_semantics = [#tpu.dimension_semantics<parallel>, #tpu.dimension_semantics<parallel>], iteration_bounds = array<i64: 2, 1>, scalar_prefetch = 0 : i64, scratch_operands = 0 : i64, tpu.core_type = #tpu.core_type<tc>, window_params = [{transform_indices = @transform_0, window_bounds = array<i64: 1, 128, 128>}, {transform_indices = @transform_1, window_bounds = array<i64: 1, 128, 128>}, {transform_indices = @transform_2, window_bounds = array<i64: 1, 1, 128>}, {pipeline_mode = #tpu.pipeline_mode<synchronous>, transform_indices = @transform_3, window_bounds = array<i64: 128, 128>}, {pipeline_mode = #tpu.pipeline_mode<synchronous>, transform_indices = @transform_4, window_bounds = array<i64: 1, 128>}, {pipeline_mode = #tpu.pipeline_mode<synchronous>, transform_indices = @transform_5, window_bounds = array<i64: 128, 128>}, {pipeline_mode = #tpu.pipeline_mode<synchronous>, transform_indices = @transform_6, window_bounds = array<i64: 1, 128>}, {pipeline_mode = #tpu.pipeline_mode<synchronous>, transform_indices = @transform_7, window_bounds = array<i64: 128, 128>}, {pipeline_mode = #tpu.pipeline_mode<synchronous>, transform_indices = @transform_8, window_bounds = array<i64: 1, 128>}, {pipeline_mode = #tpu.pipeline_mode<synchronous>, transform_indices = @transform_9, window_bounds = array<i64: 128, 6>}, {pipeline_mode = #tpu.pipeline_mode<synchronous>, transform_indices = @transform_10, window_bounds = array<i64: 1, 6>}, {transform_indices = @transform_11, window_bounds = array<i64: 1, 128, 6>}]} {
    %c0 = arith.constant 0 : index
    %c0_0 = arith.constant 0 : index
    %c0_1 = arith.constant 0 : index
    %0 = vector.load %arg2[%c0, %c0_0, %c0_1] : memref<1x128x128xbf16, #tpu.memory_space<vmem>>, vector<1x128x128xbf16>
    %1 = vector.shape_cast %0 : vector<1x128x128xbf16> to vector<128x128xbf16>
    %c0_2 = arith.constant 0 : index
    %c0_3 = arith.constant 0 : index
    %2 = vector.load %arg5[%c0_2, %c0_3] : memref<128x128xbf16, #tpu.memory_space<vmem>>, vector<128x128xbf16>
    %cst = arith.constant dense<0.000000e+00> : vector<128x128xf32>
    %3 = tpu.matmul %1, %2, %cst {dimension_numbers = #tpu.dot_dimension_numbers<[1], [0], [0], [1], [0, 0, 1, 1], [], []>} : vector<128x128xbf16>, vector<128x128xbf16>, vector<128x128xf32> -> vector<128x128xf32>
    %c0_4 = arith.constant 0 : index
    %c0_5 = arith.constant 0 : index
    %4 = vector.load %arg6[%c0_4, %c0_5] : memref<1x128xf32, #tpu.memory_space<vmem>>, vector<1x128xf32>
    %5 = vector.broadcast %4 : vector<1x128xf32> to vector<128x128xf32>
    %6 = arith.addf %3, %5 : vector<128x128xf32>
    %cst_6 = arith.constant 0.000000e+00 : f32
    %7 = vector.broadcast %cst_6 : f32 to vector<128x128xf32>
    %8 = arith.maximumf %6, %7 : vector<128x128xf32>
    %9 = arith.truncf %8 : vector<128x128xf32> to vector<128x128xbf16>
    %c0_7 = arith.constant 0 : index
    %c0_8 = arith.constant 0 : index
    %10 = vector.load %arg7[%c0_7, %c0_8] : memref<128x128xbf16, #tpu.memory_space<vmem>>, vector<128x128xbf16>
    %cst_9 = arith.constant dense<0.000000e+00> : vector<128x128xf32>
    %11 = tpu.matmul %9, %10, %cst_9 {dimension_numbers = #tpu.dot_dimension_numbers<[1], [0], [0], [1], [0, 0, 1, 1], [], []>} : vector<128x128xbf16>, vector<128x128xbf16>, vector<128x128xf32> -> vector<128x128xf32>
    %c0_10 = arith.constant 0 : index
    %c0_11 = arith.constant 0 : index
    %12 = vector.load %arg8[%c0_10, %c0_11] : memref<1x128xf32, #tpu.memory_space<vmem>>, vector<1x128xf32>
    %13 = vector.broadcast %12 : vector<1x128xf32> to vector<128x128xf32>
    %14 = arith.addf %11, %13 : vector<128x128xf32>
    %c0_12 = arith.constant 0 : index
    %c0_13 = arith.constant 0 : index
    %c0_14 = arith.constant 0 : index
    %15 = vector.load %arg4[%c0_12, %c0_13, %c0_14] : memref<1x1x128xf32, #tpu.memory_space<vmem>>, vector<1x1x128xf32>
    %16 = vector.shape_cast %15 : vector<1x1x128xf32> to vector<1x128xf32>
    %17 = vector.broadcast %16 : vector<1x128xf32> to vector<128x128xf32>
    %18 = arith.mulf %14, %17 : vector<128x128xf32>
    %19 = arith.extf %1 : vector<128x128xbf16> to vector<128x128xf32>
    %20 = arith.addf %18, %19 : vector<128x128xf32>
    %21 = arith.truncf %20 : vector<128x128xf32> to vector<128x128xbf16>
    %c0_15 = arith.constant 0 : index
    %c0_16 = arith.constant 0 : index
    %22 = vector.load %arg9[%c0_15, %c0_16] : memref<128x128xbf16, #tpu.memory_space<vmem>>, vector<128x128xbf16>
    %cst_17 = arith.constant dense<0.000000e+00> : vector<128x128xf32>
    %23 = tpu.matmul %21, %22, %cst_17 {dimension_numbers = #tpu.dot_dimension_numbers<[1], [0], [0], [1], [0, 0, 1, 1], [], []>} : vector<128x128xbf16>, vector<128x128xbf16>, vector<128x128xf32> -> vector<128x128xf32>
    %c0_18 = arith.constant 0 : index
    %c0_19 = arith.constant 0 : index
    %24 = vector.load %arg10[%c0_18, %c0_19] : memref<1x128xf32, #tpu.memory_space<vmem>>, vector<1x128xf32>
    %25 = vector.broadcast %24 : vector<1x128xf32> to vector<128x128xf32>
    %26 = arith.addf %23, %25 : vector<128x128xf32>
    %c0_20 = arith.constant 0 : index
    %c0_21 = arith.constant 0 : index
    %c0_22 = arith.constant 0 : index
    %27 = vector.load %arg3[%c0_20, %c0_21, %c0_22] : memref<1x128x128xbf16, #tpu.memory_space<vmem>>, vector<1x128x128xbf16>
    %28 = vector.shape_cast %27 : vector<1x128x128xbf16> to vector<128x128xbf16>
    %29 = arith.extf %28 : vector<128x128xbf16> to vector<128x128xf32>
    %30 = arith.addf %26, %29 : vector<128x128xf32>
    %31 = arith.truncf %30 : vector<128x128xf32> to vector<128x128xbf16>
    %c0_23 = arith.constant 0 : index
    %c0_24 = arith.constant 0 : index
    %32 = vector.load %arg11[%c0_23, %c0_24] : memref<128x6xbf16, #tpu.memory_space<vmem>>, vector<128x6xbf16>
    %cst_25 = arith.constant dense<0.000000e+00> : vector<128x6xf32>
    %33 = tpu.matmul %31, %32, %cst_25 {dimension_numbers = #tpu.dot_dimension_numbers<[1], [0], [0], [1], [0, 0, 1, 1], [], []>} : vector<128x128xbf16>, vector<128x6xbf16>, vector<128x6xf32> -> vector<128x6xf32>
    %c0_26 = arith.constant 0 : index
    %c0_27 = arith.constant 0 : index
    %34 = vector.load %arg12[%c0_26, %c0_27] : memref<1x6xf32, #tpu.memory_space<vmem>>, vector<1x6xf32>
    %35 = vector.broadcast %34 : vector<1x6xf32> to vector<128x6xf32>
    %36 = arith.addf %33, %35 : vector<128x6xf32>
    %c0_28 = arith.constant 0 : index
    %c0_29 = arith.constant 0 : index
    %c0_30 = arith.constant 0 : index
    %37 = vector.load %arg13[%c0_28, %c0_29, %c0_30] : memref<1x128x6xf32, #tpu.memory_space<vmem>>, vector<1x128x6xf32>
    %38 = vector.shape_cast %37 : vector<1x128x6xf32> to vector<128x6xf32>
    %39 = vector.shape_cast %36 : vector<128x6xf32> to vector<1x128x6xf32>
    tpu.vector_store %arg13[%c0_28, %c0_29, %c0_30], %39 {strides = array<i32>} : memref<1x128x6xf32, #tpu.memory_space<vmem>>, vector<1x128x6xf32>,
    return
  }
  func.func @transform_0(%arg0: i32, %arg1: i32) -> (i32, i32, i32) {
    %c0_i32 = arith.constant 0 : i32
    %c0_i32_0 = arith.constant 0 : i32
    return %arg0, %arg1, %c0_i32 : i32, i32, i32
  }
  func.func @transform_1(%arg0: i32, %arg1: i32) -> (i32, i32, i32) {
    %c0_i32 = arith.constant 0 : i32
    %c0_i32_0 = arith.constant 0 : i32
    return %arg0, %arg1, %c0_i32 : i32, i32, i32
  }
  func.func @transform_2(%arg0: i32, %arg1: i32) -> (i32, i32, i32) {
    %c0_i32 = arith.constant 0 : i32
    %c0_i32_0 = arith.constant 0 : i32
    %c0_i32_1 = arith.constant 0 : i32
    return %arg0, %c0_i32, %c0_i32_0 : i32, i32, i32
  }
  func.func @transform_3(%arg0: i32, %arg1: i32) -> (i32, i32) {
    %c0_i32 = arith.constant 0 : i32
    %c0_i32_0 = arith.constant 0 : i32
    %c0_i32_1 = arith.constant 0 : i32
    return %c0_i32, %c0_i32_0 : i32, i32
  }
  func.func @transform_4(%arg0: i32, %arg1: i32) -> (i32, i32) {
    %c0_i32 = arith.constant 0 : i32
    %c0_i32_0 = arith.constant 0 : i32
    %c0_i32_1 = arith.constant 0 : i32
    return %c0_i32, %c0_i32_0 : i32, i32
  }
  func.func @transform_5(%arg0: i32, %arg1: i32) -> (i32, i32) {
    %c0_i32 = arith.constant 0 : i32
    %c0_i32_0 = arith.constant 0 : i32
    %c0_i32_1 = arith.constant 0 : i32
    return %c0_i32, %c0_i32_0 : i32, i32
  }
  func.func @transform_6(%arg0: i32, %arg1: i32) -> (i32, i32) {
    %c0_i32 = arith.constant 0 : i32
    %c0_i32_0 = arith.constant 0 : i32
    %c0_i32_1 = arith.constant 0 : i32
    return %c0_i32, %c0_i32_0 : i32, i32
  }
  func.func @transform_7(%arg0: i32, %arg1: i32) -> (i32, i32) {
    %c0_i32 = arith.constant 0 : i32
    %c0_i32_0 = arith.constant 0 : i32
    %c0_i32_1 = arith.constant 0 : i32
    return %c0_i32, %c0_i32_0 : i32, i32
  }
  func.func @transform_8(%arg0: i32, %arg1: i32) -> (i32, i32) {
    %c0_i32 = arith.constant 0 : i32
    %c0_i32_0 = arith.constant 0 : i32
    %c0_i32_1 = arith.constant 0 : i32
    return %c0_i32, %c0_i32_0 : i32, i32
  }
  func.func @transform_9(%arg0: i32, %arg1: i32) -> (i32, i32) {
    %c0_i32 = arith.constant 0 : i32
    %c0_i32_0 = arith.constant 0 : i32
    %c0_i32_1 = arith.constant 0 : i32
    return %c0_i32, %c0_i32_0 : i32, i32
  }
  func.func @transform_10(%arg0: i32, %arg1: i32) -> (i32, i32) {
    %c0_i32 = arith.constant 0 : i32
    %c0_i32_0 = arith.constant 0 : i32
    %c0_i32_1 = arith.constant 0 : i32
    return %c0_i32, %c0_i32_0 : i32, i32
  }
  func.func @transform_11(%arg0: i32, %arg1: i32) -> (i32, i32, i32) {
    %c0_i32 = arith.constant 0 : i32
    %c0_i32_0 = arith.constant 0 : i32
    return %arg0, %arg1, %c0_i32 : i32, i32, i32
  }
}

module attributes {stable_mosaic.version = 11 : i64} {
  func.func @_rb_fused_kernel(%arg0: i32, %arg1: i32, %arg2: memref<1x128x128xbf16, #tpu.memory_space<vmem>>, %arg3: memref<1x1x128xf32, #tpu.memory_space<vmem>>, %arg4: memref<128x128xbf16, #tpu.memory_space<vmem>>, %arg5: memref<1x128xf32, #tpu.memory_space<vmem>>, %arg6: memref<128x128xbf16, #tpu.memory_space<vmem>>, %arg7: memref<1x128xf32, #tpu.memory_space<vmem>>, %arg8: memref<128x128xbf16, #tpu.memory_space<vmem>>, %arg9: memref<1x128xf32, #tpu.memory_space<vmem>>, %arg10: memref<128x128xbf16, #tpu.memory_space<vmem>>, %arg11: memref<1x128xf32, #tpu.memory_space<vmem>>, %arg12: memref<1x128x128xbf16, #tpu.memory_space<vmem>>, %arg13: memref<1x1x128xf32, #tpu.memory_space<vmem>>) attributes {dimension_semantics = [#tpu.dimension_semantics<parallel>, #tpu.dimension_semantics<arbitrary>], iteration_bounds = array<i64: 2, 1>, scalar_prefetch = 0 : i64, scratch_operands = 0 : i64, tpu.core_type = #tpu.core_type<tc>, window_params = [{transform_indices = @transform_0, window_bounds = array<i64: 1, 128, 128>}, {transform_indices = @transform_1, window_bounds = array<i64: 1, 1, 128>}, {pipeline_mode = #tpu.pipeline_mode<synchronous>, transform_indices = @transform_2, window_bounds = array<i64: 128, 128>}, {pipeline_mode = #tpu.pipeline_mode<synchronous>, transform_indices = @transform_3, window_bounds = array<i64: 1, 128>}, {pipeline_mode = #tpu.pipeline_mode<synchronous>, transform_indices = @transform_4, window_bounds = array<i64: 128, 128>}, {pipeline_mode = #tpu.pipeline_mode<synchronous>, transform_indices = @transform_5, window_bounds = array<i64: 1, 128>}, {pipeline_mode = #tpu.pipeline_mode<synchronous>, transform_indices = @transform_6, window_bounds = array<i64: 128, 128>}, {pipeline_mode = #tpu.pipeline_mode<synchronous>, transform_indices = @transform_7, window_bounds = array<i64: 1, 128>}, {pipeline_mode = #tpu.pipeline_mode<synchronous>, transform_indices = @transform_8, window_bounds = array<i64: 128, 128>}, {pipeline_mode = #tpu.pipeline_mode<synchronous>, transform_indices = @transform_9, window_bounds = array<i64: 1, 128>}, {transform_indices = @transform_10, window_bounds = array<i64: 1, 128, 128>}, {transform_indices = @transform_11, window_bounds = array<i64: 1, 1, 128>}]} {
    %c0_i32 = arith.constant 0 : i32
    %0 = arith.cmpi eq, %arg1, %c0_i32 : i32
    %1 = arith.extui %0 : i1 to i32
    %c0_i32_0 = arith.constant 0 : i32
    %2 = arith.cmpi ne, %1, %c0_i32_0 : i32
    scf.if %2 {
      %cst_37 = arith.constant 0.000000e+00 : f32
      %49 = vector.broadcast %cst_37 : f32 to vector<1x1x128xf32>
      %c0_38 = arith.constant 0 : index
      %c0_39 = arith.constant 0 : index
      %c0_40 = arith.constant 0 : index
      %50 = vector.load %arg13[%c0_38, %c0_39, %c0_40] : memref<1x1x128xf32, #tpu.memory_space<vmem>>, vector<1x1x128xf32>
      tpu.vector_store %arg13[%c0_38, %c0_39, %c0_40], %49 {strides = array<i32>} : memref<1x1x128xf32, #tpu.memory_space<vmem>>, vector<1x1x128xf32>,
    } else {
    }
    %c0 = arith.constant 0 : index
    %c0_1 = arith.constant 0 : index
    %c0_2 = arith.constant 0 : index
    %3 = vector.load %arg2[%c0, %c0_1, %c0_2] : memref<1x128x128xbf16, #tpu.memory_space<vmem>>, vector<1x128x128xbf16>
    %4 = vector.shape_cast %3 : vector<1x128x128xbf16> to vector<128x128xbf16>
    %c0_3 = arith.constant 0 : index
    %c0_4 = arith.constant 0 : index
    %5 = vector.load %arg4[%c0_3, %c0_4] : memref<128x128xbf16, #tpu.memory_space<vmem>>, vector<128x128xbf16>
    %cst = arith.constant dense<0.000000e+00> : vector<128x128xf32>
    %6 = tpu.matmul %4, %5, %cst {dimension_numbers = #tpu.dot_dimension_numbers<[1], [0], [0], [1], [0, 0, 1, 1], [], []>} : vector<128x128xbf16>, vector<128x128xbf16>, vector<128x128xf32> -> vector<128x128xf32>
    %c0_5 = arith.constant 0 : index
    %c0_6 = arith.constant 0 : index
    %7 = vector.load %arg5[%c0_5, %c0_6] : memref<1x128xf32, #tpu.memory_space<vmem>>, vector<1x128xf32>
    %8 = vector.broadcast %7 : vector<1x128xf32> to vector<128x128xf32>
    %9 = arith.addf %6, %8 : vector<128x128xf32>
    %cst_7 = arith.constant 0.000000e+00 : f32
    %10 = vector.broadcast %cst_7 : f32 to vector<128x128xf32>
    %11 = arith.maximumf %9, %10 : vector<128x128xf32>
    %12 = arith.truncf %11 : vector<128x128xf32> to vector<128x128xbf16>
    %c0_8 = arith.constant 0 : index
    %c0_9 = arith.constant 0 : index
    %13 = vector.load %arg6[%c0_8, %c0_9] : memref<128x128xbf16, #tpu.memory_space<vmem>>, vector<128x128xbf16>
    %cst_10 = arith.constant dense<0.000000e+00> : vector<128x128xf32>
    %14 = tpu.matmul %12, %13, %cst_10 {dimension_numbers = #tpu.dot_dimension_numbers<[1], [0], [0], [1], [0, 0, 1, 1], [], []>} : vector<128x128xbf16>, vector<128x128xbf16>, vector<128x128xf32> -> vector<128x128xf32>
    %c0_11 = arith.constant 0 : index
    %c0_12 = arith.constant 0 : index
    %15 = vector.load %arg7[%c0_11, %c0_12] : memref<1x128xf32, #tpu.memory_space<vmem>>, vector<1x128xf32>
    %16 = vector.broadcast %15 : vector<1x128xf32> to vector<128x128xf32>
    %17 = arith.addf %14, %16 : vector<128x128xf32>
    %c0_13 = arith.constant 0 : index
    %c0_14 = arith.constant 0 : index
    %c0_15 = arith.constant 0 : index
    %18 = vector.load %arg3[%c0_13, %c0_14, %c0_15] : memref<1x1x128xf32, #tpu.memory_space<vmem>>, vector<1x1x128xf32>
    %19 = vector.shape_cast %18 : vector<1x1x128xf32> to vector<1x128xf32>
    %20 = vector.broadcast %19 : vector<1x128xf32> to vector<128x128xf32>
    %21 = arith.mulf %17, %20 : vector<128x128xf32>
    %22 = arith.extf %4 : vector<128x128xbf16> to vector<128x128xf32>
    %23 = arith.addf %21, %22 : vector<128x128xf32>
    %24 = arith.truncf %23 : vector<128x128xf32> to vector<128x128xbf16>
    %c0_16 = arith.constant 0 : index
    %c0_17 = arith.constant 0 : index
    %c0_18 = arith.constant 0 : index
    %25 = vector.load %arg12[%c0_16, %c0_17, %c0_18] : memref<1x128x128xbf16, #tpu.memory_space<vmem>>, vector<1x128x128xbf16>
    %26 = vector.shape_cast %25 : vector<1x128x128xbf16> to vector<128x128xbf16>
    %27 = vector.shape_cast %24 : vector<128x128xbf16> to vector<1x128x128xbf16>
    tpu.vector_store %arg12[%c0_16, %c0_17, %c0_18], %27 {strides = array<i32>} : memref<1x128x128xbf16, #tpu.memory_space<vmem>>, vector<1x128x128xbf16>,
    %c0_19 = arith.constant 0 : index
    %c0_20 = arith.constant 0 : index
    %28 = vector.load %arg8[%c0_19, %c0_20] : memref<128x128xbf16, #tpu.memory_space<vmem>>, vector<128x128xbf16>
    %cst_21 = arith.constant dense<0.000000e+00> : vector<128x128xf32>
    %29 = tpu.matmul %24, %28, %cst_21 {dimension_numbers = #tpu.dot_dimension_numbers<[1], [0], [0], [1], [0, 0, 1, 1], [], []>} : vector<128x128xbf16>, vector<128x128xbf16>, vector<128x128xf32> -> vector<128x128xf32>
    %c0_22 = arith.constant 0 : index
    %c0_23 = arith.constant 0 : index
    %30 = vector.load %arg9[%c0_22, %c0_23] : memref<1x128xf32, #tpu.memory_space<vmem>>, vector<1x128xf32>
    %31 = vector.broadcast %30 : vector<1x128xf32> to vector<128x128xf32>
    %32 = arith.addf %29, %31 : vector<128x128xf32>
    %cst_24 = arith.constant 0.000000e+00 : f32
    %33 = vector.broadcast %cst_24 : f32 to vector<128x128xf32>
    %34 = arith.maximumf %32, %33 : vector<128x128xf32>
    %35 = arith.truncf %34 : vector<128x128xf32> to vector<128x128xbf16>
    %c0_25 = arith.constant 0 : index
    %c0_26 = arith.constant 0 : index
    %36 = vector.load %arg10[%c0_25, %c0_26] : memref<128x128xbf16, #tpu.memory_space<vmem>>, vector<128x128xbf16>
    %cst_27 = arith.constant dense<0.000000e+00> : vector<128x128xf32>
    %37 = tpu.matmul %35, %36, %cst_27 {dimension_numbers = #tpu.dot_dimension_numbers<[1], [0], [0], [1], [0, 0, 1, 1], [], []>} : vector<128x128xbf16>, vector<128x128xbf16>, vector<128x128xf32> -> vector<128x128xf32>
    %c0_28 = arith.constant 0 : index
    %c0_29 = arith.constant 0 : index
    %38 = vector.load %arg11[%c0_28, %c0_29] : memref<1x128xf32, #tpu.memory_space<vmem>>, vector<1x128xf32>
    %39 = vector.broadcast %38 : vector<1x128xf32> to vector<128x128xf32>
    %40 = arith.addf %37, %39 : vector<128x128xf32>
    %c0_30 = arith.constant 0 : index
    %c0_31 = arith.constant 0 : index
    %c0_32 = arith.constant 0 : index
    %41 = vector.load %arg13[%c0_30, %c0_31, %c0_32] : memref<1x1x128xf32, #tpu.memory_space<vmem>>, vector<1x1x128xf32>
    %42 = vector.shape_cast %41 : vector<1x1x128xf32> to vector<1x128xf32>
    %cst_33 = arith.constant dense<0.000000e+00> : vector<128xf32>
    %43 = vector.multi_reduction <add>, %40, %cst_33 [0] : vector<128x128xf32> to vector<128xf32>
    %44 = vector.shape_cast %43 : vector<128xf32> to vector<1x128xf32>
    %45 = arith.addf %42, %44 : vector<1x128xf32>
    %c0_34 = arith.constant 0 : index
    %c0_35 = arith.constant 0 : index
    %c0_36 = arith.constant 0 : index
    %46 = vector.load %arg13[%c0_34, %c0_35, %c0_36] : memref<1x1x128xf32, #tpu.memory_space<vmem>>, vector<1x1x128xf32>
    %47 = vector.shape_cast %46 : vector<1x1x128xf32> to vector<1x128xf32>
    %48 = vector.shape_cast %45 : vector<1x128xf32> to vector<1x1x128xf32>
    tpu.vector_store %arg13[%c0_34, %c0_35, %c0_36], %48 {strides = array<i32>} : memref<1x1x128xf32, #tpu.memory_space<vmem>>, vector<1x1x128xf32>,
    return
  }
  func.func @transform_0(%arg0: i32, %arg1: i32) -> (i32, i32, i32) {
    %c0_i32 = arith.constant 0 : i32
    %c0_i32_0 = arith.constant 0 : i32
    return %arg0, %arg1, %c0_i32 : i32, i32, i32
  }
  func.func @transform_1(%arg0: i32, %arg1: i32) -> (i32, i32, i32) {
    %c0_i32 = arith.constant 0 : i32
    %c0_i32_0 = arith.constant 0 : i32
    %c0_i32_1 = arith.constant 0 : i32
    return %arg0, %c0_i32, %c0_i32_0 : i32, i32, i32
  }
  func.func @transform_2(%arg0: i32, %arg1: i32) -> (i32, i32) {
    %c0_i32 = arith.constant 0 : i32
    %c0_i32_0 = arith.constant 0 : i32
    %c0_i32_1 = arith.constant 0 : i32
    return %c0_i32, %c0_i32_0 : i32, i32
  }
  func.func @transform_3(%arg0: i32, %arg1: i32) -> (i32, i32) {
    %c0_i32 = arith.constant 0 : i32
    %c0_i32_0 = arith.constant 0 : i32
    %c0_i32_1 = arith.constant 0 : i32
    return %c0_i32, %c0_i32_0 : i32, i32
  }
  func.func @transform_4(%arg0: i32, %arg1: i32) -> (i32, i32) {
    %c0_i32 = arith.constant 0 : i32
    %c0_i32_0 = arith.constant 0 : i32
    %c0_i32_1 = arith.constant 0 : i32
    return %c0_i32, %c0_i32_0 : i32, i32
  }
  func.func @transform_5(%arg0: i32, %arg1: i32) -> (i32, i32) {
    %c0_i32 = arith.constant 0 : i32
    %c0_i32_0 = arith.constant 0 : i32
    %c0_i32_1 = arith.constant 0 : i32
    return %c0_i32, %c0_i32_0 : i32, i32
  }
  func.func @transform_6(%arg0: i32, %arg1: i32) -> (i32, i32) {
    %c0_i32 = arith.constant 0 : i32
    %c0_i32_0 = arith.constant 0 : i32
    %c0_i32_1 = arith.constant 0 : i32
    return %c0_i32, %c0_i32_0 : i32, i32
  }
  func.func @transform_7(%arg0: i32, %arg1: i32) -> (i32, i32) {
    %c0_i32 = arith.constant 0 : i32
    %c0_i32_0 = arith.constant 0 : i32
    %c0_i32_1 = arith.constant 0 : i32
    return %c0_i32, %c0_i32_0 : i32, i32
  }
  func.func @transform_8(%arg0: i32, %arg1: i32) -> (i32, i32) {
    %c0_i32 = arith.constant 0 : i32
    %c0_i32_0 = arith.constant 0 : i32
    %c0_i32_1 = arith.constant 0 : i32
    return %c0_i32, %c0_i32_0 : i32, i32
  }
  func.func @transform_9(%arg0: i32, %arg1: i32) -> (i32, i32) {
    %c0_i32 = arith.constant 0 : i32
    %c0_i32_0 = arith.constant 0 : i32
    %c0_i32_1 = arith.constant 0 : i32
    return %c0_i32, %c0_i32_0 : i32, i32
  }
  func.func @transform_10(%arg0: i32, %arg1: i32) -> (i32, i32, i32) {
    %c0_i32 = arith.constant 0 : i32
    %c0_i32_0 = arith.constant 0 : i32
    return %arg0, %arg1, %c0_i32 : i32, i32, i32
  }
  func.func @transform_11(%arg0: i32, %arg1: i32) -> (i32, i32, i32) {
    %c0_i32 = arith.constant 0 : i32
    %c0_i32_0 = arith.constant 0 : i32
    %c0_i32_1 = arith.constant 0 : i32
    return %arg0, %c0_i32, %c0_i32_0 : i32, i32, i32
  }
}

</mosaic_0001>

<llo_original>
// kernel: lan_forward.5
$region0: #{lan_forward.5}
  #allocation0 [shape = 'u32[]', space=smem, size = 0x4, offset = 0x4, fixed_abs, tag = 'smem constant byte address 0x4 - core index']
  #allocation1 [shape = 'u32[144,128]{1,0:T(1,128)}', space=vmem, size = 0x12000, scoped, tag = 'internal scratch']
  %s0 = inlined_call_operand.vmem [shape: bf16[2,128,128], index: 0, kind: input, shape index: {}]
  %s1 = inlined_call_operand.vmem [shape: bf16[128,128], index: 1, kind: input, shape index: {}]
  %s2 = inlined_call_operand.vmem [shape: f32[1,128], index: 2, kind: input, shape index: {}]
  %s3 = inlined_call_operand.vmem [shape: bf16[128,128], index: 3, kind: input, shape index: {}]
  %s4 = inlined_call_operand.vmem [shape: f32[1,128], index: 4, kind: input, shape index: {}]
  %s5 = inlined_call_operand.vmem [shape: f32[2,1,128], index: 5, kind: output, shape index: {}]
  %s6 = sld [smem:[#allocation0]]
  $region57: #{lan_forward.5} parent=0
    _
  %s8 = ssub.s32 1, %s6
  %s9 = scalar_select 0, %s8, %s6
  loop: start=0, step=1, limit=4
  $region2: #{lan_forward.5} parent=0 // loop_pre_header
    _
  $region3: #{lan_forward.5} parent=0 // loop_header
    %s11 = sphi 0, %s15
    %p12 = scmp.ge.s32.totalorder %s11, 4
    %s18 = sphi 0, %s30
    %s19 = sphi 0, %s26
    %s20 = sphi 0, %s18
    %s21 = sphi 0, %s19
    %s22 = sphi 0, %s20
    %s23 = sphi 0, %s21
    %s35 = sphi 0, %s37
    %s38 = sphi 0, %s35
    %s39 = sphi 0, %s38
    %s55 = sphi 0, %s39
    %s59 = sphi 0, %s59
    %s61 = sphi 0, %s59
    %s62 = sphi 0, %s61
    %s76 = sphi 0, %s62
    %s80 = sphi 0, %s80
    %s82 = sphi 0, %s80
    %s83 = sphi 0, %s82
    %s97 = sphi 0, %s83
    %s101 = sphi 0, %s101
    %s103 = sphi 0, %s101
    %s104 = sphi 0, %s103
    %s118 = sphi 0, %s104
    %s122 = sphi 0, %s122
    %s124 = sphi 0, %s122
    %s125 = sphi 0, %s124
    %s139 = sphi 0, %s125
    %s145 = sphi 0, %s147
    %s148 = sphi 0, %s145
    %s149 = sphi 0, %s148
    %s165 = sphi 0, %s149
  $region4: #{lan_forward.5} parent=0 // loop_header_branch
    %14 = sbr.rel (%p12) target = $region8
  $region5: #{lan_forward.5} parent=0 // loop_body
    %s16 = ssub.s32 %s11, 1
    %s17 = ssub.s32 %s11, 2
    %s24 = sadd.s32 1, %s19
    %p25 = scmp.ge.s32.totalorder %s24, 1
    %s26 = scalar_select %p25, 0, %s24
    %s27 = sadd.s32 1, %s18
    %s28 = scalar_select %p25, %s27, %s18
    %p29 = scmp.ge.s32.totalorder %s28, 2
    %s30 = scalar_select %p29, 0, %s28
    %s31 = ssub.s32 %s18, %s30
    %s32 = ssub.s32 %s19, %s26
    %s33 = sor.u32 %s31, %s32
    %p34 = scmp.eq.s32.totalorder %s33, 0
    %s36 = sadd.s32 %s35, 1
    %s37 = scalar_select %p34, %s35, %s36
    %p40 = pneg %p34
    %p41 = scmp.eq.s32.totalorder %s11, 1
    %p42 = por %p40, %p41
    %p43 = scmp.ne.s32.totalorder %s35, %s38
    %p44 = scmp.eq.s32.totalorder %s11, 0
    %p45 = por %p43, %p44
    %p46 = scmp.ne.s32.totalorder %s35, %s38
    %p47 = scmp.eq.s32.totalorder %s16, 1
    %p48 = por %p46, %p47
    %p49 = scmp.ne.s32.totalorder %s38, %s39
    %p50 = scmp.eq.s32.totalorder %s16, 0
    %p51 = por %p49, %p50
    %p52 = scmp.ne.s32.totalorder %s38, %s39
    %p53 = scmp.eq.s32.totalorder %s17, 1
    %p54 = por %p52, %p53
    %p56 = scmp.ne.s32.totalorder %s39, %s55
    %p57 = scmp.eq.s32.totalorder %s17, 0
    %p58 = por %p56, %p57
    %s60 = sadd.s32 %s59, 1
    %p63 = scmp.eq.s32.totalorder %s11, 1
    %p64 = scmp.ne.s32.totalorder %s59, %s61
    %p65 = scmp.eq.s32.totalorder %s11, 0
    %p66 = por %p64, %p65
    %p67 = scmp.ne.s32.totalorder %s59, %s61
    %p68 = scmp.eq.s32.totalorder %s16, 1
    %p69 = por %p67, %p68
    %p70 = scmp.ne.s32.totalorder %s61, %s62
    %p71 = scmp.eq.s32.totalorder %s16, 0
    %p72 = por %p70, %p71
    %p73 = scmp.ne.s32.totalorder %s61, %s62
    %p74 = scmp.eq.s32.totalorder %s17, 1
    %p75 = por %p73, %p74
    %p77 = scmp.ne.s32.totalorder %s62, %s76
    %p78 = scmp.eq.s32.totalorder %s17, 0
    %p79 = por %p77, %p78
    %s81 = sadd.s32 %s80, 1
    %p84 = scmp.eq.s32.totalorder %s11, 1
    %p85 = scmp.ne.s32.totalorder %s80, %s82
    %p86 = scmp.eq.s32.totalorder %s11, 0
    %p87 = por %p85, %p86
    %p88 = scmp.ne.s32.totalorder %s80, %s82
    %p89 = scmp.eq.s32.totalorder %s16, 1
    %p90 = por %p88, %p89
    %p91 = scmp.ne.s32.totalorder %s82, %s83
    %p92 = scmp.eq.s32.totalorder %s16, 0
    %p93 = por %p91, %p92
    %p94 = scmp.ne.s32.totalorder %s82, %s83
    %p95 = scmp.eq.s32.totalorder %s17, 1
    %p96 = por %p94, %p95
    %p98 = scmp.ne.s32.totalorder %s83, %s97
    %p99 = scmp.eq.s32.totalorder %s17, 0
    %p100 = por %p98, %p99
    %s102 = sadd.s32 %s101, 1
    %p105 = scmp.eq.s32.totalorder %s11, 1
    %p106 = scmp.ne.s32.totalorder %s101, %s103
    %p107 = scmp.eq.s32.totalorder %s11, 0
    %p108 = por %p106, %p107
    %p109 = scmp.ne.s32.totalorder %s101, %s103
    %p110 = scmp.eq.s32.totalorder %s16, 1
    %p111 = por %p109, %p110
    %p112 = scmp.ne.s32.totalorder %s103, %s104
    %p113 = scmp.eq.s32.totalorder %s16, 0
    %p114 = por %p112, %p113
    %p115 = scmp.ne.s32.totalorder %s103, %s104
    %p116 = scmp.eq.s32.totalorder %s17, 1
    %p117 = por %p115, %p116
    %p119 = scmp.ne.s32.totalorder %s104, %s118
    %p120 = scmp.eq.s32.totalorder %s17, 0
    %p121 = por %p119, %p120
    %s123 = sadd.s32 %s122, 1
    %p126 = scmp.eq.s32.totalorder %s11, 1
    %p127 = scmp.ne.s32.totalorder %s122, %s124
    %p128 = scmp.eq.s32.totalorder %s11, 0
    %p129 = por %p127, %p128
    %p130 = scmp.ne.s32.totalorder %s122, %s124
    %p131 = scmp.eq.s32.totalorder %s16, 1
    %p132 = por %p130, %p131
    %p133 = scmp.ne.s32.totalorder %s124, %s125
    %p134 = scmp.eq.s32.totalorder %s16, 0
    %p135 = por %p133, %p134
    %p136 = scmp.ne.s32.totalorder %s124, %s125
    %p137 = scmp.eq.s32.totalorder %s17, 1
    %p138 = por %p136, %p137
    %p140 = scmp.ne.s32.totalorder %s125, %s139
    %p141 = scmp.eq.s32.totalorder %s17, 0
    %p142 = por %p140, %p141
    %s143 = ssub.s32 %s18, %s30
    %p144 = scmp.eq.s32.totalorder %s143, 0
    %s146 = sadd.s32 %s145, 1
    %s147 = scalar_select %p144, %s145, %s146
    %p150 = pneg %p144
    %p151 = scmp.eq.s32.totalorder %s11, 1
    %p152 = por %p150, %p151
    %p153 = scmp.ne.s32.totalorder %s145, %s148
    %p154 = scmp.eq.s32.totalorder %s11, 0
    %p155 = por %p153, %p154
    %p156 = scmp.ne.s32.totalorder %s145, %s148
    %p157 = scmp.eq.s32.totalorder %s16, 1
    %p158 = por %p156, %p157
    %p159 = scmp.ne.s32.totalorder %s148, %s149
    %p160 = scmp.eq.s32.totalorder %s16, 0
    %p161 = por %p159, %p160
    %p162 = scmp.ne.s32.totalorder %s148, %s149
    %p163 = scmp.eq.s32.totalorder %s17, 1
    %p164 = por %p162, %p163
    %p166 = scmp.ne.s32.totalorder %s149, %s165
    %p167 = scmp.eq.s32.totalorder %s17, 0
    %p168 = por %p166, %p167
    %p169 = scmp.le.s32.totalorder 1, %s11
    %p170 = scmp.lt.s32.totalorder %s11, 3
    %p171 = pnand %p169, %p170
    %p172 = pneg %p171
    // Predicated region
    $region9: #{lan_forward.5} parent=5 // pred_check
      _
    $region10: #{lan_forward.5} parent=5 // pred_check_branch
      %174 = sbr.rel (%p171) target = $region12
    $region11: #{lan_forward.5} parent=5 // pred_region
      %s175 = ssub.s32 %s11, 1
      // Predicated region
      $region13: #{lan_forward.5} parent=11 // pred_check
        %p176 = pneg %p72
      $region14: #{lan_forward.5} parent=11 // pred_check_branch
        %178 = sbr.rel (%p176) target = $region16
      $region15: #{lan_forward.5} parent=11 // pred_region
        _
      $region16: #{lan_forward.5} parent=11 // pred_fallthru
        _
      // Predicated region
      $region17: #{lan_forward.5} parent=11 // pred_check
        %p179 = pneg %p93
      $region18: #{lan_forward.5} parent=11 // pred_check_branch
        %181 = sbr.rel (%p179) target = $region20
      $region19: #{lan_forward.5} parent=11 // pred_region
        _
      $region20: #{lan_forward.5} parent=11 // pred_fallthru
        _
      // Predicated region
      $region21: #{lan_forward.5} parent=11 // pred_check
        %p182 = pneg %p114
      $region22: #{lan_forward.5} parent=11 // pred_check_branch
        %184 = sbr.rel (%p182) target = $region24
      $region23: #{lan_forward.5} parent=11 // pred_region
        _
      $region24: #{lan_forward.5} parent=11 // pred_fallthru
        _
      // Predicated region
      $region25: #{lan_forward.5} parent=11 // pred_check
        %p185 = pneg %p135
      $region26: #{lan_forward.5} parent=11 // pred_check_branch
        %187 = sbr.rel (%p185) target = $region28
      $region27: #{lan_forward.5} parent=11 // pred_region
        _
      $region28: #{lan_forward.5} parent=11 // pred_fallthru
        _
    $region12: #{lan_forward.5} parent=5 // pred_fallthru
      _
    %p188 = scmp.lt.s32.totalorder %s11, 2
    // Predicated region
    $region29: #{lan_forward.5} parent=5 // pred_check
      %p189 = pneg %p188
    $region30: #{lan_forward.5} parent=5 // pred_check_branch
      %191 = sbr.rel (%p189) target = $region32
    $region31: #{lan_forward.5} parent=5 // pred_region
      // Predicated region
      $region33: #{lan_forward.5} parent=31 // pred_check
        %p192 = pneg %p45
      $region34: #{lan_forward.5} parent=31 // pred_check_branch
        %194 = sbr.rel (%p192) target = $region36
      $region35: #{lan_forward.5} parent=31 // pred_region
        %s195 = smul.u32 16, %s19
        %p196 = scmp.lt.s32.totalorder %s18, 1
        %s197 = scalar_select %p196, %s18, 1
        %p198 = scmp.lt.s32.totalorder %s195, 15
        %s199 = scalar_select %p198, %s195, 15
        %s200 = smul.addr %s197, 16
        %s201 = sadd.s32 %s199, %s200
        %s202 = smul.addr %s201, 4
        %s203 = scalar_lea.vmem %s0, %s202
        %s204 = smul.u32 16, %s19
      $region36: #{lan_forward.5} parent=31 // pred_fallthru
        _
    $region32: #{lan_forward.5} parent=5 // pred_fallthru
      _
    %p205 = scmp.le.s32.totalorder 1, %s11
    %p206 = scmp.lt.s32.totalorder %s11, 3
    %p207 = pnand %p205, %p206
    %p208 = pneg %p207
    // Predicated region
    $region37: #{lan_forward.5} parent=5 // pred_check
      _
    $region38: #{lan_forward.5} parent=5 // pred_check_branch
      %210 = sbr.rel (%p207) target = $region40
    $region39: #{lan_forward.5} parent=5 // pred_region
      %s211 = ssub.s32 %s11, 1
      %s212 = smul.u32 16, %s21
      %p213 = scmp.lt.s32.totalorder %s20, 1
      %s214 = scalar_select %p213, %s20, 1
      %p215 = scmp.lt.s32.totalorder %s212, 15
      %s216 = scalar_select %p215, %s212, 15
      %s217 = smul.addr %s214, 16
      %s218 = sadd.s32 %s216, %s217
      %s219 = smul.addr %s218, 4
      %s220 = scalar_lea.vmem %s0, %s219
      %p221 = pneg %p51
      %p222 = pneg %p48
      %p223 = pneg %p72
      %p224 = pneg %p69
      %p225 = pneg %p93
      %p226 = pneg %p90
      %p227 = pneg %p114
      %p228 = pneg %p111
      %p229 = pneg %p135
      %p230 = pneg %p132
      %p231 = pneg %p161
      %p232 = pneg %p158
      %p233 = scmp.lt.s32.totalorder %s20, 1
      %s234 = scalar_select %p233, %s20, 1
      %s235 = scalar_lea.vmem %s5, %s234
      %s236 = smul.u32 16, %s21
      %p237 = scmp.lt.s32.totalorder %s20, 1
      %s238 = scalar_select %p237, %s20, 1
      %p239 = scmp.lt.s32.totalorder %s236, 15
      %s240 = scalar_select %p239, %s236, 15
      %s241 = smul.addr %s238, 16
      %s242 = sadd.s32 %s240, %s241
      %s243 = smul.addr %s242, 4
      %s244 = scalar_lea.vmem %s0, %s243
      %s245 = smul.u32 16, %s21
      %p246 = scmp.lt.s32.totalorder %s20, 1
      %s247 = scalar_select %p246, %s20, 1
      %s248 = scalar_lea.vmem %s5, %s247
      %p250 = scmp.eq.s32.totalorder %s21, 0
      // Predicated region
      $region41: #{lan_forward.5} parent=39 // pred_check
        %p251 = pneg %p250
      $region42: #{lan_forward.5} parent=39 // pred_check_branch
        %253 = sbr.rel (%p251) target = $region44
      $region43: #{lan_forward.5} parent=39 // pred_region
        %254 = vst [vmem:[%s248] sm:$0x1] 0.0
      $region44: #{lan_forward.5} parent=39 // pred_fallthru
        _
      %v255 = vld [vmem:[%s244] sm:$0xf]
      %v256 = vld [vmem:[%s244 + $0x4] sm:$0xf]
      %v257 = vld [vmem:[%s244 + $0x8] sm:$0xf]
      %v258 = vld [vmem:[%s244 + $0xc] sm:$0xf]
      %v259 = vld [vmem:[%s244 + $0x10] sm:$0xf]
      %v260 = vld [vmem:[%s244 + $0x14] sm:$0xf]
      %v261 = vld [vmem:[%s244 + $0x18] sm:$0xf]
      %v262 = vld [vmem:[%s244 + $0x1c] sm:$0xf]
      %v263 = vld [vmem:[%s244 + $0x20] sm:$0xf]
      %v264 = vld [vmem:[%s244 + $0x24] sm:$0xf]
      %v265 = vld [vmem:[%s244 + $0x28] sm:$0xf]
      %v266 = vld [vmem:[%s244 + $0x2c] sm:$0xf]
      %v267 = vld [vmem:[%s244 + $0x30] sm:$0xf]
      %v268 = vld [vmem:[%s244 + $0x34] sm:$0xf]
      %v269 = vld [vmem:[%s244 + $0x38] sm:$0xf]
      %v270 = vld [vmem:[%s244 + $0x3c] sm:$0xf]
      %v271 = vld [vmem:[%s1] sm:$0xf]
      %v272 = vld [vmem:[%s1 + $0x4] sm:$0xf]
      %v273 = vld [vmem:[%s1 + $0x8] sm:$0xf]
      %v274 = vld [vmem:[%s1 + $0xc] sm:$0xf]
      %v275 = vld [vmem:[%s1 + $0x10] sm:$0xf]
      %v276 = vld [vmem:[%s1 + $0x14] sm:$0xf]
      %v277 = vld [vmem:[%s1 + $0x18] sm:$0xf]
      %v278 = vld [vmem:[%s1 + $0x1c] sm:$0xf]
      %v279 = vld [vmem:[%s1 + $0x20] sm:$0xf]
      %v280 = vld [vmem:[%s1 + $0x24] sm:$0xf]
      %v281 = vld [vmem:[%s1 + $0x28] sm:$0xf]
      %v282 = vld [vmem:[%s1 + $0x2c] sm:$0xf]
      %v283 = vld [vmem:[%s1 + $0x30] sm:$0xf]
      %v284 = vld [vmem:[%s1 + $0x34] sm:$0xf]
      %v285 = vld [vmem:[%s1 + $0x38] sm:$0xf]
      %v286 = vld [vmem:[%s1 + $0x3c] sm:$0xf]
      %v287 = vld [vmem:[%s2] sm:$0x1]
      %v289 = vlaneseq
      %v290 = vshrl.u32 %v289, 7
      %v291 = vsub.s32 0, %v290
      %v292 = vrot.slane %v287, %v291
      %v310 = vunpack.c.l.b16 %v255
      %v311 = vunpack.c.l.b16 %v256
      %v312 = vunpack.c.l.b16 %v257
      %v313 = vunpack.c.l.b16 %v258
      %v314 = vunpack.c.l.b16 %v259
      %v315 = vunpack.c.l.b16 %v260
      %v316 = vunpack.c.l.b16 %v261
      %v317 = vunpack.c.l.b16 %v262
      %v318 = vunpack.c.l.b16 %v263
      %v319 = vunpack.c.l.b16 %v264
      %v320 = vunpack.c.l.b16 %v265
      %v321 = vunpack.c.l.b16 %v266
      %v322 = vunpack.c.l.b16 %v267
      %v323 = vunpack.c.l.b16 %v268
      %v324 = vunpack.c.l.b16 %v269
      %v325 = vunpack.c.l.b16 %v270
      %v326 = vpack.c.b16 %v311, %v310
      %v327 = vpack.c.b16 %v313, %v312
      %v328 = vpack.c.b16 %v315, %v314
      %v329 = vpack.c.b16 %v317, %v316
      %v330 = vpack.c.b16 %v319, %v318
      %v331 = vpack.c.b16 %v321, %v320
      %v332 = vpack.c.b16 %v323, %v322
      %v333 = vpack.c.b16 %v325, %v324
      %v358 = vunpack.c.l.b16 %v271
      %v359 = vunpack.c.l.b16 %v272
      %v360 = vunpack.c.l.b16 %v273
      %v361 = vunpack.c.l.b16 %v274
      %v362 = vunpack.c.l.b16 %v275
      %v363 = vunpack.c.l.b16 %v276
      %v364 = vunpack.c.l.b16 %v277
      %v365 = vunpack.c.l.b16 %v278
      %v366 = vunpack.c.l.b16 %v279
      %v367 = vunpack.c.l.b16 %v280
      %v368 = vunpack.c.l.b16 %v281
      %v369 = vunpack.c.l.b16 %v282
      %v370 = vunpack.c.l.b16 %v283
      %v371 = vunpack.c.l.b16 %v284
      %v372 = vunpack.c.l.b16 %v285
      %v373 = vunpack.c.l.b16 %v286
      %v374 = vpack.c.b16 %v359, %v358
      %v375 = vpack.c.b16 %v361, %v360
      %v376 = vpack.c.b16 %v363, %v362
      %v377 = vpack.c.b16 %v365, %v364
      %v378 = vpack.c.b16 %v367, %v366
      %v379 = vpack.c.b16 %v369, %v368
      %v380 = vpack.c.b16 %v371, %v370
      %v381 = vpack.c.b16 %v373, %v372
      %390 = vmatprep.subr.bf16.mxu0 0
      %391 = vmatpush1.bf16.msra.mxu0 %v374
      %392 = vmatprep.subr.bf16.mxu0 0
      %393 = vmatpush1.bf16.msra.mxu0 %v375
      %394 = vmatprep.subr.bf16.mxu0 0
      %395 = vmatpush1.bf16.msra.mxu0 %v376
      %396 = vmatprep.subr.bf16.mxu0 0
      %397 = vmatpush1.bf16.msra.mxu0 %v377
      %398 = vmatprep.subr.bf16.mxu0 0
      %399 = vmatpush1.bf16.msra.mxu0 %v378
      %400 = vmatprep.subr.bf16.mxu0 0
      %401 = vmatpush1.bf16.msra.mxu0 %v379
      %402 = vmatprep.subr.bf16.mxu0 0
      %403 = vmatpush1.bf16.msra.mxu0 %v380
      %404 = vmatprep.subr.bf16.mxu0 0
      %405 = vmatpush1.bf16.msra.mxu0 %v381
      %406 = vmatprep.subr.bf16.mxu0 0
      %407 = vmatpush1.bf16.msra.mxu0 0
      %408 = vmatprep.subr.bf16.mxu0 0
      %409 = vmatpush1.bf16.msra.mxu0 0
      %410 = vmatprep.subr.bf16.mxu0 0
      %411 = vmatpush1.bf16.msra.mxu0 0
      %412 = vmatprep.subr.bf16.mxu0 0
      %413 = vmatpush1.bf16.msra.mxu0 0
      %414 = vmatprep.subr.bf16.mxu0 0
      %415 = vmatpush1.bf16.msra.mxu0 0
      %416 = vmatprep.subr.bf16.mxu0 0
      %417 = vmatpush1.bf16.msra.mxu0 0
      %418 = vmatprep.subr.bf16.mxu0 0
      %419 = vmatpush1.bf16.msra.mxu0 0
      %420 = vmatprep.subr.bf16.mxu0 0
      %421 = vmatpush1.bf16.msra.mxu0 0
      %422 = vmatprep.mubr.bf16.mxu0 0
      %423 = vmatmul.mubr.bf16.gmra.mrb[0].mxu0 %v326
      %v424 = vpop.f32.mrb[0].mxu0
      %v425 = vadd.f32 %v292, %v424
      %v426 = vpop.f32.mrb[0].mxu0
      %v427 = vpop.f32.mrb[0].mxu0
      %v428 = vadd.f32 %v292, %v427
      %v429 = vpop.f32.mrb[0].mxu0
      %430 = vmatprep.mubr.bf16.mxu0 0
      %431 = vmatmul.mubr.bf16.gmra.mrb[0].mxu0 %v327
      %v432 = vpop.f32.mrb[0].mxu0
      %v433 = vadd.f32 %v292, %v432
      %v434 = vpop.f32.mrb[0].mxu0
      %v435 = vpop.f32.mrb[0].mxu0
      %v436 = vadd.f32 %v292, %v435
      %v437 = vpop.f32.mrb[0].mxu0
      %438 = vmatprep.mubr.bf16.mxu0 0
      %439 = vmatmul.mubr.bf16.gmra.mrb[0].mxu0 %v328
      %v440 = vpop.f32.mrb[0].mxu0
      %v441 = vadd.f32 %v292, %v440
      %v442 = vpop.f32.mrb[0].mxu0
      %v443 = vpop.f32.mrb[0].mxu0
      %v444 = vadd.f32 %v292, %v443
      %v445 = vpop.f32.mrb[0].mxu0
      %446 = vmatprep.mubr.bf16.mxu0 0
      %447 = vmatmul.mubr.bf16.gmra.mrb[0].mxu0 %v329
      %v448 = vpop.f32.mrb[0].mxu0
      %v449 = vadd.f32 %v292, %v448
      %v450 = vpop.f32.mrb[0].mxu0
      %v451 = vpop.f32.mrb[0].mxu0
      %v452 = vadd.f32 %v292, %v451
      %v453 = vpop.f32.mrb[0].mxu0
      %454 = vmatprep.mubr.bf16.mxu0 0
      %455 = vmatmul.mubr.bf16.gmra.mrb[0].mxu0 %v330
      %v456 = vpop.f32.mrb[0].mxu0
      %v457 = vadd.f32 %v292, %v456
      %v458 = vpop.f32.mrb[0].mxu0
      %v459 = vpop.f32.mrb[0].mxu0
      %v460 = vadd.f32 %v292, %v459
      %v461 = vpop.f32.mrb[0].mxu0
      %462 = vmatprep.mubr.bf16.mxu0 0
      %463 = vmatmul.mubr.bf16.gmra.mrb[0].mxu0 %v331
      %v464 = vpop.f32.mrb[0].mxu0
      %v465 = vadd.f32 %v292, %v464
      %v466 = vpop.f32.mrb[0].mxu0
      %v467 = vpop.f32.mrb[0].mxu0
      %v468 = vadd.f32 %v292, %v467
      %v469 = vpop.f32.mrb[0].mxu0
      %470 = vmatprep.mubr.bf16.mxu0 0
      %471 = vmatmul.mubr.bf16.gmra.mrb[0].mxu0 %v332
      %v472 = vpop.f32.mrb[0].mxu0
      %v473 = vadd.f32 %v292, %v472
      %v474 = vpop.f32.mrb[0].mxu0
      %v475 = vpop.f32.mrb[0].mxu0
      %v476 = vadd.f32 %v292, %v475
      %v477 = vpop.f32.mrb[0].mxu0
      %478 = vmatprep.mubr.bf16.mxu0 0
      %479 = vmatmul.mubr.bf16.gmra.mrb[0].mxu0 %v333
      %v480 = vpop.f32.mrb[0].mxu0
      %v481 = vadd.f32 %v292, %v480
      %v482 = vpop.f32.mrb[0].mxu0
      %v483 = vpop.f32.mrb[0].mxu0
      %v484 = vadd.f32 %v292, %v483
      %v485 = vpop.f32.mrb[0].mxu0
      %486 = vdwg.mxu0
      %v487 = vmax.f32 %v425, 0.0
      %v488 = vmax.f32 %v428, 0.0
      %v489 = vmax.f32 %v433, 0.0
      %v490 = vmax.f32 %v436, 0.0
      %v491 = vmax.f32 %v441, 0.0
      %v492 = vmax.f32 %v444, 0.0
      %v493 = vmax.f32 %v449, 0.0
      %v494 = vmax.f32 %v452, 0.0
      %v495 = vmax.f32 %v457, 0.0
      %v496 = vmax.f32 %v460, 0.0
      %v497 = vmax.f32 %v465, 0.0
      %v498 = vmax.f32 %v468, 0.0
      %v499 = vmax.f32 %v473, 0.0
      %v500 = vmax.f32 %v476, 0.0
      %v501 = vmax.f32 %v481, 0.0
      %v502 = vmax.f32 %v484, 0.0
      %v503 = vpack.c.bf16 %v488, %v487
      %v504 = vpack.c.bf16 %v490, %v489
      %v505 = vpack.c.bf16 %v492, %v491
      %v506 = vpack.c.bf16 %v494, %v493
      %v507 = vpack.c.bf16 %v496, %v495
      %v508 = vpack.c.bf16 %v498, %v497
      %v509 = vpack.c.bf16 %v500, %v499
      %v510 = vpack.c.bf16 %v502, %v501
      %v511 = vld [vmem:[%s3] sm:$0xf]
      %v512 = vld [vmem:[%s3 + $0x4] sm:$0xf]
      %v513 = vld [vmem:[%s3 + $0x8] sm:$0xf]
      %v514 = vld [vmem:[%s3 + $0xc] sm:$0xf]
      %v515 = vld [vmem:[%s3 + $0x10] sm:$0xf]
      %v516 = vld [vmem:[%s3 + $0x14] sm:$0xf]
      %v517 = vld [vmem:[%s3 + $0x18] sm:$0xf]
      %v518 = vld [vmem:[%s3 + $0x1c] sm:$0xf]
      %v519 = vld [vmem:[%s3 + $0x20] sm:$0xf]
      %v520 = vld [vmem:[%s3 + $0x24] sm:$0xf]
      %v521 = vld [vmem:[%s3 + $0x28] sm:$0xf]
      %v522 = vld [vmem:[%s3 + $0x2c] sm:$0xf]
      %v523 = vld [vmem:[%s3 + $0x30] sm:$0xf]
      %v524 = vld [vmem:[%s3 + $0x34] sm:$0xf]
      %v525 = vld [vmem:[%s3 + $0x38] sm:$0xf]
      %v526 = vld [vmem:[%s3 + $0x3c] sm:$0xf]
      %v527 = vld [vmem:[%s4] sm:$0x1]
      %v529 = vlaneseq
      %v530 = vshrl.u32 %v529, 7
      %v531 = vsub.s32 0, %v530
      %v532 = vrot.slane %v527, %v531
      %v550 = vunpack.c.l.b16 %v511
      %v551 = vunpack.c.l.b16 %v512
      %v552 = vunpack.c.l.b16 %v513
      %v553 = vunpack.c.l.b16 %v514
      %v554 = vunpack.c.l.b16 %v515
      %v555 = vunpack.c.l.b16 %v516
      %v556 = vunpack.c.l.b16 %v517
      %v557 = vunpack.c.l.b16 %v518
      %v558 = vunpack.c.l.b16 %v519
      %v559 = vunpack.c.l.b16 %v520
      %v560 = vunpack.c.l.b16 %v521
      %v561 = vunpack.c.l.b16 %v522
      %v562 = vunpack.c.l.b16 %v523
      %v563 = vunpack.c.l.b16 %v524
      %v564 = vunpack.c.l.b16 %v525
      %v565 = vunpack.c.l.b16 %v526
      %v566 = vpack.c.b16 %v551, %v550
      %v567 = vpack.c.b16 %v553, %v552
      %v568 = vpack.c.b16 %v555, %v554
      %v569 = vpack.c.b16 %v557, %v556
      %v570 = vpack.c.b16 %v559, %v558
      %v571 = vpack.c.b16 %v561, %v560
      %v572 = vpack.c.b16 %v563, %v562
      %v573 = vpack.c.b16 %v565, %v564
      %582 = vmatprep.subr.bf16.mxu0 0
      %583 = vmatpush1.bf16.msra.mxu0 %v566
      %584 = vmatprep.subr.bf16.mxu0 0
      %585 = vmatpush1.bf16.msra.mxu0 %v567
      %586 = vmatprep.subr.bf16.mxu0 0
      %587 = vmatpush1.bf16.msra.mxu0 %v568
      %588 = vmatprep.subr.bf16.mxu0 0
      %589 = vmatpush1.bf16.msra.mxu0 %v569
      %590 = vmatprep.subr.bf16.mxu0 0
      %591 = vmatpush1.bf16.msra.mxu0 %v570
      %592 = vmatprep.subr.bf16.mxu0 0
      %593 = vmatpush1.bf16.msra.mxu0 %v571
      %594 = vmatprep.subr.bf16.mxu0 0
      %595 = vmatpush1.bf16.msra.mxu0 %v572
      %596 = vmatprep.subr.bf16.mxu0 0
      %597 = vmatpush1.bf16.msra.mxu0 %v573
      %598 = vmatprep.subr.bf16.mxu0 0
      %599 = vmatpush1.bf16.msra.mxu0 0
      %600 = vmatprep.subr.bf16.mxu0 0
      %601 = vmatpush1.bf16.msra.mxu0 0
      %602 = vmatprep.subr.bf16.mxu0 0
      %603 = vmatpush1.bf16.msra.mxu0 0
      %604 = vmatprep.subr.bf16.mxu0 0
      %605 = vmatpush1.bf16.msra.mxu0 0
      %606 = vmatprep.subr.bf16.mxu0 0
      %607 = vmatpush1.bf16.msra.mxu0 0
      %608 = vmatprep.subr.bf16.mxu0 0
      %609 = vmatpush1.bf16.msra.mxu0 0
      %610 = vmatprep.subr.bf16.mxu0 0
      %611 = vmatpush1.bf16.msra.mxu0 0
      %612 = vmatprep.subr.bf16.mxu0 0
      %613 = vmatpush1.bf16.msra.mxu0 0
      %614 = vmatprep.mubr.bf16.mxu0 0
      %615 = vmatmul.mubr.bf16.gmra.mrb[0].mxu0 %v503
      %v616 = vpop.f32.mrb[0].mxu0
      %v617 = vadd.f32 %v532, %v616
      %v618 = vpop.f32.mrb[0].mxu0
      %v619 = vpop.f32.mrb[0].mxu0
      %v620 = vadd.f32 %v532, %v619
      %v621 = vpop.f32.mrb[0].mxu0
      %622 = vmatprep.mubr.bf16.mxu0 0
      %623 = vmatmul.mubr.bf16.gmra.mrb[0].mxu0 %v504
      %v624 = vpop.f32.mrb[0].mxu0
      %v625 = vadd.f32 %v532, %v624
      %v626 = vpop.f32.mrb[0].mxu0
      %v627 = vpop.f32.mrb[0].mxu0
      %v628 = vadd.f32 %v532, %v627
      %v629 = vpop.f32.mrb[0].mxu0
      %630 = vmatprep.mubr.bf16.mxu0 0
      %631 = vmatmul.mubr.bf16.gmra.mrb[0].mxu0 %v505
      %v632 = vpop.f32.mrb[0].mxu0
      %v633 = vadd.f32 %v532, %v632
      %v634 = vpop.f32.mrb[0].mxu0
      %v635 = vpop.f32.mrb[0].mxu0
      %v636 = vadd.f32 %v532, %v635
      %v637 = vpop.f32.mrb[0].mxu0
      %638 = vmatprep.mubr.bf16.mxu0 0
      %639 = vmatmul.mubr.bf16.gmra.mrb[0].mxu0 %v506
      %v640 = vpop.f32.mrb[0].mxu0
      %v641 = vadd.f32 %v532, %v640
      %v642 = vpop.f32.mrb[0].mxu0
      %v643 = vpop.f32.mrb[0].mxu0
      %v644 = vadd.f32 %v532, %v643
      %v645 = vpop.f32.mrb[0].mxu0
      %646 = vmatprep.mubr.bf16.mxu0 0
      %647 = vmatmul.mubr.bf16.gmra.mrb[0].mxu0 %v507
      %v648 = vpop.f32.mrb[0].mxu0
      %v649 = vadd.f32 %v532, %v648
      %v650 = vpop.f32.mrb[0].mxu0
      %v651 = vpop.f32.mrb[0].mxu0
      %v652 = vadd.f32 %v532, %v651
      %v653 = vpop.f32.mrb[0].mxu0
      %654 = vmatprep.mubr.bf16.mxu0 0
      %655 = vmatmul.mubr.bf16.gmra.mrb[0].mxu0 %v508
      %v656 = vpop.f32.mrb[0].mxu0
      %v657 = vadd.f32 %v532, %v656
      %v658 = vpop.f32.mrb[0].mxu0
      %v659 = vpop.f32.mrb[0].mxu0
      %v660 = vadd.f32 %v532, %v659
      %v661 = vpop.f32.mrb[0].mxu0
      %662 = vmatprep.mubr.bf16.mxu0 0
      %663 = vmatmul.mubr.bf16.gmra.mrb[0].mxu0 %v509
      %v664 = vpop.f32.mrb[0].mxu0
      %v665 = vadd.f32 %v532, %v664
      %v666 = vpop.f32.mrb[0].mxu0
      %v667 = vpop.f32.mrb[0].mxu0
      %v668 = vadd.f32 %v532, %v667
      %v669 = vpop.f32.mrb[0].mxu0
      %670 = vmatprep.mubr.bf16.mxu0 0
      %671 = vmatmul.mubr.bf16.gmra.mrb[0].mxu0 %v510
      %v672 = vpop.f32.mrb[0].mxu0
      %v673 = vadd.f32 %v532, %v672
      %v674 = vpop.f32.mrb[0].mxu0
      %v675 = vpop.f32.mrb[0].mxu0
      %v676 = vadd.f32 %v532, %v675
      %v677 = vpop.f32.mrb[0].mxu0
      %678 = vdwg.mxu0
      %v679 = vld [vmem:[%s248] sm:$0x1]
      %v680 = vadd.f32 %v617, %v620
      %v681 = vadd.f32 %v680, %v625
      %v682 = vadd.f32 %v681, %v628
      %v683 = vadd.f32 %v682, %v633
      %v684 = vadd.f32 %v683, %v636
      %v685 = vadd.f32 %v684, %v641
      %v686 = vadd.f32 %v685, %v644
      %v687 = vadd.f32 %v686, %v649
      %v688 = vadd.f32 %v687, %v652
      %v689 = vadd.f32 %v688, %v657
      %v690 = vadd.f32 %v689, %v660
      %v691 = vadd.f32 %v690, %v665
      %v692 = vadd.f32 %v691, %v668
      %v693 = vadd.f32 %v692, %v673
      %v694 = vadd.f32 %v693, %v676
      %v695 = vrot.slane %v694, 4
      %v696 = vadd.f32 %v694, %v695
      %v697 = vrot.slane %v696, 2
      %v698 = vadd.f32 %v696, %v697
      %v699 = vrot.slane %v698, 1
      %v700 = vadd.f32 %v698, %v699
      %v701 = vadd.f32 %v679, %v700
      %702 = vst [vmem:[%s248] sm:$0x1] %v701
      %p703 = scmp.lt.s32.totalorder %s20, 1
      %s704 = scalar_select %p703, %s20, 1
      %s705 = scalar_lea.vmem %s5, %s704
      // Predicated region
      $region45: #{lan_forward.5} parent=39 // pred_check
        %p706 = pneg %p158
      $region46: #{lan_forward.5} parent=39 // pred_check_branch
        %708 = sbr.rel (%p706) target = $region48
      $region47: #{lan_forward.5} parent=39 // pred_region
        _
      $region48: #{lan_forward.5} parent=39 // pred_fallthru
        _
    $region40: #{lan_forward.5} parent=5 // pred_fallthru
      _
    %p709 = scmp.le.s32.totalorder 2, %s11
    // Predicated region
    $region49: #{lan_forward.5} parent=5 // pred_check
      %p710 = pneg %p709
    $region50: #{lan_forward.5} parent=5 // pred_check_branch
      %712 = sbr.rel (%p710) target = $region52
    $region51: #{lan_forward.5} parent=5 // pred_region
      %s713 = ssub.s32 %s11, 2
      // Predicated region
      $region53: #{lan_forward.5} parent=51 // pred_check
        %p714 = pneg %p164
      $region54: #{lan_forward.5} parent=51 // pred_check_branch
        %716 = sbr.rel (%p714) target = $region56
      $region55: #{lan_forward.5} parent=51 // pred_region
        %p717 = scmp.lt.s32.totalorder %s22, 1
        %s718 = scalar_select %p717, %s22, 1
        %s719 = scalar_lea.vmem %s5, %s718
      $region56: #{lan_forward.5} parent=51 // pred_fallthru
        _
    $region52: #{lan_forward.5} parent=5 // pred_fallthru
      _
  $region6: #{lan_forward.5} parent=0 // loop_footer
    %s15 = sadd.s32 1, %s11
  $region7: #{lan_forward.5} parent=0 // loop_footer_branch
    %10 = sbr.rel target = $region3
  $region8: #{lan_forward.5} parent=0 // loop_exit
    _

// kernel: lan_forward.7
$region0: #{lan_forward.7}
  #allocation0 [shape = 'u32[]', space=smem, size = 0x4, offset = 0x4, fixed_abs, tag = 'smem constant byte address 0x4 - core index']
  #allocation1 [shape = 'u32[144,128]{1,0:T(1,128)}', space=vmem, size = 0x12000, scoped, tag = 'internal scratch']
  %s0 = inlined_call_operand.vmem [shape: bf16[2,128,128], index: 0, kind: input, shape index: {}]
  %s1 = inlined_call_operand.vmem [shape: bf16[2,128,128], index: 1, kind: input, shape index: {}]
  %s2 = inlined_call_operand.vmem [shape: f32[2,1,128], index: 2, kind: input, shape index: {}]
  %s3 = inlined_call_operand.vmem [shape: bf16[128,128], index: 3, kind: input, shape index: {}]
  %s4 = inlined_call_operand.vmem [shape: f32[1,128], index: 4, kind: input, shape index: {}]
  %s5 = inlined_call_operand.vmem [shape: bf16[128,128], index: 5, kind: input, shape index: {}]
  %s6 = inlined_call_operand.vmem [shape: f32[1,128], index: 6, kind: input, shape index: {}]
  %s7 = inlined_call_operand.vmem [shape: bf16[128,128], index: 7, kind: input, shape index: {}]
  %s8 = inlined_call_operand.vmem [shape: f32[1,128], index: 8, kind: input, shape index: {}]
  %s9 = inlined_call_operand.vmem [shape: bf16[128,6], index: 9, kind: input, shape index: {}]
  %s10 = inlined_call_operand.vmem [shape: f32[1,6], index: 10, kind: input, shape index: {}]
  %s11 = inlined_call_operand.vmem [shape: f32[2,128,6], index: 11, kind: output, shape index: {}]
  %s12 = sld [smem:[#allocation0]]
  $region77: #{lan_forward.7} parent=0
    _
  %s14 = ssub.s32 1, %s12
  %s15 = scalar_select 0, %s14, %s12
  loop: start=0, step=1, limit=4
  $region2: #{lan_forward.7} parent=0 // loop_pre_header
    _
  $region3: #{lan_forward.7} parent=0 // loop_header
    %s17 = sphi 0, %s21
    %p18 = scmp.ge.s32.totalorder %s17, 4
    %s24 = sphi 0, %s36
    %s25 = sphi 0, %s32
    %s26 = sphi 0, %s24
    %s27 = sphi 0, %s25
    %s28 = sphi 0, %s26
    %s29 = sphi 0, %s27
    %s41 = sphi 0, %s43
    %s44 = sphi 0, %s41
    %s45 = sphi 0, %s44
    %s61 = sphi 0, %s45
    %s69 = sphi 0, %s71
    %s72 = sphi 0, %s69
    %s73 = sphi 0, %s72
    %s89 = sphi 0, %s73
    %s95 = sphi 0, %s97
    %s98 = sphi 0, %s95
    %s99 = sphi 0, %s98
    %s115 = sphi 0, %s99
    %s119 = sphi 0, %s119
    %s121 = sphi 0, %s119
    %s122 = sphi 0, %s121
    %s136 = sphi 0, %s122
    %s140 = sphi 0, %s140
    %s142 = sphi 0, %s140
    %s143 = sphi 0, %s142
    %s157 = sphi 0, %s143
    %s161 = sphi 0, %s161
    %s163 = sphi 0, %s161
    %s164 = sphi 0, %s163
    %s178 = sphi 0, %s164
    %s182 = sphi 0, %s182
    %s184 = sphi 0, %s182
    %s185 = sphi 0, %s184
    %s199 = sphi 0, %s185
    %s203 = sphi 0, %s203
    %s205 = sphi 0, %s203
    %s206 = sphi 0, %s205
    %s220 = sphi 0, %s206
    %s224 = sphi 0, %s224
    %s226 = sphi 0, %s224
    %s227 = sphi 0, %s226
    %s241 = sphi 0, %s227
    %s245 = sphi 0, %s245
    %s247 = sphi 0, %s245
    %s248 = sphi 0, %s247
    %s262 = sphi 0, %s248
    %s266 = sphi 0, %s266
    %s268 = sphi 0, %s266
    %s269 = sphi 0, %s268
    %s283 = sphi 0, %s269
    %s291 = sphi 0, %s293
    %s294 = sphi 0, %s291
    %s295 = sphi 0, %s294
    %s311 = sphi 0, %s295
  $region4: #{lan_forward.7} parent=0 // loop_header_branch
    %20 = sbr.rel (%p18) target = $region8
  $region5: #{lan_forward.7} parent=0 // loop_body
    %s22 = ssub.s32 %s17, 1
    %s23 = ssub.s32 %s17, 2
    %s30 = sadd.s32 1, %s25
    %p31 = scmp.ge.s32.totalorder %s30, 1
    %s32 = scalar_select %p31, 0, %s30
    %s33 = sadd.s32 1, %s24
    %s34 = scalar_select %p31, %s33, %s24
    %p35 = scmp.ge.s32.totalorder %s34, 2
    %s36 = scalar_select %p35, 0, %s34
    %s37 = ssub.s32 %s24, %s36
    %s38 = ssub.s32 %s25, %s32
    %s39 = sor.u32 %s37, %s38
    %p40 = scmp.eq.s32.totalorder %s39, 0
    %s42 = sadd.s32 %s41, 1
    %s43 = scalar_select %p40, %s41, %s42
    %p46 = pneg %p40
    %p47 = scmp.eq.s32.totalorder %s17, 1
    %p48 = por %p46, %p47
    %p49 = scmp.ne.s32.totalorder %s41, %s44
    %p50 = scmp.eq.s32.totalorder %s17, 0
    %p51 = por %p49, %p50
    %p52 = scmp.ne.s32.totalorder %s41, %s44
    %p53 = scmp.eq.s32.totalorder %s22, 1
    %p54 = por %p52, %p53
    %p55 = scmp.ne.s32.totalorder %s44, %s45
    %p56 = scmp.eq.s32.totalorder %s22, 0
    %p57 = por %p55, %p56
    %p58 = scmp.ne.s32.totalorder %s44, %s45
    %p59 = scmp.eq.s32.totalorder %s23, 1
    %p60 = por %p58, %p59
    %p62 = scmp.ne.s32.totalorder %s45, %s61
    %p63 = scmp.eq.s32.totalorder %s23, 0
    %p64 = por %p62, %p63
    %s65 = ssub.s32 %s24, %s36
    %s66 = ssub.s32 %s25, %s32
    %s67 = sor.u32 %s65, %s66
    %p68 = scmp.eq.s32.totalorder %s67, 0
    %s70 = sadd.s32 %s69, 1
    %s71 = scalar_select %p68, %s69, %s70
    %p74 = pneg %p68
    %p75 = scmp.eq.s32.totalorder %s17, 1
    %p76 = por %p74, %p75
    %p77 = scmp.ne.s32.totalorder %s69, %s72
    %p78 = scmp.eq.s32.totalorder %s17, 0
    %p79 = por %p77, %p78
    %p80 = scmp.ne.s32.totalorder %s69, %s72
    %p81 = scmp.eq.s32.totalorder %s22, 1
    %p82 = por %p80, %p81
    %p83 = scmp.ne.s32.totalorder %s72, %s73
    %p84 = scmp.eq.s32.totalorder %s22, 0
    %p85 = por %p83, %p84
    %p86 = scmp.ne.s32.totalorder %s72, %s73
    %p87 = scmp.eq.s32.totalorder %s23, 1
    %p88 = por %p86, %p87
    %p90 = scmp.ne.s32.totalorder %s73, %s89
    %p91 = scmp.eq.s32.totalorder %s23, 0
    %p92 = por %p90, %p91
    %s93 = ssub.s32 %s24, %s36
    %p94 = scmp.eq.s32.totalorder %s93, 0
    %s96 = sadd.s32 %s95, 1
    %s97 = scalar_select %p94, %s95, %s96
    %p100 = pneg %p94
    %p101 = scmp.eq.s32.totalorder %s17, 1
    %p102 = por %p100, %p101
    %p103 = scmp.ne.s32.totalorder %s95, %s98
    %p104 = scmp.eq.s32.totalorder %s17, 0
    %p105 = por %p103, %p104
    %p106 = scmp.ne.s32.totalorder %s95, %s98
    %p107 = scmp.eq.s32.totalorder %s22, 1
    %p108 = por %p106, %p107
    %p109 = scmp.ne.s32.totalorder %s98, %s99
    %p110 = scmp.eq.s32.totalorder %s22, 0
    %p111 = por %p109, %p110
    %p112 = scmp.ne.s32.totalorder %s98, %s99
    %p113 = scmp.eq.s32.totalorder %s23, 1
    %p114 = por %p112, %p113
    %p116 = scmp.ne.s32.totalorder %s99, %s115
    %p117 = scmp.eq.s32.totalorder %s23, 0
    %p118 = por %p116, %p117
    %s120 = sadd.s32 %s119, 1
    %p123 = scmp.eq.s32.totalorder %s17, 1
    %p124 = scmp.ne.s32.totalorder %s119, %s121
    %p125 = scmp.eq.s32.totalorder %s17, 0
    %p126 = por %p124, %p125
    %p127 = scmp.ne.s32.totalorder %s119, %s121
    %p128 = scmp.eq.s32.totalorder %s22, 1
    %p129 = por %p127, %p128
    %p130 = scmp.ne.s32.totalorder %s121, %s122
    %p131 = scmp.eq.s32.totalorder %s22, 0
    %p132 = por %p130, %p131
    %p133 = scmp.ne.s32.totalorder %s121, %s122
    %p134 = scmp.eq.s32.totalorder %s23, 1
    %p135 = por %p133, %p134
    %p137 = scmp.ne.s32.totalorder %s122, %s136
    %p138 = scmp.eq.s32.totalorder %s23, 0
    %p139 = por %p137, %p138
    %s141 = sadd.s32 %s140, 1
    %p144 = scmp.eq.s32.totalorder %s17, 1
    %p145 = scmp.ne.s32.totalorder %s140, %s142
    %p146 = scmp.eq.s32.totalorder %s17, 0
    %p147 = por %p145, %p146
    %p148 = scmp.ne.s32.totalorder %s140, %s142
    %p149 = scmp.eq.s32.totalorder %s22, 1
    %p150 = por %p148, %p149
    %p151 = scmp.ne.s32.totalorder %s142, %s143
    %p152 = scmp.eq.s32.totalorder %s22, 0
    %p153 = por %p151, %p152
    %p154 = scmp.ne.s32.totalorder %s142, %s143
    %p155 = scmp.eq.s32.totalorder %s23, 1
    %p156 = por %p154, %p155
    %p158 = scmp.ne.s32.totalorder %s143, %s157
    %p159 = scmp.eq.s32.totalorder %s23, 0
    %p160 = por %p158, %p159
    %s162 = sadd.s32 %s161, 1
    %p165 = scmp.eq.s32.totalorder %s17, 1
    %p166 = scmp.ne.s32.totalorder %s161, %s163
    %p167 = scmp.eq.s32.totalorder %s17, 0
    %p168 = por %p166, %p167
    %p169 = scmp.ne.s32.totalorder %s161, %s163
    %p170 = scmp.eq.s32.totalorder %s22, 1
    %p171 = por %p169, %p170
    %p172 = scmp.ne.s32.totalorder %s163, %s164
    %p173 = scmp.eq.s32.totalorder %s22, 0
    %p174 = por %p172, %p173
    %p175 = scmp.ne.s32.totalorder %s163, %s164
    %p176 = scmp.eq.s32.totalorder %s23, 1
    %p177 = por %p175, %p176
    %p179 = scmp.ne.s32.totalorder %s164, %s178
    %p180 = scmp.eq.s32.totalorder %s23, 0
    %p181 = por %p179, %p180
    %s183 = sadd.s32 %s182, 1
    %p186 = scmp.eq.s32.totalorder %s17, 1
    %p187 = scmp.ne.s32.totalorder %s182, %s184
    %p188 = scmp.eq.s32.totalorder %s17, 0
    %p189 = por %p187, %p188
    %p190 = scmp.ne.s32.totalorder %s182, %s184
    %p191 = scmp.eq.s32.totalorder %s22, 1
    %p192 = por %p190, %p191
    %p193 = scmp.ne.s32.totalorder %s184, %s185
    %p194 = scmp.eq.s32.totalorder %s22, 0
    %p195 = por %p193, %p194
    %p196 = scmp.ne.s32.totalorder %s184, %s185
    %p197 = scmp.eq.s32.totalorder %s23, 1
    %p198 = por %p196, %p197
    %p200 = scmp.ne.s32.totalorder %s185, %s199
    %p201 = scmp.eq.s32.totalorder %s23, 0
    %p202 = por %p200, %p201
    %s204 = sadd.s32 %s203, 1
    %p207 = scmp.eq.s32.totalorder %s17, 1
    %p208 = scmp.ne.s32.totalorder %s203, %s205
    %p209 = scmp.eq.s32.totalorder %s17, 0
    %p210 = por %p208, %p209
    %p211 = scmp.ne.s32.totalorder %s203, %s205
    %p212 = scmp.eq.s32.totalorder %s22, 1
    %p213 = por %p211, %p212
    %p214 = scmp.ne.s32.totalorder %s205, %s206
    %p215 = scmp.eq.s32.totalorder %s22, 0
    %p216 = por %p214, %p215
    %p217 = scmp.ne.s32.totalorder %s205, %s206
    %p218 = scmp.eq.s32.totalorder %s23, 1
    %p219 = por %p217, %p218
    %p221 = scmp.ne.s32.totalorder %s206, %s220
    %p222 = scmp.eq.s32.totalorder %s23, 0
    %p223 = por %p221, %p222
    %s225 = sadd.s32 %s224, 1
    %p228 = scmp.eq.s32.totalorder %s17, 1
    %p229 = scmp.ne.s32.totalorder %s224, %s226
    %p230 = scmp.eq.s32.totalorder %s17, 0
    %p231 = por %p229, %p230
    %p232 = scmp.ne.s32.totalorder %s224, %s226
    %p233 = scmp.eq.s32.totalorder %s22, 1
    %p234 = por %p232, %p233
    %p235 = scmp.ne.s32.totalorder %s226, %s227
    %p236 = scmp.eq.s32.totalorder %s22, 0
    %p237 = por %p235, %p236
    %p238 = scmp.ne.s32.totalorder %s226, %s227
    %p239 = scmp.eq.s32.totalorder %s23, 1
    %p240 = por %p238, %p239
    %p242 = scmp.ne.s32.totalorder %s227, %s241
    %p243 = scmp.eq.s32.totalorder %s23, 0
    %p244 = por %p242, %p243
    %s246 = sadd.s32 %s245, 1
    %p249 = scmp.eq.s32.totalorder %s17, 1
    %p250 = scmp.ne.s32.totalorder %s245, %s247
    %p251 = scmp.eq.s32.totalorder %s17, 0
    %p252 = por %p250, %p251
    %p253 = scmp.ne.s32.totalorder %s245, %s247
    %p254 = scmp.eq.s32.totalorder %s22, 1
    %p255 = por %p253, %p254
    %p256 = scmp.ne.s32.totalorder %s247, %s248
    %p257 = scmp.eq.s32.totalorder %s22, 0
    %p258 = por %p256, %p257
    %p259 = scmp.ne.s32.totalorder %s247, %s248
    %p260 = scmp.eq.s32.totalorder %s23, 1
    %p261 = por %p259, %p260
    %p263 = scmp.ne.s32.totalorder %s248, %s262
    %p264 = scmp.eq.s32.totalorder %s23, 0
    %p265 = por %p263, %p264
    %s267 = sadd.s32 %s266, 1
    %p270 = scmp.eq.s32.totalorder %s17, 1
    %p271 = scmp.ne.s32.totalorder %s266, %s268
    %p272 = scmp.eq.s32.totalorder %s17, 0
    %p273 = por %p271, %p272
    %p274 = scmp.ne.s32.totalorder %s266, %s268
    %p275 = scmp.eq.s32.totalorder %s22, 1
    %p276 = por %p274, %p275
    %p277 = scmp.ne.s32.totalorder %s268, %s269
    %p278 = scmp.eq.s32.totalorder %s22, 0
    %p279 = por %p277, %p278
    %p280 = scmp.ne.s32.totalorder %s268, %s269
    %p281 = scmp.eq.s32.totalorder %s23, 1
    %p282 = por %p280, %p281
    %p284 = scmp.ne.s32.totalorder %s269, %s283
    %p285 = scmp.eq.s32.totalorder %s23, 0
    %p286 = por %p284, %p285
    %s287 = ssub.s32 %s24, %s36
    %s288 = ssub.s32 %s25, %s32
    %s289 = sor.u32 %s287, %s288
    %p290 = scmp.eq.s32.totalorder %s289, 0
    %s292 = sadd.s32 %s291, 1
    %s293 = scalar_select %p290, %s291, %s292
    %p296 = pneg %p290
    %p297 = scmp.eq.s32.totalorder %s17, 1
    %p298 = por %p296, %p297
    %p299 = scmp.ne.s32.totalorder %s291, %s294
    %p300 = scmp.eq.s32.totalorder %s17, 0
    %p301 = por %p299, %p300
    %p302 = scmp.ne.s32.totalorder %s291, %s294
    %p303 = scmp.eq.s32.totalorder %s22, 1
    %p304 = por %p302, %p303
    %p305 = scmp.ne.s32.totalorder %s294, %s295
    %p306 = scmp.eq.s32.totalorder %s22, 0
    %p307 = por %p305, %p306
    %p308 = scmp.ne.s32.totalorder %s294, %s295
    %p309 = scmp.eq.s32.totalorder %s23, 1
    %p310 = por %p308, %p309
    %p312 = scmp.ne.s32.totalorder %s295, %s311
    %p313 = scmp.eq.s32.totalorder %s23, 0
    %p314 = por %p312, %p313
    %p315 = scmp.le.s32.totalorder 1, %s17
    %p316 = scmp.lt.s32.totalorder %s17, 3
    %p317 = pnand %p315, %p316
    %p318 = pneg %p317
    // Predicated region
    $region9: #{lan_forward.7} parent=5 // pred_check
      _
    $region10: #{lan_forward.7} parent=5 // pred_check_branch
      %320 = sbr.rel (%p317) target = $region12
    $region11: #{lan_forward.7} parent=5 // pred_region
      %s321 = ssub.s32 %s17, 1
      // Predicated region
      $region13: #{lan_forward.7} parent=11 // pred_check
        %p322 = pneg %p132
      $region14: #{lan_forward.7} parent=11 // pred_check_branch
        %324 = sbr.rel (%p322) target = $region16
      $region15: #{lan_forward.7} parent=11 // pred_region
        _
      $region16: #{lan_forward.7} parent=11 // pred_fallthru
        _
      // Predicated region
      $region17: #{lan_forward.7} parent=11 // pred_check
        %p325 = pneg %p153
      $region18: #{lan_forward.7} parent=11 // pred_check_branch
        %327 = sbr.rel (%p325) target = $region20
      $region19: #{lan_forward.7} parent=11 // pred_region
        _
      $region20: #{lan_forward.7} parent=11 // pred_fallthru
        _
      // Predicated region
      $region21: #{lan_forward.7} parent=11 // pred_check
        %p328 = pneg %p174
      $region22: #{lan_forward.7} parent=11 // pred_check_branch
        %330 = sbr.rel (%p328) target = $region24
      $region23: #{lan_forward.7} parent=11 // pred_region
        _
      $region24: #{lan_forward.7} parent=11 // pred_fallthru
        _
      // Predicated region
      $region25: #{lan_forward.7} parent=11 // pred_check
        %p331 = pneg %p195
      $region26: #{lan_forward.7} parent=11 // pred_check_branch
        %333 = sbr.rel (%p331) target = $region28
      $region27: #{lan_forward.7} parent=11 // pred_region
        _
      $region28: #{lan_forward.7} parent=11 // pred_fallthru
        _
      // Predicated region
      $region29: #{lan_forward.7} parent=11 // pred_check
        %p334 = pneg %p216
      $region30: #{lan_forward.7} parent=11 // pred_check_branch
        %336 = sbr.rel (%p334) target = $region32
      $region31: #{lan_forward.7} parent=11 // pred_region
        _
      $region32: #{lan_forward.7} parent=11 // pred_fallthru
        _
      // Predicated region
      $region33: #{lan_forward.7} parent=11 // pred_check
        %p337 = pneg %p237
      $region34: #{lan_forward.7} parent=11 // pred_check_branch
        %339 = sbr.rel (%p337) target = $region36
      $region35: #{lan_forward.7} parent=11 // pred_region
        _
      $region36: #{lan_forward.7} parent=11 // pred_fallthru
        _
      // Predicated region
      $region37: #{lan_forward.7} parent=11 // pred_check
        %p340 = pneg %p258
      $region38: #{lan_forward.7} parent=11 // pred_check_branch
        %342 = sbr.rel (%p340) target = $region40
      $region39: #{lan_forward.7} parent=11 // pred_region
        _
      $region40: #{lan_forward.7} parent=11 // pred_fallthru
        _
      // Predicated region
      $region41: #{lan_forward.7} parent=11 // pred_check
        %p343 = pneg %p279
      $region42: #{lan_forward.7} parent=11 // pred_check_branch
        %345 = sbr.rel (%p343) target = $region44
      $region43: #{lan_forward.7} parent=11 // pred_region
        _
      $region44: #{lan_forward.7} parent=11 // pred_fallthru
        _
    $region12: #{lan_forward.7} parent=5 // pred_fallthru
      _
    %p346 = scmp.lt.s32.totalorder %s17, 2
    // Predicated region
    $region45: #{lan_forward.7} parent=5 // pred_check
      %p347 = pneg %p346
    $region46: #{lan_forward.7} parent=5 // pred_check_branch
      %349 = sbr.rel (%p347) target = $region48
    $region47: #{lan_forward.7} parent=5 // pred_region
      // Predicated region
      $region49: #{lan_forward.7} parent=47 // pred_check
        %p350 = pneg %p51
      $region50: #{lan_forward.7} parent=47 // pred_check_branch
        %352 = sbr.rel (%p350) target = $region52
      $region51: #{lan_forward.7} parent=47 // pred_region
        %s353 = smul.u32 16, %s25
        %p354 = scmp.lt.s32.totalorder %s24, 1
        %s355 = scalar_select %p354, %s24, 1
        %p356 = scmp.lt.s32.totalorder %s353, 15
        %s357 = scalar_select %p356, %s353, 15
        %s358 = smul.addr %s355, 16
        %s359 = sadd.s32 %s357, %s358
        %s360 = smul.addr %s359, 4
        %s361 = scalar_lea.vmem %s0, %s360
        %s362 = smul.u32 16, %s25
      $region52: #{lan_forward.7} parent=47 // pred_fallthru
        _
      // Predicated region
      $region53: #{lan_forward.7} parent=47 // pred_check
        %p363 = pneg %p79
      $region54: #{lan_forward.7} parent=47 // pred_check_branch
        %365 = sbr.rel (%p363) target = $region56
      $region55: #{lan_forward.7} parent=47 // pred_region
        %s366 = smul.u32 16, %s25
        %p367 = scmp.lt.s32.totalorder %s24, 1
        %s368 = scalar_select %p367, %s24, 1
        %p369 = scmp.lt.s32.totalorder %s366, 15
        %s370 = scalar_select %p369, %s366, 15
        %s371 = smul.addr %s368, 16
        %s372 = sadd.s32 %s370, %s371
        %s373 = smul.addr %s372, 4
        %s374 = scalar_lea.vmem %s1, %s373
        %s375 = smul.u32 16, %s25
      $region56: #{lan_forward.7} parent=47 // pred_fallthru
        _
      // Predicated region
      $region57: #{lan_forward.7} parent=47 // pred_check
        %p376 = pneg %p105
      $region58: #{lan_forward.7} parent=47 // pred_check_branch
        %378 = sbr.rel (%p376) target = $region60
      $region59: #{lan_forward.7} parent=47 // pred_region
        %p379 = scmp.lt.s32.totalorder %s24, 1
        %s380 = scalar_select %p379, %s24, 1
        %s381 = scalar_lea.vmem %s2, %s380
      $region60: #{lan_forward.7} parent=47 // pred_fallthru
        _
    $region48: #{lan_forward.7} parent=5 // pred_fallthru
      _
    %p382 = scmp.le.s32.totalorder 1, %s17
    %p383 = scmp.lt.s32.totalorder %s17, 3
    %p384 = pnand %p382, %p383
    %p385 = pneg %p384
    // Predicated region
    $region61: #{lan_forward.7} parent=5 // pred_check
      _
    $region62: #{lan_forward.7} parent=5 // pred_check_branch
      %387 = sbr.rel (%p384) target = $region64
    $region63: #{lan_forward.7} parent=5 // pred_region
      %s388 = ssub.s32 %s17, 1
      %s389 = smul.u32 16, %s27
      %p390 = scmp.lt.s32.totalorder %s26, 1
      %s391 = scalar_select %p390, %s26, 1
      %p392 = scmp.lt.s32.totalorder %s389, 15
      %s393 = scalar_select %p392, %s389, 15
      %s394 = smul.addr %s391, 16
      %s395 = sadd.s32 %s393, %s394
      %s396 = smul.addr %s395, 4
      %s397 = scalar_lea.vmem %s0, %s396
      %p398 = pneg %p57
      %p399 = pneg %p54
      %s400 = smul.u32 16, %s27
      %p401 = scmp.lt.s32.totalorder %s26, 1
      %s402 = scalar_select %p401, %s26, 1
      %p403 = scmp.lt.s32.totalorder %s400, 15
      %s404 = scalar_select %p403, %s400, 15
      %s405 = smul.addr %s402, 16
      %s406 = sadd.s32 %s404, %s405
      %s407 = smul.addr %s406, 4
      %s408 = scalar_lea.vmem %s1, %s407
      %p409 = pneg %p85
      %p410 = pneg %p82
      %p411 = scmp.lt.s32.totalorder %s26, 1
      %s412 = scalar_select %p411, %s26, 1
      %s413 = scalar_lea.vmem %s2, %s412
      %p414 = pneg %p111
      %p415 = pneg %p108
      %p416 = pneg %p132
      %p417 = pneg %p129
      %p418 = pneg %p153
      %p419 = pneg %p150
      %p420 = pneg %p174
      %p421 = pneg %p171
      %p422 = pneg %p195
      %p423 = pneg %p192
      %p424 = pneg %p216
      %p425 = pneg %p213
      %p426 = pneg %p237
      %p427 = pneg %p234
      %p428 = pneg %p258
      %p429 = pneg %p255
      %p430 = pneg %p279
      %p431 = pneg %p276
      %p432 = pneg %p307
      %p433 = pneg %p304
      %s434 = smul.u32 16, %s27
      %p435 = scmp.lt.s32.totalorder %s26, 1
      %s436 = scalar_select %p435, %s26, 1
      %p437 = scmp.lt.s32.totalorder %s434, 15
      %s438 = scalar_select %p437, %s434, 15
      %s439 = smul.addr %s436, 16
      %s440 = sadd.s32 %s438, %s439
      %s441 = smul.addr %s440, 8
      %s442 = scalar_lea.vmem %s11, %s441
      %s443 = smul.u32 16, %s27
      %p444 = scmp.lt.s32.totalorder %s26, 1
      %s445 = scalar_select %p444, %s26, 1
      %p446 = scmp.lt.s32.totalorder %s443, 15
      %s447 = scalar_select %p446, %s443, 15
      %s448 = smul.addr %s445, 16
      %s449 = sadd.s32 %s447, %s448
      %s450 = smul.addr %s449, 4
      %s451 = scalar_lea.vmem %s0, %s450
      %s452 = smul.u32 16, %s27
      %s453 = smul.u32 16, %s27
      %p454 = scmp.lt.s32.totalorder %s26, 1
      %s455 = scalar_select %p454, %s26, 1
      %p456 = scmp.lt.s32.totalorder %s453, 15
      %s457 = scalar_select %p456, %s453, 15
      %s458 = smul.addr %s455, 16
      %s459 = sadd.s32 %s457, %s458
      %s460 = smul.addr %s459, 4
      %s461 = scalar_lea.vmem %s1, %s460
      %s462 = smul.u32 16, %s27
      %p463 = scmp.lt.s32.totalorder %s26, 1
      %s464 = scalar_select %p463, %s26, 1
      %s465 = scalar_lea.vmem %s2, %s464
      %s466 = smul.u32 16, %s27
      %p467 = scmp.lt.s32.totalorder %s26, 1
      %s468 = scalar_select %p467, %s26, 1
      %p469 = scmp.lt.s32.totalorder %s466, 15
      %s470 = scalar_select %p469, %s466, 15
      %s471 = smul.addr %s468, 16
      %s472 = sadd.s32 %s470, %s471
      %s473 = smul.addr %s472, 8
      %s474 = scalar_lea.vmem %s11, %s473
      %s475 = smul.u32 16, %s27
      %v477 = vld [vmem:[%s451] sm:$0xf]
      %v478 = vld [vmem:[%s451 + $0x4] sm:$0xf]
      %v479 = vld [vmem:[%s451 + $0x8] sm:$0xf]
      %v480 = vld [vmem:[%s451 + $0xc] sm:$0xf]
      %v481 = vld [vmem:[%s451 + $0x10] sm:$0xf]
      %v482 = vld [vmem:[%s451 + $0x14] sm:$0xf]
      %v483 = vld [vmem:[%s451 + $0x18] sm:$0xf]
      %v484 = vld [vmem:[%s451 + $0x1c] sm:$0xf]
      %v485 = vld [vmem:[%s451 + $0x20] sm:$0xf]
      %v486 = vld [vmem:[%s451 + $0x24] sm:$0xf]
      %v487 = vld [vmem:[%s451 + $0x28] sm:$0xf]
      %v488 = vld [vmem:[%s451 + $0x2c] sm:$0xf]
      %v489 = vld [vmem:[%s451 + $0x30] sm:$0xf]
      %v490 = vld [vmem:[%s451 + $0x34] sm:$0xf]
      %v491 = vld [vmem:[%s451 + $0x38] sm:$0xf]
      %v492 = vld [vmem:[%s451 + $0x3c] sm:$0xf]
      %v493 = vld [vmem:[%s3] sm:$0xf]
      %v494 = vld [vmem:[%s3 + $0x4] sm:$0xf]
      %v495 = vld [vmem:[%s3 + $0x8] sm:$0xf]
      %v496 = vld [vmem:[%s3 + $0xc] sm:$0xf]
      %v497 = vld [vmem:[%s3 + $0x10] sm:$0xf]
      %v498 = vld [vmem:[%s3 + $0x14] sm:$0xf]
      %v499 = vld [vmem:[%s3 + $0x18] sm:$0xf]
      %v500 = vld [vmem:[%s3 + $0x1c] sm:$0xf]
      %v501 = vld [vmem:[%s3 + $0x20] sm:$0xf]
      %v502 = vld [vmem:[%s3 + $0x24] sm:$0xf]
      %v503 = vld [vmem:[%s3 + $0x28] sm:$0xf]
      %v504 = vld [vmem:[%s3 + $0x2c] sm:$0xf]
      %v505 = vld [vmem:[%s3 + $0x30] sm:$0xf]
      %v506 = vld [vmem:[%s3 + $0x34] sm:$0xf]
      %v507 = vld [vmem:[%s3 + $0x38] sm:$0xf]
      %v508 = vld [vmem:[%s3 + $0x3c] sm:$0xf]
      %v509 = vld [vmem:[%s4] sm:$0x1]
      %v511 = vlaneseq
      %v512 = vshrl.u32 %v511, 7
      %v513 = vsub.s32 0, %v512
      %v514 = vrot.slane %v509, %v513
      %v532 = vunpack.c.l.b16 %v477
      %v533 = vunpack.c.l.b16 %v478
      %v534 = vunpack.c.l.b16 %v479
      %v535 = vunpack.c.l.b16 %v480
      %v536 = vunpack.c.l.b16 %v481
      %v537 = vunpack.c.l.b16 %v482
      %v538 = vunpack.c.l.b16 %v483
      %v539 = vunpack.c.l.b16 %v484
      %v540 = vunpack.c.l.b16 %v485
      %v541 = vunpack.c.l.b16 %v486
      %v542 = vunpack.c.l.b16 %v487
      %v543 = vunpack.c.l.b16 %v488
      %v544 = vunpack.c.l.b16 %v489
      %v545 = vunpack.c.l.b16 %v490
      %v546 = vunpack.c.l.b16 %v491
      %v547 = vunpack.c.l.b16 %v492
      %v548 = vpack.c.b16 %v533, %v532
      %v549 = vpack.c.b16 %v535, %v534
      %v550 = vpack.c.b16 %v537, %v536
      %v551 = vpack.c.b16 %v539, %v538
      %v552 = vpack.c.b16 %v541, %v540
      %v553 = vpack.c.b16 %v543, %v542
      %v554 = vpack.c.b16 %v545, %v544
      %v555 = vpack.c.b16 %v547, %v546
      %v580 = vunpack.c.l.b16 %v493
      %v581 = vunpack.c.l.b16 %v494
      %v582 = vunpack.c.l.b16 %v495
      %v583 = vunpack.c.l.b16 %v496
      %v584 = vunpack.c.l.b16 %v497
      %v585 = vunpack.c.l.b16 %v498
      %v586 = vunpack.c.l.b16 %v499
      %v587 = vunpack.c.l.b16 %v500
      %v588 = vunpack.c.l.b16 %v501
      %v589 = vunpack.c.l.b16 %v502
      %v590 = vunpack.c.l.b16 %v503
      %v591 = vunpack.c.l.b16 %v504
      %v592 = vunpack.c.l.b16 %v505
      %v593 = vunpack.c.l.b16 %v506
      %v594 = vunpack.c.l.b16 %v507
      %v595 = vunpack.c.l.b16 %v508
      %v596 = vpack.c.b16 %v581, %v580
      %v597 = vpack.c.b16 %v583, %v582
      %v598 = vpack.c.b16 %v585, %v584
      %v599 = vpack.c.b16 %v587, %v586
      %v600 = vpack.c.b16 %v589, %v588
      %v601 = vpack.c.b16 %v591, %v590
      %v602 = vpack.c.b16 %v593, %v592
      %v603 = vpack.c.b16 %v595, %v594
      %612 = vmatprep.subr.bf16.mxu0 0
      %613 = vmatpush1.bf16.msra.mxu0 %v596
      %614 = vmatprep.subr.bf16.mxu0 0
      %615 = vmatpush1.bf16.msra.mxu0 %v597
      %616 = vmatprep.subr.bf16.mxu0 0
      %617 = vmatpush1.bf16.msra.mxu0 %v598
      %618 = vmatprep.subr.bf16.mxu0 0
      %619 = vmatpush1.bf16.msra.mxu0 %v599
      %620 = vmatprep.subr.bf16.mxu0 0
      %621 = vmatpush1.bf16.msra.mxu0 %v600
      %622 = vmatprep.subr.bf16.mxu0 0
      %623 = vmatpush1.bf16.msra.mxu0 %v601
      %624 = vmatprep.subr.bf16.mxu0 0
      %625 = vmatpush1.bf16.msra.mxu0 %v602
      %626 = vmatprep.subr.bf16.mxu0 0
      %627 = vmatpush1.bf16.msra.mxu0 %v603
      %628 = vmatprep.subr.bf16.mxu0 0
      %629 = vmatpush1.bf16.msra.mxu0 0
      %630 = vmatprep.subr.bf16.mxu0 0
      %631 = vmatpush1.bf16.msra.mxu0 0
      %632 = vmatprep.subr.bf16.mxu0 0
      %633 = vmatpush1.bf16.msra.mxu0 0
      %634 = vmatprep.subr.bf16.mxu0 0
      %635 = vmatpush1.bf16.msra.mxu0 0
      %636 = vmatprep.subr.bf16.mxu0 0
      %637 = vmatpush1.bf16.msra.mxu0 0
      %638 = vmatprep.subr.bf16.mxu0 0
      %639 = vmatpush1.bf16.msra.mxu0 0
      %640 = vmatprep.subr.bf16.mxu0 0
      %641 = vmatpush1.bf16.msra.mxu0 0
      %642 = vmatprep.subr.bf16.mxu0 0
      %643 = vmatpush1.bf16.msra.mxu0 0
      %644 = vmatprep.mubr.bf16.mxu0 0
      %645 = vmatmul.mubr.bf16.gmra.mrb[0].mxu0 %v548
      %v646 = vpop.f32.mrb[0].mxu0
      %v647 = vadd.f32 %v514, %v646
      %v648 = vpop.f32.mrb[0].mxu0
      %v649 = vpop.f32.mrb[0].mxu0
      %v650 = vadd.f32 %v514, %v649
      %v651 = vpop.f32.mrb[0].mxu0
      %652 = vmatprep.mubr.bf16.mxu0 0
      %653 = vmatmul.mubr.bf16.gmra.mrb[0].mxu0 %v549
      %v654 = vpop.f32.mrb[0].mxu0
      %v655 = vadd.f32 %v514, %v654
      %v656 = vpop.f32.mrb[0].mxu0
      %v657 = vpop.f32.mrb[0].mxu0
      %v658 = vadd.f32 %v514, %v657
      %v659 = vpop.f32.mrb[0].mxu0
      %660 = vmatprep.mubr.bf16.mxu0 0
      %661 = vmatmul.mubr.bf16.gmra.mrb[0].mxu0 %v550
      %v662 = vpop.f32.mrb[0].mxu0
      %v663 = vadd.f32 %v514, %v662
      %v664 = vpop.f32.mrb[0].mxu0
      %v665 = vpop.f32.mrb[0].mxu0
      %v666 = vadd.f32 %v514, %v665
      %v667 = vpop.f32.mrb[0].mxu0
      %668 = vmatprep.mubr.bf16.mxu0 0
      %669 = vmatmul.mubr.bf16.gmra.mrb[0].mxu0 %v551
      %v670 = vpop.f32.mrb[0].mxu0
      %v671 = vadd.f32 %v514, %v670
      %v672 = vpop.f32.mrb[0].mxu0
      %v673 = vpop.f32.mrb[0].mxu0
      %v674 = vadd.f32 %v514, %v673
      %v675 = vpop.f32.mrb[0].mxu0
      %676 = vmatprep.mubr.bf16.mxu0 0
      %677 = vmatmul.mubr.bf16.gmra.mrb[0].mxu0 %v552
      %v678 = vpop.f32.mrb[0].mxu0
      %v679 = vadd.f32 %v514, %v678
      %v680 = vpop.f32.mrb[0].mxu0
      %v681 = vpop.f32.mrb[0].mxu0
      %v682 = vadd.f32 %v514, %v681
      %v683 = vpop.f32.mrb[0].mxu0
      %684 = vmatprep.mubr.bf16.mxu0 0
      %685 = vmatmul.mubr.bf16.gmra.mrb[0].mxu0 %v553
      %v686 = vpop.f32.mrb[0].mxu0
      %v687 = vadd.f32 %v514, %v686
      %v688 = vpop.f32.mrb[0].mxu0
      %v689 = vpop.f32.mrb[0].mxu0
      %v690 = vadd.f32 %v514, %v689
      %v691 = vpop.f32.mrb[0].mxu0
      %692 = vmatprep.mubr.bf16.mxu0 0
      %693 = vmatmul.mubr.bf16.gmra.mrb[0].mxu0 %v554
      %v694 = vpop.f32.mrb[0].mxu0
      %v695 = vadd.f32 %v514, %v694
      %v696 = vpop.f32.mrb[0].mxu0
      %v697 = vpop.f32.mrb[0].mxu0
      %v698 = vadd.f32 %v514, %v697
      %v699 = vpop.f32.mrb[0].mxu0
      %700 = vmatprep.mubr.bf16.mxu0 0
      %701 = vmatmul.mubr.bf16.gmra.mrb[0].mxu0 %v555
      %v702 = vpop.f32.mrb[0].mxu0
      %v703 = vadd.f32 %v514, %v702
      %v704 = vpop.f32.mrb[0].mxu0
      %v705 = vpop.f32.mrb[0].mxu0
      %v706 = vadd.f32 %v514, %v705
      %v707 = vpop.f32.mrb[0].mxu0
      %708 = vdwg.mxu0
      %v709 = vmax.f32 %v647, 0.0
      %v710 = vmax.f32 %v650, 0.0
      %v711 = vmax.f32 %v655, 0.0
      %v712 = vmax.f32 %v658, 0.0
      %v713 = vmax.f32 %v663, 0.0
      %v714 = vmax.f32 %v666, 0.0
      %v715 = vmax.f32 %v671, 0.0
      %v716 = vmax.f32 %v674, 0.0
      %v717 = vmax.f32 %v679, 0.0
      %v718 = vmax.f32 %v682, 0.0
      %v719 = vmax.f32 %v687, 0.0
      %v720 = vmax.f32 %v690, 0.0
      %v721 = vmax.f32 %v695, 0.0
      %v722 = vmax.f32 %v698, 0.0
      %v723 = vmax.f32 %v703, 0.0
      %v724 = vmax.f32 %v706, 0.0
      %v725 = vpack.c.bf16 %v710, %v709
      %v726 = vpack.c.bf16 %v712, %v711
      %v727 = vpack.c.bf16 %v714, %v713
      %v728 = vpack.c.bf16 %v716, %v715
      %v729 = vpack.c.bf16 %v718, %v717
      %v730 = vpack.c.bf16 %v720, %v719
      %v731 = vpack.c.bf16 %v722, %v721
      %v732 = vpack.c.bf16 %v724, %v723
      %v733 = vld [vmem:[%s5] sm:$0xf]
      %v734 = vld [vmem:[%s5 + $0x4] sm:$0xf]
      %v735 = vld [vmem:[%s5 + $0x8] sm:$0xf]
      %v736 = vld [vmem:[%s5 + $0xc] sm:$0xf]
      %v737 = vld [vmem:[%s5 + $0x10] sm:$0xf]
      %v738 = vld [vmem:[%s5 + $0x14] sm:$0xf]
      %v739 = vld [vmem:[%s5 + $0x18] sm:$0xf]
      %v740 = vld [vmem:[%s5 + $0x1c] sm:$0xf]
      %v741 = vld [vmem:[%s5 + $0x20] sm:$0xf]
      %v742 = vld [vmem:[%s5 + $0x24] sm:$0xf]
      %v743 = vld [vmem:[%s5 + $0x28] sm:$0xf]
      %v744 = vld [vmem:[%s5 + $0x2c] sm:$0xf]
      %v745 = vld [vmem:[%s5 + $0x30] sm:$0xf]
      %v746 = vld [vmem:[%s5 + $0x34] sm:$0xf]
      %v747 = vld [vmem:[%s5 + $0x38] sm:$0xf]
      %v748 = vld [vmem:[%s5 + $0x3c] sm:$0xf]
      %v749 = vld [vmem:[%s6] sm:$0x1]
      %v751 = vlaneseq
      %v752 = vshrl.u32 %v751, 7
      %v753 = vsub.s32 0, %v752
      %v754 = vrot.slane %v749, %v753
      %v772 = vunpack.c.l.b16 %v733
      %v773 = vunpack.c.l.b16 %v734
      %v774 = vunpack.c.l.b16 %v735
      %v775 = vunpack.c.l.b16 %v736
      %v776 = vunpack.c.l.b16 %v737
      %v777 = vunpack.c.l.b16 %v738
      %v778 = vunpack.c.l.b16 %v739
      %v779 = vunpack.c.l.b16 %v740
      %v780 = vunpack.c.l.b16 %v741
      %v781 = vunpack.c.l.b16 %v742
      %v782 = vunpack.c.l.b16 %v743
      %v783 = vunpack.c.l.b16 %v744
      %v784 = vunpack.c.l.b16 %v745
      %v785 = vunpack.c.l.b16 %v746
      %v786 = vunpack.c.l.b16 %v747
      %v787 = vunpack.c.l.b16 %v748
      %v788 = vpack.c.b16 %v773, %v772
      %v789 = vpack.c.b16 %v775, %v774
      %v790 = vpack.c.b16 %v777, %v776
      %v791 = vpack.c.b16 %v779, %v778
      %v792 = vpack.c.b16 %v781, %v780
      %v793 = vpack.c.b16 %v783, %v782
      %v794 = vpack.c.b16 %v785, %v784
      %v795 = vpack.c.b16 %v787, %v786
      %804 = vmatprep.subr.bf16.mxu0 0
      %805 = vmatpush1.bf16.msra.mxu0 %v788
      %806 = vmatprep.subr.bf16.mxu0 0
      %807 = vmatpush1.bf16.msra.mxu0 %v789
      %808 = vmatprep.subr.bf16.mxu0 0
      %809 = vmatpush1.bf16.msra.mxu0 %v790
      %810 = vmatprep.subr.bf16.mxu0 0
      %811 = vmatpush1.bf16.msra.mxu0 %v791
      %812 = vmatprep.subr.bf16.mxu0 0
      %813 = vmatpush1.bf16.msra.mxu0 %v792
      %814 = vmatprep.subr.bf16.mxu0 0
      %815 = vmatpush1.bf16.msra.mxu0 %v793
      %816 = vmatprep.subr.bf16.mxu0 0
      %817 = vmatpush1.bf16.msra.mxu0 %v794
      %818 = vmatprep.subr.bf16.mxu0 0
      %819 = vmatpush1.bf16.msra.mxu0 %v795
      %820 = vmatprep.subr.bf16.mxu0 0
      %821 = vmatpush1.bf16.msra.mxu0 0
      %822 = vmatprep.subr.bf16.mxu0 0
      %823 = vmatpush1.bf16.msra.mxu0 0
      %824 = vmatprep.subr.bf16.mxu0 0
      %825 = vmatpush1.bf16.msra.mxu0 0
      %826 = vmatprep.subr.bf16.mxu0 0
      %827 = vmatpush1.bf16.msra.mxu0 0
      %828 = vmatprep.subr.bf16.mxu0 0
      %829 = vmatpush1.bf16.msra.mxu0 0
      %830 = vmatprep.subr.bf16.mxu0 0
      %831 = vmatpush1.bf16.msra.mxu0 0
      %832 = vmatprep.subr.bf16.mxu0 0
      %833 = vmatpush1.bf16.msra.mxu0 0
      %834 = vmatprep.subr.bf16.mxu0 0
      %835 = vmatpush1.bf16.msra.mxu0 0
      %836 = vmatprep.mubr.bf16.mxu0 0
      %837 = vmatmul.mubr.bf16.gmra.mrb[0].mxu0 %v725
      %v838 = vpop.f32.mrb[0].mxu0
      %v839 = vadd.f32 %v754, %v838
      %v840 = vpop.f32.mrb[0].mxu0
      %v841 = vpop.f32.mrb[0].mxu0
      %v842 = vadd.f32 %v754, %v841
      %v843 = vpop.f32.mrb[0].mxu0
      %844 = vmatprep.mubr.bf16.mxu0 0
      %845 = vmatmul.mubr.bf16.gmra.mrb[0].mxu0 %v726
      %v846 = vpop.f32.mrb[0].mxu0
      %v847 = vadd.f32 %v754, %v846
      %v848 = vpop.f32.mrb[0].mxu0
      %v849 = vpop.f32.mrb[0].mxu0
      %v850 = vadd.f32 %v754, %v849
      %v851 = vpop.f32.mrb[0].mxu0
      %852 = vmatprep.mubr.bf16.mxu0 0
      %853 = vmatmul.mubr.bf16.gmra.mrb[0].mxu0 %v727
      %v854 = vpop.f32.mrb[0].mxu0
      %v855 = vadd.f32 %v754, %v854
      %v856 = vpop.f32.mrb[0].mxu0
      %v857 = vpop.f32.mrb[0].mxu0
      %v858 = vadd.f32 %v754, %v857
      %v859 = vpop.f32.mrb[0].mxu0
      %860 = vmatprep.mubr.bf16.mxu0 0
      %861 = vmatmul.mubr.bf16.gmra.mrb[0].mxu0 %v728
      %v862 = vpop.f32.mrb[0].mxu0
      %v863 = vadd.f32 %v754, %v862
      %v864 = vpop.f32.mrb[0].mxu0
      %v865 = vpop.f32.mrb[0].mxu0
      %v866 = vadd.f32 %v754, %v865
      %v867 = vpop.f32.mrb[0].mxu0
      %868 = vmatprep.mubr.bf16.mxu0 0
      %869 = vmatmul.mubr.bf16.gmra.mrb[0].mxu0 %v729
      %v870 = vpop.f32.mrb[0].mxu0
      %v871 = vadd.f32 %v754, %v870
      %v872 = vpop.f32.mrb[0].mxu0
      %v873 = vpop.f32.mrb[0].mxu0
      %v874 = vadd.f32 %v754, %v873
      %v875 = vpop.f32.mrb[0].mxu0
      %876 = vmatprep.mubr.bf16.mxu0 0
      %877 = vmatmul.mubr.bf16.gmra.mrb[0].mxu0 %v730
      %v878 = vpop.f32.mrb[0].mxu0
      %v879 = vadd.f32 %v754, %v878
      %v880 = vpop.f32.mrb[0].mxu0
      %v881 = vpop.f32.mrb[0].mxu0
      %v882 = vadd.f32 %v754, %v881
      %v883 = vpop.f32.mrb[0].mxu0
      %884 = vmatprep.mubr.bf16.mxu0 0
      %885 = vmatmul.mubr.bf16.gmra.mrb[0].mxu0 %v731
      %v886 = vpop.f32.mrb[0].mxu0
      %v887 = vadd.f32 %v754, %v886
      %v888 = vpop.f32.mrb[0].mxu0
      %v889 = vpop.f32.mrb[0].mxu0
      %v890 = vadd.f32 %v754, %v889
      %v891 = vpop.f32.mrb[0].mxu0
      %892 = vmatprep.mubr.bf16.mxu0 0
      %893 = vmatmul.mubr.bf16.gmra.mrb[0].mxu0 %v732
      %v894 = vpop.f32.mrb[0].mxu0
      %v895 = vadd.f32 %v754, %v894
      %v896 = vpop.f32.mrb[0].mxu0
      %v897 = vpop.f32.mrb[0].mxu0
      %v898 = vadd.f32 %v754, %v897
      %v899 = vpop.f32.mrb[0].mxu0
      %900 = vdwg.mxu0
      %v901 = vld [vmem:[%s465] sm:$0x1]
      %v903 = vlaneseq
      %v904 = vshrl.u32 %v903, 7
      %v905 = vsub.s32 0, %v904
      %v906 = vrot.slane %v901, %v905
      %v908 = vmul.f32 %v839, %v906
      %v909 = vmul.f32 %v842, %v906
      %v910 = vmul.f32 %v847, %v906
      %v911 = vmul.f32 %v850, %v906
      %v912 = vmul.f32 %v855, %v906
      %v913 = vmul.f32 %v858, %v906
      %v914 = vmul.f32 %v863, %v906
      %v915 = vmul.f32 %v866, %v906
      %v916 = vmul.f32 %v871, %v906
      %v917 = vmul.f32 %v874, %v906
      %v918 = vmul.f32 %v879, %v906
      %v919 = vmul.f32 %v882, %v906
      %v920 = vmul.f32 %v887, %v906
      %v921 = vmul.f32 %v890, %v906
      %v922 = vmul.f32 %v895, %v906
      %v923 = vmul.f32 %v898, %v906
      %v924 = vunpack.c.l.bf16 %v477
      %v925 = vunpack.c.l.bf16 %v478
      %v926 = vunpack.c.l.bf16 %v479
      %v927 = vunpack.c.l.bf16 %v480
      %v928 = vunpack.c.l.bf16 %v481
      %v929 = vunpack.c.l.bf16 %v482
      %v930 = vunpack.c.l.bf16 %v483
      %v931 = vunpack.c.l.bf16 %v484
      %v932 = vunpack.c.l.bf16 %v485
      %v933 = vunpack.c.l.bf16 %v486
      %v934 = vunpack.c.l.bf16 %v487
      %v935 = vunpack.c.l.bf16 %v488
      %v936 = vunpack.c.l.bf16 %v489
      %v937 = vunpack.c.l.bf16 %v490
      %v938 = vunpack.c.l.bf16 %v491
      %v939 = vunpack.c.l.bf16 %v492
      %v940 = vadd.f32 %v908, %v924
      %v941 = vadd.f32 %v909, %v925
      %v942 = vadd.f32 %v910, %v926
      %v943 = vadd.f32 %v911, %v927
      %v944 = vadd.f32 %v912, %v928
      %v945 = vadd.f32 %v913, %v929
      %v946 = vadd.f32 %v914, %v930
      %v947 = vadd.f32 %v915, %v931
      %v948 = vadd.f32 %v916, %v932
      %v949 = vadd.f32 %v917, %v933
      %v950 = vadd.f32 %v918, %v934
      %v951 = vadd.f32 %v919, %v935
      %v952 = vadd.f32 %v920, %v936
      %v953 = vadd.f32 %v921, %v937
      %v954 = vadd.f32 %v922, %v938
      %v955 = vadd.f32 %v923, %v939
      %v956 = vpack.c.bf16 %v941, %v940
      %v957 = vpack.c.bf16 %v943, %v942
      %v958 = vpack.c.bf16 %v945, %v944
      %v959 = vpack.c.bf16 %v947, %v946
      %v960 = vpack.c.bf16 %v949, %v948
      %v961 = vpack.c.bf16 %v951, %v950
      %v962 = vpack.c.bf16 %v953, %v952
      %v963 = vpack.c.bf16 %v955, %v954
      %v964 = vld [vmem:[%s7] sm:$0xf]
      %v965 = vld [vmem:[%s7 + $0x4] sm:$0xf]
      %v966 = vld [vmem:[%s7 + $0x8] sm:$0xf]
      %v967 = vld [vmem:[%s7 + $0xc] sm:$0xf]
      %v968 = vld [vmem:[%s7 + $0x10] sm:$0xf]
      %v969 = vld [vmem:[%s7 + $0x14] sm:$0xf]
      %v970 = vld [vmem:[%s7 + $0x18] sm:$0xf]
      %v971 = vld [vmem:[%s7 + $0x1c] sm:$0xf]
      %v972 = vld [vmem:[%s7 + $0x20] sm:$0xf]
      %v973 = vld [vmem:[%s7 + $0x24] sm:$0xf]
      %v974 = vld [vmem:[%s7 + $0x28] sm:$0xf]
      %v975 = vld [vmem:[%s7 + $0x2c] sm:$0xf]
      %v976 = vld [vmem:[%s7 + $0x30] sm:$0xf]
      %v977 = vld [vmem:[%s7 + $0x34] sm:$0xf]
      %v978 = vld [vmem:[%s7 + $0x38] sm:$0xf]
      %v979 = vld [vmem:[%s7 + $0x3c] sm:$0xf]
      %v980 = vld [vmem:[%s8] sm:$0x1]
      %v982 = vlaneseq
      %v983 = vshrl.u32 %v982, 7
      %v984 = vsub.s32 0, %v983
      %v985 = vrot.slane %v980, %v984
      %v1003 = vunpack.c.l.b16 %v964
      %v1004 = vunpack.c.l.b16 %v965
      %v1005 = vunpack.c.l.b16 %v966
      %v1006 = vunpack.c.l.b16 %v967
      %v1007 = vunpack.c.l.b16 %v968
      %v1008 = vunpack.c.l.b16 %v969
      %v1009 = vunpack.c.l.b16 %v970
      %v1010 = vunpack.c.l.b16 %v971
      %v1011 = vunpack.c.l.b16 %v972
      %v1012 = vunpack.c.l.b16 %v973
      %v1013 = vunpack.c.l.b16 %v974
      %v1014 = vunpack.c.l.b16 %v975
      %v1015 = vunpack.c.l.b16 %v976
      %v1016 = vunpack.c.l.b16 %v977
      %v1017 = vunpack.c.l.b16 %v978
      %v1018 = vunpack.c.l.b16 %v979
      %v1019 = vpack.c.b16 %v1004, %v1003
      %v1020 = vpack.c.b16 %v1006, %v1005
      %v1021 = vpack.c.b16 %v1008, %v1007
      %v1022 = vpack.c.b16 %v1010, %v1009
      %v1023 = vpack.c.b16 %v1012, %v1011
      %v1024 = vpack.c.b16 %v1014, %v1013
      %v1025 = vpack.c.b16 %v1016, %v1015
      %v1026 = vpack.c.b16 %v1018, %v1017
      %1035 = vmatprep.subr.bf16.mxu0 0
      %1036 = vmatpush1.bf16.msra.mxu0 %v1019
      %1037 = vmatprep.subr.bf16.mxu0 0
      %1038 = vmatpush1.bf16.msra.mxu0 %v1020
      %1039 = vmatprep.subr.bf16.mxu0 0
      %1040 = vmatpush1.bf16.msra.mxu0 %v1021
      %1041 = vmatprep.subr.bf16.mxu0 0
      %1042 = vmatpush1.bf16.msra.mxu0 %v1022
      %1043 = vmatprep.subr.bf16.mxu0 0
      %1044 = vmatpush1.bf16.msra.mxu0 %v1023
      %1045 = vmatprep.subr.bf16.mxu0 0
      %1046 = vmatpush1.bf16.msra.mxu0 %v1024
      %1047 = vmatprep.subr.bf16.mxu0 0
      %1048 = vmatpush1.bf16.msra.mxu0 %v1025
      %1049 = vmatprep.subr.bf16.mxu0 0
      %1050 = vmatpush1.bf16.msra.mxu0 %v1026
      %1051 = vmatprep.subr.bf16.mxu0 0
      %1052 = vmatpush1.bf16.msra.mxu0 0
      %1053 = vmatprep.subr.bf16.mxu0 0
      %1054 = vmatpush1.bf16.msra.mxu0 0
      %1055 = vmatprep.subr.bf16.mxu0 0
      %1056 = vmatpush1.bf16.msra.mxu0 0
      %1057 = vmatprep.subr.bf16.mxu0 0
      %1058 = vmatpush1.bf16.msra.mxu0 0
      %1059 = vmatprep.subr.bf16.mxu0 0
      %1060 = vmatpush1.bf16.msra.mxu0 0
      %1061 = vmatprep.subr.bf16.mxu0 0
      %1062 = vmatpush1.bf16.msra.mxu0 0
      %1063 = vmatprep.subr.bf16.mxu0 0
      %1064 = vmatpush1.bf16.msra.mxu0 0
      %1065 = vmatprep.subr.bf16.mxu0 0
      %1066 = vmatpush1.bf16.msra.mxu0 0
      %1067 = vmatprep.mubr.bf16.mxu0 0
      %1068 = vmatmul.mubr.bf16.gmra.mrb[0].mxu0 %v956
      %v1069 = vpop.f32.mrb[0].mxu0
      %v1070 = vadd.f32 %v985, %v1069
      %v1071 = vpop.f32.mrb[0].mxu0
      %v1072 = vpop.f32.mrb[0].mxu0
      %v1073 = vadd.f32 %v985, %v1072
      %v1074 = vpop.f32.mrb[0].mxu0
      %1075 = vmatprep.mubr.bf16.mxu0 0
      %1076 = vmatmul.mubr.bf16.gmra.mrb[0].mxu0 %v957
      %v1077 = vpop.f32.mrb[0].mxu0
      %v1078 = vadd.f32 %v985, %v1077
      %v1079 = vpop.f32.mrb[0].mxu0
      %v1080 = vpop.f32.mrb[0].mxu0
      %v1081 = vadd.f32 %v985, %v1080
      %v1082 = vpop.f32.mrb[0].mxu0
      %1083 = vmatprep.mubr.bf16.mxu0 0
      %1084 = vmatmul.mubr.bf16.gmra.mrb[0].mxu0 %v958
      %v1085 = vpop.f32.mrb[0].mxu0
      %v1086 = vadd.f32 %v985, %v1085
      %v1087 = vpop.f32.mrb[0].mxu0
      %v1088 = vpop.f32.mrb[0].mxu0
      %v1089 = vadd.f32 %v985, %v1088
      %v1090 = vpop.f32.mrb[0].mxu0
      %1091 = vmatprep.mubr.bf16.mxu0 0
      %1092 = vmatmul.mubr.bf16.gmra.mrb[0].mxu0 %v959
      %v1093 = vpop.f32.mrb[0].mxu0
      %v1094 = vadd.f32 %v985, %v1093
      %v1095 = vpop.f32.mrb[0].mxu0
      %v1096 = vpop.f32.mrb[0].mxu0
      %v1097 = vadd.f32 %v985, %v1096
      %v1098 = vpop.f32.mrb[0].mxu0
      %1099 = vmatprep.mubr.bf16.mxu0 0
      %1100 = vmatmul.mubr.bf16.gmra.mrb[0].mxu0 %v960
      %v1101 = vpop.f32.mrb[0].mxu0
      %v1102 = vadd.f32 %v985, %v1101
      %v1103 = vpop.f32.mrb[0].mxu0
      %v1104 = vpop.f32.mrb[0].mxu0
      %v1105 = vadd.f32 %v985, %v1104
      %v1106 = vpop.f32.mrb[0].mxu0
      %1107 = vmatprep.mubr.bf16.mxu0 0
      %1108 = vmatmul.mubr.bf16.gmra.mrb[0].mxu0 %v961
      %v1109 = vpop.f32.mrb[0].mxu0
      %v1110 = vadd.f32 %v985, %v1109
      %v1111 = vpop.f32.mrb[0].mxu0
      %v1112 = vpop.f32.mrb[0].mxu0
      %v1113 = vadd.f32 %v985, %v1112
      %v1114 = vpop.f32.mrb[0].mxu0
      %1115 = vmatprep.mubr.bf16.mxu0 0
      %1116 = vmatmul.mubr.bf16.gmra.mrb[0].mxu0 %v962
      %v1117 = vpop.f32.mrb[0].mxu0
      %v1118 = vadd.f32 %v985, %v1117
      %v1119 = vpop.f32.mrb[0].mxu0
      %v1120 = vpop.f32.mrb[0].mxu0
      %v1121 = vadd.f32 %v985, %v1120
      %v1122 = vpop.f32.mrb[0].mxu0
      %1123 = vmatprep.mubr.bf16.mxu0 0
      %1124 = vmatmul.mubr.bf16.gmra.mrb[0].mxu0 %v963
      %v1125 = vpop.f32.mrb[0].mxu0
      %v1126 = vadd.f32 %v985, %v1125
      %v1127 = vpop.f32.mrb[0].mxu0
      %v1128 = vpop.f32.mrb[0].mxu0
      %v1129 = vadd.f32 %v985, %v1128
      %v1130 = vpop.f32.mrb[0].mxu0
      %1131 = vdwg.mxu0
      %v1132 = vld [vmem:[%s461] sm:$0xf]
      %v1133 = vld [vmem:[%s461 + $0x4] sm:$0xf]
      %v1134 = vld [vmem:[%s461 + $0x8] sm:$0xf]
      %v1135 = vld [vmem:[%s461 + $0xc] sm:$0xf]
      %v1136 = vld [vmem:[%s461 + $0x10] sm:$0xf]
      %v1137 = vld [vmem:[%s461 + $0x14] sm:$0xf]
      %v1138 = vld [vmem:[%s461 + $0x18] sm:$0xf]
      %v1139 = vld [vmem:[%s461 + $0x1c] sm:$0xf]
      %v1140 = vld [vmem:[%s461 + $0x20] sm:$0xf]
      %v1141 = vld [vmem:[%s461 + $0x24] sm:$0xf]
      %v1142 = vld [vmem:[%s461 + $0x28] sm:$0xf]
      %v1143 = vld [vmem:[%s461 + $0x2c] sm:$0xf]
      %v1144 = vld [vmem:[%s461 + $0x30] sm:$0xf]
      %v1145 = vld [vmem:[%s461 + $0x34] sm:$0xf]
      %v1146 = vld [vmem:[%s461 + $0x38] sm:$0xf]
      %v1147 = vld [vmem:[%s461 + $0x3c] sm:$0xf]
      %v1148 = vunpack.c.l.bf16 %v1132
      %v1149 = vunpack.c.l.bf16 %v1133
      %v1150 = vunpack.c.l.bf16 %v1134
      %v1151 = vunpack.c.l.bf16 %v1135
      %v1152 = vunpack.c.l.bf16 %v1136
      %v1153 = vunpack.c.l.bf16 %v1137
      %v1154 = vunpack.c.l.bf16 %v1138
      %v1155 = vunpack.c.l.bf16 %v1139
      %v1156 = vunpack.c.l.bf16 %v1140
      %v1157 = vunpack.c.l.bf16 %v1141
      %v1158 = vunpack.c.l.bf16 %v1142
      %v1159 = vunpack.c.l.bf16 %v1143
      %v1160 = vunpack.c.l.bf16 %v1144
      %v1161 = vunpack.c.l.bf16 %v1145
      %v1162 = vunpack.c.l.bf16 %v1146
      %v1163 = vunpack.c.l.bf16 %v1147
      %v1164 = vadd.f32 %v1070, %v1148
      %v1165 = vadd.f32 %v1073, %v1149
      %v1166 = vadd.f32 %v1078, %v1150
      %v1167 = vadd.f32 %v1081, %v1151
      %v1168 = vadd.f32 %v1086, %v1152
      %v1169 = vadd.f32 %v1089, %v1153
      %v1170 = vadd.f32 %v1094, %v1154
      %v1171 = vadd.f32 %v1097, %v1155
      %v1172 = vadd.f32 %v1102, %v1156
      %v1173 = vadd.f32 %v1105, %v1157
      %v1174 = vadd.f32 %v1110, %v1158
      %v1175 = vadd.f32 %v1113, %v1159
      %v1176 = vadd.f32 %v1118, %v1160
      %v1177 = vadd.f32 %v1121, %v1161
      %v1178 = vadd.f32 %v1126, %v1162
      %v1179 = vadd.f32 %v1129, %v1163
      %v1180 = vpack.c.bf16 %v1165, %v1164
      %v1181 = vpack.c.bf16 %v1167, %v1166
      %v1182 = vpack.c.bf16 %v1169, %v1168
      %v1183 = vpack.c.bf16 %v1171, %v1170
      %v1184 = vpack.c.bf16 %v1173, %v1172
      %v1185 = vpack.c.bf16 %v1175, %v1174
      %v1186 = vpack.c.bf16 %v1177, %v1176
      %v1187 = vpack.c.bf16 %v1179, %v1178
      %v1188 = vld [vmem:[%s9] sm:$0xf]
      %v1189 = vld [vmem:[%s9 + $0x4] sm:$0xf]
      %v1190 = vld [vmem:[%s9 + $0x8] sm:$0xf]
      %v1191 = vld [vmem:[%s9 + $0xc] sm:$0xf]
      %v1192 = vld [vmem:[%s9 + $0x10] sm:$0xf]
      %v1193 = vld [vmem:[%s9 + $0x14] sm:$0xf]
      %v1194 = vld [vmem:[%s9 + $0x18] sm:$0xf]
      %v1195 = vld [vmem:[%s9 + $0x1c] sm:$0xf]
      %v1196 = vld [vmem:[%s9 + $0x20] sm:$0xf]
      %v1197 = vld [vmem:[%s9 + $0x24] sm:$0xf]
      %v1198 = vld [vmem:[%s9 + $0x28] sm:$0xf]
      %v1199 = vld [vmem:[%s9 + $0x2c] sm:$0xf]
      %v1200 = vld [vmem:[%s9 + $0x30] sm:$0xf]
      %v1201 = vld [vmem:[%s9 + $0x34] sm:$0xf]
      %v1202 = vld [vmem:[%s9 + $0x38] sm:$0xf]
      %v1203 = vld [vmem:[%s9 + $0x3c] sm:$0xf]
      %v1204 = vld [vmem:[%s10] sm:$0x1]
      %v1206 = vlaneseq
      %v1207 = vshrl.u32 %v1206, 7
      %v1208 = vsub.s32 0, %v1207
      %v1209 = vrot.slane %v1204, %v1208
      %v1227 = vunpack.c.l.b16 %v1188
      %v1228 = vunpack.c.l.b16 %v1189
      %v1229 = vunpack.c.l.b16 %v1190
      %v1230 = vunpack.c.l.b16 %v1191
      %v1231 = vunpack.c.l.b16 %v1192
      %v1232 = vunpack.c.l.b16 %v1193
      %v1233 = vunpack.c.l.b16 %v1194
      %v1234 = vunpack.c.l.b16 %v1195
      %v1235 = vunpack.c.l.b16 %v1196
      %v1236 = vunpack.c.l.b16 %v1197
      %v1237 = vunpack.c.l.b16 %v1198
      %v1238 = vunpack.c.l.b16 %v1199
      %v1239 = vunpack.c.l.b16 %v1200
      %v1240 = vunpack.c.l.b16 %v1201
      %v1241 = vunpack.c.l.b16 %v1202
      %v1242 = vunpack.c.l.b16 %v1203
      %v1243 = vpack.c.b16 %v1228, %v1227
      %v1244 = vpack.c.b16 %v1230, %v1229
      %v1245 = vpack.c.b16 %v1232, %v1231
      %v1246 = vpack.c.b16 %v1234, %v1233
      %v1247 = vpack.c.b16 %v1236, %v1235
      %v1248 = vpack.c.b16 %v1238, %v1237
      %v1249 = vpack.c.b16 %v1240, %v1239
      %v1250 = vpack.c.b16 %v1242, %v1241
      %1259 = vmatprep.subr.bf16.mxu0 0
      %1260 = vmatpush1.bf16.msra.mxu0 %v1243
      %1261 = vmatprep.subr.bf16.mxu0 0
      %1262 = vmatpush1.bf16.msra.mxu0 %v1244
      %1263 = vmatprep.subr.bf16.mxu0 0
      %1264 = vmatpush1.bf16.msra.mxu0 %v1245
      %1265 = vmatprep.subr.bf16.mxu0 0
      %1266 = vmatpush1.bf16.msra.mxu0 %v1246
      %1267 = vmatprep.subr.bf16.mxu0 0
      %1268 = vmatpush1.bf16.msra.mxu0 %v1247
      %1269 = vmatprep.subr.bf16.mxu0 0
      %1270 = vmatpush1.bf16.msra.mxu0 %v1248
      %1271 = vmatprep.subr.bf16.mxu0 0
      %1272 = vmatpush1.bf16.msra.mxu0 %v1249
      %1273 = vmatprep.subr.bf16.mxu0 0
      %1274 = vmatpush1.bf16.msra.mxu0 %v1250
      %1275 = vmatprep.subr.bf16.mxu0 0
      %1276 = vmatpush1.bf16.msra.mxu0 0
      %1277 = vmatprep.subr.bf16.mxu0 0
      %1278 = vmatpush1.bf16.msra.mxu0 0
      %1279 = vmatprep.subr.bf16.mxu0 0
      %1280 = vmatpush1.bf16.msra.mxu0 0
      %1281 = vmatprep.subr.bf16.mxu0 0
      %1282 = vmatpush1.bf16.msra.mxu0 0
      %1283 = vmatprep.subr.bf16.mxu0 0
      %1284 = vmatpush1.bf16.msra.mxu0 0
      %1285 = vmatprep.subr.bf16.mxu0 0
      %1286 = vmatpush1.bf16.msra.mxu0 0
      %1287 = vmatprep.subr.bf16.mxu0 0
      %1288 = vmatpush1.bf16.msra.mxu0 0
      %1289 = vmatprep.subr.bf16.mxu0 0
      %1290 = vmatpush1.bf16.msra.mxu0 0
      %1291 = vmatprep.mubr.bf16.mxu0 0
      %1292 = vmatmul.mubr.bf16.gmra.mrb[0].mxu0 %v1180
      %v1293 = vpop.f32.mrb[0].mxu0
      %v1294 = vadd.f32 %v1209, %v1293
      %v1295 = vpop.f32.mrb[0].mxu0
      %v1296 = vpop.f32.mrb[0].mxu0
      %v1297 = vadd.f32 %v1209, %v1296
      %v1298 = vpop.f32.mrb[0].mxu0
      %1299 = vmatprep.mubr.bf16.mxu0 0
      %1300 = vmatmul.mubr.bf16.gmra.mrb[0].mxu0 %v1181
      %v1301 = vpop.f32.mrb[0].mxu0
      %v1302 = vadd.f32 %v1209, %v1301
      %v1303 = vpop.f32.mrb[0].mxu0
      %v1304 = vpop.f32.mrb[0].mxu0
      %v1305 = vadd.f32 %v1209, %v1304
      %v1306 = vpop.f32.mrb[0].mxu0
      %1307 = vmatprep.mubr.bf16.mxu0 0
      %1308 = vmatmul.mubr.bf16.gmra.mrb[0].mxu0 %v1182
      %v1309 = vpop.f32.mrb[0].mxu0
      %v1310 = vadd.f32 %v1209, %v1309
      %v1311 = vpop.f32.mrb[0].mxu0
      %v1312 = vpop.f32.mrb[0].mxu0
      %v1313 = vadd.f32 %v1209, %v1312
      %v1314 = vpop.f32.mrb[0].mxu0
      %1315 = vmatprep.mubr.bf16.mxu0 0
      %1316 = vmatmul.mubr.bf16.gmra.mrb[0].mxu0 %v1183
      %v1317 = vpop.f32.mrb[0].mxu0
      %v1318 = vadd.f32 %v1209, %v1317
      %v1319 = vpop.f32.mrb[0].mxu0
      %v1320 = vpop.f32.mrb[0].mxu0
      %v1321 = vadd.f32 %v1209, %v1320
      %v1322 = vpop.f32.mrb[0].mxu0
      %1323 = vmatprep.mubr.bf16.mxu0 0
      %1324 = vmatmul.mubr.bf16.gmra.mrb[0].mxu0 %v1184
      %v1325 = vpop.f32.mrb[0].mxu0
      %v1326 = vadd.f32 %v1209, %v1325
      %v1327 = vpop.f32.mrb[0].mxu0
      %v1328 = vpop.f32.mrb[0].mxu0
      %v1329 = vadd.f32 %v1209, %v1328
      %v1330 = vpop.f32.mrb[0].mxu0
      %1331 = vmatprep.mubr.bf16.mxu0 0
      %1332 = vmatmul.mubr.bf16.gmra.mrb[0].mxu0 %v1185
      %v1333 = vpop.f32.mrb[0].mxu0
      %v1334 = vadd.f32 %v1209, %v1333
      %v1335 = vpop.f32.mrb[0].mxu0
      %v1336 = vpop.f32.mrb[0].mxu0
      %v1337 = vadd.f32 %v1209, %v1336
      %v1338 = vpop.f32.mrb[0].mxu0
      %1339 = vmatprep.mubr.bf16.mxu0 0
      %1340 = vmatmul.mubr.bf16.gmra.mrb[0].mxu0 %v1186
      %v1341 = vpop.f32.mrb[0].mxu0
      %v1342 = vadd.f32 %v1209, %v1341
      %v1343 = vpop.f32.mrb[0].mxu0
      %v1344 = vpop.f32.mrb[0].mxu0
      %v1345 = vadd.f32 %v1209, %v1344
      %v1346 = vpop.f32.mrb[0].mxu0
      %1347 = vmatprep.mubr.bf16.mxu0 0
      %1348 = vmatmul.mubr.bf16.gmra.mrb[0].mxu0 %v1187
      %v1349 = vpop.f32.mrb[0].mxu0
      %v1350 = vadd.f32 %v1209, %v1349
      %v1351 = vpop.f32.mrb[0].mxu0
      %v1352 = vpop.f32.mrb[0].mxu0
      %v1353 = vadd.f32 %v1209, %v1352
      %v1354 = vpop.f32.mrb[0].mxu0
      %1355 = vdwg.mxu0
      %vm1356 = vcmask 48128
      %1357 = vst.msk [vmem:[%s474] sm:$0xff] %vm1356, %v1294
      %1358 = vst.msk [vmem:[%s474 + $0x8] sm:$0xff] %vm1356, %v1297
      %1359 = vst.msk [vmem:[%s474 + $0x10] sm:$0xff] %vm1356, %v1302
      %1360 = vst.msk [vmem:[%s474 + $0x18] sm:$0xff] %vm1356, %v1305
      %1361 = vst.msk [vmem:[%s474 + $0x20] sm:$0xff] %vm1356, %v1310
      %1362 = vst.msk [vmem:[%s474 + $0x28] sm:$0xff] %vm1356, %v1313
      %1363 = vst.msk [vmem:[%s474 + $0x30] sm:$0xff] %vm1356, %v1318
      %1364 = vst.msk [vmem:[%s474 + $0x38] sm:$0xff] %vm1356, %v1321
      %1365 = vst.msk [vmem:[%s474 + $0x40] sm:$0xff] %vm1356, %v1326
      %1366 = vst.msk [vmem:[%s474 + $0x48] sm:$0xff] %vm1356, %v1329
      %1367 = vst.msk [vmem:[%s474 + $0x50] sm:$0xff] %vm1356, %v1334
      %1368 = vst.msk [vmem:[%s474 + $0x58] sm:$0xff] %vm1356, %v1337
      %1369 = vst.msk [vmem:[%s474 + $0x60] sm:$0xff] %vm1356, %v1342
      %1370 = vst.msk [vmem:[%s474 + $0x68] sm:$0xff] %vm1356, %v1345
      %1371 = vst.msk [vmem:[%s474 + $0x70] sm:$0xff] %vm1356, %v1350
      %1372 = vst.msk [vmem:[%s474 + $0x78] sm:$0xff] %vm1356, %v1353
      %s1373 = smul.u32 16, %s27
      %p1374 = scmp.lt.s32.totalorder %s26, 1
      %s1375 = scalar_select %p1374, %s26, 1
      %p1376 = scmp.lt.s32.totalorder %s1373, 15
      %s1377 = scalar_select %p1376, %s1373, 15
      %s1378 = smul.addr %s1375, 16
      %s1379 = sadd.s32 %s1377, %s1378
      %s1380 = smul.addr %s1379, 8
      %s1381 = scalar_lea.vmem %s11, %s1380
      // Predicated region
      $region65: #{lan_forward.7} parent=63 // pred_check
        %p1382 = pneg %p304
      $region66: #{lan_forward.7} parent=63 // pred_check_branch
        %1384 = sbr.rel (%p1382) target = $region68
      $region67: #{lan_forward.7} parent=63 // pred_region
        %s1385 = smul.u32 16, %s27
      $region68: #{lan_forward.7} parent=63 // pred_fallthru
        _
    $region64: #{lan_forward.7} parent=5 // pred_fallthru
      _
    %p1386 = scmp.le.s32.totalorder 2, %s17
    // Predicated region
    $region69: #{lan_forward.7} parent=5 // pred_check
      %p1387 = pneg %p1386
    $region70: #{lan_forward.7} parent=5 // pred_check_branch
      %1389 = sbr.rel (%p1387) target = $region72
    $region71: #{lan_forward.7} parent=5 // pred_region
      %s1390 = ssub.s32 %s17, 2
      // Predicated region
      $region73: #{lan_forward.7} parent=71 // pred_check
        %p1391 = pneg %p310
      $region74: #{lan_forward.7} parent=71 // pred_check_branch
        %1393 = sbr.rel (%p1391) target = $region76
      $region75: #{lan_forward.7} parent=71 // pred_region
        %s1394 = smul.u32 16, %s29
        %p1395 = scmp.lt.s32.totalorder %s28, 1
        %s1396 = scalar_select %p1395, %s28, 1
        %p1397 = scmp.lt.s32.totalorder %s1394, 15
        %s1398 = scalar_select %p1397, %s1394, 15
        %s1399 = smul.addr %s1396, 16
        %s1400 = sadd.s32 %s1398, %s1399
        %s1401 = smul.addr %s1400, 8
        %s1402 = scalar_lea.vmem %s11, %s1401
      $region76: #{lan_forward.7} parent=71 // pred_fallthru
        _
    $region72: #{lan_forward.7} parent=5 // pred_fallthru
      _
  $region6: #{lan_forward.7} parent=0 // loop_footer
    %s21 = sadd.s32 1, %s17
  $region7: #{lan_forward.7} parent=0 // loop_footer_branch
    %16 = sbr.rel target = $region3
  $region8: #{lan_forward.7} parent=0 // loop_exit
    _

// kernel: lan_forward.6
$region0: #{lan_forward.6}
  #allocation0 [shape = 'u32[]', space=smem, size = 0x4, offset = 0x4, fixed_abs, tag = 'smem constant byte address 0x4 - core index']
  #allocation1 [shape = 'u32[144,128]{1,0:T(1,128)}', space=vmem, size = 0x12000, scoped, tag = 'internal scratch']
  %s0 = inlined_call_operand.vmem [shape: bf16[2,128,128], index: 0, kind: input, shape index: {}]
  %s1 = inlined_call_operand.vmem [shape: f32[2,1,128], index: 1, kind: input, shape index: {}]
  %s2 = inlined_call_operand.vmem [shape: bf16[128,128], index: 2, kind: input, shape index: {}]
  %s3 = inlined_call_operand.vmem [shape: f32[1,128], index: 3, kind: input, shape index: {}]
  %s4 = inlined_call_operand.vmem [shape: bf16[128,128], index: 4, kind: input, shape index: {}]
  %s5 = inlined_call_operand.vmem [shape: f32[1,128], index: 5, kind: input, shape index: {}]
  %s6 = inlined_call_operand.vmem [shape: bf16[128,128], index: 6, kind: input, shape index: {}]
  %s7 = inlined_call_operand.vmem [shape: f32[1,128], index: 7, kind: input, shape index: {}]
  %s8 = inlined_call_operand.vmem [shape: bf16[128,128], index: 8, kind: input, shape index: {}]
  %s9 = inlined_call_operand.vmem [shape: f32[1,128], index: 9, kind: input, shape index: {}]
  %s10 = inlined_call_operand.vmem [shape: bf16[2,128,128], index: 10, kind: output, shape index: {0}]
  %s11 = inlined_call_operand.vmem [shape: f32[2,1,128], index: 11, kind: output, shape index: {1}]
  %12 = xla_tuple %s10, %s11
  %s13 = sld [smem:[#allocation0]]
  $region85: #{lan_forward.6} parent=0
    _
  %s15 = ssub.s32 1, %s13
  %s16 = scalar_select 0, %s15, %s13
  loop: start=0, step=1, limit=4
  $region2: #{lan_forward.6} parent=0 // loop_pre_header
    _
  $region3: #{lan_forward.6} parent=0 // loop_header
    %s18 = sphi 0, %s22
    %p19 = scmp.ge.s32.totalorder %s18, 4
    %s25 = sphi 0, %s37
    %s26 = sphi 0, %s33
    %s27 = sphi 0, %s25
    %s28 = sphi 0, %s26
    %s29 = sphi 0, %s27
    %s30 = sphi 0, %s28
    %s42 = sphi 0, %s44
    %s45 = sphi 0, %s42
    %s46 = sphi 0, %s45
    %s62 = sphi 0, %s46
    %s68 = sphi 0, %s70
    %s71 = sphi 0, %s68
    %s72 = sphi 0, %s71
    %s88 = sphi 0, %s72
    %s92 = sphi 0, %s92
    %s94 = sphi 0, %s92
    %s95 = sphi 0, %s94
    %s109 = sphi 0, %s95
    %s113 = sphi 0, %s113
    %s115 = sphi 0, %s113
    %s116 = sphi 0, %s115
    %s130 = sphi 0, %s116
    %s134 = sphi 0, %s134
    %s136 = sphi 0, %s134
    %s137 = sphi 0, %s136
    %s151 = sphi 0, %s137
    %s155 = sphi 0, %s155
    %s157 = sphi 0, %s155
    %s158 = sphi 0, %s157
    %s172 = sphi 0, %s158
    %s176 = sphi 0, %s176
    %s178 = sphi 0, %s176
    %s179 = sphi 0, %s178
    %s193 = sphi 0, %s179
    %s197 = sphi 0, %s197
    %s199 = sphi 0, %s197
    %s200 = sphi 0, %s199
    %s214 = sphi 0, %s200
    %s218 = sphi 0, %s218
    %s220 = sphi 0, %s218
    %s221 = sphi 0, %s220
    %s235 = sphi 0, %s221
    %s239 = sphi 0, %s239
    %s241 = sphi 0, %s239
    %s242 = sphi 0, %s241
    %s256 = sphi 0, %s242
    %s264 = sphi 0, %s266
    %s267 = sphi 0, %s264
    %s268 = sphi 0, %s267
    %s284 = sphi 0, %s268
    %s290 = sphi 0, %s292
    %s293 = sphi 0, %s290
    %s294 = sphi 0, %s293
    %s310 = sphi 0, %s294
  $region4: #{lan_forward.6} parent=0 // loop_header_branch
    %21 = sbr.rel (%p19) target = $region8
  $region5: #{lan_forward.6} parent=0 // loop_body
    %s23 = ssub.s32 %s18, 1
    %s24 = ssub.s32 %s18, 2
    %s31 = sadd.s32 1, %s26
    %p32 = scmp.ge.s32.totalorder %s31, 1
    %s33 = scalar_select %p32, 0, %s31
    %s34 = sadd.s32 1, %s25
    %s35 = scalar_select %p32, %s34, %s25
    %p36 = scmp.ge.s32.totalorder %s35, 2
    %s37 = scalar_select %p36, 0, %s35
    %s38 = ssub.s32 %s25, %s37
    %s39 = ssub.s32 %s26, %s33
    %s40 = sor.u32 %s38, %s39
    %p41 = scmp.eq.s32.totalorder %s40, 0
    %s43 = sadd.s32 %s42, 1
    %s44 = scalar_select %p41, %s42, %s43
    %p47 = pneg %p41
    %p48 = scmp.eq.s32.totalorder %s18, 1
    %p49 = por %p47, %p48
    %p50 = scmp.ne.s32.totalorder %s42, %s45
    %p51 = scmp.eq.s32.totalorder %s18, 0
    %p52 = por %p50, %p51
    %p53 = scmp.ne.s32.totalorder %s42, %s45
    %p54 = scmp.eq.s32.totalorder %s23, 1
    %p55 = por %p53, %p54
    %p56 = scmp.ne.s32.totalorder %s45, %s46
    %p57 = scmp.eq.s32.totalorder %s23, 0
    %p58 = por %p56, %p57
    %p59 = scmp.ne.s32.totalorder %s45, %s46
    %p60 = scmp.eq.s32.totalorder %s24, 1
    %p61 = por %p59, %p60
    %p63 = scmp.ne.s32.totalorder %s46, %s62
    %p64 = scmp.eq.s32.totalorder %s24, 0
    %p65 = por %p63, %p64
    %s66 = ssub.s32 %s25, %s37
    %p67 = scmp.eq.s32.totalorder %s66, 0
    %s69 = sadd.s32 %s68, 1
    %s70 = scalar_select %p67, %s68, %s69
    %p73 = pneg %p67
    %p74 = scmp.eq.s32.totalorder %s18, 1
    %p75 = por %p73, %p74
    %p76 = scmp.ne.s32.totalorder %s68, %s71
    %p77 = scmp.eq.s32.totalorder %s18, 0
    %p78 = por %p76, %p77
    %p79 = scmp.ne.s32.totalorder %s68, %s71
    %p80 = scmp.eq.s32.totalorder %s23, 1
    %p81 = por %p79, %p80
    %p82 = scmp.ne.s32.totalorder %s71, %s72
    %p83 = scmp.eq.s32.totalorder %s23, 0
    %p84 = por %p82, %p83
    %p85 = scmp.ne.s32.totalorder %s71, %s72
    %p86 = scmp.eq.s32.totalorder %s24, 1
    %p87 = por %p85, %p86
    %p89 = scmp.ne.s32.totalorder %s72, %s88
    %p90 = scmp.eq.s32.totalorder %s24, 0
    %p91 = por %p89, %p90
    %s93 = sadd.s32 %s92, 1
    %p96 = scmp.eq.s32.totalorder %s18, 1
    %p97 = scmp.ne.s32.totalorder %s92, %s94
    %p98 = scmp.eq.s32.totalorder %s18, 0
    %p99 = por %p97, %p98
    %p100 = scmp.ne.s32.totalorder %s92, %s94
    %p101 = scmp.eq.s32.totalorder %s23, 1
    %p102 = por %p100, %p101
    %p103 = scmp.ne.s32.totalorder %s94, %s95
    %p104 = scmp.eq.s32.totalorder %s23, 0
    %p105 = por %p103, %p104
    %p106 = scmp.ne.s32.totalorder %s94, %s95
    %p107 = scmp.eq.s32.totalorder %s24, 1
    %p108 = por %p106, %p107
    %p110 = scmp.ne.s32.totalorder %s95, %s109
    %p111 = scmp.eq.s32.totalorder %s24, 0
    %p112 = por %p110, %p111
    %s114 = sadd.s32 %s113, 1
    %p117 = scmp.eq.s32.totalorder %s18, 1
    %p118 = scmp.ne.s32.totalorder %s113, %s115
    %p119 = scmp.eq.s32.totalorder %s18, 0
    %p120 = por %p118, %p119
    %p121 = scmp.ne.s32.totalorder %s113, %s115
    %p122 = scmp.eq.s32.totalorder %s23, 1
    %p123 = por %p121, %p122
    %p124 = scmp.ne.s32.totalorder %s115, %s116
    %p125 = scmp.eq.s32.totalorder %s23, 0
    %p126 = por %p124, %p125
    %p127 = scmp.ne.s32.totalorder %s115, %s116
    %p128 = scmp.eq.s32.totalorder %s24, 1
    %p129 = por %p127, %p128
    %p131 = scmp.ne.s32.totalorder %s116, %s130
    %p132 = scmp.eq.s32.totalorder %s24, 0
    %p133 = por %p131, %p132
    %s135 = sadd.s32 %s134, 1
    %p138 = scmp.eq.s32.totalorder %s18, 1
    %p139 = scmp.ne.s32.totalorder %s134, %s136
    %p140 = scmp.eq.s32.totalorder %s18, 0
    %p141 = por %p139, %p140
    %p142 = scmp.ne.s32.totalorder %s134, %s136
    %p143 = scmp.eq.s32.totalorder %s23, 1
    %p144 = por %p142, %p143
    %p145 = scmp.ne.s32.totalorder %s136, %s137
    %p146 = scmp.eq.s32.totalorder %s23, 0
    %p147 = por %p145, %p146
    %p148 = scmp.ne.s32.totalorder %s136, %s137
    %p149 = scmp.eq.s32.totalorder %s24, 1
    %p150 = por %p148, %p149
    %p152 = scmp.ne.s32.totalorder %s137, %s151
    %p153 = scmp.eq.s32.totalorder %s24, 0
    %p154 = por %p152, %p153
    %s156 = sadd.s32 %s155, 1
    %p159 = scmp.eq.s32.totalorder %s18, 1
    %p160 = scmp.ne.s32.totalorder %s155, %s157
    %p161 = scmp.eq.s32.totalorder %s18, 0
    %p162 = por %p160, %p161
    %p163 = scmp.ne.s32.totalorder %s155, %s157
    %p164 = scmp.eq.s32.totalorder %s23, 1
    %p165 = por %p163, %p164
    %p166 = scmp.ne.s32.totalorder %s157, %s158
    %p167 = scmp.eq.s32.totalorder %s23, 0
    %p168 = por %p166, %p167
    %p169 = scmp.ne.s32.totalorder %s157, %s158
    %p170 = scmp.eq.s32.totalorder %s24, 1
    %p171 = por %p169, %p170
    %p173 = scmp.ne.s32.totalorder %s158, %s172
    %p174 = scmp.eq.s32.totalorder %s24, 0
    %p175 = por %p173, %p174
    %s177 = sadd.s32 %s176, 1
    %p180 = scmp.eq.s32.totalorder %s18, 1
    %p181 = scmp.ne.s32.totalorder %s176, %s178
    %p182 = scmp.eq.s32.totalorder %s18, 0
    %p183 = por %p181, %p182
    %p184 = scmp.ne.s32.totalorder %s176, %s178
    %p185 = scmp.eq.s32.totalorder %s23, 1
    %p186 = por %p184, %p185
    %p187 = scmp.ne.s32.totalorder %s178, %s179
    %p188 = scmp.eq.s32.totalorder %s23, 0
    %p189 = por %p187, %p188
    %p190 = scmp.ne.s32.totalorder %s178, %s179
    %p191 = scmp.eq.s32.totalorder %s24, 1
    %p192 = por %p190, %p191
    %p194 = scmp.ne.s32.totalorder %s179, %s193
    %p195 = scmp.eq.s32.totalorder %s24, 0
    %p196 = por %p194, %p195
    %s198 = sadd.s32 %s197, 1
    %p201 = scmp.eq.s32.totalorder %s18, 1
    %p202 = scmp.ne.s32.totalorder %s197, %s199
    %p203 = scmp.eq.s32.totalorder %s18, 0
    %p204 = por %p202, %p203
    %p205 = scmp.ne.s32.totalorder %s197, %s199
    %p206 = scmp.eq.s32.totalorder %s23, 1
    %p207 = por %p205, %p206
    %p208 = scmp.ne.s32.totalorder %s199, %s200
    %p209 = scmp.eq.s32.totalorder %s23, 0
    %p210 = por %p208, %p209
    %p211 = scmp.ne.s32.totalorder %s199, %s200
    %p212 = scmp.eq.s32.totalorder %s24, 1
    %p213 = por %p211, %p212
    %p215 = scmp.ne.s32.totalorder %s200, %s214
    %p216 = scmp.eq.s32.totalorder %s24, 0
    %p217 = por %p215, %p216
    %s219 = sadd.s32 %s218, 1
    %p222 = scmp.eq.s32.totalorder %s18, 1
    %p223 = scmp.ne.s32.totalorder %s218, %s220
    %p224 = scmp.eq.s32.totalorder %s18, 0
    %p225 = por %p223, %p224
    %p226 = scmp.ne.s32.totalorder %s218, %s220
    %p227 = scmp.eq.s32.totalorder %s23, 1
    %p228 = por %p226, %p227
    %p229 = scmp.ne.s32.totalorder %s220, %s221
    %p230 = scmp.eq.s32.totalorder %s23, 0
    %p231 = por %p229, %p230
    %p232 = scmp.ne.s32.totalorder %s220, %s221
    %p233 = scmp.eq.s32.totalorder %s24, 1
    %p234 = por %p232, %p233
    %p236 = scmp.ne.s32.totalorder %s221, %s235
    %p237 = scmp.eq.s32.totalorder %s24, 0
    %p238 = por %p236, %p237
    %s240 = sadd.s32 %s239, 1
    %p243 = scmp.eq.s32.totalorder %s18, 1
    %p244 = scmp.ne.s32.totalorder %s239, %s241
    %p245 = scmp.eq.s32.totalorder %s18, 0
    %p246 = por %p244, %p245
    %p247 = scmp.ne.s32.totalorder %s239, %s241
    %p248 = scmp.eq.s32.totalorder %s23, 1
    %p249 = por %p247, %p248
    %p250 = scmp.ne.s32.totalorder %s241, %s242
    %p251 = scmp.eq.s32.totalorder %s23, 0
    %p252 = por %p250, %p251
    %p253 = scmp.ne.s32.totalorder %s241, %s242
    %p254 = scmp.eq.s32.totalorder %s24, 1
    %p255 = por %p253, %p254
    %p257 = scmp.ne.s32.totalorder %s242, %s256
    %p258 = scmp.eq.s32.totalorder %s24, 0
    %p259 = por %p257, %p258
    %s260 = ssub.s32 %s25, %s37
    %s261 = ssub.s32 %s26, %s33
    %s262 = sor.u32 %s260, %s261
    %p263 = scmp.eq.s32.totalorder %s262, 0
    %s265 = sadd.s32 %s264, 1
    %s266 = scalar_select %p263, %s264, %s265
    %p269 = pneg %p263
    %p270 = scmp.eq.s32.totalorder %s18, 1
    %p271 = por %p269, %p270
    %p272 = scmp.ne.s32.totalorder %s264, %s267
    %p273 = scmp.eq.s32.totalorder %s18, 0
    %p274 = por %p272, %p273
    %p275 = scmp.ne.s32.totalorder %s264, %s267
    %p276 = scmp.eq.s32.totalorder %s23, 1
    %p277 = por %p275, %p276
    %p278 = scmp.ne.s32.totalorder %s267, %s268
    %p279 = scmp.eq.s32.totalorder %s23, 0
    %p280 = por %p278, %p279
    %p281 = scmp.ne.s32.totalorder %s267, %s268
    %p282 = scmp.eq.s32.totalorder %s24, 1
    %p283 = por %p281, %p282
    %p285 = scmp.ne.s32.totalorder %s268, %s284
    %p286 = scmp.eq.s32.totalorder %s24, 0
    %p287 = por %p285, %p286
    %s288 = ssub.s32 %s25, %s37
    %p289 = scmp.eq.s32.totalorder %s288, 0
    %s291 = sadd.s32 %s290, 1
    %s292 = scalar_select %p289, %s290, %s291
    %p295 = pneg %p289
    %p296 = scmp.eq.s32.totalorder %s18, 1
    %p297 = por %p295, %p296
    %p298 = scmp.ne.s32.totalorder %s290, %s293
    %p299 = scmp.eq.s32.totalorder %s18, 0
    %p300 = por %p298, %p299
    %p301 = scmp.ne.s32.totalorder %s290, %s293
    %p302 = scmp.eq.s32.totalorder %s23, 1
    %p303 = por %p301, %p302
    %p304 = scmp.ne.s32.totalorder %s293, %s294
    %p305 = scmp.eq.s32.totalorder %s23, 0
    %p306 = por %p304, %p305
    %p307 = scmp.ne.s32.totalorder %s293, %s294
    %p308 = scmp.eq.s32.totalorder %s24, 1
    %p309 = por %p307, %p308
    %p311 = scmp.ne.s32.totalorder %s294, %s310
    %p312 = scmp.eq.s32.totalorder %s24, 0
    %p313 = por %p311, %p312
    %p314 = scmp.le.s32.totalorder 1, %s18
    %p315 = scmp.lt.s32.totalorder %s18, 3
    %p316 = pnand %p314, %p315
    %p317 = pneg %p316
    // Predicated region
    $region9: #{lan_forward.6} parent=5 // pred_check
      _
    $region10: #{lan_forward.6} parent=5 // pred_check_branch
      %319 = sbr.rel (%p316) target = $region12
    $region11: #{lan_forward.6} parent=5 // pred_region
      %s320 = ssub.s32 %s18, 1
      // Predicated region
      $region13: #{lan_forward.6} parent=11 // pred_check
        %p321 = pneg %p105
      $region14: #{lan_forward.6} parent=11 // pred_check_branch
        %323 = sbr.rel (%p321) target = $region16
      $region15: #{lan_forward.6} parent=11 // pred_region
        _
      $region16: #{lan_forward.6} parent=11 // pred_fallthru
        _
      // Predicated region
      $region17: #{lan_forward.6} parent=11 // pred_check
        %p324 = pneg %p126
      $region18: #{lan_forward.6} parent=11 // pred_check_branch
        %326 = sbr.rel (%p324) target = $region20
      $region19: #{lan_forward.6} parent=11 // pred_region
        _
      $region20: #{lan_forward.6} parent=11 // pred_fallthru
        _
      // Predicated region
      $region21: #{lan_forward.6} parent=11 // pred_check
        %p327 = pneg %p147
      $region22: #{lan_forward.6} parent=11 // pred_check_branch
        %329 = sbr.rel (%p327) target = $region24
      $region23: #{lan_forward.6} parent=11 // pred_region
        _
      $region24: #{lan_forward.6} parent=11 // pred_fallthru
        _
      // Predicated region
      $region25: #{lan_forward.6} parent=11 // pred_check
        %p330 = pneg %p168
      $region26: #{lan_forward.6} parent=11 // pred_check_branch
        %332 = sbr.rel (%p330) target = $region28
      $region27: #{lan_forward.6} parent=11 // pred_region
        _
      $region28: #{lan_forward.6} parent=11 // pred_fallthru
        _
      // Predicated region
      $region29: #{lan_forward.6} parent=11 // pred_check
        %p333 = pneg %p189
      $region30: #{lan_forward.6} parent=11 // pred_check_branch
        %335 = sbr.rel (%p333) target = $region32
      $region31: #{lan_forward.6} parent=11 // pred_region
        _
      $region32: #{lan_forward.6} parent=11 // pred_fallthru
        _
      // Predicated region
      $region33: #{lan_forward.6} parent=11 // pred_check
        %p336 = pneg %p210
      $region34: #{lan_forward.6} parent=11 // pred_check_branch
        %338 = sbr.rel (%p336) target = $region36
      $region35: #{lan_forward.6} parent=11 // pred_region
        _
      $region36: #{lan_forward.6} parent=11 // pred_fallthru
        _
      // Predicated region
      $region37: #{lan_forward.6} parent=11 // pred_check
        %p339 = pneg %p231
      $region38: #{lan_forward.6} parent=11 // pred_check_branch
        %341 = sbr.rel (%p339) target = $region40
      $region39: #{lan_forward.6} parent=11 // pred_region
        _
      $region40: #{lan_forward.6} parent=11 // pred_fallthru
        _
      // Predicated region
      $region41: #{lan_forward.6} parent=11 // pred_check
        %p342 = pneg %p252
      $region42: #{lan_forward.6} parent=11 // pred_check_branch
        %344 = sbr.rel (%p342) target = $region44
      $region43: #{lan_forward.6} parent=11 // pred_region
        _
      $region44: #{lan_forward.6} parent=11 // pred_fallthru
        _
    $region12: #{lan_forward.6} parent=5 // pred_fallthru
      _
    %p345 = scmp.lt.s32.totalorder %s18, 2
    // Predicated region
    $region45: #{lan_forward.6} parent=5 // pred_check
      %p346 = pneg %p345
    $region46: #{lan_forward.6} parent=5 // pred_check_branch
      %348 = sbr.rel (%p346) target = $region48
    $region47: #{lan_forward.6} parent=5 // pred_region
      // Predicated region
      $region49: #{lan_forward.6} parent=47 // pred_check
        %p349 = pneg %p52
      $region50: #{lan_forward.6} parent=47 // pred_check_branch
        %351 = sbr.rel (%p349) target = $region52
      $region51: #{lan_forward.6} parent=47 // pred_region
        %s352 = smul.u32 16, %s26
        %p353 = scmp.lt.s32.totalorder %s25, 1
        %s354 = scalar_select %p353, %s25, 1
        %p355 = scmp.lt.s32.totalorder %s352, 15
        %s356 = scalar_select %p355, %s352, 15
        %s357 = smul.addr %s354, 16
        %s358 = sadd.s32 %s356, %s357
        %s359 = smul.addr %s358, 4
        %s360 = scalar_lea.vmem %s0, %s359
        %s361 = smul.u32 16, %s26
      $region52: #{lan_forward.6} parent=47 // pred_fallthru
        _
      // Predicated region
      $region53: #{lan_forward.6} parent=47 // pred_check
        %p362 = pneg %p78
      $region54: #{lan_forward.6} parent=47 // pred_check_branch
        %364 = sbr.rel (%p362) target = $region56
      $region55: #{lan_forward.6} parent=47 // pred_region
        %p365 = scmp.lt.s32.totalorder %s25, 1
        %s366 = scalar_select %p365, %s25, 1
        %s367 = scalar_lea.vmem %s1, %s366
      $region56: #{lan_forward.6} parent=47 // pred_fallthru
        _
    $region48: #{lan_forward.6} parent=5 // pred_fallthru
      _
    %p368 = scmp.le.s32.totalorder 1, %s18
    %p369 = scmp.lt.s32.totalorder %s18, 3
    %p370 = pnand %p368, %p369
    %p371 = pneg %p370
    // Predicated region
    $region57: #{lan_forward.6} parent=5 // pred_check
      _
    $region58: #{lan_forward.6} parent=5 // pred_check_branch
      %373 = sbr.rel (%p370) target = $region60
    $region59: #{lan_forward.6} parent=5 // pred_region
      %s374 = ssub.s32 %s18, 1
      %s375 = smul.u32 16, %s28
      %p376 = scmp.lt.s32.totalorder %s27, 1
      %s377 = scalar_select %p376, %s27, 1
      %p378 = scmp.lt.s32.totalorder %s375, 15
      %s379 = scalar_select %p378, %s375, 15
      %s380 = smul.addr %s377, 16
      %s381 = sadd.s32 %s379, %s380
      %s382 = smul.addr %s381, 4
      %s383 = scalar_lea.vmem %s0, %s382
      %p384 = pneg %p58
      %p385 = pneg %p55
      %p386 = scmp.lt.s32.totalorder %s27, 1
      %s387 = scalar_select %p386, %s27, 1
      %s388 = scalar_lea.vmem %s1, %s387
      %p389 = pneg %p84
      %p390 = pneg %p81
      %p391 = pneg %p105
      %p392 = pneg %p102
      %p393 = pneg %p126
      %p394 = pneg %p123
      %p395 = pneg %p147
      %p396 = pneg %p144
      %p397 = pneg %p168
      %p398 = pneg %p165
      %p399 = pneg %p189
      %p400 = pneg %p186
      %p401 = pneg %p210
      %p402 = pneg %p207
      %p403 = pneg %p231
      %p404 = pneg %p228
      %p405 = pneg %p252
      %p406 = pneg %p249
      %p407 = pneg %p280
      %p408 = pneg %p277
      %s409 = smul.u32 16, %s28
      %p410 = scmp.lt.s32.totalorder %s27, 1
      %s411 = scalar_select %p410, %s27, 1
      %p412 = scmp.lt.s32.totalorder %s409, 15
      %s413 = scalar_select %p412, %s409, 15
      %s414 = smul.addr %s411, 16
      %s415 = sadd.s32 %s413, %s414
      %s416 = smul.addr %s415, 4
      %s417 = scalar_lea.vmem %s10, %s416
      %p418 = pneg %p306
      %p419 = pneg %p303
      %p420 = scmp.lt.s32.totalorder %s27, 1
      %s421 = scalar_select %p420, %s27, 1
      %s422 = scalar_lea.vmem %s11, %s421
      %s423 = smul.u32 16, %s28
      %p424 = scmp.lt.s32.totalorder %s27, 1
      %s425 = scalar_select %p424, %s27, 1
      %p426 = scmp.lt.s32.totalorder %s423, 15
      %s427 = scalar_select %p426, %s423, 15
      %s428 = smul.addr %s425, 16
      %s429 = sadd.s32 %s427, %s428
      %s430 = smul.addr %s429, 4
      %s431 = scalar_lea.vmem %s0, %s430
      %s432 = smul.u32 16, %s28
      %p433 = scmp.lt.s32.totalorder %s27, 1
      %s434 = scalar_select %p433, %s27, 1
      %s435 = scalar_lea.vmem %s1, %s434
      %s436 = smul.u32 16, %s28
      %p437 = scmp.lt.s32.totalorder %s27, 1
      %s438 = scalar_select %p437, %s27, 1
      %p439 = scmp.lt.s32.totalorder %s436, 15
      %s440 = scalar_select %p439, %s436, 15
      %s441 = smul.addr %s438, 16
      %s442 = sadd.s32 %s440, %s441
      %s443 = smul.addr %s442, 4
      %s444 = scalar_lea.vmem %s10, %s443
      %s445 = smul.u32 16, %s28
      %p446 = scmp.lt.s32.totalorder %s27, 1
      %s447 = scalar_select %p446, %s27, 1
      %s448 = scalar_lea.vmem %s11, %s447
      %p450 = scmp.eq.s32.totalorder %s28, 0
      // Predicated region
      $region61: #{lan_forward.6} parent=59 // pred_check
        %p451 = pneg %p450
      $region62: #{lan_forward.6} parent=59 // pred_check_branch
        %453 = sbr.rel (%p451) target = $region64
      $region63: #{lan_forward.6} parent=59 // pred_region
        %454 = vst [vmem:[%s448] sm:$0x1] 0.0
      $region64: #{lan_forward.6} parent=59 // pred_fallthru
        _
      %v455 = vld [vmem:[%s431] sm:$0xf]
      %v456 = vld [vmem:[%s431 + $0x4] sm:$0xf]
      %v457 = vld [vmem:[%s431 + $0x8] sm:$0xf]
      %v458 = vld [vmem:[%s431 + $0xc] sm:$0xf]
      %v459 = vld [vmem:[%s431 + $0x10] sm:$0xf]
      %v460 = vld [vmem:[%s431 + $0x14] sm:$0xf]
      %v461 = vld [vmem:[%s431 + $0x18] sm:$0xf]
      %v462 = vld [vmem:[%s431 + $0x1c] sm:$0xf]
      %v463 = vld [vmem:[%s431 + $0x20] sm:$0xf]
      %v464 = vld [vmem:[%s431 + $0x24] sm:$0xf]
      %v465 = vld [vmem:[%s431 + $0x28] sm:$0xf]
      %v466 = vld [vmem:[%s431 + $0x2c] sm:$0xf]
      %v467 = vld [vmem:[%s431 + $0x30] sm:$0xf]
      %v468 = vld [vmem:[%s431 + $0x34] sm:$0xf]
      %v469 = vld [vmem:[%s431 + $0x38] sm:$0xf]
      %v470 = vld [vmem:[%s431 + $0x3c] sm:$0xf]
      %v471 = vld [vmem:[%s2] sm:$0xf]
      %v472 = vld [vmem:[%s2 + $0x4] sm:$0xf]
      %v473 = vld [vmem:[%s2 + $0x8] sm:$0xf]
      %v474 = vld [vmem:[%s2 + $0xc] sm:$0xf]
      %v475 = vld [vmem:[%s2 + $0x10] sm:$0xf]
      %v476 = vld [vmem:[%s2 + $0x14] sm:$0xf]
      %v477 = vld [vmem:[%s2 + $0x18] sm:$0xf]
      %v478 = vld [vmem:[%s2 + $0x1c] sm:$0xf]
      %v479 = vld [vmem:[%s2 + $0x20] sm:$0xf]
      %v480 = vld [vmem:[%s2 + $0x24] sm:$0xf]
      %v481 = vld [vmem:[%s2 + $0x28] sm:$0xf]
      %v482 = vld [vmem:[%s2 + $0x2c] sm:$0xf]
      %v483 = vld [vmem:[%s2 + $0x30] sm:$0xf]
      %v484 = vld [vmem:[%s2 + $0x34] sm:$0xf]
      %v485 = vld [vmem:[%s2 + $0x38] sm:$0xf]
      %v486 = vld [vmem:[%s2 + $0x3c] sm:$0xf]
      %v487 = vld [vmem:[%s3] sm:$0x1]
      %v489 = vlaneseq
      %v490 = vshrl.u32 %v489, 7
      %v491 = vsub.s32 0, %v490
      %v492 = vrot.slane %v487, %v491
      %v510 = vunpack.c.l.b16 %v455
      %v511 = vunpack.c.l.b16 %v456
      %v512 = vunpack.c.l.b16 %v457
      %v513 = vunpack.c.l.b16 %v458
      %v514 = vunpack.c.l.b16 %v459
      %v515 = vunpack.c.l.b16 %v460
      %v516 = vunpack.c.l.b16 %v461
      %v517 = vunpack.c.l.b16 %v462
      %v518 = vunpack.c.l.b16 %v463
      %v519 = vunpack.c.l.b16 %v464
      %v520 = vunpack.c.l.b16 %v465
      %v521 = vunpack.c.l.b16 %v466
      %v522 = vunpack.c.l.b16 %v467
      %v523 = vunpack.c.l.b16 %v468
      %v524 = vunpack.c.l.b16 %v469
      %v525 = vunpack.c.l.b16 %v470
      %v526 = vpack.c.b16 %v511, %v510
      %v527 = vpack.c.b16 %v513, %v512
      %v528 = vpack.c.b16 %v515, %v514
      %v529 = vpack.c.b16 %v517, %v516
      %v530 = vpack.c.b16 %v519, %v518
      %v531 = vpack.c.b16 %v521, %v520
      %v532 = vpack.c.b16 %v523, %v522
      %v533 = vpack.c.b16 %v525, %v524
      %v558 = vunpack.c.l.b16 %v471
      %v559 = vunpack.c.l.b16 %v472
      %v560 = vunpack.c.l.b16 %v473
      %v561 = vunpack.c.l.b16 %v474
      %v562 = vunpack.c.l.b16 %v475
      %v563 = vunpack.c.l.b16 %v476
      %v564 = vunpack.c.l.b16 %v477
      %v565 = vunpack.c.l.b16 %v478
      %v566 = vunpack.c.l.b16 %v479
      %v567 = vunpack.c.l.b16 %v480
      %v568 = vunpack.c.l.b16 %v481
      %v569 = vunpack.c.l.b16 %v482
      %v570 = vunpack.c.l.b16 %v483
      %v571 = vunpack.c.l.b16 %v484
      %v572 = vunpack.c.l.b16 %v485
      %v573 = vunpack.c.l.b16 %v486
      %v574 = vpack.c.b16 %v559, %v558
      %v575 = vpack.c.b16 %v561, %v560
      %v576 = vpack.c.b16 %v563, %v562
      %v577 = vpack.c.b16 %v565, %v564
      %v578 = vpack.c.b16 %v567, %v566
      %v579 = vpack.c.b16 %v569, %v568
      %v580 = vpack.c.b16 %v571, %v570
      %v581 = vpack.c.b16 %v573, %v572
      %590 = vmatprep.subr.bf16.mxu0 0
      %591 = vmatpush1.bf16.msra.mxu0 %v574
      %592 = vmatprep.subr.bf16.mxu0 0
      %593 = vmatpush1.bf16.msra.mxu0 %v575
      %594 = vmatprep.subr.bf16.mxu0 0
      %595 = vmatpush1.bf16.msra.mxu0 %v576
      %596 = vmatprep.subr.bf16.mxu0 0
      %597 = vmatpush1.bf16.msra.mxu0 %v577
      %598 = vmatprep.subr.bf16.mxu0 0
      %599 = vmatpush1.bf16.msra.mxu0 %v578
      %600 = vmatprep.subr.bf16.mxu0 0
      %601 = vmatpush1.bf16.msra.mxu0 %v579
      %602 = vmatprep.subr.bf16.mxu0 0
      %603 = vmatpush1.bf16.msra.mxu0 %v580
      %604 = vmatprep.subr.bf16.mxu0 0
      %605 = vmatpush1.bf16.msra.mxu0 %v581
      %606 = vmatprep.subr.bf16.mxu0 0
      %607 = vmatpush1.bf16.msra.mxu0 0
      %608 = vmatprep.subr.bf16.mxu0 0
      %609 = vmatpush1.bf16.msra.mxu0 0
      %610 = vmatprep.subr.bf16.mxu0 0
      %611 = vmatpush1.bf16.msra.mxu0 0
      %612 = vmatprep.subr.bf16.mxu0 0
      %613 = vmatpush1.bf16.msra.mxu0 0
      %614 = vmatprep.subr.bf16.mxu0 0
      %615 = vmatpush1.bf16.msra.mxu0 0
      %616 = vmatprep.subr.bf16.mxu0 0
      %617 = vmatpush1.bf16.msra.mxu0 0
      %618 = vmatprep.subr.bf16.mxu0 0
      %619 = vmatpush1.bf16.msra.mxu0 0
      %620 = vmatprep.subr.bf16.mxu0 0
      %621 = vmatpush1.bf16.msra.mxu0 0
      %622 = vmatprep.mubr.bf16.mxu0 0
      %623 = vmatmul.mubr.bf16.gmra.mrb[0].mxu0 %v526
      %v624 = vpop.f32.mrb[0].mxu0
      %v625 = vadd.f32 %v492, %v624
      %v626 = vpop.f32.mrb[0].mxu0
      %v627 = vpop.f32.mrb[0].mxu0
      %v628 = vadd.f32 %v492, %v627
      %v629 = vpop.f32.mrb[0].mxu0
      %630 = vmatprep.mubr.bf16.mxu0 0
      %631 = vmatmul.mubr.bf16.gmra.mrb[0].mxu0 %v527
      %v632 = vpop.f32.mrb[0].mxu0
      %v633 = vadd.f32 %v492, %v632
      %v634 = vpop.f32.mrb[0].mxu0
      %v635 = vpop.f32.mrb[0].mxu0
      %v636 = vadd.f32 %v492, %v635
      %v637 = vpop.f32.mrb[0].mxu0
      %638 = vmatprep.mubr.bf16.mxu0 0
      %639 = vmatmul.mubr.bf16.gmra.mrb[0].mxu0 %v528
      %v640 = vpop.f32.mrb[0].mxu0
      %v641 = vadd.f32 %v492, %v640
      %v642 = vpop.f32.mrb[0].mxu0
      %v643 = vpop.f32.mrb[0].mxu0
      %v644 = vadd.f32 %v492, %v643
      %v645 = vpop.f32.mrb[0].mxu0
      %646 = vmatprep.mubr.bf16.mxu0 0
      %647 = vmatmul.mubr.bf16.gmra.mrb[0].mxu0 %v529
      %v648 = vpop.f32.mrb[0].mxu0
      %v649 = vadd.f32 %v492, %v648
      %v650 = vpop.f32.mrb[0].mxu0
      %v651 = vpop.f32.mrb[0].mxu0
      %v652 = vadd.f32 %v492, %v651
      %v653 = vpop.f32.mrb[0].mxu0
      %654 = vmatprep.mubr.bf16.mxu0 0
      %655 = vmatmul.mubr.bf16.gmra.mrb[0].mxu0 %v530
      %v656 = vpop.f32.mrb[0].mxu0
      %v657 = vadd.f32 %v492, %v656
      %v658 = vpop.f32.mrb[0].mxu0
      %v659 = vpop.f32.mrb[0].mxu0
      %v660 = vadd.f32 %v492, %v659
      %v661 = vpop.f32.mrb[0].mxu0
      %662 = vmatprep.mubr.bf16.mxu0 0
      %663 = vmatmul.mubr.bf16.gmra.mrb[0].mxu0 %v531
      %v664 = vpop.f32.mrb[0].mxu0
      %v665 = vadd.f32 %v492, %v664
      %v666 = vpop.f32.mrb[0].mxu0
      %v667 = vpop.f32.mrb[0].mxu0
      %v668 = vadd.f32 %v492, %v667
      %v669 = vpop.f32.mrb[0].mxu0
      %670 = vmatprep.mubr.bf16.mxu0 0
      %671 = vmatmul.mubr.bf16.gmra.mrb[0].mxu0 %v532
      %v672 = vpop.f32.mrb[0].mxu0
      %v673 = vadd.f32 %v492, %v672
      %v674 = vpop.f32.mrb[0].mxu0
      %v675 = vpop.f32.mrb[0].mxu0
      %v676 = vadd.f32 %v492, %v675
      %v677 = vpop.f32.mrb[0].mxu0
      %678 = vmatprep.mubr.bf16.mxu0 0
      %679 = vmatmul.mubr.bf16.gmra.mrb[0].mxu0 %v533
      %v680 = vpop.f32.mrb[0].mxu0
      %v681 = vadd.f32 %v492, %v680
      %v682 = vpop.f32.mrb[0].mxu0
      %v683 = vpop.f32.mrb[0].mxu0
      %v684 = vadd.f32 %v492, %v683
      %v685 = vpop.f32.mrb[0].mxu0
      %686 = vdwg.mxu0
      %v687 = vmax.f32 %v625, 0.0
      %v688 = vmax.f32 %v628, 0.0
      %v689 = vmax.f32 %v633, 0.0
      %v690 = vmax.f32 %v636, 0.0
      %v691 = vmax.f32 %v641, 0.0
      %v692 = vmax.f32 %v644, 0.0
      %v693 = vmax.f32 %v649, 0.0
      %v694 = vmax.f32 %v652, 0.0
      %v695 = vmax.f32 %v657, 0.0
      %v696 = vmax.f32 %v660, 0.0
      %v697 = vmax.f32 %v665, 0.0
      %v698 = vmax.f32 %v668, 0.0
      %v699 = vmax.f32 %v673, 0.0
      %v700 = vmax.f32 %v676, 0.0
      %v701 = vmax.f32 %v681, 0.0
      %v702 = vmax.f32 %v684, 0.0
      %v703 = vpack.c.bf16 %v688, %v687
      %v704 = vpack.c.bf16 %v690, %v689
      %v705 = vpack.c.bf16 %v692, %v691
      %v706 = vpack.c.bf16 %v694, %v693
      %v707 = vpack.c.bf16 %v696, %v695
      %v708 = vpack.c.bf16 %v698, %v697
      %v709 = vpack.c.bf16 %v700, %v699
      %v710 = vpack.c.bf16 %v702, %v701
      %v711 = vld [vmem:[%s4] sm:$0xf]
      %v712 = vld [vmem:[%s4 + $0x4] sm:$0xf]
      %v713 = vld [vmem:[%s4 + $0x8] sm:$0xf]
      %v714 = vld [vmem:[%s4 + $0xc] sm:$0xf]
      %v715 = vld [vmem:[%s4 + $0x10] sm:$0xf]
      %v716 = vld [vmem:[%s4 + $0x14] sm:$0xf]
      %v717 = vld [vmem:[%s4 + $0x18] sm:$0xf]
      %v718 = vld [vmem:[%s4 + $0x1c] sm:$0xf]
      %v719 = vld [vmem:[%s4 + $0x20] sm:$0xf]
      %v720 = vld [vmem:[%s4 + $0x24] sm:$0xf]
      %v721 = vld [vmem:[%s4 + $0x28] sm:$0xf]
      %v722 = vld [vmem:[%s4 + $0x2c] sm:$0xf]
      %v723 = vld [vmem:[%s4 + $0x30] sm:$0xf]
      %v724 = vld [vmem:[%s4 + $0x34] sm:$0xf]
      %v725 = vld [vmem:[%s4 + $0x38] sm:$0xf]
      %v726 = vld [vmem:[%s4 + $0x3c] sm:$0xf]
      %v727 = vld [vmem:[%s5] sm:$0x1]
      %v729 = vlaneseq
      %v730 = vshrl.u32 %v729, 7
      %v731 = vsub.s32 0, %v730
      %v732 = vrot.slane %v727, %v731
      %v750 = vunpack.c.l.b16 %v711
      %v751 = vunpack.c.l.b16 %v712
      %v752 = vunpack.c.l.b16 %v713
      %v753 = vunpack.c.l.b16 %v714
      %v754 = vunpack.c.l.b16 %v715
      %v755 = vunpack.c.l.b16 %v716
      %v756 = vunpack.c.l.b16 %v717
      %v757 = vunpack.c.l.b16 %v718
      %v758 = vunpack.c.l.b16 %v719
      %v759 = vunpack.c.l.b16 %v720
      %v760 = vunpack.c.l.b16 %v721
      %v761 = vunpack.c.l.b16 %v722
      %v762 = vunpack.c.l.b16 %v723
      %v763 = vunpack.c.l.b16 %v724
      %v764 = vunpack.c.l.b16 %v725
      %v765 = vunpack.c.l.b16 %v726
      %v766 = vpack.c.b16 %v751, %v750
      %v767 = vpack.c.b16 %v753, %v752
      %v768 = vpack.c.b16 %v755, %v754
      %v769 = vpack.c.b16 %v757, %v756
      %v770 = vpack.c.b16 %v759, %v758
      %v771 = vpack.c.b16 %v761, %v760
      %v772 = vpack.c.b16 %v763, %v762
      %v773 = vpack.c.b16 %v765, %v764
      %782 = vmatprep.subr.bf16.mxu0 0
      %783 = vmatpush1.bf16.msra.mxu0 %v766
      %784 = vmatprep.subr.bf16.mxu0 0
      %785 = vmatpush1.bf16.msra.mxu0 %v767
      %786 = vmatprep.subr.bf16.mxu0 0
      %787 = vmatpush1.bf16.msra.mxu0 %v768
      %788 = vmatprep.subr.bf16.mxu0 0
      %789 = vmatpush1.bf16.msra.mxu0 %v769
      %790 = vmatprep.subr.bf16.mxu0 0
      %791 = vmatpush1.bf16.msra.mxu0 %v770
      %792 = vmatprep.subr.bf16.mxu0 0
      %793 = vmatpush1.bf16.msra.mxu0 %v771
      %794 = vmatprep.subr.bf16.mxu0 0
      %795 = vmatpush1.bf16.msra.mxu0 %v772
      %796 = vmatprep.subr.bf16.mxu0 0
      %797 = vmatpush1.bf16.msra.mxu0 %v773
      %798 = vmatprep.subr.bf16.mxu0 0
      %799 = vmatpush1.bf16.msra.mxu0 0
      %800 = vmatprep.subr.bf16.mxu0 0
      %801 = vmatpush1.bf16.msra.mxu0 0
      %802 = vmatprep.subr.bf16.mxu0 0
      %803 = vmatpush1.bf16.msra.mxu0 0
      %804 = vmatprep.subr.bf16.mxu0 0
      %805 = vmatpush1.bf16.msra.mxu0 0
      %806 = vmatprep.subr.bf16.mxu0 0
      %807 = vmatpush1.bf16.msra.mxu0 0
      %808 = vmatprep.subr.bf16.mxu0 0
      %809 = vmatpush1.bf16.msra.mxu0 0
      %810 = vmatprep.subr.bf16.mxu0 0
      %811 = vmatpush1.bf16.msra.mxu0 0
      %812 = vmatprep.subr.bf16.mxu0 0
      %813 = vmatpush1.bf16.msra.mxu0 0
      %814 = vmatprep.mubr.bf16.mxu0 0
      %815 = vmatmul.mubr.bf16.gmra.mrb[0].mxu0 %v703
      %v816 = vpop.f32.mrb[0].mxu0
      %v817 = vadd.f32 %v732, %v816
      %v818 = vpop.f32.mrb[0].mxu0
      %v819 = vpop.f32.mrb[0].mxu0
      %v820 = vadd.f32 %v732, %v819
      %v821 = vpop.f32.mrb[0].mxu0
      %822 = vmatprep.mubr.bf16.mxu0 0
      %823 = vmatmul.mubr.bf16.gmra.mrb[0].mxu0 %v704
      %v824 = vpop.f32.mrb[0].mxu0
      %v825 = vadd.f32 %v732, %v824
      %v826 = vpop.f32.mrb[0].mxu0
      %v827 = vpop.f32.mrb[0].mxu0
      %v828 = vadd.f32 %v732, %v827
      %v829 = vpop.f32.mrb[0].mxu0
      %830 = vmatprep.mubr.bf16.mxu0 0
      %831 = vmatmul.mubr.bf16.gmra.mrb[0].mxu0 %v705
      %v832 = vpop.f32.mrb[0].mxu0
      %v833 = vadd.f32 %v732, %v832
      %v834 = vpop.f32.mrb[0].mxu0
      %v835 = vpop.f32.mrb[0].mxu0
      %v836 = vadd.f32 %v732, %v835
      %v837 = vpop.f32.mrb[0].mxu0
      %838 = vmatprep.mubr.bf16.mxu0 0
      %839 = vmatmul.mubr.bf16.gmra.mrb[0].mxu0 %v706
      %v840 = vpop.f32.mrb[0].mxu0
      %v841 = vadd.f32 %v732, %v840
      %v842 = vpop.f32.mrb[0].mxu0
      %v843 = vpop.f32.mrb[0].mxu0
      %v844 = vadd.f32 %v732, %v843
      %v845 = vpop.f32.mrb[0].mxu0
      %846 = vmatprep.mubr.bf16.mxu0 0
      %847 = vmatmul.mubr.bf16.gmra.mrb[0].mxu0 %v707
      %v848 = vpop.f32.mrb[0].mxu0
      %v849 = vadd.f32 %v732, %v848
      %v850 = vpop.f32.mrb[0].mxu0
      %v851 = vpop.f32.mrb[0].mxu0
      %v852 = vadd.f32 %v732, %v851
      %v853 = vpop.f32.mrb[0].mxu0
      %854 = vmatprep.mubr.bf16.mxu0 0
      %855 = vmatmul.mubr.bf16.gmra.mrb[0].mxu0 %v708
      %v856 = vpop.f32.mrb[0].mxu0
      %v857 = vadd.f32 %v732, %v856
      %v858 = vpop.f32.mrb[0].mxu0
      %v859 = vpop.f32.mrb[0].mxu0
      %v860 = vadd.f32 %v732, %v859
      %v861 = vpop.f32.mrb[0].mxu0
      %862 = vmatprep.mubr.bf16.mxu0 0
      %863 = vmatmul.mubr.bf16.gmra.mrb[0].mxu0 %v709
      %v864 = vpop.f32.mrb[0].mxu0
      %v865 = vadd.f32 %v732, %v864
      %v866 = vpop.f32.mrb[0].mxu0
      %v867 = vpop.f32.mrb[0].mxu0
      %v868 = vadd.f32 %v732, %v867
      %v869 = vpop.f32.mrb[0].mxu0
      %870 = vmatprep.mubr.bf16.mxu0 0
      %871 = vmatmul.mubr.bf16.gmra.mrb[0].mxu0 %v710
      %v872 = vpop.f32.mrb[0].mxu0
      %v873 = vadd.f32 %v732, %v872
      %v874 = vpop.f32.mrb[0].mxu0
      %v875 = vpop.f32.mrb[0].mxu0
      %v876 = vadd.f32 %v732, %v875
      %v877 = vpop.f32.mrb[0].mxu0
      %878 = vdwg.mxu0
      %v879 = vld [vmem:[%s435] sm:$0x1]
      %v881 = vlaneseq
      %v882 = vshrl.u32 %v881, 7
      %v883 = vsub.s32 0, %v882
      %v884 = vrot.slane %v879, %v883
      %v886 = vmul.f32 %v817, %v884
      %v887 = vmul.f32 %v820, %v884
      %v888 = vmul.f32 %v825, %v884
      %v889 = vmul.f32 %v828, %v884
      %v890 = vmul.f32 %v833, %v884
      %v891 = vmul.f32 %v836, %v884
      %v892 = vmul.f32 %v841, %v884
      %v893 = vmul.f32 %v844, %v884
      %v894 = vmul.f32 %v849, %v884
      %v895 = vmul.f32 %v852, %v884
      %v896 = vmul.f32 %v857, %v884
      %v897 = vmul.f32 %v860, %v884
      %v898 = vmul.f32 %v865, %v884
      %v899 = vmul.f32 %v868, %v884
      %v900 = vmul.f32 %v873, %v884
      %v901 = vmul.f32 %v876, %v884
      %v902 = vunpack.c.l.bf16 %v455
      %v903 = vunpack.c.l.bf16 %v456
      %v904 = vunpack.c.l.bf16 %v457
      %v905 = vunpack.c.l.bf16 %v458
      %v906 = vunpack.c.l.bf16 %v459
      %v907 = vunpack.c.l.bf16 %v460
      %v908 = vunpack.c.l.bf16 %v461
      %v909 = vunpack.c.l.bf16 %v462
      %v910 = vunpack.c.l.bf16 %v463
      %v911 = vunpack.c.l.bf16 %v464
      %v912 = vunpack.c.l.bf16 %v465
      %v913 = vunpack.c.l.bf16 %v466
      %v914 = vunpack.c.l.bf16 %v467
      %v915 = vunpack.c.l.bf16 %v468
      %v916 = vunpack.c.l.bf16 %v469
      %v917 = vunpack.c.l.bf16 %v470
      %v918 = vadd.f32 %v886, %v902
      %v919 = vadd.f32 %v887, %v903
      %v920 = vadd.f32 %v888, %v904
      %v921 = vadd.f32 %v889, %v905
      %v922 = vadd.f32 %v890, %v906
      %v923 = vadd.f32 %v891, %v907
      %v924 = vadd.f32 %v892, %v908
      %v925 = vadd.f32 %v893, %v909
      %v926 = vadd.f32 %v894, %v910
      %v927 = vadd.f32 %v895, %v911
      %v928 = vadd.f32 %v896, %v912
      %v929 = vadd.f32 %v897, %v913
      %v930 = vadd.f32 %v898, %v914
      %v931 = vadd.f32 %v899, %v915
      %v932 = vadd.f32 %v900, %v916
      %v933 = vadd.f32 %v901, %v917
      %v934 = vpack.c.bf16 %v919, %v918
      %v935 = vpack.c.bf16 %v921, %v920
      %v936 = vpack.c.bf16 %v923, %v922
      %v937 = vpack.c.bf16 %v925, %v924
      %v938 = vpack.c.bf16 %v927, %v926
      %v939 = vpack.c.bf16 %v929, %v928
      %v940 = vpack.c.bf16 %v931, %v930
      %v941 = vpack.c.bf16 %v933, %v932
      %v950 = vunpack.c.l.b16 %v934
      %v951 = vunpack.c.h.b16 %v934
      %v952 = vunpack.c.l.b16 %v935
      %v953 = vunpack.c.h.b16 %v935
      %v954 = vunpack.c.l.b16 %v936
      %v955 = vunpack.c.h.b16 %v936
      %v956 = vunpack.c.l.b16 %v937
      %v957 = vunpack.c.h.b16 %v937
      %v958 = vunpack.c.l.b16 %v938
      %v959 = vunpack.c.h.b16 %v938
      %v960 = vunpack.c.l.b16 %v939
      %v961 = vunpack.c.h.b16 %v939
      %v962 = vunpack.c.l.b16 %v940
      %v963 = vunpack.c.h.b16 %v940
      %v964 = vunpack.c.l.b16 %v941
      %v965 = vunpack.c.h.b16 %v941
      %v966 = vpack.c.b16 %v950, %v950
      %v967 = vpack.c.b16 %v951, %v951
      %v968 = vpack.c.b16 %v952, %v952
      %v969 = vpack.c.b16 %v953, %v953
      %v970 = vpack.c.b16 %v954, %v954
      %v971 = vpack.c.b16 %v955, %v955
      %v972 = vpack.c.b16 %v956, %v956
      %v973 = vpack.c.b16 %v957, %v957
      %v974 = vpack.c.b16 %v958, %v958
      %v975 = vpack.c.b16 %v959, %v959
      %v976 = vpack.c.b16 %v960, %v960
      %v977 = vpack.c.b16 %v961, %v961
      %v978 = vpack.c.b16 %v962, %v962
      %v979 = vpack.c.b16 %v963, %v963
      %v980 = vpack.c.b16 %v964, %v964
      %v981 = vpack.c.b16 %v965, %v965
      %998 = vst [vmem:[%s444] sm:$0xf] %v966
      %999 = vst [vmem:[%s444 + $0x4] sm:$0xf] %v967
      %1000 = vst [vmem:[%s444 + $0x8] sm:$0xf] %v968
      %1001 = vst [vmem:[%s444 + $0xc] sm:$0xf] %v969
      %1002 = vst [vmem:[%s444 + $0x10] sm:$0xf] %v970
      %1003 = vst [vmem:[%s444 + $0x14] sm:$0xf] %v971
      %1004 = vst [vmem:[%s444 + $0x18] sm:$0xf] %v972
      %1005 = vst [vmem:[%s444 + $0x1c] sm:$0xf] %v973
      %1006 = vst [vmem:[%s444 + $0x20] sm:$0xf] %v974
      %1007 = vst [vmem:[%s444 + $0x24] sm:$0xf] %v975
      %1008 = vst [vmem:[%s444 + $0x28] sm:$0xf] %v976
      %1009 = vst [vmem:[%s444 + $0x2c] sm:$0xf] %v977
      %1010 = vst [vmem:[%s444 + $0x30] sm:$0xf] %v978
      %1011 = vst [vmem:[%s444 + $0x34] sm:$0xf] %v979
      %1012 = vst [vmem:[%s444 + $0x38] sm:$0xf] %v980
      %1013 = vst [vmem:[%s444 + $0x3c] sm:$0xf] %v981
      %v1014 = vld [vmem:[%s6] sm:$0xf]
      %v1015 = vld [vmem:[%s6 + $0x4] sm:$0xf]
      %v1016 = vld [vmem:[%s6 + $0x8] sm:$0xf]
      %v1017 = vld [vmem:[%s6 + $0xc] sm:$0xf]
      %v1018 = vld [vmem:[%s6 + $0x10] sm:$0xf]
      %v1019 = vld [vmem:[%s6 + $0x14] sm:$0xf]
      %v1020 = vld [vmem:[%s6 + $0x18] sm:$0xf]
      %v1021 = vld [vmem:[%s6 + $0x1c] sm:$0xf]
      %v1022 = vld [vmem:[%s6 + $0x20] sm:$0xf]
      %v1023 = vld [vmem:[%s6 + $0x24] sm:$0xf]
      %v1024 = vld [vmem:[%s6 + $0x28] sm:$0xf]
      %v1025 = vld [vmem:[%s6 + $0x2c] sm:$0xf]
      %v1026 = vld [vmem:[%s6 + $0x30] sm:$0xf]
      %v1027 = vld [vmem:[%s6 + $0x34] sm:$0xf]
      %v1028 = vld [vmem:[%s6 + $0x38] sm:$0xf]
      %v1029 = vld [vmem:[%s6 + $0x3c] sm:$0xf]
      %v1030 = vld [vmem:[%s7] sm:$0x1]
      %v1032 = vlaneseq
      %v1033 = vshrl.u32 %v1032, 7
      %v1034 = vsub.s32 0, %v1033
      %v1035 = vrot.slane %v1030, %v1034
      %v1053 = vunpack.c.l.b16 %v1014
      %v1054 = vunpack.c.l.b16 %v1015
      %v1055 = vunpack.c.l.b16 %v1016
      %v1056 = vunpack.c.l.b16 %v1017
      %v1057 = vunpack.c.l.b16 %v1018
      %v1058 = vunpack.c.l.b16 %v1019
      %v1059 = vunpack.c.l.b16 %v1020
      %v1060 = vunpack.c.l.b16 %v1021
      %v1061 = vunpack.c.l.b16 %v1022
      %v1062 = vunpack.c.l.b16 %v1023
      %v1063 = vunpack.c.l.b16 %v1024
      %v1064 = vunpack.c.l.b16 %v1025
      %v1065 = vunpack.c.l.b16 %v1026
      %v1066 = vunpack.c.l.b16 %v1027
      %v1067 = vunpack.c.l.b16 %v1028
      %v1068 = vunpack.c.l.b16 %v1029
      %v1069 = vpack.c.b16 %v1054, %v1053
      %v1070 = vpack.c.b16 %v1056, %v1055
      %v1071 = vpack.c.b16 %v1058, %v1057
      %v1072 = vpack.c.b16 %v1060, %v1059
      %v1073 = vpack.c.b16 %v1062, %v1061
      %v1074 = vpack.c.b16 %v1064, %v1063
      %v1075 = vpack.c.b16 %v1066, %v1065
      %v1076 = vpack.c.b16 %v1068, %v1067
      %1085 = vmatprep.subr.bf16.mxu0 0
      %1086 = vmatpush1.bf16.msra.mxu0 %v1069
      %1087 = vmatprep.subr.bf16.mxu0 0
      %1088 = vmatpush1.bf16.msra.mxu0 %v1070
      %1089 = vmatprep.subr.bf16.mxu0 0
      %1090 = vmatpush1.bf16.msra.mxu0 %v1071
      %1091 = vmatprep.subr.bf16.mxu0 0
      %1092 = vmatpush1.bf16.msra.mxu0 %v1072
      %1093 = vmatprep.subr.bf16.mxu0 0
      %1094 = vmatpush1.bf16.msra.mxu0 %v1073
      %1095 = vmatprep.subr.bf16.mxu0 0
      %1096 = vmatpush1.bf16.msra.mxu0 %v1074
      %1097 = vmatprep.subr.bf16.mxu0 0
      %1098 = vmatpush1.bf16.msra.mxu0 %v1075
      %1099 = vmatprep.subr.bf16.mxu0 0
      %1100 = vmatpush1.bf16.msra.mxu0 %v1076
      %1101 = vmatprep.subr.bf16.mxu0 0
      %1102 = vmatpush1.bf16.msra.mxu0 0
      %1103 = vmatprep.subr.bf16.mxu0 0
      %1104 = vmatpush1.bf16.msra.mxu0 0
      %1105 = vmatprep.subr.bf16.mxu0 0
      %1106 = vmatpush1.bf16.msra.mxu0 0
      %1107 = vmatprep.subr.bf16.mxu0 0
      %1108 = vmatpush1.bf16.msra.mxu0 0
      %1109 = vmatprep.subr.bf16.mxu0 0
      %1110 = vmatpush1.bf16.msra.mxu0 0
      %1111 = vmatprep.subr.bf16.mxu0 0
      %1112 = vmatpush1.bf16.msra.mxu0 0
      %1113 = vmatprep.subr.bf16.mxu0 0
      %1114 = vmatpush1.bf16.msra.mxu0 0
      %1115 = vmatprep.subr.bf16.mxu0 0
      %1116 = vmatpush1.bf16.msra.mxu0 0
      %1117 = vmatprep.mubr.bf16.mxu0 0
      %1118 = vmatmul.mubr.bf16.gmra.mrb[0].mxu0 %v934
      %v1119 = vpop.f32.mrb[0].mxu0
      %v1120 = vadd.f32 %v1035, %v1119
      %v1121 = vpop.f32.mrb[0].mxu0
      %v1122 = vpop.f32.mrb[0].mxu0
      %v1123 = vadd.f32 %v1035, %v1122
      %v1124 = vpop.f32.mrb[0].mxu0
      %1125 = vmatprep.mubr.bf16.mxu0 0
      %1126 = vmatmul.mubr.bf16.gmra.mrb[0].mxu0 %v935
      %v1127 = vpop.f32.mrb[0].mxu0
      %v1128 = vadd.f32 %v1035, %v1127
      %v1129 = vpop.f32.mrb[0].mxu0
      %v1130 = vpop.f32.mrb[0].mxu0
      %v1131 = vadd.f32 %v1035, %v1130
      %v1132 = vpop.f32.mrb[0].mxu0
      %1133 = vmatprep.mubr.bf16.mxu0 0
      %1134 = vmatmul.mubr.bf16.gmra.mrb[0].mxu0 %v936
      %v1135 = vpop.f32.mrb[0].mxu0
      %v1136 = vadd.f32 %v1035, %v1135
      %v1137 = vpop.f32.mrb[0].mxu0
      %v1138 = vpop.f32.mrb[0].mxu0
      %v1139 = vadd.f32 %v1035, %v1138
      %v1140 = vpop.f32.mrb[0].mxu0
      %1141 = vmatprep.mubr.bf16.mxu0 0
      %1142 = vmatmul.mubr.bf16.gmra.mrb[0].mxu0 %v937
      %v1143 = vpop.f32.mrb[0].mxu0
      %v1144 = vadd.f32 %v1035, %v1143
      %v1145 = vpop.f32.mrb[0].mxu0
      %v1146 = vpop.f32.mrb[0].mxu0
      %v1147 = vadd.f32 %v1035, %v1146
      %v1148 = vpop.f32.mrb[0].mxu0
      %1149 = vmatprep.mubr.bf16.mxu0 0
      %1150 = vmatmul.mubr.bf16.gmra.mrb[0].mxu0 %v938
      %v1151 = vpop.f32.mrb[0].mxu0
      %v1152 = vadd.f32 %v1035, %v1151
      %v1153 = vpop.f32.mrb[0].mxu0
      %v1154 = vpop.f32.mrb[0].mxu0
      %v1155 = vadd.f32 %v1035, %v1154
      %v1156 = vpop.f32.mrb[0].mxu0
      %1157 = vmatprep.mubr.bf16.mxu0 0
      %1158 = vmatmul.mubr.bf16.gmra.mrb[0].mxu0 %v939
      %v1159 = vpop.f32.mrb[0].mxu0
      %v1160 = vadd.f32 %v1035, %v1159
      %v1161 = vpop.f32.mrb[0].mxu0
      %v1162 = vpop.f32.mrb[0].mxu0
      %v1163 = vadd.f32 %v1035, %v1162
      %v1164 = vpop.f32.mrb[0].mxu0
      %1165 = vmatprep.mubr.bf16.mxu0 0
      %1166 = vmatmul.mubr.bf16.gmra.mrb[0].mxu0 %v940
      %v1167 = vpop.f32.mrb[0].mxu0
      %v1168 = vadd.f32 %v1035, %v1167
      %v1169 = vpop.f32.mrb[0].mxu0
      %v1170 = vpop.f32.mrb[0].mxu0
      %v1171 = vadd.f32 %v1035, %v1170
      %v1172 = vpop.f32.mrb[0].mxu0
      %1173 = vmatprep.mubr.bf16.mxu0 0
      %1174 = vmatmul.mubr.bf16.gmra.mrb[0].mxu0 %v941
      %v1175 = vpop.f32.mrb[0].mxu0
      %v1176 = vadd.f32 %v1035, %v1175
      %v1177 = vpop.f32.mrb[0].mxu0
      %v1178 = vpop.f32.mrb[0].mxu0
      %v1179 = vadd.f32 %v1035, %v1178
      %v1180 = vpop.f32.mrb[0].mxu0
      %1181 = vdwg.mxu0
      %v1182 = vmax.f32 %v1120, 0.0
      %v1183 = vmax.f32 %v1123, 0.0
      %v1184 = vmax.f32 %v1128, 0.0
      %v1185 = vmax.f32 %v1131, 0.0
      %v1186 = vmax.f32 %v1136, 0.0
      %v1187 = vmax.f32 %v1139, 0.0
      %v1188 = vmax.f32 %v1144, 0.0
      %v1189 = vmax.f32 %v1147, 0.0
      %v1190 = vmax.f32 %v1152, 0.0
      %v1191 = vmax.f32 %v1155, 0.0
      %v1192 = vmax.f32 %v1160, 0.0
      %v1193 = vmax.f32 %v1163, 0.0
      %v1194 = vmax.f32 %v1168, 0.0
      %v1195 = vmax.f32 %v1171, 0.0
      %v1196 = vmax.f32 %v1176, 0.0
      %v1197 = vmax.f32 %v1179, 0.0
      %v1198 = vpack.c.bf16 %v1183, %v1182
      %v1199 = vpack.c.bf16 %v1185, %v1184
      %v1200 = vpack.c.bf16 %v1187, %v1186
      %v1201 = vpack.c.bf16 %v1189, %v1188
      %v1202 = vpack.c.bf16 %v1191, %v1190
      %v1203 = vpack.c.bf16 %v1193, %v1192
      %v1204 = vpack.c.bf16 %v1195, %v1194
      %v1205 = vpack.c.bf16 %v1197, %v1196
      %v1206 = vld [vmem:[%s8] sm:$0xf]
      %v1207 = vld [vmem:[%s8 + $0x4] sm:$0xf]
      %v1208 = vld [vmem:[%s8 + $0x8] sm:$0xf]
      %v1209 = vld [vmem:[%s8 + $0xc] sm:$0xf]
      %v1210 = vld [vmem:[%s8 + $0x10] sm:$0xf]
      %v1211 = vld [vmem:[%s8 + $0x14] sm:$0xf]
      %v1212 = vld [vmem:[%s8 + $0x18] sm:$0xf]
      %v1213 = vld [vmem:[%s8 + $0x1c] sm:$0xf]
      %v1214 = vld [vmem:[%s8 + $0x20] sm:$0xf]
      %v1215 = vld [vmem:[%s8 + $0x24] sm:$0xf]
      %v1216 = vld [vmem:[%s8 + $0x28] sm:$0xf]
      %v1217 = vld [vmem:[%s8 + $0x2c] sm:$0xf]
      %v1218 = vld [vmem:[%s8 + $0x30] sm:$0xf]
      %v1219 = vld [vmem:[%s8 + $0x34] sm:$0xf]
      %v1220 = vld [vmem:[%s8 + $0x38] sm:$0xf]
      %v1221 = vld [vmem:[%s8 + $0x3c] sm:$0xf]
      %v1222 = vld [vmem:[%s9] sm:$0x1]
      %v1224 = vlaneseq
      %v1225 = vshrl.u32 %v1224, 7
      %v1226 = vsub.s32 0, %v1225
      %v1227 = vrot.slane %v1222, %v1226
      %v1245 = vunpack.c.l.b16 %v1206
      %v1246 = vunpack.c.l.b16 %v1207
      %v1247 = vunpack.c.l.b16 %v1208
      %v1248 = vunpack.c.l.b16 %v1209
      %v1249 = vunpack.c.l.b16 %v1210
      %v1250 = vunpack.c.l.b16 %v1211
      %v1251 = vunpack.c.l.b16 %v1212
      %v1252 = vunpack.c.l.b16 %v1213
      %v1253 = vunpack.c.l.b16 %v1214
      %v1254 = vunpack.c.l.b16 %v1215
      %v1255 = vunpack.c.l.b16 %v1216
      %v1256 = vunpack.c.l.b16 %v1217
      %v1257 = vunpack.c.l.b16 %v1218
      %v1258 = vunpack.c.l.b16 %v1219
      %v1259 = vunpack.c.l.b16 %v1220
      %v1260 = vunpack.c.l.b16 %v1221
      %v1261 = vpack.c.b16 %v1246, %v1245
      %v1262 = vpack.c.b16 %v1248, %v1247
      %v1263 = vpack.c.b16 %v1250, %v1249
      %v1264 = vpack.c.b16 %v1252, %v1251
      %v1265 = vpack.c.b16 %v1254, %v1253
      %v1266 = vpack.c.b16 %v1256, %v1255
      %v1267 = vpack.c.b16 %v1258, %v1257
      %v1268 = vpack.c.b16 %v1260, %v1259
      %1277 = vmatprep.subr.bf16.mxu0 0
      %1278 = vmatpush1.bf16.msra.mxu0 %v1261
      %1279 = vmatprep.subr.bf16.mxu0 0
      %1280 = vmatpush1.bf16.msra.mxu0 %v1262
      %1281 = vmatprep.subr.bf16.mxu0 0
      %1282 = vmatpush1.bf16.msra.mxu0 %v1263
      %1283 = vmatprep.subr.bf16.mxu0 0
      %1284 = vmatpush1.bf16.msra.mxu0 %v1264
      %1285 = vmatprep.subr.bf16.mxu0 0
      %1286 = vmatpush1.bf16.msra.mxu0 %v1265
      %1287 = vmatprep.subr.bf16.mxu0 0
      %1288 = vmatpush1.bf16.msra.mxu0 %v1266
      %1289 = vmatprep.subr.bf16.mxu0 0
      %1290 = vmatpush1.bf16.msra.mxu0 %v1267
      %1291 = vmatprep.subr.bf16.mxu0 0
      %1292 = vmatpush1.bf16.msra.mxu0 %v1268
      %1293 = vmatprep.subr.bf16.mxu0 0
      %1294 = vmatpush1.bf16.msra.mxu0 0
      %1295 = vmatprep.subr.bf16.mxu0 0
      %1296 = vmatpush1.bf16.msra.mxu0 0
      %1297 = vmatprep.subr.bf16.mxu0 0
      %1298 = vmatpush1.bf16.msra.mxu0 0
      %1299 = vmatprep.subr.bf16.mxu0 0
      %1300 = vmatpush1.bf16.msra.mxu0 0
      %1301 = vmatprep.subr.bf16.mxu0 0
      %1302 = vmatpush1.bf16.msra.mxu0 0
      %1303 = vmatprep.subr.bf16.mxu0 0
      %1304 = vmatpush1.bf16.msra.mxu0 0
      %1305 = vmatprep.subr.bf16.mxu0 0
      %1306 = vmatpush1.bf16.msra.mxu0 0
      %1307 = vmatprep.subr.bf16.mxu0 0
      %1308 = vmatpush1.bf16.msra.mxu0 0
      %1309 = vmatprep.mubr.bf16.mxu0 0
      %1310 = vmatmul.mubr.bf16.gmra.mrb[0].mxu0 %v1198
      %v1311 = vpop.f32.mrb[0].mxu0
      %v1312 = vadd.f32 %v1227, %v1311
      %v1313 = vpop.f32.mrb[0].mxu0
      %v1314 = vpop.f32.mrb[0].mxu0
      %v1315 = vadd.f32 %v1227, %v1314
      %v1316 = vpop.f32.mrb[0].mxu0
      %1317 = vmatprep.mubr.bf16.mxu0 0
      %1318 = vmatmul.mubr.bf16.gmra.mrb[0].mxu0 %v1199
      %v1319 = vpop.f32.mrb[0].mxu0
      %v1320 = vadd.f32 %v1227, %v1319
      %v1321 = vpop.f32.mrb[0].mxu0
      %v1322 = vpop.f32.mrb[0].mxu0
      %v1323 = vadd.f32 %v1227, %v1322
      %v1324 = vpop.f32.mrb[0].mxu0
      %1325 = vmatprep.mubr.bf16.mxu0 0
      %1326 = vmatmul.mubr.bf16.gmra.mrb[0].mxu0 %v1200
      %v1327 = vpop.f32.mrb[0].mxu0
      %v1328 = vadd.f32 %v1227, %v1327
      %v1329 = vpop.f32.mrb[0].mxu0
      %v1330 = vpop.f32.mrb[0].mxu0
      %v1331 = vadd.f32 %v1227, %v1330
      %v1332 = vpop.f32.mrb[0].mxu0
      %1333 = vmatprep.mubr.bf16.mxu0 0
      %1334 = vmatmul.mubr.bf16.gmra.mrb[0].mxu0 %v1201
      %v1335 = vpop.f32.mrb[0].mxu0
      %v1336 = vadd.f32 %v1227, %v1335
      %v1337 = vpop.f32.mrb[0].mxu0
      %v1338 = vpop.f32.mrb[0].mxu0
      %v1339 = vadd.f32 %v1227, %v1338
      %v1340 = vpop.f32.mrb[0].mxu0
      %1341 = vmatprep.mubr.bf16.mxu0 0
      %1342 = vmatmul.mubr.bf16.gmra.mrb[0].mxu0 %v1202
      %v1343 = vpop.f32.mrb[0].mxu0
      %v1344 = vadd.f32 %v1227, %v1343
      %v1345 = vpop.f32.mrb[0].mxu0
      %v1346 = vpop.f32.mrb[0].mxu0
      %v1347 = vadd.f32 %v1227, %v1346
      %v1348 = vpop.f32.mrb[0].mxu0
      %1349 = vmatprep.mubr.bf16.mxu0 0
      %1350 = vmatmul.mubr.bf16.gmra.mrb[0].mxu0 %v1203
      %v1351 = vpop.f32.mrb[0].mxu0
      %v1352 = vadd.f32 %v1227, %v1351
      %v1353 = vpop.f32.mrb[0].mxu0
      %v1354 = vpop.f32.mrb[0].mxu0
      %v1355 = vadd.f32 %v1227, %v1354
      %v1356 = vpop.f32.mrb[0].mxu0
      %1357 = vmatprep.mubr.bf16.mxu0 0
      %1358 = vmatmul.mubr.bf16.gmra.mrb[0].mxu0 %v1204
      %v1359 = vpop.f32.mrb[0].mxu0
      %v1360 = vadd.f32 %v1227, %v1359
      %v1361 = vpop.f32.mrb[0].mxu0
      %v1362 = vpop.f32.mrb[0].mxu0
      %v1363 = vadd.f32 %v1227, %v1362
      %v1364 = vpop.f32.mrb[0].mxu0
      %1365 = vmatprep.mubr.bf16.mxu0 0
      %1366 = vmatmul.mubr.bf16.gmra.mrb[0].mxu0 %v1205
      %v1367 = vpop.f32.mrb[0].mxu0
      %v1368 = vadd.f32 %v1227, %v1367
      %v1369 = vpop.f32.mrb[0].mxu0
      %v1370 = vpop.f32.mrb[0].mxu0
      %v1371 = vadd.f32 %v1227, %v1370
      %v1372 = vpop.f32.mrb[0].mxu0
      %1373 = vdwg.mxu0
      %v1374 = vld [vmem:[%s448] sm:$0x1]
      %v1375 = vadd.f32 %v1312, %v1315
      %v1376 = vadd.f32 %v1375, %v1320
      %v1377 = vadd.f32 %v1376, %v1323
      %v1378 = vadd.f32 %v1377, %v1328
      %v1379 = vadd.f32 %v1378, %v1331
      %v1380 = vadd.f32 %v1379, %v1336
      %v1381 = vadd.f32 %v1380, %v1339
      %v1382 = vadd.f32 %v1381, %v1344
      %v1383 = vadd.f32 %v1382, %v1347
      %v1384 = vadd.f32 %v1383, %v1352
      %v1385 = vadd.f32 %v1384, %v1355
      %v1386 = vadd.f32 %v1385, %v1360
      %v1387 = vadd.f32 %v1386, %v1363
      %v1388 = vadd.f32 %v1387, %v1368
      %v1389 = vadd.f32 %v1388, %v1371
      %v1390 = vrot.slane %v1389, 4
      %v1391 = vadd.f32 %v1389, %v1390
      %v1392 = vrot.slane %v1391, 2
      %v1393 = vadd.f32 %v1391, %v1392
      %v1394 = vrot.slane %v1393, 1
      %v1395 = vadd.f32 %v1393, %v1394
      %v1396 = vadd.f32 %v1374, %v1395
      %1397 = vst [vmem:[%s448] sm:$0x1] %v1396
      %s1398 = smul.u32 16, %s28
      %p1399 = scmp.lt.s32.totalorder %s27, 1
      %s1400 = scalar_select %p1399, %s27, 1
      %p1401 = scmp.lt.s32.totalorder %s1398, 15
      %s1402 = scalar_select %p1401, %s1398, 15
      %s1403 = smul.addr %s1400, 16
      %s1404 = sadd.s32 %s1402, %s1403
      %s1405 = smul.addr %s1404, 4
      %s1406 = scalar_lea.vmem %s10, %s1405
      %p1407 = scmp.lt.s32.totalorder %s27, 1
      %s1408 = scalar_select %p1407, %s27, 1
      %s1409 = scalar_lea.vmem %s11, %s1408
      // Predicated region
      $region65: #{lan_forward.6} parent=59 // pred_check
        %p1410 = pneg %p277
      $region66: #{lan_forward.6} parent=59 // pred_check_branch
        %1412 = sbr.rel (%p1410) target = $region68
      $region67: #{lan_forward.6} parent=59 // pred_region
        %s1413 = smul.u32 16, %s28
      $region68: #{lan_forward.6} parent=59 // pred_fallthru
        _
      // Predicated region
      $region69: #{lan_forward.6} parent=59 // pred_check
        %p1414 = pneg %p303
      $region70: #{lan_forward.6} parent=59 // pred_check_branch
        %1416 = sbr.rel (%p1414) target = $region72
      $region71: #{lan_forward.6} parent=59 // pred_region
        _
      $region72: #{lan_forward.6} parent=59 // pred_fallthru
        _
    $region60: #{lan_forward.6} parent=5 // pred_fallthru
      _
    %p1417 = scmp.le.s32.totalorder 2, %s18
    // Predicated region
    $region73: #{lan_forward.6} parent=5 // pred_check
      %p1418 = pneg %p1417
    $region74: #{lan_forward.6} parent=5 // pred_check_branch
      %1420 = sbr.rel (%p1418) target = $region76
    $region75: #{lan_forward.6} parent=5 // pred_region
      %s1421 = ssub.s32 %s18, 2
      // Predicated region
      $region77: #{lan_forward.6} parent=75 // pred_check
        %p1422 = pneg %p283
      $region78: #{lan_forward.6} parent=75 // pred_check_branch
        %1424 = sbr.rel (%p1422) target = $region80
      $region79: #{lan_forward.6} parent=75 // pred_region
        %s1425 = smul.u32 16, %s30
        %p1426 = scmp.lt.s32.totalorder %s29, 1
        %s1427 = scalar_select %p1426, %s29, 1
        %p1428 = scmp.lt.s32.totalorder %s1425, 15
        %s1429 = scalar_select %p1428, %s1425, 15
        %s1430 = smul.addr %s1427, 16
        %s1431 = sadd.s32 %s1429, %s1430
        %s1432 = smul.addr %s1431, 4
        %s1433 = scalar_lea.vmem %s10, %s1432
      $region80: #{lan_forward.6} parent=75 // pred_fallthru
        _
      // Predicated region
      $region81: #{lan_forward.6} parent=75 // pred_check
        %p1434 = pneg %p309
      $region82: #{lan_forward.6} parent=75 // pred_check_branch
        %1436 = sbr.rel (%p1434) target = $region84
      $region83: #{lan_forward.6} parent=75 // pred_region
        %p1437 = scmp.lt.s32.totalorder %s29, 1
        %s1438 = scalar_select %p1437, %s29, 1
        %s1439 = scalar_lea.vmem %s11, %s1438
      $region84: #{lan_forward.6} parent=75 // pred_fallthru
        _
    $region76: #{lan_forward.6} parent=5 // pred_fallthru
      _
  $region6: #{lan_forward.6} parent=0 // loop_footer
    %s22 = sadd.s32 1, %s18
  $region7: #{lan_forward.6} parent=0 // loop_footer_branch
    %17 = sbr.rel target = $region3
  $region8: #{lan_forward.6} parent=0 // loop_exit
    _

// kernel: lan_forward.4
$region0: #{lan_forward.4}
  #allocation0 [shape = 'u32[]', space=smem, size = 0x4, offset = 0x4, fixed_abs, tag = 'smem constant byte address 0x4 - core index']
  #allocation1 [shape = 'u32[144,128]{1,0:T(1,128)}', space=vmem, size = 0x12000, scoped, tag = 'internal scratch']
  #allocation2 [shape = 'bf16[146,128]{1,0:T(8,128)(2,1)}', space=vmem, size = 0x9800, scoped, tag = 'scratch operand']
  %s0 = inlined_call_operand.vmem [shape: bf16[2,146,6], index: 0, kind: input, shape index: {}]
  %s1 = inlined_call_operand.vmem [shape: bf16[6,128], index: 1, kind: input, shape index: {}]
  %s2 = inlined_call_operand.vmem [shape: f32[1,128], index: 2, kind: input, shape index: {}]
  %s3 = inlined_call_operand.vmem [shape: bf16[9,128,128], index: 3, kind: input, shape index: {}]
  %s4 = inlined_call_operand.vmem [shape: f32[1,128], index: 4, kind: input, shape index: {}]
  %s5 = inlined_call_operand.vmem [shape: bf16[2,128,128], index: 5, kind: output, shape index: {}]
  %s6 = sld [smem:[#allocation0]]
  $region53: #{lan_forward.4} parent=0
    _
  %s8 = ssub.s32 1, %s6
  %s9 = scalar_select 0, %s8, %s6
  loop: start=0, step=1, limit=4
  $region2: #{lan_forward.4} parent=0 // loop_pre_header
    _
  $region3: #{lan_forward.4} parent=0 // loop_header
    %s11 = sphi 0, %s15
    %p12 = scmp.ge.s32.totalorder %s11, 4
    %s18 = sphi 0, %s30
    %s19 = sphi 0, %s26
    %s20 = sphi 0, %s18
    %s21 = sphi 0, %s19
    %s22 = sphi 0, %s20
    %s23 = sphi 0, %s21
    %s33 = sphi 0, %s35
    %s36 = sphi 0, %s33
    %s37 = sphi 0, %s36
    %s53 = sphi 0, %s37
    %s57 = sphi 0, %s57
    %s59 = sphi 0, %s57
    %s60 = sphi 0, %s59
    %s74 = sphi 0, %s60
    %s78 = sphi 0, %s78
    %s80 = sphi 0, %s78
    %s81 = sphi 0, %s80
    %s95 = sphi 0, %s81
    %s99 = sphi 0, %s99
    %s101 = sphi 0, %s99
    %s102 = sphi 0, %s101
    %s116 = sphi 0, %s102
    %s120 = sphi 0, %s120
    %s122 = sphi 0, %s120
    %s123 = sphi 0, %s122
    %s137 = sphi 0, %s123
    %s145 = sphi 0, %s147
    %s148 = sphi 0, %s145
    %s149 = sphi 0, %s148
    %s165 = sphi 0, %s149
  $region4: #{lan_forward.4} parent=0 // loop_header_branch
    %14 = sbr.rel (%p12) target = $region8
  $region5: #{lan_forward.4} parent=0 // loop_body
    %s16 = ssub.s32 %s11, 1
    %s17 = ssub.s32 %s11, 2
    %s24 = sadd.s32 1, %s19
    %p25 = scmp.ge.s32.totalorder %s24, 1
    %s26 = scalar_select %p25, 0, %s24
    %s27 = sadd.s32 1, %s18
    %s28 = scalar_select %p25, %s27, %s18
    %p29 = scmp.ge.s32.totalorder %s28, 2
    %s30 = scalar_select %p29, 0, %s28
    %s31 = ssub.s32 %s18, %s30
    %p32 = scmp.eq.s32.totalorder %s31, 0
    %s34 = sadd.s32 %s33, 1
    %s35 = scalar_select %p32, %s33, %s34
    %p38 = pneg %p32
    %p39 = scmp.eq.s32.totalorder %s11, 1
    %p40 = por %p38, %p39
    %p41 = scmp.ne.s32.totalorder %s33, %s36
    %p42 = scmp.eq.s32.totalorder %s11, 0
    %p43 = por %p41, %p42
    %p44 = scmp.ne.s32.totalorder %s33, %s36
    %p45 = scmp.eq.s32.totalorder %s16, 1
    %p46 = por %p44, %p45
    %p47 = scmp.ne.s32.totalorder %s36, %s37
    %p48 = scmp.eq.s32.totalorder %s16, 0
    %p49 = por %p47, %p48
    %p50 = scmp.ne.s32.totalorder %s36, %s37
    %p51 = scmp.eq.s32.totalorder %s17, 1
    %p52 = por %p50, %p51
    %p54 = scmp.ne.s32.totalorder %s37, %s53
    %p55 = scmp.eq.s32.totalorder %s17, 0
    %p56 = por %p54, %p55
    %s58 = sadd.s32 %s57, 1
    %p61 = scmp.eq.s32.totalorder %s11, 1
    %p62 = scmp.ne.s32.totalorder %s57, %s59
    %p63 = scmp.eq.s32.totalorder %s11, 0
    %p64 = por %p62, %p63
    %p65 = scmp.ne.s32.totalorder %s57, %s59
    %p66 = scmp.eq.s32.totalorder %s16, 1
    %p67 = por %p65, %p66
    %p68 = scmp.ne.s32.totalorder %s59, %s60
    %p69 = scmp.eq.s32.totalorder %s16, 0
    %p70 = por %p68, %p69
    %p71 = scmp.ne.s32.totalorder %s59, %s60
    %p72 = scmp.eq.s32.totalorder %s17, 1
    %p73 = por %p71, %p72
    %p75 = scmp.ne.s32.totalorder %s60, %s74
    %p76 = scmp.eq.s32.totalorder %s17, 0
    %p77 = por %p75, %p76
    %s79 = sadd.s32 %s78, 1
    %p82 = scmp.eq.s32.totalorder %s11, 1
    %p83 = scmp.ne.s32.totalorder %s78, %s80
    %p84 = scmp.eq.s32.totalorder %s11, 0
    %p85 = por %p83, %p84
    %p86 = scmp.ne.s32.totalorder %s78, %s80
    %p87 = scmp.eq.s32.totalorder %s16, 1
    %p88 = por %p86, %p87
    %p89 = scmp.ne.s32.totalorder %s80, %s81
    %p90 = scmp.eq.s32.totalorder %s16, 0
    %p91 = por %p89, %p90
    %p92 = scmp.ne.s32.totalorder %s80, %s81
    %p93 = scmp.eq.s32.totalorder %s17, 1
    %p94 = por %p92, %p93
    %p96 = scmp.ne.s32.totalorder %s81, %s95
    %p97 = scmp.eq.s32.totalorder %s17, 0
    %p98 = por %p96, %p97
    %s100 = sadd.s32 %s99, 1
    %p103 = scmp.eq.s32.totalorder %s11, 1
    %p104 = scmp.ne.s32.totalorder %s99, %s101
    %p105 = scmp.eq.s32.totalorder %s11, 0
    %p106 = por %p104, %p105
    %p107 = scmp.ne.s32.totalorder %s99, %s101
    %p108 = scmp.eq.s32.totalorder %s16, 1
    %p109 = por %p107, %p108
    %p110 = scmp.ne.s32.totalorder %s101, %s102
    %p111 = scmp.eq.s32.totalorder %s16, 0
    %p112 = por %p110, %p111
    %p113 = scmp.ne.s32.totalorder %s101, %s102
    %p114 = scmp.eq.s32.totalorder %s17, 1
    %p115 = por %p113, %p114
    %p117 = scmp.ne.s32.totalorder %s102, %s116
    %p118 = scmp.eq.s32.totalorder %s17, 0
    %p119 = por %p117, %p118
    %s121 = sadd.s32 %s120, 1
    %p124 = scmp.eq.s32.totalorder %s11, 1
    %p125 = scmp.ne.s32.totalorder %s120, %s122
    %p126 = scmp.eq.s32.totalorder %s11, 0
    %p127 = por %p125, %p126
    %p128 = scmp.ne.s32.totalorder %s120, %s122
    %p129 = scmp.eq.s32.totalorder %s16, 1
    %p130 = por %p128, %p129
    %p131 = scmp.ne.s32.totalorder %s122, %s123
    %p132 = scmp.eq.s32.totalorder %s16, 0
    %p133 = por %p131, %p132
    %p134 = scmp.ne.s32.totalorder %s122, %s123
    %p135 = scmp.eq.s32.totalorder %s17, 1
    %p136 = por %p134, %p135
    %p138 = scmp.ne.s32.totalorder %s123, %s137
    %p139 = scmp.eq.s32.totalorder %s17, 0
    %p140 = por %p138, %p139
    %s141 = ssub.s32 %s18, %s30
    %s142 = ssub.s32 %s19, %s26
    %s143 = sor.u32 %s141, %s142
    %p144 = scmp.eq.s32.totalorder %s143, 0
    %s146 = sadd.s32 %s145, 1
    %s147 = scalar_select %p144, %s145, %s146
    %p150 = pneg %p144
    %p151 = scmp.eq.s32.totalorder %s11, 1
    %p152 = por %p150, %p151
    %p153 = scmp.ne.s32.totalorder %s145, %s148
    %p154 = scmp.eq.s32.totalorder %s11, 0
    %p155 = por %p153, %p154
    %p156 = scmp.ne.s32.totalorder %s145, %s148
    %p157 = scmp.eq.s32.totalorder %s16, 1
    %p158 = por %p156, %p157
    %p159 = scmp.ne.s32.totalorder %s148, %s149
    %p160 = scmp.eq.s32.totalorder %s16, 0
    %p161 = por %p159, %p160
    %p162 = scmp.ne.s32.totalorder %s148, %s149
    %p163 = scmp.eq.s32.totalorder %s17, 1
    %p164 = por %p162, %p163
    %p166 = scmp.ne.s32.totalorder %s149, %s165
    %p167 = scmp.eq.s32.totalorder %s17, 0
    %p168 = por %p166, %p167
    %p169 = scmp.le.s32.totalorder 1, %s11
    %p170 = scmp.lt.s32.totalorder %s11, 3
    %p171 = pnand %p169, %p170
    %p172 = pneg %p171
    // Predicated region
    $region9: #{lan_forward.4} parent=5 // pred_check
      _
    $region10: #{lan_forward.4} parent=5 // pred_check_branch
      %174 = sbr.rel (%p171) target = $region12
    $region11: #{lan_forward.4} parent=5 // pred_region
      %s175 = ssub.s32 %s11, 1
      // Predicated region
      $region13: #{lan_forward.4} parent=11 // pred_check
        %p176 = pneg %p49
      $region14: #{lan_forward.4} parent=11 // pred_check_branch
        %178 = sbr.rel (%p176) target = $region16
      $region15: #{lan_forward.4} parent=11 // pred_region
        %p179 = scmp.lt.s32.totalorder %s20, 1
        %s180 = scalar_select %p179, %s20, 1
        %s181 = smul.addr %s180, 19
        %s182 = smul.addr %s181, 4
        %s183 = scalar_lea.vmem %s0, %s182
      $region16: #{lan_forward.4} parent=11 // pred_fallthru
        _
      // Predicated region
      $region17: #{lan_forward.4} parent=11 // pred_check
        %p184 = pneg %p70
      $region18: #{lan_forward.4} parent=11 // pred_check_branch
        %186 = sbr.rel (%p184) target = $region20
      $region19: #{lan_forward.4} parent=11 // pred_region
        _
      $region20: #{lan_forward.4} parent=11 // pred_fallthru
        _
      // Predicated region
      $region21: #{lan_forward.4} parent=11 // pred_check
        %p187 = pneg %p91
      $region22: #{lan_forward.4} parent=11 // pred_check_branch
        %189 = sbr.rel (%p187) target = $region24
      $region23: #{lan_forward.4} parent=11 // pred_region
        _
      $region24: #{lan_forward.4} parent=11 // pred_fallthru
        _
      // Predicated region
      $region25: #{lan_forward.4} parent=11 // pred_check
        %p190 = pneg %p112
      $region26: #{lan_forward.4} parent=11 // pred_check_branch
        %192 = sbr.rel (%p190) target = $region28
      $region27: #{lan_forward.4} parent=11 // pred_region
        _
      $region28: #{lan_forward.4} parent=11 // pred_fallthru
        _
      // Predicated region
      $region29: #{lan_forward.4} parent=11 // pred_check
        %p193 = pneg %p133
      $region30: #{lan_forward.4} parent=11 // pred_check_branch
        %195 = sbr.rel (%p193) target = $region32
      $region31: #{lan_forward.4} parent=11 // pred_region
        _
      $region32: #{lan_forward.4} parent=11 // pred_fallthru
        _
    $region12: #{lan_forward.4} parent=5 // pred_fallthru
      _
    %p196 = scmp.lt.s32.totalorder %s11, 2
    // Predicated region
    $region33: #{lan_forward.4} parent=5 // pred_check
      %p197 = pneg %p196
    $region34: #{lan_forward.4} parent=5 // pred_check_branch
      %199 = sbr.rel (%p197) target = $region36
    $region35: #{lan_forward.4} parent=5 // pred_region
      _
    $region36: #{lan_forward.4} parent=5 // pred_fallthru
      _
    %p200 = scmp.le.s32.totalorder 1, %s11
    %p201 = scmp.lt.s32.totalorder %s11, 3
    %p202 = pnand %p200, %p201
    %p203 = pneg %p202
    // Predicated region
    $region37: #{lan_forward.4} parent=5 // pred_check
      _
    $region38: #{lan_forward.4} parent=5 // pred_check_branch
      %205 = sbr.rel (%p202) target = $region40
    $region39: #{lan_forward.4} parent=5 // pred_region
      %s206 = ssub.s32 %s11, 1
      %p207 = scmp.lt.s32.totalorder %s20, 1
      %s208 = scalar_select %p207, %s20, 1
      %s209 = smul.addr %s208, 19
      %s210 = smul.addr %s209, 4
      %s211 = scalar_lea.vmem %s0, %s210
      %p212 = pneg %p49
      %p213 = pneg %p46
      %p214 = pneg %p70
      %p215 = pneg %p67
      %p216 = pneg %p91
      %p217 = pneg %p88
      %p218 = pneg %p112
      %p219 = pneg %p109
      %p220 = pneg %p133
      %p221 = pneg %p130
      %p222 = pneg %p161
      %p223 = pneg %p158
      %s224 = smul.u32 16, %s21
      %p225 = scmp.lt.s32.totalorder %s20, 1
      %s226 = scalar_select %p225, %s20, 1
      %p227 = scmp.lt.s32.totalorder %s224, 15
      %s228 = scalar_select %p227, %s224, 15
      %s229 = smul.addr %s226, 16
      %s230 = sadd.s32 %s228, %s229
      %s231 = smul.addr %s230, 4
      %s232 = scalar_lea.vmem %s5, %s231
      %p233 = scmp.lt.s32.totalorder %s20, 1
      %s234 = scalar_select %p233, %s20, 1
      %s235 = smul.addr %s234, 19
      %s236 = smul.addr %s235, 4
      %s237 = scalar_lea.vmem %s0, %s236
      %s238 = smul.u32 16, %s21
      %p239 = scmp.lt.s32.totalorder %s20, 1
      %s240 = scalar_select %p239, %s20, 1
      %p241 = scmp.lt.s32.totalorder %s238, 15
      %s242 = scalar_select %p241, %s238, 15
      %s243 = smul.addr %s240, 16
      %s244 = sadd.s32 %s242, %s243
      %s245 = smul.addr %s244, 4
      %s246 = scalar_lea.vmem %s5, %s245
      %s247 = smul.u32 16, %s21
      %s251 = smul.u32 %s21, 128
      %s252 = sshra.s32 %s251, 3
      %s253 = sand.u32 %s251, 7
      %s254 = smul.addr %s252, 4
      %s255 = scalar_lea.vmem %s237, %s254
      %v256 = vld [vmem:[%s255] sm:$0xf]
      %v257 = vld [vmem:[%s255 + $0x4] sm:$0xf]
      %v258 = vld [vmem:[%s255 + $0x8] sm:$0xf]
      %v259 = vld [vmem:[%s255 + $0xc] sm:$0xf]
      %v260 = vld [vmem:[%s255 + $0x10] sm:$0xf]
      %v261 = vld [vmem:[%s255 + $0x14] sm:$0xf]
      %v262 = vld [vmem:[%s255 + $0x18] sm:$0xf]
      %v263 = vld [vmem:[%s255 + $0x1c] sm:$0xf]
      %v264 = vld [vmem:[%s255 + $0x20] sm:$0xf]
      %v265 = vld [vmem:[%s255 + $0x24] sm:$0xf]
      %v266 = vld [vmem:[%s255 + $0x28] sm:$0xf]
      %v267 = vld [vmem:[%s255 + $0x2c] sm:$0xf]
      %v268 = vld [vmem:[%s255 + $0x30] sm:$0xf]
      %v269 = vld [vmem:[%s255 + $0x34] sm:$0xf]
      %v270 = vld [vmem:[%s255 + $0x38] sm:$0xf]
      %v271 = vld [vmem:[%s255 + $0x3c] sm:$0xf]
      %v272 = vld [vmem:[%s255 + $0x40] sm:$0xf]
      %v273 = vld [vmem:[%s255 + $0x44] sm:$0xf]
      %v274 = vld [vmem:[%s255 + $0x48] sm:$0x1]
      %v275 = vld [vmem:[%s1] sm:$0x7]
      %v276 = vld [vmem:[%s2] sm:$0x1]
      %v278 = vlaneseq
      %v279 = vshrl.u32 %v278, 7
      %v280 = vsub.s32 0, %v279
      %v281 = vrot.slane %v276, %v280
      %v302 = vunpack.c.l.b16 %v256
      %v303 = vunpack.c.l.b16 %v257
      %v304 = vunpack.c.l.b16 %v258
      %v305 = vunpack.c.l.b16 %v259
      %v306 = vunpack.c.l.b16 %v260
      %v307 = vunpack.c.l.b16 %v261
      %v308 = vunpack.c.l.b16 %v262
      %v309 = vunpack.c.l.b16 %v263
      %v310 = vunpack.c.l.b16 %v264
      %v311 = vunpack.c.l.b16 %v265
      %v312 = vunpack.c.l.b16 %v266
      %v313 = vunpack.c.l.b16 %v267
      %v314 = vunpack.c.l.b16 %v268
      %v315 = vunpack.c.l.b16 %v269
      %v316 = vunpack.c.l.b16 %v270
      %v317 = vunpack.c.l.b16 %v271
      %v318 = vunpack.c.l.b16 %v272
      %v319 = vunpack.c.l.b16 %v273
      %v320 = vunpack.c.l.b16 %v274
      %v321 = vpack.c.b16 %v303, %v302
      %v322 = vpack.c.b16 %v305, %v304
      %v323 = vpack.c.b16 %v307, %v306
      %v324 = vpack.c.b16 %v309, %v308
      %v325 = vpack.c.b16 %v311, %v310
      %v326 = vpack.c.b16 %v313, %v312
      %v327 = vpack.c.b16 %v315, %v314
      %v328 = vpack.c.b16 %v317, %v316
      %v329 = vpack.c.b16 %v319, %v318
      %v330 = vpack.c.b16 %v320, %v320
      %vm331 = vcmask 48128
      %v333 = vsel %vm331, %v321, 0
      %v336 = vsel %vm331, %v322, 0
      %v339 = vsel %vm331, %v323, 0
      %v342 = vsel %vm331, %v324, 0
      %v345 = vsel %vm331, %v325, 0
      %v348 = vsel %vm331, %v326, 0
      %v351 = vsel %vm331, %v327, 0
      %v354 = vsel %vm331, %v328, 0
      %v357 = vsel %vm331, %v329, 0
      %v360 = vsel %vm331, %v330, 0
      %vm362 = vcmask 1042432
      %v364 = vsel %vm362, %v275, 0
      %366 = vmatprep.subr.bf16.mxu0 0
      %367 = vmatpush1.bf16.msra.mxu0 %v364
      %368 = vmatprep.subr.bf16.mxu0 0
      %369 = vmatpush1.bf16.msra.mxu0 0
      %370 = vmatprep.subr.bf16.mxu0 0
      %371 = vmatpush1.bf16.msra.mxu0 0
      %372 = vmatprep.subr.bf16.mxu0 0
      %373 = vmatpush1.bf16.msra.mxu0 0
      %374 = vmatprep.subr.bf16.mxu0 0
      %375 = vmatpush1.bf16.msra.mxu0 0
      %376 = vmatprep.subr.bf16.mxu0 0
      %377 = vmatpush1.bf16.msra.mxu0 0
      %378 = vmatprep.subr.bf16.mxu0 0
      %379 = vmatpush1.bf16.msra.mxu0 0
      %380 = vmatprep.subr.bf16.mxu0 0
      %381 = vmatpush1.bf16.msra.mxu0 0
      %382 = vmatprep.subr.bf16.mxu0 0
      %383 = vmatpush1.bf16.msra.mxu0 0
      %384 = vmatprep.subr.bf16.mxu0 0
      %385 = vmatpush1.bf16.msra.mxu0 0
      %386 = vmatprep.subr.bf16.mxu0 0
      %387 = vmatpush1.bf16.msra.mxu0 0
      %388 = vmatprep.subr.bf16.mxu0 0
      %389 = vmatpush1.bf16.msra.mxu0 0
      %390 = vmatprep.subr.bf16.mxu0 0
      %391 = vmatpush1.bf16.msra.mxu0 0
      %392 = vmatprep.subr.bf16.mxu0 0
      %393 = vmatpush1.bf16.msra.mxu0 0
      %394 = vmatprep.subr.bf16.mxu0 0
      %395 = vmatpush1.bf16.msra.mxu0 0
      %396 = vmatprep.subr.bf16.mxu0 0
      %397 = vmatpush1.bf16.msra.mxu0 0
      %398 = vmatprep.mubr.bf16.mxu0 0
      %399 = vmatmul.mubr.bf16.gmra.mrb[0].mxu0 %v333
      %v400 = vpop.f32.mrb[0].mxu0
      %v401 = vadd.f32 %v281, %v400
      %v402 = vpop.f32.mrb[0].mxu0
      %v403 = vpop.f32.mrb[0].mxu0
      %v404 = vadd.f32 %v281, %v403
      %v405 = vpop.f32.mrb[0].mxu0
      %406 = vmatprep.mubr.bf16.mxu0 0
      %407 = vmatmul.mubr.bf16.gmra.mrb[0].mxu0 %v336
      %v408 = vpop.f32.mrb[0].mxu0
      %v409 = vadd.f32 %v281, %v408
      %v410 = vpop.f32.mrb[0].mxu0
      %v411 = vpop.f32.mrb[0].mxu0
      %v412 = vadd.f32 %v281, %v411
      %v413 = vpop.f32.mrb[0].mxu0
      %414 = vmatprep.mubr.bf16.mxu0 0
      %415 = vmatmul.mubr.bf16.gmra.mrb[0].mxu0 %v339
      %v416 = vpop.f32.mrb[0].mxu0
      %v417 = vadd.f32 %v281, %v416
      %v418 = vpop.f32.mrb[0].mxu0
      %v419 = vpop.f32.mrb[0].mxu0
      %v420 = vadd.f32 %v281, %v419
      %v421 = vpop.f32.mrb[0].mxu0
      %422 = vmatprep.mubr.bf16.mxu0 0
      %423 = vmatmul.mubr.bf16.gmra.mrb[0].mxu0 %v342
      %v424 = vpop.f32.mrb[0].mxu0
      %v425 = vadd.f32 %v281, %v424
      %v426 = vpop.f32.mrb[0].mxu0
      %v427 = vpop.f32.mrb[0].mxu0
      %v428 = vadd.f32 %v281, %v427
      %v429 = vpop.f32.mrb[0].mxu0
      %430 = vmatprep.mubr.bf16.mxu0 0
      %431 = vmatmul.mubr.bf16.gmra.mrb[0].mxu0 %v345
      %v432 = vpop.f32.mrb[0].mxu0
      %v433 = vadd.f32 %v281, %v432
      %v434 = vpop.f32.mrb[0].mxu0
      %v435 = vpop.f32.mrb[0].mxu0
      %v436 = vadd.f32 %v281, %v435
      %v437 = vpop.f32.mrb[0].mxu0
      %438 = vmatprep.mubr.bf16.mxu0 0
      %439 = vmatmul.mubr.bf16.gmra.mrb[0].mxu0 %v348
      %v440 = vpop.f32.mrb[0].mxu0
      %v441 = vadd.f32 %v281, %v440
      %v442 = vpop.f32.mrb[0].mxu0
      %v443 = vpop.f32.mrb[0].mxu0
      %v444 = vadd.f32 %v281, %v443
      %v445 = vpop.f32.mrb[0].mxu0
      %446 = vmatprep.mubr.bf16.mxu0 0
      %447 = vmatmul.mubr.bf16.gmra.mrb[0].mxu0 %v351
      %v448 = vpop.f32.mrb[0].mxu0
      %v449 = vadd.f32 %v281, %v448
      %v450 = vpop.f32.mrb[0].mxu0
      %v451 = vpop.f32.mrb[0].mxu0
      %v452 = vadd.f32 %v281, %v451
      %v453 = vpop.f32.mrb[0].mxu0
      %454 = vmatprep.mubr.bf16.mxu0 0
      %455 = vmatmul.mubr.bf16.gmra.mrb[0].mxu0 %v354
      %v456 = vpop.f32.mrb[0].mxu0
      %v457 = vadd.f32 %v281, %v456
      %v458 = vpop.f32.mrb[0].mxu0
      %v459 = vpop.f32.mrb[0].mxu0
      %v460 = vadd.f32 %v281, %v459
      %v461 = vpop.f32.mrb[0].mxu0
      %462 = vmatprep.mubr.bf16.mxu0 0
      %463 = vmatmul.mubr.bf16.gmra.mrb[0].mxu0 %v357
      %v464 = vpop.f32.mrb[0].mxu0
      %v465 = vadd.f32 %v281, %v464
      %v466 = vpop.f32.mrb[0].mxu0
      %v467 = vpop.f32.mrb[0].mxu0
      %v468 = vadd.f32 %v281, %v467
      %v469 = vpop.f32.mrb[0].mxu0
      %470 = vmatprep.mubr.bf16.mxu0 0
      %471 = vmatmul.mubr.bf16.gmra.mrb[0].mxu0 %v360
      %v472 = vpop.f32.mrb[0].mxu0
      %v473 = vadd.f32 %v281, %v472
      %v474 = vpop.f32.mrb[0].mxu0
      %v475 = vpop.f32.mrb[0].mxu0
      %v476 = vpop.f32.mrb[0].mxu0
      %477 = vdwg.mxu0
      %v478 = vmax.f32 %v401, 0.0
      %v479 = vmax.f32 %v404, 0.0
      %v480 = vmax.f32 %v409, 0.0
      %v481 = vmax.f32 %v412, 0.0
      %v482 = vmax.f32 %v417, 0.0
      %v483 = vmax.f32 %v420, 0.0
      %v484 = vmax.f32 %v425, 0.0
      %v485 = vmax.f32 %v428, 0.0
      %v486 = vmax.f32 %v433, 0.0
      %v487 = vmax.f32 %v436, 0.0
      %v488 = vmax.f32 %v441, 0.0
      %v489 = vmax.f32 %v444, 0.0
      %v490 = vmax.f32 %v449, 0.0
      %v491 = vmax.f32 %v452, 0.0
      %v492 = vmax.f32 %v457, 0.0
      %v493 = vmax.f32 %v460, 0.0
      %v494 = vmax.f32 %v465, 0.0
      %v495 = vmax.f32 %v468, 0.0
      %v496 = vmax.f32 %v473, 0.0
      %v497 = vlaneseq
      %v498 = vshrl.u32 %v497, 7
      %v499 = vadd.s32 %v498, 8
      %v500 = vadd.s32 %v498, 16
      %v501 = vadd.s32 %v498, 24
      %v502 = vadd.s32 %v498, 32
      %v503 = vadd.s32 %v498, 40
      %v504 = vadd.s32 %v498, 48
      %v505 = vadd.s32 %v498, 56
      %v506 = vadd.s32 %v498, 64
      %v507 = vadd.s32 %v498, 72
      %v508 = vadd.s32 %v498, 80
      %v509 = vadd.s32 %v498, 88
      %v510 = vadd.s32 %v498, 96
      %v511 = vadd.s32 %v498, 104
      %v512 = vadd.s32 %v498, 112
      %v513 = vadd.s32 %v498, 120
      %v514 = vadd.s32 %v498, 128
      %v515 = vadd.s32 %v498, 136
      %v516 = vadd.s32 %v498, 144
      %v517 = vstv %s251
      %v518 = vadd.s32 %v498, %v517
      %v519 = vadd.s32 %v499, %v517
      %v520 = vadd.s32 %v500, %v517
      %v521 = vadd.s32 %v501, %v517
      %v522 = vadd.s32 %v502, %v517
      %v523 = vadd.s32 %v503, %v517
      %v524 = vadd.s32 %v504, %v517
      %v525 = vadd.s32 %v505, %v517
      %v526 = vadd.s32 %v506, %v517
      %v527 = vadd.s32 %v507, %v517
      %v528 = vadd.s32 %v508, %v517
      %v529 = vadd.s32 %v509, %v517
      %v530 = vadd.s32 %v510, %v517
      %v531 = vadd.s32 %v511, %v517
      %v532 = vadd.s32 %v512, %v517
      %v533 = vadd.s32 %v513, %v517
      %v534 = vadd.s32 %v514, %v517
      %v535 = vadd.s32 %v515, %v517
      %v536 = vadd.s32 %v516, %v517
      %vm537 = vcmp.ge.s32.totalorder %v518, 9
      %vm538 = vcmp.ge.s32.totalorder %v519, 9
      %vm539 = vcmp.ge.s32.totalorder %v520, 9
      %vm540 = vcmp.ge.s32.totalorder %v521, 9
      %vm541 = vcmp.ge.s32.totalorder %v522, 9
      %vm542 = vcmp.ge.s32.totalorder %v523, 9
      %vm543 = vcmp.ge.s32.totalorder %v524, 9
      %vm544 = vcmp.ge.s32.totalorder %v525, 9
      %vm545 = vcmp.ge.s32.totalorder %v526, 9
      %vm546 = vcmp.ge.s32.totalorder %v527, 9
      %vm547 = vcmp.ge.s32.totalorder %v528, 9
      %vm548 = vcmp.ge.s32.totalorder %v529, 9
      %vm549 = vcmp.ge.s32.totalorder %v530, 9
      %vm550 = vcmp.ge.s32.totalorder %v531, 9
      %vm551 = vcmp.ge.s32.totalorder %v532, 9
      %vm552 = vcmp.ge.s32.totalorder %v533, 9
      %vm553 = vcmp.ge.s32.totalorder %v534, 9
      %vm554 = vcmp.ge.s32.totalorder %v535, 9
      %vm555 = vcmp.ge.s32.totalorder %v536, 9
      %vm556 = vcmp.lt.s32.totalorder %v518, 137
      %vm557 = vcmp.lt.s32.totalorder %v519, 137
      %vm558 = vcmp.lt.s32.totalorder %v520, 137
      %vm559 = vcmp.lt.s32.totalorder %v521, 137
      %vm560 = vcmp.lt.s32.totalorder %v522, 137
      %vm561 = vcmp.lt.s32.totalorder %v523, 137
      %vm562 = vcmp.lt.s32.totalorder %v524, 137
      %vm563 = vcmp.lt.s32.totalorder %v525, 137
      %vm564 = vcmp.lt.s32.totalorder %v526, 137
      %vm565 = vcmp.lt.s32.totalorder %v527, 137
      %vm566 = vcmp.lt.s32.totalorder %v528, 137
      %vm567 = vcmp.lt.s32.totalorder %v529, 137
      %vm568 = vcmp.lt.s32.totalorder %v530, 137
      %vm569 = vcmp.lt.s32.totalorder %v531, 137
      %vm570 = vcmp.lt.s32.totalorder %v532, 137
      %vm571 = vcmp.lt.s32.totalorder %v533, 137
      %vm572 = vcmp.lt.s32.totalorder %v534, 137
      %vm573 = vcmp.lt.s32.totalorder %v535, 137
      %vm574 = vcmp.lt.s32.totalorder %v536, 137
      %vm575 = vmand %vm537, %vm556
      %vm576 = vmand %vm538, %vm557
      %vm577 = vmand %vm539, %vm558
      %vm578 = vmand %vm540, %vm559
      %vm579 = vmand %vm541, %vm560
      %vm580 = vmand %vm542, %vm561
      %vm581 = vmand %vm543, %vm562
      %vm582 = vmand %vm544, %vm563
      %vm583 = vmand %vm545, %vm564
      %vm584 = vmand %vm546, %vm565
      %vm585 = vmand %vm547, %vm566
      %vm586 = vmand %vm548, %vm567
      %vm587 = vmand %vm549, %vm568
      %vm588 = vmand %vm550, %vm569
      %vm589 = vmand %vm551, %vm570
      %vm590 = vmand %vm552, %vm571
      %vm591 = vmand %vm553, %vm572
      %vm592 = vmand %vm554, %vm573
      %vm593 = vmand %vm555, %vm574
      %v594 = vsel %vm575, %v478, 0.0
      %v595 = vsel %vm576, %v479, 0.0
      %v596 = vsel %vm577, %v480, 0.0
      %v597 = vsel %vm578, %v481, 0.0
      %v598 = vsel %vm579, %v482, 0.0
      %v599 = vsel %vm580, %v483, 0.0
      %v600 = vsel %vm581, %v484, 0.0
      %v601 = vsel %vm582, %v485, 0.0
      %v602 = vsel %vm583, %v486, 0.0
      %v603 = vsel %vm584, %v487, 0.0
      %v604 = vsel %vm585, %v488, 0.0
      %v605 = vsel %vm586, %v489, 0.0
      %v606 = vsel %vm587, %v490, 0.0
      %v607 = vsel %vm588, %v491, 0.0
      %v608 = vsel %vm589, %v492, 0.0
      %v609 = vsel %vm590, %v493, 0.0
      %v610 = vsel %vm591, %v494, 0.0
      %v611 = vsel %vm592, %v495, 0.0
      %v612 = vsel %vm593, %v496, 0.0
      %v613 = vpack.c.bf16 %v595, %v594
      %v614 = vpack.c.bf16 %v597, %v596
      %v615 = vpack.c.bf16 %v599, %v598
      %v616 = vpack.c.bf16 %v601, %v600
      %v617 = vpack.c.bf16 %v603, %v602
      %v618 = vpack.c.bf16 %v605, %v604
      %v619 = vpack.c.bf16 %v607, %v606
      %v620 = vpack.c.bf16 %v609, %v608
      %v621 = vpack.c.bf16 %v611, %v610
      %v622 = vpack.c.bf16 %v612, %v612
      %v633 = vunpack.c.l.b16 %v613
      %v634 = vunpack.c.h.b16 %v613
      %v635 = vunpack.c.l.b16 %v614
      %v636 = vunpack.c.h.b16 %v614
      %v637 = vunpack.c.l.b16 %v615
      %v638 = vunpack.c.h.b16 %v615
      %v639 = vunpack.c.l.b16 %v616
      %v640 = vunpack.c.h.b16 %v616
      %v641 = vunpack.c.l.b16 %v617
      %v642 = vunpack.c.h.b16 %v617
      %v643 = vunpack.c.l.b16 %v618
      %v644 = vunpack.c.h.b16 %v618
      %v645 = vunpack.c.l.b16 %v619
      %v646 = vunpack.c.h.b16 %v619
      %v647 = vunpack.c.l.b16 %v620
      %v648 = vunpack.c.h.b16 %v620
      %v649 = vunpack.c.l.b16 %v621
      %v650 = vunpack.c.h.b16 %v621
      %v651 = vunpack.c.l.b16 %v622
      %v652 = vpack.c.b16 %v633, %v633
      %v653 = vpack.c.b16 %v634, %v634
      %v654 = vpack.c.b16 %v635, %v635
      %v655 = vpack.c.b16 %v636, %v636
      %v656 = vpack.c.b16 %v637, %v637
      %v657 = vpack.c.b16 %v638, %v638
      %v658 = vpack.c.b16 %v639, %v639
      %v659 = vpack.c.b16 %v640, %v640
      %v660 = vpack.c.b16 %v641, %v641
      %v661 = vpack.c.b16 %v642, %v642
      %v662 = vpack.c.b16 %v643, %v643
      %v663 = vpack.c.b16 %v644, %v644
      %v664 = vpack.c.b16 %v645, %v645
      %v665 = vpack.c.b16 %v646, %v646
      %v666 = vpack.c.b16 %v647, %v647
      %v667 = vpack.c.b16 %v648, %v648
      %v668 = vpack.c.b16 %v649, %v649
      %v669 = vpack.c.b16 %v650, %v650
      %v670 = vpack.c.b16 %v651, %v651
      %690 = vst [vmem:[#allocation2] sm:$0xf] %v652
      %691 = vst [vmem:[#allocation2 + $0x4] sm:$0xf] %v653
      %692 = vst [vmem:[#allocation2 + $0x8] sm:$0xf] %v654
      %693 = vst [vmem:[#allocation2 + $0xc] sm:$0xf] %v655
      %694 = vst [vmem:[#allocation2 + $0x10] sm:$0xf] %v656
      %695 = vst [vmem:[#allocation2 + $0x14] sm:$0xf] %v657
      %696 = vst [vmem:[#allocation2 + $0x18] sm:$0xf] %v658
      %697 = vst [vmem:[#allocation2 + $0x1c] sm:$0xf] %v659
      %698 = vst [vmem:[#allocation2 + $0x20] sm:$0xf] %v660
      %699 = vst [vmem:[#allocation2 + $0x24] sm:$0xf] %v661
      %700 = vst [vmem:[#allocation2 + $0x28] sm:$0xf] %v662
      %701 = vst [vmem:[#allocation2 + $0x2c] sm:$0xf] %v663
      %702 = vst [vmem:[#allocation2 + $0x30] sm:$0xf] %v664
      %703 = vst [vmem:[#allocation2 + $0x34] sm:$0xf] %v665
      %704 = vst [vmem:[#allocation2 + $0x38] sm:$0xf] %v666
      %705 = vst [vmem:[#allocation2 + $0x3c] sm:$0xf] %v667
      %706 = vst [vmem:[#allocation2 + $0x40] sm:$0xf] %v668
      %707 = vst [vmem:[#allocation2 + $0x44] sm:$0xf] %v669
      %708 = vst [vmem:[#allocation2 + $0x48] sm:$0x1] %v670
      %vm709 = vcmp.lt.s32.totalorder %v498, 0
      %v710 = vsub.s32 0, %v498
      %v711 = vsel %vm709, %v710, %v498
      %v712 = vshrl.u32 %v711, 3
      %v713 = vand.u32 %v711, 7
      %v714 = vsub.s32 0, %v713
      %v715 = vsel %vm709, %v714, %v713
      %vm716 = vcmp.lt.s32.totalorder %v499, 0
      %v717 = vsub.s32 0, %v499
      %v718 = vsel %vm716, %v717, %v499
      %v719 = vshrl.u32 %v718, 3
      %v720 = vand.u32 %v718, 7
      %v721 = vsub.s32 0, %v720
      %v722 = vsel %vm716, %v721, %v720
      %vm723 = vcmp.lt.s32.totalorder %v500, 0
      %v724 = vsub.s32 0, %v500
      %v725 = vsel %vm723, %v724, %v500
      %v726 = vshrl.u32 %v725, 3
      %v727 = vand.u32 %v725, 7
      %v728 = vsub.s32 0, %v727
      %v729 = vsel %vm723, %v728, %v727
      %vm730 = vcmp.lt.s32.totalorder %v501, 0
      %v731 = vsub.s32 0, %v501
      %v732 = vsel %vm730, %v731, %v501
      %v733 = vshrl.u32 %v732, 3
      %v734 = vand.u32 %v732, 7
      %v735 = vsub.s32 0, %v734
      %v736 = vsel %vm730, %v735, %v734
      %vm737 = vcmp.lt.s32.totalorder %v502, 0
      %v738 = vsub.s32 0, %v502
      %v739 = vsel %vm737, %v738, %v502
      %v740 = vshrl.u32 %v739, 3
      %v741 = vand.u32 %v739, 7
      %v742 = vsub.s32 0, %v741
      %v743 = vsel %vm737, %v742, %v741
      %vm744 = vcmp.lt.s32.totalorder %v503, 0
      %v745 = vsub.s32 0, %v503
      %v746 = vsel %vm744, %v745, %v503
      %v747 = vshrl.u32 %v746, 3
      %v748 = vand.u32 %v746, 7
      %v749 = vsub.s32 0, %v748
      %v750 = vsel %vm744, %v749, %v748
      %vm751 = vcmp.lt.s32.totalorder %v504, 0
      %v752 = vsub.s32 0, %v504
      %v753 = vsel %vm751, %v752, %v504
      %v754 = vshrl.u32 %v753, 3
      %v755 = vand.u32 %v753, 7
      %v756 = vsub.s32 0, %v755
      %v757 = vsel %vm751, %v756, %v755
      %vm758 = vcmp.lt.s32.totalorder %v505, 0
      %v759 = vsub.s32 0, %v505
      %v760 = vsel %vm758, %v759, %v505
      %v761 = vshrl.u32 %v760, 3
      %v762 = vand.u32 %v760, 7
      %v763 = vsub.s32 0, %v762
      %v764 = vsel %vm758, %v763, %v762
      %vm765 = vcmp.lt.s32.totalorder %v506, 0
      %v766 = vsub.s32 0, %v506
      %v767 = vsel %vm765, %v766, %v506
      %v768 = vshrl.u32 %v767, 3
      %v769 = vand.u32 %v767, 7
      %v770 = vsub.s32 0, %v769
      %v771 = vsel %vm765, %v770, %v769
      %vm772 = vcmp.lt.s32.totalorder %v507, 0
      %v773 = vsub.s32 0, %v507
      %v774 = vsel %vm772, %v773, %v507
      %v775 = vshrl.u32 %v774, 3
      %v776 = vand.u32 %v774, 7
      %v777 = vsub.s32 0, %v776
      %v778 = vsel %vm772, %v777, %v776
      %vm779 = vcmp.lt.s32.totalorder %v508, 0
      %v780 = vsub.s32 0, %v508
      %v781 = vsel %vm779, %v780, %v508
      %v782 = vshrl.u32 %v781, 3
      %v783 = vand.u32 %v781, 7
      %v784 = vsub.s32 0, %v783
      %v785 = vsel %vm779, %v784, %v783
      %vm786 = vcmp.lt.s32.totalorder %v509, 0
      %v787 = vsub.s32 0, %v509
      %v788 = vsel %vm786, %v787, %v509
      %v789 = vshrl.u32 %v788, 3
      %v790 = vand.u32 %v788, 7
      %v791 = vsub.s32 0, %v790
      %v792 = vsel %vm786, %v791, %v790
      %vm793 = vcmp.lt.s32.totalorder %v510, 0
      %v794 = vsub.s32 0, %v510
      %v795 = vsel %vm793, %v794, %v510
      %v796 = vshrl.u32 %v795, 3
      %v797 = vand.u32 %v795, 7
      %v798 = vsub.s32 0, %v797
      %v799 = vsel %vm793, %v798, %v797
      %vm800 = vcmp.lt.s32.totalorder %v511, 0
      %v801 = vsub.s32 0, %v511
      %v802 = vsel %vm800, %v801, %v511
      %v803 = vshrl.u32 %v802, 3
      %v804 = vand.u32 %v802, 7
      %v805 = vsub.s32 0, %v804
      %v806 = vsel %vm800, %v805, %v804
      %vm807 = vcmp.lt.s32.totalorder %v512, 0
      %v808 = vsub.s32 0, %v512
      %v809 = vsel %vm807, %v808, %v512
      %v810 = vshrl.u32 %v809, 3
      %v811 = vand.u32 %v809, 7
      %v812 = vsub.s32 0, %v811
      %v813 = vsel %vm807, %v812, %v811
      %vm814 = vcmp.lt.s32.totalorder %v513, 0
      %v815 = vsub.s32 0, %v513
      %v816 = vsel %vm814, %v815, %v513
      %v817 = vshrl.u32 %v816, 3
      %v818 = vand.u32 %v816, 7
      %v819 = vsub.s32 0, %v818
      %v820 = vsel %vm814, %v819, %v818
      %vm821 = vcmp.ne.s32.totalorder %v715, 0
      %vm822 = vcmp.ne.s32.totalorder %v722, 0
      %vm823 = vcmp.ne.s32.totalorder %v729, 0
      %vm824 = vcmp.ne.s32.totalorder %v736, 0
      %vm825 = vcmp.ne.s32.totalorder %v743, 0
      %vm826 = vcmp.ne.s32.totalorder %v750, 0
      %vm827 = vcmp.ne.s32.totalorder %v757, 0
      %vm828 = vcmp.ne.s32.totalorder %v764, 0
      %vm829 = vcmp.ne.s32.totalorder %v771, 0
      %vm830 = vcmp.ne.s32.totalorder %v778, 0
      %vm831 = vcmp.ne.s32.totalorder %v785, 0
      %vm832 = vcmp.ne.s32.totalorder %v792, 0
      %vm833 = vcmp.ne.s32.totalorder %v799, 0
      %vm834 = vcmp.ne.s32.totalorder %v806, 0
      %vm835 = vcmp.ne.s32.totalorder %v813, 0
      %vm836 = vcmp.ne.s32.totalorder %v820, 0
      %vm837 = vcmp.lt.s32.totalorder %v715, 0
      %vm838 = vcmp.lt.s32.totalorder %v722, 0
      %vm839 = vcmp.lt.s32.totalorder %v729, 0
      %vm840 = vcmp.lt.s32.totalorder %v736, 0
      %vm841 = vcmp.lt.s32.totalorder %v743, 0
      %vm842 = vcmp.lt.s32.totalorder %v750, 0
      %vm843 = vcmp.lt.s32.totalorder %v757, 0
      %vm844 = vcmp.lt.s32.totalorder %v764, 0
      %vm845 = vcmp.lt.s32.totalorder %v771, 0
      %vm846 = vcmp.lt.s32.totalorder %v778, 0
      %vm847 = vcmp.lt.s32.totalorder %v785, 0
      %vm848 = vcmp.lt.s32.totalorder %v792, 0
      %vm849 = vcmp.lt.s32.totalorder %v799, 0
      %vm850 = vcmp.lt.s32.totalorder %v806, 0
      %vm851 = vcmp.lt.s32.totalorder %v813, 0
      %vm852 = vcmp.lt.s32.totalorder %v820, 0
      %vm853 = vmand %vm837, %vm821
      %vm854 = vmand %vm838, %vm822
      %vm855 = vmand %vm839, %vm823
      %vm856 = vmand %vm840, %vm824
      %vm857 = vmand %vm841, %vm825
      %vm858 = vmand %vm842, %vm826
      %vm859 = vmand %vm843, %vm827
      %vm860 = vmand %vm844, %vm828
      %vm861 = vmand %vm845, %vm829
      %vm862 = vmand %vm846, %vm830
      %vm863 = vmand %vm847, %vm831
      %vm864 = vmand %vm848, %vm832
      %vm865 = vmand %vm849, %vm833
      %vm866 = vmand %vm850, %vm834
      %vm867 = vmand %vm851, %vm835
      %vm868 = vmand %vm852, %vm836
      %v869 = vadd.s32 %v715, 8
      %v870 = vadd.s32 %v722, 8
      %v871 = vadd.s32 %v729, 8
      %v872 = vadd.s32 %v736, 8
      %v873 = vadd.s32 %v743, 8
      %v874 = vadd.s32 %v750, 8
      %v875 = vadd.s32 %v757, 8
      %v876 = vadd.s32 %v764, 8
      %v877 = vadd.s32 %v771, 8
      %v878 = vadd.s32 %v778, 8
      %v879 = vadd.s32 %v785, 8
      %v880 = vadd.s32 %v792, 8
      %v881 = vadd.s32 %v799, 8
      %v882 = vadd.s32 %v806, 8
      %v883 = vadd.s32 %v813, 8
      %v884 = vadd.s32 %v820, 8
      %v885 = vsel %vm853, %v869, %v715
      %v886 = vsel %vm854, %v870, %v722
      %v887 = vsel %vm855, %v871, %v729
      %v888 = vsel %vm856, %v872, %v736
      %v889 = vsel %vm857, %v873, %v743
      %v890 = vsel %vm858, %v874, %v750
      %v891 = vsel %vm859, %v875, %v757
      %v892 = vsel %vm860, %v876, %v764
      %v893 = vsel %vm861, %v877, %v771
      %v894 = vsel %vm862, %v878, %v778
      %v895 = vsel %vm863, %v879, %v785
      %v896 = vsel %vm864, %v880, %v792
      %v897 = vsel %vm865, %v881, %v799
      %v898 = vsel %vm866, %v882, %v806
      %v899 = vsel %vm867, %v883, %v813
      %v900 = vsel %vm868, %v884, %v820
      %vm901 = vcmp.ne.s32.totalorder %v885, 0
      %vm902 = vcmp.ne.s32.totalorder %v886, 0
      %vm903 = vcmp.ne.s32.totalorder %v887, 0
      %vm904 = vcmp.ne.s32.totalorder %v888, 0
      %vm905 = vcmp.ne.s32.totalorder %v889, 0
      %vm906 = vcmp.ne.s32.totalorder %v890, 0
      %vm907 = vcmp.ne.s32.totalorder %v891, 0
      %vm908 = vcmp.ne.s32.totalorder %v892, 0
      %vm909 = vcmp.ne.s32.totalorder %v893, 0
      %vm910 = vcmp.ne.s32.totalorder %v894, 0
      %vm911 = vcmp.ne.s32.totalorder %v895, 0
      %vm912 = vcmp.ne.s32.totalorder %v896, 0
      %vm913 = vcmp.ne.s32.totalorder %v897, 0
      %vm914 = vcmp.ne.s32.totalorder %v898, 0
      %vm915 = vcmp.ne.s32.totalorder %v899, 0
      %vm916 = vcmp.ne.s32.totalorder %v900, 0
      %vm917 = vcmp.ne.s32.totalorder %v885, 7
      %vm918 = vcmp.ne.s32.totalorder %v886, 7
      %vm919 = vcmp.ne.s32.totalorder %v887, 7
      %vm920 = vcmp.ne.s32.totalorder %v888, 7
      %vm921 = vcmp.ne.s32.totalorder %v889, 7
      %vm922 = vcmp.ne.s32.totalorder %v890, 7
      %vm923 = vcmp.ne.s32.totalorder %v891, 7
      %vm924 = vcmp.ne.s32.totalorder %v892, 7
      %vm925 = vcmp.ne.s32.totalorder %v893, 7
      %vm926 = vcmp.ne.s32.totalorder %v894, 7
      %vm927 = vcmp.ne.s32.totalorder %v895, 7
      %vm928 = vcmp.ne.s32.totalorder %v896, 7
      %vm929 = vcmp.ne.s32.totalorder %v897, 7
      %vm930 = vcmp.ne.s32.totalorder %v898, 7
      %vm931 = vcmp.ne.s32.totalorder %v899, 7
      %vm932 = vcmp.ne.s32.totalorder %v900, 7
      %v933 = vld [vmem:[#allocation2] sm:$0xf]
      %v934 = vld [vmem:[#allocation2 + $0x4] sm:$0xf]
      %v935 = vld [vmem:[#allocation2 + $0x8] sm:$0xf]
      %v936 = vld [vmem:[#allocation2 + $0xc] sm:$0xf]
      %v937 = vld [vmem:[#allocation2 + $0x10] sm:$0xf]
      %v938 = vld [vmem:[#allocation2 + $0x14] sm:$0xf]
      %v939 = vld [vmem:[#allocation2 + $0x18] sm:$0xf]
      %v940 = vld [vmem:[#allocation2 + $0x1c] sm:$0xf]
      %v941 = vld [vmem:[#allocation2 + $0x20] sm:$0xf]
      %v942 = vld [vmem:[#allocation2 + $0x24] sm:$0xf]
      %v943 = vld [vmem:[#allocation2 + $0x28] sm:$0xf]
      %v944 = vld [vmem:[#allocation2 + $0x2c] sm:$0xf]
      %v945 = vld [vmem:[#allocation2 + $0x30] sm:$0xf]
      %v946 = vld [vmem:[#allocation2 + $0x34] sm:$0xf]
      %v947 = vld [vmem:[#allocation2 + $0x38] sm:$0xf]
      %v948 = vld [vmem:[#allocation2 + $0x3c] sm:$0xf]
      %vm949 = vmpackc.low %vm901, %vm901
      %vm950 = vmpackc.low %vm902, %vm902
      %vm951 = vmpackc.low %vm903, %vm903
      %vm952 = vmpackc.low %vm904, %vm904
      %vm953 = vmpackc.low %vm905, %vm905
      %vm954 = vmpackc.low %vm906, %vm906
      %vm955 = vmpackc.low %vm907, %vm907
      %vm956 = vmpackc.low %vm908, %vm908
      %vm957 = vmpackc.low %vm909, %vm909
      %vm958 = vmpackc.low %vm910, %vm910
      %vm959 = vmpackc.low %vm911, %vm911
      %vm960 = vmpackc.low %vm912, %vm912
      %vm961 = vmpackc.low %vm913, %vm913
      %vm962 = vmpackc.low %vm914, %vm914
      %vm963 = vmpackc.low %vm915, %vm915
      %vm964 = vmpackc.low %vm916, %vm916
      %v965 = vsel %vm949, %v933, 0
      %v966 = vsel %vm950, %v934, 0
      %v967 = vsel %vm951, %v935, 0
      %v968 = vsel %vm952, %v936, 0
      %v969 = vsel %vm953, %v937, 0
      %v970 = vsel %vm954, %v938, 0
      %v971 = vsel %vm955, %v939, 0
      %v972 = vsel %vm956, %v940, 0
      %v973 = vsel %vm957, %v941, 0
      %v974 = vsel %vm958, %v942, 0
      %v975 = vsel %vm959, %v943, 0
      %v976 = vsel %vm960, %v944, 0
      %v977 = vsel %vm961, %v945, 0
      %v978 = vsel %vm962, %v946, 0
      %v979 = vsel %vm963, %v947, 0
      %v980 = vsel %vm964, %v948, 0
      %v981 = vld [vmem:[%s3] sm:$0xf]
      %v982 = vld [vmem:[%s3 + $0x4] sm:$0xf]
      %v983 = vld [vmem:[%s3 + $0x8] sm:$0xf]
      %v984 = vld [vmem:[%s3 + $0xc] sm:$0xf]
      %v985 = vld [vmem:[%s3 + $0x10] sm:$0xf]
      %v986 = vld [vmem:[%s3 + $0x14] sm:$0xf]
      %v987 = vld [vmem:[%s3 + $0x18] sm:$0xf]
      %v988 = vld [vmem:[%s3 + $0x1c] sm:$0xf]
      %v989 = vld [vmem:[%s3 + $0x20] sm:$0xf]
      %v990 = vld [vmem:[%s3 + $0x24] sm:$0xf]
      %v991 = vld [vmem:[%s3 + $0x28] sm:$0xf]
      %v992 = vld [vmem:[%s3 + $0x2c] sm:$0xf]
      %v993 = vld [vmem:[%s3 + $0x30] sm:$0xf]
      %v994 = vld [vmem:[%s3 + $0x34] sm:$0xf]
      %v995 = vld [vmem:[%s3 + $0x38] sm:$0xf]
      %v996 = vld [vmem:[%s3 + $0x3c] sm:$0xf]
      %v997 = vld [vmem:[#allocation2 + $0x40] sm:$0x1]
      %s998 = scalar_lea.vmem %s3, 64
      %v999 = vld [vmem:[%s998] sm:$0xf]
      %v1000 = vld [vmem:[%s998 + $0x4] sm:$0xf]
      %v1001 = vld [vmem:[%s998 + $0x8] sm:$0xf]
      %v1002 = vld [vmem:[%s998 + $0xc] sm:$0xf]
      %v1003 = vld [vmem:[%s998 + $0x10] sm:$0xf]
      %v1004 = vld [vmem:[%s998 + $0x14] sm:$0xf]
      %v1005 = vld [vmem:[%s998 + $0x18] sm:$0xf]
      %v1006 = vld [vmem:[%s998 + $0x1c] sm:$0xf]
      %v1007 = vld [vmem:[%s998 + $0x20] sm:$0xf]
      %v1008 = vld [vmem:[%s998 + $0x24] sm:$0xf]
      %v1009 = vld [vmem:[%s998 + $0x28] sm:$0xf]
      %v1010 = vld [vmem:[%s998 + $0x2c] sm:$0xf]
      %v1011 = vld [vmem:[%s998 + $0x30] sm:$0xf]
      %v1012 = vld [vmem:[%s998 + $0x34] sm:$0xf]
      %v1013 = vld [vmem:[%s998 + $0x38] sm:$0xf]
      %v1014 = vld [vmem:[%s998 + $0x3c] sm:$0xf]
      %v1032 = vunpack.c.l.b16 %v933
      %v1033 = vunpack.c.l.b16 %v934
      %v1034 = vunpack.c.l.b16 %v935
      %v1035 = vunpack.c.l.b16 %v936
      %v1036 = vunpack.c.l.b16 %v937
      %v1037 = vunpack.c.l.b16 %v938
      %v1038 = vunpack.c.l.b16 %v939
      %v1039 = vunpack.c.l.b16 %v940
      %v1040 = vunpack.c.l.b16 %v941
      %v1041 = vunpack.c.l.b16 %v942
      %v1042 = vunpack.c.l.b16 %v943
      %v1043 = vunpack.c.l.b16 %v944
      %v1044 = vunpack.c.l.b16 %v945
      %v1045 = vunpack.c.l.b16 %v946
      %v1046 = vunpack.c.l.b16 %v947
      %v1047 = vunpack.c.l.b16 %v948
      %v1048 = vunpack.c.l.b16 %v997
      %v1049 = vpack.c.b16 %v1033, %v1032
      %v1050 = vpack.c.b16 %v1035, %v1034
      %v1051 = vpack.c.b16 %v1037, %v1036
      %v1052 = vpack.c.b16 %v1039, %v1038
      %v1053 = vpack.c.b16 %v1041, %v1040
      %v1054 = vpack.c.b16 %v1043, %v1042
      %v1055 = vpack.c.b16 %v1045, %v1044
      %v1056 = vpack.c.b16 %v1047, %v1046
      %v1057 = vpack.c.b16 %v1048, %v1048
      %vm1058 = vsmask.f32 7424
      %v1060 = vshrl.u32 %v1049, 16
      %v1062 = vshll.u32 %v1049, 16
      %v1064 = vrot.slane %v1062, 1
      %v1065 = vor.u32 %v1060, %v1064
      %v1067 = vshll.u32 %v1050, 16
      %v1069 = vrot.slane %v1067, 1
      %v1070 = vsel %vm1058, %v1065, %v1069
      %v1071 = vshrl.u32 %v1050, 16
      %v1073 = vor.u32 %v1071, %v1069
      %v1075 = vshll.u32 %v1051, 16
      %v1077 = vrot.slane %v1075, 1
      %v1078 = vsel %vm1058, %v1073, %v1077
      %v1079 = vshrl.u32 %v1051, 16
      %v1081 = vor.u32 %v1079, %v1077
      %v1083 = vshll.u32 %v1052, 16
      %v1085 = vrot.slane %v1083, 1
      %v1086 = vsel %vm1058, %v1081, %v1085
      %v1087 = vshrl.u32 %v1052, 16
      %v1089 = vor.u32 %v1087, %v1085
      %v1091 = vshll.u32 %v1053, 16
      %v1093 = vrot.slane %v1091, 1
      %v1094 = vsel %vm1058, %v1089, %v1093
      %v1095 = vshrl.u32 %v1053, 16
      %v1097 = vor.u32 %v1095, %v1093
      %v1099 = vshll.u32 %v1054, 16
      %v1101 = vrot.slane %v1099, 1
      %v1102 = vsel %vm1058, %v1097, %v1101
      %v1103 = vshrl.u32 %v1054, 16
      %v1105 = vor.u32 %v1103, %v1101
      %v1107 = vshll.u32 %v1055, 16
      %v1109 = vrot.slane %v1107, 1
      %v1110 = vsel %vm1058, %v1105, %v1109
      %v1111 = vshrl.u32 %v1055, 16
      %v1113 = vor.u32 %v1111, %v1109
      %v1115 = vshll.u32 %v1056, 16
      %v1117 = vrot.slane %v1115, 1
      %v1118 = vsel %vm1058, %v1113, %v1117
      %v1119 = vshrl.u32 %v1056, 16
      %v1121 = vor.u32 %v1119, %v1117
      %v1123 = vshll.u32 %v1057, 16
      %v1125 = vrot.slane %v1123, 1
      %v1126 = vsel %vm1058, %v1121, %v1125
      %v1151 = vunpack.c.l.b16 %v999
      %v1152 = vunpack.c.l.b16 %v1000
      %v1153 = vunpack.c.l.b16 %v1001
      %v1154 = vunpack.c.l.b16 %v1002
      %v1155 = vunpack.c.l.b16 %v1003
      %v1156 = vunpack.c.l.b16 %v1004
      %v1157 = vunpack.c.l.b16 %v1005
      %v1158 = vunpack.c.l.b16 %v1006
      %v1159 = vunpack.c.l.b16 %v1007
      %v1160 = vunpack.c.l.b16 %v1008
      %v1161 = vunpack.c.l.b16 %v1009
      %v1162 = vunpack.c.l.b16 %v1010
      %v1163 = vunpack.c.l.b16 %v1011
      %v1164 = vunpack.c.l.b16 %v1012
      %v1165 = vunpack.c.l.b16 %v1013
      %v1166 = vunpack.c.l.b16 %v1014
      %v1167 = vpack.c.b16 %v1152, %v1151
      %v1168 = vpack.c.b16 %v1154, %v1153
      %v1169 = vpack.c.b16 %v1156, %v1155
      %v1170 = vpack.c.b16 %v1158, %v1157
      %v1171 = vpack.c.b16 %v1160, %v1159
      %v1172 = vpack.c.b16 %v1162, %v1161
      %v1173 = vpack.c.b16 %v1164, %v1163
      %v1174 = vpack.c.b16 %v1166, %v1165
      %1183 = vmatprep.subr.bf16.mxu0 0
      %1184 = vmatpush1.bf16.msra.mxu0 %v1167
      %1185 = vmatprep.subr.bf16.mxu0 0
      %1186 = vmatpush1.bf16.msra.mxu0 %v1168
      %1187 = vmatprep.subr.bf16.mxu0 0
      %1188 = vmatpush1.bf16.msra.mxu0 %v1169
      %1189 = vmatprep.subr.bf16.mxu0 0
      %1190 = vmatpush1.bf16.msra.mxu0 %v1170
      %1191 = vmatprep.subr.bf16.mxu0 0
      %1192 = vmatpush1.bf16.msra.mxu0 %v1171
      %1193 = vmatprep.subr.bf16.mxu0 0
      %1194 = vmatpush1.bf16.msra.mxu0 %v1172
      %1195 = vmatprep.subr.bf16.mxu0 0
      %1196 = vmatpush1.bf16.msra.mxu0 %v1173
      %1197 = vmatprep.subr.bf16.mxu0 0
      %1198 = vmatpush1.bf16.msra.mxu0 %v1174
      %1199 = vmatprep.subr.bf16.mxu0 0
      %1200 = vmatpush1.bf16.msra.mxu0 0
      %1201 = vmatprep.subr.bf16.mxu0 0
      %1202 = vmatpush1.bf16.msra.mxu0 0
      %1203 = vmatprep.subr.bf16.mxu0 0
      %1204 = vmatpush1.bf16.msra.mxu0 0
      %1205 = vmatprep.subr.bf16.mxu0 0
      %1206 = vmatpush1.bf16.msra.mxu0 0
      %1207 = vmatprep.subr.bf16.mxu0 0
      %1208 = vmatpush1.bf16.msra.mxu0 0
      %1209 = vmatprep.subr.bf16.mxu0 0
      %1210 = vmatpush1.bf16.msra.mxu0 0
      %1211 = vmatprep.subr.bf16.mxu0 0
      %1212 = vmatpush1.bf16.msra.mxu0 0
      %1213 = vmatprep.subr.bf16.mxu0 0
      %1214 = vmatpush1.bf16.msra.mxu0 0
      %1215 = vmatprep.mubr.bf16.mxu0 0
      %1216 = vmatmul.mubr.bf16.gmra.mrb[0].mxu0 %v1070
      %v1217 = vpop.f32.mrb[0].mxu0
      %v1218 = vadd.f32 0.0, %v1217
      %v1219 = vpop.f32.mrb[0].mxu0
      %v1220 = vpop.f32.mrb[0].mxu0
      %v1221 = vadd.f32 0.0, %v1220
      %v1222 = vpop.f32.mrb[0].mxu0
      %1223 = vmatprep.mubr.bf16.mxu0 0
      %1224 = vmatmul.mubr.bf16.gmra.mrb[0].mxu0 %v1078
      %v1225 = vpop.f32.mrb[0].mxu0
      %v1226 = vadd.f32 0.0, %v1225
      %v1227 = vpop.f32.mrb[0].mxu0
      %v1228 = vpop.f32.mrb[0].mxu0
      %v1229 = vadd.f32 0.0, %v1228
      %v1230 = vpop.f32.mrb[0].mxu0
      %1231 = vmatprep.mubr.bf16.mxu0 0
      %1232 = vmatmul.mubr.bf16.gmra.mrb[0].mxu0 %v1086
      %v1233 = vpop.f32.mrb[0].mxu0
      %v1234 = vadd.f32 0.0, %v1233
      %v1235 = vpop.f32.mrb[0].mxu0
      %v1236 = vpop.f32.mrb[0].mxu0
      %v1237 = vadd.f32 0.0, %v1236
      %v1238 = vpop.f32.mrb[0].mxu0
      %1239 = vmatprep.mubr.bf16.mxu0 0
      %1240 = vmatmul.mubr.bf16.gmra.mrb[0].mxu0 %v1094
      %v1241 = vpop.f32.mrb[0].mxu0
      %v1242 = vadd.f32 0.0, %v1241
      %v1243 = vpop.f32.mrb[0].mxu0
      %v1244 = vpop.f32.mrb[0].mxu0
      %v1245 = vadd.f32 0.0, %v1244
      %v1246 = vpop.f32.mrb[0].mxu0
      %1247 = vmatprep.mubr.bf16.mxu0 0
      %1248 = vmatmul.mubr.bf16.gmra.mrb[0].mxu0 %v1102
      %v1249 = vpop.f32.mrb[0].mxu0
      %v1250 = vadd.f32 0.0, %v1249
      %v1251 = vpop.f32.mrb[0].mxu0
      %v1252 = vpop.f32.mrb[0].mxu0
      %v1253 = vadd.f32 0.0, %v1252
      %v1254 = vpop.f32.mrb[0].mxu0
      %1255 = vmatprep.mubr.bf16.mxu0 0
      %1256 = vmatmul.mubr.bf16.gmra.mrb[0].mxu0 %v1110
      %v1257 = vpop.f32.mrb[0].mxu0
      %v1258 = vadd.f32 0.0, %v1257
      %v1259 = vpop.f32.mrb[0].mxu0
      %v1260 = vpop.f32.mrb[0].mxu0
      %v1261 = vadd.f32 0.0, %v1260
      %v1262 = vpop.f32.mrb[0].mxu0
      %1263 = vmatprep.mubr.bf16.mxu0 0
      %1264 = vmatmul.mubr.bf16.gmra.mrb[0].mxu0 %v1118
      %v1265 = vpop.f32.mrb[0].mxu0
      %v1266 = vadd.f32 0.0, %v1265
      %v1267 = vpop.f32.mrb[0].mxu0
      %v1268 = vpop.f32.mrb[0].mxu0
      %v1269 = vadd.f32 0.0, %v1268
      %v1270 = vpop.f32.mrb[0].mxu0
      %1271 = vmatprep.mubr.bf16.mxu0 0
      %1272 = vmatmul.mubr.bf16.gmra.mrb[0].mxu0 %v1126
      %v1273 = vpop.f32.mrb[0].mxu0
      %v1274 = vadd.f32 0.0, %v1273
      %v1275 = vpop.f32.mrb[0].mxu0
      %v1276 = vpop.f32.mrb[0].mxu0
      %v1277 = vadd.f32 0.0, %v1276
      %v1278 = vpop.f32.mrb[0].mxu0
      %1279 = vdwg.mxu0
      %v1296 = vunpack.c.l.b16 %v965
      %v1297 = vunpack.c.l.b16 %v966
      %v1298 = vunpack.c.l.b16 %v967
      %v1299 = vunpack.c.l.b16 %v968
      %v1300 = vunpack.c.l.b16 %v969
      %v1301 = vunpack.c.l.b16 %v970
      %v1302 = vunpack.c.l.b16 %v971
      %v1303 = vunpack.c.l.b16 %v972
      %v1304 = vunpack.c.l.b16 %v973
      %v1305 = vunpack.c.l.b16 %v974
      %v1306 = vunpack.c.l.b16 %v975
      %v1307 = vunpack.c.l.b16 %v976
      %v1308 = vunpack.c.l.b16 %v977
      %v1309 = vunpack.c.l.b16 %v978
      %v1310 = vunpack.c.l.b16 %v979
      %v1311 = vunpack.c.l.b16 %v980
      %v1312 = vpack.c.b16 %v1297, %v1296
      %v1313 = vpack.c.b16 %v1299, %v1298
      %v1314 = vpack.c.b16 %v1301, %v1300
      %v1315 = vpack.c.b16 %v1303, %v1302
      %v1316 = vpack.c.b16 %v1305, %v1304
      %v1317 = vpack.c.b16 %v1307, %v1306
      %v1318 = vpack.c.b16 %v1309, %v1308
      %v1319 = vpack.c.b16 %v1311, %v1310
      %v1344 = vunpack.c.l.b16 %v981
      %v1345 = vunpack.c.l.b16 %v982
      %v1346 = vunpack.c.l.b16 %v983
      %v1347 = vunpack.c.l.b16 %v984
      %v1348 = vunpack.c.l.b16 %v985
      %v1349 = vunpack.c.l.b16 %v986
      %v1350 = vunpack.c.l.b16 %v987
      %v1351 = vunpack.c.l.b16 %v988
      %v1352 = vunpack.c.l.b16 %v989
      %v1353 = vunpack.c.l.b16 %v990
      %v1354 = vunpack.c.l.b16 %v991
      %v1355 = vunpack.c.l.b16 %v992
      %v1356 = vunpack.c.l.b16 %v993
      %v1357 = vunpack.c.l.b16 %v994
      %v1358 = vunpack.c.l.b16 %v995
      %v1359 = vunpack.c.l.b16 %v996
      %v1360 = vpack.c.b16 %v1345, %v1344
      %v1361 = vpack.c.b16 %v1347, %v1346
      %v1362 = vpack.c.b16 %v1349, %v1348
      %v1363 = vpack.c.b16 %v1351, %v1350
      %v1364 = vpack.c.b16 %v1353, %v1352
      %v1365 = vpack.c.b16 %v1355, %v1354
      %v1366 = vpack.c.b16 %v1357, %v1356
      %v1367 = vpack.c.b16 %v1359, %v1358
      %1376 = vmatprep.subr.bf16.mxu0 0
      %1377 = vmatpush1.bf16.msra.mxu0 %v1360
      %1378 = vmatprep.subr.bf16.mxu0 0
      %1379 = vmatpush1.bf16.msra.mxu0 %v1361
      %1380 = vmatprep.subr.bf16.mxu0 0
      %1381 = vmatpush1.bf16.msra.mxu0 %v1362
      %1382 = vmatprep.subr.bf16.mxu0 0
      %1383 = vmatpush1.bf16.msra.mxu0 %v1363
      %1384 = vmatprep.subr.bf16.mxu0 0
      %1385 = vmatpush1.bf16.msra.mxu0 %v1364
      %1386 = vmatprep.subr.bf16.mxu0 0
      %1387 = vmatpush1.bf16.msra.mxu0 %v1365
      %1388 = vmatprep.subr.bf16.mxu0 0
      %1389 = vmatpush1.bf16.msra.mxu0 %v1366
      %1390 = vmatprep.subr.bf16.mxu0 0
      %1391 = vmatpush1.bf16.msra.mxu0 %v1367
      %1392 = vmatprep.subr.bf16.mxu0 0
      %1393 = vmatpush1.bf16.msra.mxu0 0
      %1394 = vmatprep.subr.bf16.mxu0 0
      %1395 = vmatpush1.bf16.msra.mxu0 0
      %1396 = vmatprep.subr.bf16.mxu0 0
      %1397 = vmatpush1.bf16.msra.mxu0 0
      %1398 = vmatprep.subr.bf16.mxu0 0
      %1399 = vmatpush1.bf16.msra.mxu0 0
      %1400 = vmatprep.subr.bf16.mxu0 0
      %1401 = vmatpush1.bf16.msra.mxu0 0
      %1402 = vmatprep.subr.bf16.mxu0 0
      %1403 = vmatpush1.bf16.msra.mxu0 0
      %1404 = vmatprep.subr.bf16.mxu0 0
      %1405 = vmatpush1.bf16.msra.mxu0 0
      %1406 = vmatprep.subr.bf16.mxu0 0
      %1407 = vmatpush1.bf16.msra.mxu0 0
      %1408 = vmatprep.mubr.bf16.mxu0 0
      %1409 = vmatmul.mubr.bf16.gmra.mrb[0].mxu0 %v1312
      %v1410 = vpop.f32.mrb[0].mxu0
      %v1411 = vadd.f32 %v1218, %v1410
      %v1412 = vpop.f32.mrb[0].mxu0
      %v1413 = vpop.f32.mrb[0].mxu0
      %v1414 = vadd.f32 %v1221, %v1413
      %v1415 = vpop.f32.mrb[0].mxu0
      %1416 = vmatprep.mubr.bf16.mxu0 0
      %1417 = vmatmul.mubr.bf16.gmra.mrb[0].mxu0 %v1313
      %v1418 = vpop.f32.mrb[0].mxu0
      %v1419 = vadd.f32 %v1226, %v1418
      %v1420 = vpop.f32.mrb[0].mxu0
      %v1421 = vpop.f32.mrb[0].mxu0
      %v1422 = vadd.f32 %v1229, %v1421
      %v1423 = vpop.f32.mrb[0].mxu0
      %1424 = vmatprep.mubr.bf16.mxu0 0
      %1425 = vmatmul.mubr.bf16.gmra.mrb[0].mxu0 %v1314
      %v1426 = vpop.f32.mrb[0].mxu0
      %v1427 = vadd.f32 %v1234, %v1426
      %v1428 = vpop.f32.mrb[0].mxu0
      %v1429 = vpop.f32.mrb[0].mxu0
      %v1430 = vadd.f32 %v1237, %v1429
      %v1431 = vpop.f32.mrb[0].mxu0
      %1432 = vmatprep.mubr.bf16.mxu0 0
      %1433 = vmatmul.mubr.bf16.gmra.mrb[0].mxu0 %v1315
      %v1434 = vpop.f32.mrb[0].mxu0
      %v1435 = vadd.f32 %v1242, %v1434
      %v1436 = vpop.f32.mrb[0].mxu0
      %v1437 = vpop.f32.mrb[0].mxu0
      %v1438 = vadd.f32 %v1245, %v1437
      %v1439 = vpop.f32.mrb[0].mxu0
      %1440 = vmatprep.mubr.bf16.mxu0 0
      %1441 = vmatmul.mubr.bf16.gmra.mrb[0].mxu0 %v1316
      %v1442 = vpop.f32.mrb[0].mxu0
      %v1443 = vadd.f32 %v1250, %v1442
      %v1444 = vpop.f32.mrb[0].mxu0
      %v1445 = vpop.f32.mrb[0].mxu0
      %v1446 = vadd.f32 %v1253, %v1445
      %v1447 = vpop.f32.mrb[0].mxu0
      %1448 = vmatprep.mubr.bf16.mxu0 0
      %1449 = vmatmul.mubr.bf16.gmra.mrb[0].mxu0 %v1317
      %v1450 = vpop.f32.mrb[0].mxu0
      %v1451 = vadd.f32 %v1258, %v1450
      %v1452 = vpop.f32.mrb[0].mxu0
      %v1453 = vpop.f32.mrb[0].mxu0
      %v1454 = vadd.f32 %v1261, %v1453
      %v1455 = vpop.f32.mrb[0].mxu0
      %1456 = vmatprep.mubr.bf16.mxu0 0
      %1457 = vmatmul.mubr.bf16.gmra.mrb[0].mxu0 %v1318
      %v1458 = vpop.f32.mrb[0].mxu0
      %v1459 = vadd.f32 %v1266, %v1458
      %v1460 = vpop.f32.mrb[0].mxu0
      %v1461 = vpop.f32.mrb[0].mxu0
      %v1462 = vadd.f32 %v1269, %v1461
      %v1463 = vpop.f32.mrb[0].mxu0
      %1464 = vmatprep.mubr.bf16.mxu0 0
      %1465 = vmatmul.mubr.bf16.gmra.mrb[0].mxu0 %v1319
      %v1466 = vpop.f32.mrb[0].mxu0
      %v1467 = vadd.f32 %v1274, %v1466
      %v1468 = vpop.f32.mrb[0].mxu0
      %v1469 = vpop.f32.mrb[0].mxu0
      %v1470 = vadd.f32 %v1277, %v1469
      %v1471 = vpop.f32.mrb[0].mxu0
      %1472 = vdwg.mxu0
      %v1473 = vld [vmem:[#allocation2] sm:$0xe]
      %vm1474 = vmpackc.low %vm917, %vm917
      %vm1475 = vmpackc.low %vm918, %vm918
      %vm1476 = vmpackc.low %vm919, %vm919
      %vm1477 = vmpackc.low %vm920, %vm920
      %vm1478 = vmpackc.low %vm921, %vm921
      %vm1479 = vmpackc.low %vm922, %vm922
      %vm1480 = vmpackc.low %vm923, %vm923
      %vm1481 = vmpackc.low %vm924, %vm924
      %vm1482 = vmpackc.low %vm925, %vm925
      %vm1483 = vmpackc.low %vm926, %vm926
      %vm1484 = vmpackc.low %vm927, %vm927
      %vm1485 = vmpackc.low %vm928, %vm928
      %vm1486 = vmpackc.low %vm929, %vm929
      %vm1487 = vmpackc.low %vm930, %vm930
      %vm1488 = vmpackc.low %vm931, %vm931
      %vm1489 = vmpackc.low %vm932, %vm932
      %v1490 = vsel %vm1474, 65537, 0
      %v1491 = vsel %vm1475, 65537, 0
      %v1492 = vsel %vm1476, 65537, 0
      %v1493 = vsel %vm1477, 65537, 0
      %v1494 = vsel %vm1478, 65537, 0
      %v1495 = vsel %vm1479, 65537, 0
      %v1496 = vsel %vm1480, 65537, 0
      %v1497 = vsel %vm1481, 65537, 0
      %v1498 = vsel %vm1482, 65537, 0
      %v1499 = vsel %vm1483, 65537, 0
      %v1500 = vsel %vm1484, 65537, 0
      %v1501 = vsel %vm1485, 65537, 0
      %v1502 = vsel %vm1486, 65537, 0
      %v1503 = vsel %vm1487, 65537, 0
      %v1504 = vsel %vm1488, 65537, 0
      %v1505 = vsel %vm1489, 65537, 0
      %vm1506 = vcmask 1040384
      %vm1507 = vcmask 1044484
      %vm1508 = vmor %vm1506, %vm1507
      %v1509 = vrot.slane %v1490, 7
      %v1510 = vrot.slane %v1509, 4
      %v1511 = vrot.slane %v1491, 7
      %v1512 = vsel %vm1508, %v1510, %v1511
      %v1513 = vrot.slane %v1511, 4
      %v1514 = vrot.slane %v1492, 7
      %v1515 = vsel %vm1508, %v1513, %v1514
      %v1516 = vrot.slane %v1514, 4
      %v1517 = vrot.slane %v1493, 7
      %v1518 = vsel %vm1508, %v1516, %v1517
      %v1519 = vrot.slane %v1517, 4
      %v1520 = vrot.slane %v1494, 7
      %v1521 = vsel %vm1508, %v1519, %v1520
      %v1522 = vrot.slane %v1520, 4
      %v1523 = vrot.slane %v1495, 7
      %v1524 = vsel %vm1508, %v1522, %v1523
      %v1525 = vrot.slane %v1523, 4
      %v1526 = vrot.slane %v1496, 7
      %v1527 = vsel %vm1508, %v1525, %v1526
      %v1528 = vrot.slane %v1526, 4
      %v1529 = vrot.slane %v1497, 7
      %v1530 = vsel %vm1508, %v1528, %v1529
      %v1531 = vrot.slane %v1529, 4
      %v1532 = vrot.slane %v1498, 7
      %v1533 = vsel %vm1508, %v1531, %v1532
      %v1534 = vrot.slane %v1532, 4
      %v1535 = vrot.slane %v1499, 7
      %v1536 = vsel %vm1508, %v1534, %v1535
      %v1537 = vrot.slane %v1535, 4
      %v1538 = vrot.slane %v1500, 7
      %v1539 = vsel %vm1508, %v1537, %v1538
      %v1540 = vrot.slane %v1538, 4
      %v1541 = vrot.slane %v1501, 7
      %v1542 = vsel %vm1508, %v1540, %v1541
      %v1543 = vrot.slane %v1541, 4
      %v1544 = vrot.slane %v1502, 7
      %v1545 = vsel %vm1508, %v1543, %v1544
      %v1546 = vrot.slane %v1544, 4
      %v1547 = vrot.slane %v1503, 7
      %v1548 = vsel %vm1508, %v1546, %v1547
      %v1549 = vrot.slane %v1547, 4
      %v1550 = vrot.slane %v1504, 7
      %v1551 = vsel %vm1508, %v1549, %v1550
      %v1552 = vrot.slane %v1550, 4
      %v1553 = vrot.slane %v1505, 7
      %v1554 = vsel %vm1508, %v1552, %v1553
      %v1555 = vrot.slane %v1553, 4
      %vm1556 = vcmp.ne.s16.totalorder %v1509, 0
      %vm1557 = vcmp.ne.s16.totalorder %v1512, 0
      %vm1558 = vcmp.ne.s16.totalorder %v1515, 0
      %vm1559 = vcmp.ne.s16.totalorder %v1518, 0
      %vm1560 = vcmp.ne.s16.totalorder %v1521, 0
      %vm1561 = vcmp.ne.s16.totalorder %v1524, 0
      %vm1562 = vcmp.ne.s16.totalorder %v1527, 0
      %vm1563 = vcmp.ne.s16.totalorder %v1530, 0
      %vm1564 = vcmp.ne.s16.totalorder %v1533, 0
      %vm1565 = vcmp.ne.s16.totalorder %v1536, 0
      %vm1566 = vcmp.ne.s16.totalorder %v1539, 0
      %vm1567 = vcmp.ne.s16.totalorder %v1542, 0
      %vm1568 = vcmp.ne.s16.totalorder %v1545, 0
      %vm1569 = vcmp.ne.s16.totalorder %v1548, 0
      %vm1570 = vcmp.ne.s16.totalorder %v1551, 0
      %vm1571 = vcmp.ne.s16.totalorder %v1554, 0
      %vm1572 = vcmp.ne.s16.totalorder %v1555, 0
      %v1573 = vsel %vm1556, %v1473, 0
      %v1574 = vsel %vm1557, %v934, 0
      %v1575 = vsel %vm1558, %v935, 0
      %v1576 = vsel %vm1559, %v936, 0
      %v1577 = vsel %vm1560, %v937, 0
      %v1578 = vsel %vm1561, %v938, 0
      %v1579 = vsel %vm1562, %v939, 0
      %v1580 = vsel %vm1563, %v940, 0
      %v1581 = vsel %vm1564, %v941, 0
      %v1582 = vsel %vm1565, %v942, 0
      %v1583 = vsel %vm1566, %v943, 0
      %v1584 = vsel %vm1567, %v944, 0
      %v1585 = vsel %vm1568, %v945, 0
      %v1586 = vsel %vm1569, %v946, 0
      %v1587 = vsel %vm1570, %v947, 0
      %v1588 = vsel %vm1571, %v948, 0
      %v1589 = vsel %vm1572, %v997, 0
      %s1590 = scalar_lea.vmem %s3, 128
      %v1591 = vld [vmem:[%s1590] sm:$0xf]
      %v1592 = vld [vmem:[%s1590 + $0x4] sm:$0xf]
      %v1593 = vld [vmem:[%s1590 + $0x8] sm:$0xf]
      %v1594 = vld [vmem:[%s1590 + $0xc] sm:$0xf]
      %v1595 = vld [vmem:[%s1590 + $0x10] sm:$0xf]
      %v1596 = vld [vmem:[%s1590 + $0x14] sm:$0xf]
      %v1597 = vld [vmem:[%s1590 + $0x18] sm:$0xf]
      %v1598 = vld [vmem:[%s1590 + $0x1c] sm:$0xf]
      %v1599 = vld [vmem:[%s1590 + $0x20] sm:$0xf]
      %v1600 = vld [vmem:[%s1590 + $0x24] sm:$0xf]
      %v1601 = vld [vmem:[%s1590 + $0x28] sm:$0xf]
      %v1602 = vld [vmem:[%s1590 + $0x2c] sm:$0xf]
      %v1603 = vld [vmem:[%s1590 + $0x30] sm:$0xf]
      %v1604 = vld [vmem:[%s1590 + $0x34] sm:$0xf]
      %v1605 = vld [vmem:[%s1590 + $0x38] sm:$0xf]
      %v1606 = vld [vmem:[%s1590 + $0x3c] sm:$0xf]
      %v1624 = vunpack.c.l.b16 %v1573
      %v1625 = vunpack.c.l.b16 %v1574
      %v1626 = vunpack.c.l.b16 %v1575
      %v1627 = vunpack.c.l.b16 %v1576
      %v1628 = vunpack.c.l.b16 %v1577
      %v1629 = vunpack.c.l.b16 %v1578
      %v1630 = vunpack.c.l.b16 %v1579
      %v1631 = vunpack.c.l.b16 %v1580
      %v1632 = vunpack.c.l.b16 %v1581
      %v1633 = vunpack.c.l.b16 %v1582
      %v1634 = vunpack.c.l.b16 %v1583
      %v1635 = vunpack.c.l.b16 %v1584
      %v1636 = vunpack.c.l.b16 %v1585
      %v1637 = vunpack.c.l.b16 %v1586
      %v1638 = vunpack.c.l.b16 %v1587
      %v1639 = vunpack.c.l.b16 %v1588
      %v1640 = vunpack.c.l.b16 %v1589
      %v1641 = vpack.c.b16 %v1625, %v1624
      %v1642 = vpack.c.b16 %v1627, %v1626
      %v1643 = vpack.c.b16 %v1629, %v1628
      %v1644 = vpack.c.b16 %v1631, %v1630
      %v1645 = vpack.c.b16 %v1633, %v1632
      %v1646 = vpack.c.b16 %v1635, %v1634
      %v1647 = vpack.c.b16 %v1637, %v1636
      %v1648 = vpack.c.b16 %v1639, %v1638
      %v1649 = vpack.c.b16 %v1640, %v1640
      %vm1650 = vcmask 1046528
      %v1651 = vrot.slane %v1641, 1
      %v1652 = vrot.slane %v1642, 1
      %v1653 = vsel %vm1650, %v1651, %v1652
      %v1654 = vrot.slane %v1643, 1
      %v1655 = vsel %vm1650, %v1652, %v1654
      %v1656 = vrot.slane %v1644, 1
      %v1657 = vsel %vm1650, %v1654, %v1656
      %v1658 = vrot.slane %v1645, 1
      %v1659 = vsel %vm1650, %v1656, %v1658
      %v1660 = vrot.slane %v1646, 1
      %v1661 = vsel %vm1650, %v1658, %v1660
      %v1662 = vrot.slane %v1647, 1
      %v1663 = vsel %vm1650, %v1660, %v1662
      %v1664 = vrot.slane %v1648, 1
      %v1665 = vsel %vm1650, %v1662, %v1664
      %v1666 = vrot.slane %v1649, 1
      %v1667 = vsel %vm1650, %v1664, %v1666
      %v1692 = vunpack.c.l.b16 %v1591
      %v1693 = vunpack.c.l.b16 %v1592
      %v1694 = vunpack.c.l.b16 %v1593
      %v1695 = vunpack.c.l.b16 %v1594
      %v1696 = vunpack.c.l.b16 %v1595
      %v1697 = vunpack.c.l.b16 %v1596
      %v1698 = vunpack.c.l.b16 %v1597
      %v1699 = vunpack.c.l.b16 %v1598
      %v1700 = vunpack.c.l.b16 %v1599
      %v1701 = vunpack.c.l.b16 %v1600
      %v1702 = vunpack.c.l.b16 %v1601
      %v1703 = vunpack.c.l.b16 %v1602
      %v1704 = vunpack.c.l.b16 %v1603
      %v1705 = vunpack.c.l.b16 %v1604
      %v1706 = vunpack.c.l.b16 %v1605
      %v1707 = vunpack.c.l.b16 %v1606
      %v1708 = vpack.c.b16 %v1693, %v1692
      %v1709 = vpack.c.b16 %v1695, %v1694
      %v1710 = vpack.c.b16 %v1697, %v1696
      %v1711 = vpack.c.b16 %v1699, %v1698
      %v1712 = vpack.c.b16 %v1701, %v1700
      %v1713 = vpack.c.b16 %v1703, %v1702
      %v1714 = vpack.c.b16 %v1705, %v1704
      %v1715 = vpack.c.b16 %v1707, %v1706
      %1724 = vmatprep.subr.bf16.mxu0 0
      %1725 = vmatpush1.bf16.msra.mxu0 %v1708
      %1726 = vmatprep.subr.bf16.mxu0 0
      %1727 = vmatpush1.bf16.msra.mxu0 %v1709
      %1728 = vmatprep.subr.bf16.mxu0 0
      %1729 = vmatpush1.bf16.msra.mxu0 %v1710
      %1730 = vmatprep.subr.bf16.mxu0 0
      %1731 = vmatpush1.bf16.msra.mxu0 %v1711
      %1732 = vmatprep.subr.bf16.mxu0 0
      %1733 = vmatpush1.bf16.msra.mxu0 %v1712
      %1734 = vmatprep.subr.bf16.mxu0 0
      %1735 = vmatpush1.bf16.msra.mxu0 %v1713
      %1736 = vmatprep.subr.bf16.mxu0 0
      %1737 = vmatpush1.bf16.msra.mxu0 %v1714
      %1738 = vmatprep.subr.bf16.mxu0 0
      %1739 = vmatpush1.bf16.msra.mxu0 %v1715
      %1740 = vmatprep.subr.bf16.mxu0 0
      %1741 = vmatpush1.bf16.msra.mxu0 0
      %1742 = vmatprep.subr.bf16.mxu0 0
      %1743 = vmatpush1.bf16.msra.mxu0 0
      %1744 = vmatprep.subr.bf16.mxu0 0
      %1745 = vmatpush1.bf16.msra.mxu0 0
      %1746 = vmatprep.subr.bf16.mxu0 0
      %1747 = vmatpush1.bf16.msra.mxu0 0
      %1748 = vmatprep.subr.bf16.mxu0 0
      %1749 = vmatpush1.bf16.msra.mxu0 0
      %1750 = vmatprep.subr.bf16.mxu0 0
      %1751 = vmatpush1.bf16.msra.mxu0 0
      %1752 = vmatprep.subr.bf16.mxu0 0
      %1753 = vmatpush1.bf16.msra.mxu0 0
      %1754 = vmatprep.subr.bf16.mxu0 0
      %1755 = vmatpush1.bf16.msra.mxu0 0
      %1756 = vmatprep.mubr.bf16.mxu0 0
      %1757 = vmatmul.mubr.bf16.gmra.mrb[0].mxu0 %v1653
      %v1758 = vpop.f32.mrb[0].mxu0
      %v1759 = vadd.f32 0.0, %v1758
      %v1760 = vpop.f32.mrb[0].mxu0
      %v1761 = vpop.f32.mrb[0].mxu0
      %v1762 = vadd.f32 0.0, %v1761
      %v1763 = vpop.f32.mrb[0].mxu0
      %1764 = vmatprep.mubr.bf16.mxu0 0
      %1765 = vmatmul.mubr.bf16.gmra.mrb[0].mxu0 %v1655
      %v1766 = vpop.f32.mrb[0].mxu0
      %v1767 = vadd.f32 0.0, %v1766
      %v1768 = vpop.f32.mrb[0].mxu0
      %v1769 = vpop.f32.mrb[0].mxu0
      %v1770 = vadd.f32 0.0, %v1769
      %v1771 = vpop.f32.mrb[0].mxu0
      %1772 = vmatprep.mubr.bf16.mxu0 0
      %1773 = vmatmul.mubr.bf16.gmra.mrb[0].mxu0 %v1657
      %v1774 = vpop.f32.mrb[0].mxu0
      %v1775 = vadd.f32 0.0, %v1774
      %v1776 = vpop.f32.mrb[0].mxu0
      %v1777 = vpop.f32.mrb[0].mxu0
      %v1778 = vadd.f32 0.0, %v1777
      %v1779 = vpop.f32.mrb[0].mxu0
      %1780 = vmatprep.mubr.bf16.mxu0 0
      %1781 = vmatmul.mubr.bf16.gmra.mrb[0].mxu0 %v1659
      %v1782 = vpop.f32.mrb[0].mxu0
      %v1783 = vadd.f32 0.0, %v1782
      %v1784 = vpop.f32.mrb[0].mxu0
      %v1785 = vpop.f32.mrb[0].mxu0
      %v1786 = vadd.f32 0.0, %v1785
      %v1787 = vpop.f32.mrb[0].mxu0
      %1788 = vmatprep.mubr.bf16.mxu0 0
      %1789 = vmatmul.mubr.bf16.gmra.mrb[0].mxu0 %v1661
      %v1790 = vpop.f32.mrb[0].mxu0
      %v1791 = vadd.f32 0.0, %v1790
      %v1792 = vpop.f32.mrb[0].mxu0
      %v1793 = vpop.f32.mrb[0].mxu0
      %v1794 = vadd.f32 0.0, %v1793
      %v1795 = vpop.f32.mrb[0].mxu0
      %1796 = vmatprep.mubr.bf16.mxu0 0
      %1797 = vmatmul.mubr.bf16.gmra.mrb[0].mxu0 %v1663
      %v1798 = vpop.f32.mrb[0].mxu0
      %v1799 = vadd.f32 0.0, %v1798
      %v1800 = vpop.f32.mrb[0].mxu0
      %v1801 = vpop.f32.mrb[0].mxu0
      %v1802 = vadd.f32 0.0, %v1801
      %v1803 = vpop.f32.mrb[0].mxu0
      %1804 = vmatprep.mubr.bf16.mxu0 0
      %1805 = vmatmul.mubr.bf16.gmra.mrb[0].mxu0 %v1665
      %v1806 = vpop.f32.mrb[0].mxu0
      %v1807 = vadd.f32 0.0, %v1806
      %v1808 = vpop.f32.mrb[0].mxu0
      %v1809 = vpop.f32.mrb[0].mxu0
      %v1810 = vadd.f32 0.0, %v1809
      %v1811 = vpop.f32.mrb[0].mxu0
      %1812 = vmatprep.mubr.bf16.mxu0 0
      %1813 = vmatmul.mubr.bf16.gmra.mrb[0].mxu0 %v1667
      %v1814 = vpop.f32.mrb[0].mxu0
      %v1815 = vadd.f32 0.0, %v1814
      %v1816 = vpop.f32.mrb[0].mxu0
      %v1817 = vpop.f32.mrb[0].mxu0
      %v1818 = vadd.f32 0.0, %v1817
      %v1819 = vpop.f32.mrb[0].mxu0
      %1820 = vdwg.mxu0
      %v1821 = vadd.f32 %v1411, %v1759
      %v1822 = vadd.f32 %v1414, %v1762
      %v1823 = vadd.f32 %v1419, %v1767
      %v1824 = vadd.f32 %v1422, %v1770
      %v1825 = vadd.f32 %v1427, %v1775
      %v1826 = vadd.f32 %v1430, %v1778
      %v1827 = vadd.f32 %v1435, %v1783
      %v1828 = vadd.f32 %v1438, %v1786
      %v1829 = vadd.f32 %v1443, %v1791
      %v1830 = vadd.f32 %v1446, %v1794
      %v1831 = vadd.f32 %v1451, %v1799
      %v1832 = vadd.f32 %v1454, %v1802
      %v1833 = vadd.f32 %v1459, %v1807
      %v1834 = vadd.f32 %v1462, %v1810
      %v1835 = vadd.f32 %v1467, %v1815
      %v1836 = vadd.f32 %v1470, %v1818
      %v1837 = vld [vmem:[#allocation2 + $0x40] sm:$0xf]
      %v1838 = vsel %vm949, %v934, 0
      %v1839 = vsel %vm950, %v935, 0
      %v1840 = vsel %vm951, %v936, 0
      %v1841 = vsel %vm952, %v937, 0
      %v1842 = vsel %vm953, %v938, 0
      %v1843 = vsel %vm954, %v939, 0
      %v1844 = vsel %vm955, %v940, 0
      %v1845 = vsel %vm956, %v941, 0
      %v1846 = vsel %vm957, %v942, 0
      %v1847 = vsel %vm958, %v943, 0
      %v1848 = vsel %vm959, %v944, 0
      %v1849 = vsel %vm960, %v945, 0
      %v1850 = vsel %vm961, %v946, 0
      %v1851 = vsel %vm962, %v947, 0
      %v1852 = vsel %vm963, %v948, 0
      %v1853 = vsel %vm964, %v1837, 0
      %s1854 = scalar_lea.vmem %s3, 192
      %v1855 = vld [vmem:[%s1854] sm:$0xf]
      %v1856 = vld [vmem:[%s1854 + $0x4] sm:$0xf]
      %v1857 = vld [vmem:[%s1854 + $0x8] sm:$0xf]
      %v1858 = vld [vmem:[%s1854 + $0xc] sm:$0xf]
      %v1859 = vld [vmem:[%s1854 + $0x10] sm:$0xf]
      %v1860 = vld [vmem:[%s1854 + $0x14] sm:$0xf]
      %v1861 = vld [vmem:[%s1854 + $0x18] sm:$0xf]
      %v1862 = vld [vmem:[%s1854 + $0x1c] sm:$0xf]
      %v1863 = vld [vmem:[%s1854 + $0x20] sm:$0xf]
      %v1864 = vld [vmem:[%s1854 + $0x24] sm:$0xf]
      %v1865 = vld [vmem:[%s1854 + $0x28] sm:$0xf]
      %v1866 = vld [vmem:[%s1854 + $0x2c] sm:$0xf]
      %v1867 = vld [vmem:[%s1854 + $0x30] sm:$0xf]
      %v1868 = vld [vmem:[%s1854 + $0x34] sm:$0xf]
      %v1869 = vld [vmem:[%s1854 + $0x38] sm:$0xf]
      %v1870 = vld [vmem:[%s1854 + $0x3c] sm:$0xf]
      %v1887 = vunpack.c.l.b16 %v1838
      %v1888 = vunpack.c.l.b16 %v1839
      %v1889 = vunpack.c.l.b16 %v1840
      %v1890 = vunpack.c.l.b16 %v1841
      %v1891 = vunpack.c.l.b16 %v1842
      %v1892 = vunpack.c.l.b16 %v1843
      %v1893 = vunpack.c.l.b16 %v1844
      %v1894 = vunpack.c.l.b16 %v1845
      %v1895 = vunpack.c.l.b16 %v1846
      %v1896 = vunpack.c.l.b16 %v1847
      %v1897 = vunpack.c.l.b16 %v1848
      %v1898 = vunpack.c.l.b16 %v1849
      %v1899 = vunpack.c.l.b16 %v1850
      %v1900 = vunpack.c.l.b16 %v1851
      %v1901 = vunpack.c.l.b16 %v1852
      %v1902 = vunpack.c.l.b16 %v1853
      %v1903 = vpack.c.b16 %v1888, %v1887
      %v1904 = vpack.c.b16 %v1890, %v1889
      %v1905 = vpack.c.b16 %v1892, %v1891
      %v1906 = vpack.c.b16 %v1894, %v1893
      %v1907 = vpack.c.b16 %v1896, %v1895
      %v1908 = vpack.c.b16 %v1898, %v1897
      %v1909 = vpack.c.b16 %v1900, %v1899
      %v1910 = vpack.c.b16 %v1902, %v1901
      %v1935 = vunpack.c.l.b16 %v1855
      %v1936 = vunpack.c.l.b16 %v1856
      %v1937 = vunpack.c.l.b16 %v1857
      %v1938 = vunpack.c.l.b16 %v1858
      %v1939 = vunpack.c.l.b16 %v1859
      %v1940 = vunpack.c.l.b16 %v1860
      %v1941 = vunpack.c.l.b16 %v1861
      %v1942 = vunpack.c.l.b16 %v1862
      %v1943 = vunpack.c.l.b16 %v1863
      %v1944 = vunpack.c.l.b16 %v1864
      %v1945 = vunpack.c.l.b16 %v1865
      %v1946 = vunpack.c.l.b16 %v1866
      %v1947 = vunpack.c.l.b16 %v1867
      %v1948 = vunpack.c.l.b16 %v1868
      %v1949 = vunpack.c.l.b16 %v1869
      %v1950 = vunpack.c.l.b16 %v1870
      %v1951 = vpack.c.b16 %v1936, %v1935
      %v1952 = vpack.c.b16 %v1938, %v1937
      %v1953 = vpack.c.b16 %v1940, %v1939
      %v1954 = vpack.c.b16 %v1942, %v1941
      %v1955 = vpack.c.b16 %v1944, %v1943
      %v1956 = vpack.c.b16 %v1946, %v1945
      %v1957 = vpack.c.b16 %v1948, %v1947
      %v1958 = vpack.c.b16 %v1950, %v1949
      %1967 = vmatprep.subr.bf16.mxu0 0
      %1968 = vmatpush1.bf16.msra.mxu0 %v1951
      %1969 = vmatprep.subr.bf16.mxu0 0
      %1970 = vmatpush1.bf16.msra.mxu0 %v1952
      %1971 = vmatprep.subr.bf16.mxu0 0
      %1972 = vmatpush1.bf16.msra.mxu0 %v1953
      %1973 = vmatprep.subr.bf16.mxu0 0
      %1974 = vmatpush1.bf16.msra.mxu0 %v1954
      %1975 = vmatprep.subr.bf16.mxu0 0
      %1976 = vmatpush1.bf16.msra.mxu0 %v1955
      %1977 = vmatprep.subr.bf16.mxu0 0
      %1978 = vmatpush1.bf16.msra.mxu0 %v1956
      %1979 = vmatprep.subr.bf16.mxu0 0
      %1980 = vmatpush1.bf16.msra.mxu0 %v1957
      %1981 = vmatprep.subr.bf16.mxu0 0
      %1982 = vmatpush1.bf16.msra.mxu0 %v1958
      %1983 = vmatprep.subr.bf16.mxu0 0
      %1984 = vmatpush1.bf16.msra.mxu0 0
      %1985 = vmatprep.subr.bf16.mxu0 0
      %1986 = vmatpush1.bf16.msra.mxu0 0
      %1987 = vmatprep.subr.bf16.mxu0 0
      %1988 = vmatpush1.bf16.msra.mxu0 0
      %1989 = vmatprep.subr.bf16.mxu0 0
      %1990 = vmatpush1.bf16.msra.mxu0 0
      %1991 = vmatprep.subr.bf16.mxu0 0
      %1992 = vmatpush1.bf16.msra.mxu0 0
      %1993 = vmatprep.subr.bf16.mxu0 0
      %1994 = vmatpush1.bf16.msra.mxu0 0
      %1995 = vmatprep.subr.bf16.mxu0 0
      %1996 = vmatpush1.bf16.msra.mxu0 0
      %1997 = vmatprep.subr.bf16.mxu0 0
      %1998 = vmatpush1.bf16.msra.mxu0 0
      %1999 = vmatprep.mubr.bf16.mxu0 0
      %2000 = vmatmul.mubr.bf16.gmra.mrb[0].mxu0 %v1903
      %v2001 = vpop.f32.mrb[0].mxu0
      %v2002 = vadd.f32 0.0, %v2001
      %v2003 = vpop.f32.mrb[0].mxu0
      %v2004 = vpop.f32.mrb[0].mxu0
      %v2005 = vadd.f32 0.0, %v2004
      %v2006 = vpop.f32.mrb[0].mxu0
      %2007 = vmatprep.mubr.bf16.mxu0 0
      %2008 = vmatmul.mubr.bf16.gmra.mrb[0].mxu0 %v1904
      %v2009 = vpop.f32.mrb[0].mxu0
      %v2010 = vadd.f32 0.0, %v2009
      %v2011 = vpop.f32.mrb[0].mxu0
      %v2012 = vpop.f32.mrb[0].mxu0
      %v2013 = vadd.f32 0.0, %v2012
      %v2014 = vpop.f32.mrb[0].mxu0
      %2015 = vmatprep.mubr.bf16.mxu0 0
      %2016 = vmatmul.mubr.bf16.gmra.mrb[0].mxu0 %v1905
      %v2017 = vpop.f32.mrb[0].mxu0
      %v2018 = vadd.f32 0.0, %v2017
      %v2019 = vpop.f32.mrb[0].mxu0
      %v2020 = vpop.f32.mrb[0].mxu0
      %v2021 = vadd.f32 0.0, %v2020
      %v2022 = vpop.f32.mrb[0].mxu0
      %2023 = vmatprep.mubr.bf16.mxu0 0
      %2024 = vmatmul.mubr.bf16.gmra.mrb[0].mxu0 %v1906
      %v2025 = vpop.f32.mrb[0].mxu0
      %v2026 = vadd.f32 0.0, %v2025
      %v2027 = vpop.f32.mrb[0].mxu0
      %v2028 = vpop.f32.mrb[0].mxu0
      %v2029 = vadd.f32 0.0, %v2028
      %v2030 = vpop.f32.mrb[0].mxu0
      %2031 = vmatprep.mubr.bf16.mxu0 0
      %2032 = vmatmul.mubr.bf16.gmra.mrb[0].mxu0 %v1907
      %v2033 = vpop.f32.mrb[0].mxu0
      %v2034 = vadd.f32 0.0, %v2033
      %v2035 = vpop.f32.mrb[0].mxu0
      %v2036 = vpop.f32.mrb[0].mxu0
      %v2037 = vadd.f32 0.0, %v2036
      %v2038 = vpop.f32.mrb[0].mxu0
      %2039 = vmatprep.mubr.bf16.mxu0 0
      %2040 = vmatmul.mubr.bf16.gmra.mrb[0].mxu0 %v1908
      %v2041 = vpop.f32.mrb[0].mxu0
      %v2042 = vadd.f32 0.0, %v2041
      %v2043 = vpop.f32.mrb[0].mxu0
      %v2044 = vpop.f32.mrb[0].mxu0
      %v2045 = vadd.f32 0.0, %v2044
      %v2046 = vpop.f32.mrb[0].mxu0
      %2047 = vmatprep.mubr.bf16.mxu0 0
      %2048 = vmatmul.mubr.bf16.gmra.mrb[0].mxu0 %v1909
      %v2049 = vpop.f32.mrb[0].mxu0
      %v2050 = vadd.f32 0.0, %v2049
      %v2051 = vpop.f32.mrb[0].mxu0
      %v2052 = vpop.f32.mrb[0].mxu0
      %v2053 = vadd.f32 0.0, %v2052
      %v2054 = vpop.f32.mrb[0].mxu0
      %2055 = vmatprep.mubr.bf16.mxu0 0
      %2056 = vmatmul.mubr.bf16.gmra.mrb[0].mxu0 %v1910
      %v2057 = vpop.f32.mrb[0].mxu0
      %v2058 = vadd.f32 0.0, %v2057
      %v2059 = vpop.f32.mrb[0].mxu0
      %v2060 = vpop.f32.mrb[0].mxu0
      %v2061 = vadd.f32 0.0, %v2060
      %v2062 = vpop.f32.mrb[0].mxu0
      %2063 = vdwg.mxu0
      %v2064 = vadd.f32 %v1821, %v2002
      %v2065 = vadd.f32 %v1822, %v2005
      %v2066 = vadd.f32 %v1823, %v2010
      %v2067 = vadd.f32 %v1824, %v2013
      %v2068 = vadd.f32 %v1825, %v2018
      %v2069 = vadd.f32 %v1826, %v2021
      %v2070 = vadd.f32 %v1827, %v2026
      %v2071 = vadd.f32 %v1828, %v2029
      %v2072 = vadd.f32 %v1829, %v2034
      %v2073 = vadd.f32 %v1830, %v2037
      %v2074 = vadd.f32 %v1831, %v2042
      %v2075 = vadd.f32 %v1832, %v2045
      %v2076 = vadd.f32 %v1833, %v2050
      %v2077 = vadd.f32 %v1834, %v2053
      %v2078 = vadd.f32 %v1835, %v2058
      %v2079 = vadd.f32 %v1836, %v2061
      %v2080 = vld [vmem:[#allocation2 + $0x4] sm:$0xf]
      %v2081 = vld [vmem:[#allocation2 + $0x8] sm:$0xf]
      %v2082 = vld [vmem:[#allocation2 + $0xc] sm:$0xf]
      %v2083 = vld [vmem:[#allocation2 + $0x10] sm:$0xf]
      %v2084 = vld [vmem:[#allocation2 + $0x14] sm:$0xf]
      %v2085 = vld [vmem:[#allocation2 + $0x18] sm:$0xf]
      %v2086 = vld [vmem:[#allocation2 + $0x1c] sm:$0xf]
      %v2087 = vld [vmem:[#allocation2 + $0x20] sm:$0xf]
      %v2088 = vld [vmem:[#allocation2 + $0x24] sm:$0xf]
      %v2089 = vld [vmem:[#allocation2 + $0x28] sm:$0xf]
      %v2090 = vld [vmem:[#allocation2 + $0x2c] sm:$0xf]
      %v2091 = vld [vmem:[#allocation2 + $0x30] sm:$0xf]
      %v2092 = vld [vmem:[#allocation2 + $0x34] sm:$0xf]
      %v2093 = vld [vmem:[#allocation2 + $0x38] sm:$0xf]
      %v2094 = vld [vmem:[#allocation2 + $0x3c] sm:$0xf]
      %v2095 = vld [vmem:[#allocation2 + $0x40] sm:$0xf]
      %v2096 = vld [vmem:[#allocation2 + $0x44] sm:$0x1]
      %s2097 = scalar_lea.vmem %s3, 256
      %v2098 = vld [vmem:[%s2097] sm:$0xf]
      %v2099 = vld [vmem:[%s2097 + $0x4] sm:$0xf]
      %v2100 = vld [vmem:[%s2097 + $0x8] sm:$0xf]
      %v2101 = vld [vmem:[%s2097 + $0xc] sm:$0xf]
      %v2102 = vld [vmem:[%s2097 + $0x10] sm:$0xf]
      %v2103 = vld [vmem:[%s2097 + $0x14] sm:$0xf]
      %v2104 = vld [vmem:[%s2097 + $0x18] sm:$0xf]
      %v2105 = vld [vmem:[%s2097 + $0x1c] sm:$0xf]
      %v2106 = vld [vmem:[%s2097 + $0x20] sm:$0xf]
      %v2107 = vld [vmem:[%s2097 + $0x24] sm:$0xf]
      %v2108 = vld [vmem:[%s2097 + $0x28] sm:$0xf]
      %v2109 = vld [vmem:[%s2097 + $0x2c] sm:$0xf]
      %v2110 = vld [vmem:[%s2097 + $0x30] sm:$0xf]
      %v2111 = vld [vmem:[%s2097 + $0x34] sm:$0xf]
      %v2112 = vld [vmem:[%s2097 + $0x38] sm:$0xf]
      %v2113 = vld [vmem:[%s2097 + $0x3c] sm:$0xf]
      %v2131 = vunpack.c.l.b16 %v2080
      %v2132 = vunpack.c.l.b16 %v2081
      %v2133 = vunpack.c.l.b16 %v2082
      %v2134 = vunpack.c.l.b16 %v2083
      %v2135 = vunpack.c.l.b16 %v2084
      %v2136 = vunpack.c.l.b16 %v2085
      %v2137 = vunpack.c.l.b16 %v2086
      %v2138 = vunpack.c.l.b16 %v2087
      %v2139 = vunpack.c.l.b16 %v2088
      %v2140 = vunpack.c.l.b16 %v2089
      %v2141 = vunpack.c.l.b16 %v2090
      %v2142 = vunpack.c.l.b16 %v2091
      %v2143 = vunpack.c.l.b16 %v2092
      %v2144 = vunpack.c.l.b16 %v2093
      %v2145 = vunpack.c.l.b16 %v2094
      %v2146 = vunpack.c.l.b16 %v2095
      %v2147 = vunpack.c.l.b16 %v2096
      %v2148 = vpack.c.b16 %v2132, %v2131
      %v2149 = vpack.c.b16 %v2134, %v2133
      %v2150 = vpack.c.b16 %v2136, %v2135
      %v2151 = vpack.c.b16 %v2138, %v2137
      %v2152 = vpack.c.b16 %v2140, %v2139
      %v2153 = vpack.c.b16 %v2142, %v2141
      %v2154 = vpack.c.b16 %v2144, %v2143
      %v2155 = vpack.c.b16 %v2146, %v2145
      %v2156 = vpack.c.b16 %v2147, %v2147
      %v2158 = vshrl.u32 %v2148, 16
      %v2160 = vshll.u32 %v2148, 16
      %v2162 = vrot.slane %v2160, 1
      %v2163 = vor.u32 %v2158, %v2162
      %v2165 = vshll.u32 %v2149, 16
      %v2167 = vrot.slane %v2165, 1
      %v2168 = vsel %vm1058, %v2163, %v2167
      %v2169 = vshrl.u32 %v2149, 16
      %v2171 = vor.u32 %v2169, %v2167
      %v2173 = vshll.u32 %v2150, 16
      %v2175 = vrot.slane %v2173, 1
      %v2176 = vsel %vm1058, %v2171, %v2175
      %v2177 = vshrl.u32 %v2150, 16
      %v2179 = vor.u32 %v2177, %v2175
      %v2181 = vshll.u32 %v2151, 16
      %v2183 = vrot.slane %v2181, 1
      %v2184 = vsel %vm1058, %v2179, %v2183
      %v2185 = vshrl.u32 %v2151, 16
      %v2187 = vor.u32 %v2185, %v2183
      %v2189 = vshll.u32 %v2152, 16
      %v2191 = vrot.slane %v2189, 1
      %v2192 = vsel %vm1058, %v2187, %v2191
      %v2193 = vshrl.u32 %v2152, 16
      %v2195 = vor.u32 %v2193, %v2191
      %v2197 = vshll.u32 %v2153, 16
      %v2199 = vrot.slane %v2197, 1
      %v2200 = vsel %vm1058, %v2195, %v2199
      %v2201 = vshrl.u32 %v2153, 16
      %v2203 = vor.u32 %v2201, %v2199
      %v2205 = vshll.u32 %v2154, 16
      %v2207 = vrot.slane %v2205, 1
      %v2208 = vsel %vm1058, %v2203, %v2207
      %v2209 = vshrl.u32 %v2154, 16
      %v2211 = vor.u32 %v2209, %v2207
      %v2213 = vshll.u32 %v2155, 16
      %v2215 = vrot.slane %v2213, 1
      %v2216 = vsel %vm1058, %v2211, %v2215
      %v2217 = vshrl.u32 %v2155, 16
      %v2219 = vor.u32 %v2217, %v2215
      %v2221 = vshll.u32 %v2156, 16
      %v2223 = vrot.slane %v2221, 1
      %v2224 = vsel %vm1058, %v2219, %v2223
      %v2249 = vunpack.c.l.b16 %v2098
      %v2250 = vunpack.c.l.b16 %v2099
      %v2251 = vunpack.c.l.b16 %v2100
      %v2252 = vunpack.c.l.b16 %v2101
      %v2253 = vunpack.c.l.b16 %v2102
      %v2254 = vunpack.c.l.b16 %v2103
      %v2255 = vunpack.c.l.b16 %v2104
      %v2256 = vunpack.c.l.b16 %v2105
      %v2257 = vunpack.c.l.b16 %v2106
      %v2258 = vunpack.c.l.b16 %v2107
      %v2259 = vunpack.c.l.b16 %v2108
      %v2260 = vunpack.c.l.b16 %v2109
      %v2261 = vunpack.c.l.b16 %v2110
      %v2262 = vunpack.c.l.b16 %v2111
      %v2263 = vunpack.c.l.b16 %v2112
      %v2264 = vunpack.c.l.b16 %v2113
      %v2265 = vpack.c.b16 %v2250, %v2249
      %v2266 = vpack.c.b16 %v2252, %v2251
      %v2267 = vpack.c.b16 %v2254, %v2253
      %v2268 = vpack.c.b16 %v2256, %v2255
      %v2269 = vpack.c.b16 %v2258, %v2257
      %v2270 = vpack.c.b16 %v2260, %v2259
      %v2271 = vpack.c.b16 %v2262, %v2261
      %v2272 = vpack.c.b16 %v2264, %v2263
      %2281 = vmatprep.subr.bf16.mxu0 0
      %2282 = vmatpush1.bf16.msra.mxu0 %v2265
      %2283 = vmatprep.subr.bf16.mxu0 0
      %2284 = vmatpush1.bf16.msra.mxu0 %v2266
      %2285 = vmatprep.subr.bf16.mxu0 0
      %2286 = vmatpush1.bf16.msra.mxu0 %v2267
      %2287 = vmatprep.subr.bf16.mxu0 0
      %2288 = vmatpush1.bf16.msra.mxu0 %v2268
      %2289 = vmatprep.subr.bf16.mxu0 0
      %2290 = vmatpush1.bf16.msra.mxu0 %v2269
      %2291 = vmatprep.subr.bf16.mxu0 0
      %2292 = vmatpush1.bf16.msra.mxu0 %v2270
      %2293 = vmatprep.subr.bf16.mxu0 0
      %2294 = vmatpush1.bf16.msra.mxu0 %v2271
      %2295 = vmatprep.subr.bf16.mxu0 0
      %2296 = vmatpush1.bf16.msra.mxu0 %v2272
      %2297 = vmatprep.subr.bf16.mxu0 0
      %2298 = vmatpush1.bf16.msra.mxu0 0
      %2299 = vmatprep.subr.bf16.mxu0 0
      %2300 = vmatpush1.bf16.msra.mxu0 0
      %2301 = vmatprep.subr.bf16.mxu0 0
      %2302 = vmatpush1.bf16.msra.mxu0 0
      %2303 = vmatprep.subr.bf16.mxu0 0
      %2304 = vmatpush1.bf16.msra.mxu0 0
      %2305 = vmatprep.subr.bf16.mxu0 0
      %2306 = vmatpush1.bf16.msra.mxu0 0
      %2307 = vmatprep.subr.bf16.mxu0 0
      %2308 = vmatpush1.bf16.msra.mxu0 0
      %2309 = vmatprep.subr.bf16.mxu0 0
      %2310 = vmatpush1.bf16.msra.mxu0 0
      %2311 = vmatprep.subr.bf16.mxu0 0
      %2312 = vmatpush1.bf16.msra.mxu0 0
      %2313 = vmatprep.mubr.bf16.mxu0 0
      %2314 = vmatmul.mubr.bf16.gmra.mrb[0].mxu0 %v2168
      %v2315 = vpop.f32.mrb[0].mxu0
      %v2316 = vadd.f32 0.0, %v2315
      %v2317 = vpop.f32.mrb[0].mxu0
      %v2318 = vpop.f32.mrb[0].mxu0
      %v2319 = vadd.f32 0.0, %v2318
      %v2320 = vpop.f32.mrb[0].mxu0
      %2321 = vmatprep.mubr.bf16.mxu0 0
      %2322 = vmatmul.mubr.bf16.gmra.mrb[0].mxu0 %v2176
      %v2323 = vpop.f32.mrb[0].mxu0
      %v2324 = vadd.f32 0.0, %v2323
      %v2325 = vpop.f32.mrb[0].mxu0
      %v2326 = vpop.f32.mrb[0].mxu0
      %v2327 = vadd.f32 0.0, %v2326
      %v2328 = vpop.f32.mrb[0].mxu0
      %2329 = vmatprep.mubr.bf16.mxu0 0
      %2330 = vmatmul.mubr.bf16.gmra.mrb[0].mxu0 %v2184
      %v2331 = vpop.f32.mrb[0].mxu0
      %v2332 = vadd.f32 0.0, %v2331
      %v2333 = vpop.f32.mrb[0].mxu0
      %v2334 = vpop.f32.mrb[0].mxu0
      %v2335 = vadd.f32 0.0, %v2334
      %v2336 = vpop.f32.mrb[0].mxu0
      %2337 = vmatprep.mubr.bf16.mxu0 0
      %2338 = vmatmul.mubr.bf16.gmra.mrb[0].mxu0 %v2192
      %v2339 = vpop.f32.mrb[0].mxu0
      %v2340 = vadd.f32 0.0, %v2339
      %v2341 = vpop.f32.mrb[0].mxu0
      %v2342 = vpop.f32.mrb[0].mxu0
      %v2343 = vadd.f32 0.0, %v2342
      %v2344 = vpop.f32.mrb[0].mxu0
      %2345 = vmatprep.mubr.bf16.mxu0 0
      %2346 = vmatmul.mubr.bf16.gmra.mrb[0].mxu0 %v2200
      %v2347 = vpop.f32.mrb[0].mxu0
      %v2348 = vadd.f32 0.0, %v2347
      %v2349 = vpop.f32.mrb[0].mxu0
      %v2350 = vpop.f32.mrb[0].mxu0
      %v2351 = vadd.f32 0.0, %v2350
      %v2352 = vpop.f32.mrb[0].mxu0
      %2353 = vmatprep.mubr.bf16.mxu0 0
      %2354 = vmatmul.mubr.bf16.gmra.mrb[0].mxu0 %v2208
      %v2355 = vpop.f32.mrb[0].mxu0
      %v2356 = vadd.f32 0.0, %v2355
      %v2357 = vpop.f32.mrb[0].mxu0
      %v2358 = vpop.f32.mrb[0].mxu0
      %v2359 = vadd.f32 0.0, %v2358
      %v2360 = vpop.f32.mrb[0].mxu0
      %2361 = vmatprep.mubr.bf16.mxu0 0
      %2362 = vmatmul.mubr.bf16.gmra.mrb[0].mxu0 %v2216
      %v2363 = vpop.f32.mrb[0].mxu0
      %v2364 = vadd.f32 0.0, %v2363
      %v2365 = vpop.f32.mrb[0].mxu0
      %v2366 = vpop.f32.mrb[0].mxu0
      %v2367 = vadd.f32 0.0, %v2366
      %v2368 = vpop.f32.mrb[0].mxu0
      %2369 = vmatprep.mubr.bf16.mxu0 0
      %2370 = vmatmul.mubr.bf16.gmra.mrb[0].mxu0 %v2224
      %v2371 = vpop.f32.mrb[0].mxu0
      %v2372 = vadd.f32 0.0, %v2371
      %v2373 = vpop.f32.mrb[0].mxu0
      %v2374 = vpop.f32.mrb[0].mxu0
      %v2375 = vadd.f32 0.0, %v2374
      %v2376 = vpop.f32.mrb[0].mxu0
      %2377 = vdwg.mxu0
      %v2378 = vadd.f32 %v2064, %v2316
      %v2379 = vadd.f32 %v2065, %v2319
      %v2380 = vadd.f32 %v2066, %v2324
      %v2381 = vadd.f32 %v2067, %v2327
      %v2382 = vadd.f32 %v2068, %v2332
      %v2383 = vadd.f32 %v2069, %v2335
      %v2384 = vadd.f32 %v2070, %v2340
      %v2385 = vadd.f32 %v2071, %v2343
      %v2386 = vadd.f32 %v2072, %v2348
      %v2387 = vadd.f32 %v2073, %v2351
      %v2388 = vadd.f32 %v2074, %v2356
      %v2389 = vadd.f32 %v2075, %v2359
      %v2390 = vadd.f32 %v2076, %v2364
      %v2391 = vadd.f32 %v2077, %v2367
      %v2392 = vadd.f32 %v2078, %v2372
      %v2393 = vadd.f32 %v2079, %v2375
      %v2394 = vld [vmem:[#allocation2 + $0x4] sm:$0xe]
      %v2395 = vsel %vm1556, %v2394, 0
      %v2396 = vsel %vm1557, %v2081, 0
      %v2397 = vsel %vm1558, %v2082, 0
      %v2398 = vsel %vm1559, %v2083, 0
      %v2399 = vsel %vm1560, %v2084, 0
      %v2400 = vsel %vm1561, %v2085, 0
      %v2401 = vsel %vm1562, %v2086, 0
      %v2402 = vsel %vm1563, %v2087, 0
      %v2403 = vsel %vm1564, %v2088, 0
      %v2404 = vsel %vm1565, %v2089, 0
      %v2405 = vsel %vm1566, %v2090, 0
      %v2406 = vsel %vm1567, %v2091, 0
      %v2407 = vsel %vm1568, %v2092, 0
      %v2408 = vsel %vm1569, %v2093, 0
      %v2409 = vsel %vm1570, %v2094, 0
      %v2410 = vsel %vm1571, %v2095, 0
      %v2411 = vsel %vm1572, %v2096, 0
      %s2412 = scalar_lea.vmem %s3, 320
      %v2413 = vld [vmem:[%s2412] sm:$0xf]
      %v2414 = vld [vmem:[%s2412 + $0x4] sm:$0xf]
      %v2415 = vld [vmem:[%s2412 + $0x8] sm:$0xf]
      %v2416 = vld [vmem:[%s2412 + $0xc] sm:$0xf]
      %v2417 = vld [vmem:[%s2412 + $0x10] sm:$0xf]
      %v2418 = vld [vmem:[%s2412 + $0x14] sm:$0xf]
      %v2419 = vld [vmem:[%s2412 + $0x18] sm:$0xf]
      %v2420 = vld [vmem:[%s2412 + $0x1c] sm:$0xf]
      %v2421 = vld [vmem:[%s2412 + $0x20] sm:$0xf]
      %v2422 = vld [vmem:[%s2412 + $0x24] sm:$0xf]
      %v2423 = vld [vmem:[%s2412 + $0x28] sm:$0xf]
      %v2424 = vld [vmem:[%s2412 + $0x2c] sm:$0xf]
      %v2425 = vld [vmem:[%s2412 + $0x30] sm:$0xf]
      %v2426 = vld [vmem:[%s2412 + $0x34] sm:$0xf]
      %v2427 = vld [vmem:[%s2412 + $0x38] sm:$0xf]
      %v2428 = vld [vmem:[%s2412 + $0x3c] sm:$0xf]
      %v2446 = vunpack.c.l.b16 %v2395
      %v2447 = vunpack.c.l.b16 %v2396
      %v2448 = vunpack.c.l.b16 %v2397
      %v2449 = vunpack.c.l.b16 %v2398
      %v2450 = vunpack.c.l.b16 %v2399
      %v2451 = vunpack.c.l.b16 %v2400
      %v2452 = vunpack.c.l.b16 %v2401
      %v2453 = vunpack.c.l.b16 %v2402
      %v2454 = vunpack.c.l.b16 %v2403
      %v2455 = vunpack.c.l.b16 %v2404
      %v2456 = vunpack.c.l.b16 %v2405
      %v2457 = vunpack.c.l.b16 %v2406
      %v2458 = vunpack.c.l.b16 %v2407
      %v2459 = vunpack.c.l.b16 %v2408
      %v2460 = vunpack.c.l.b16 %v2409
      %v2461 = vunpack.c.l.b16 %v2410
      %v2462 = vunpack.c.l.b16 %v2411
      %v2463 = vpack.c.b16 %v2447, %v2446
      %v2464 = vpack.c.b16 %v2449, %v2448
      %v2465 = vpack.c.b16 %v2451, %v2450
      %v2466 = vpack.c.b16 %v2453, %v2452
      %v2467 = vpack.c.b16 %v2455, %v2454
      %v2468 = vpack.c.b16 %v2457, %v2456
      %v2469 = vpack.c.b16 %v2459, %v2458
      %v2470 = vpack.c.b16 %v2461, %v2460
      %v2471 = vpack.c.b16 %v2462, %v2462
      %v2472 = vrot.slane %v2463, 1
      %v2473 = vrot.slane %v2464, 1
      %v2474 = vsel %vm1650, %v2472, %v2473
      %v2475 = vrot.slane %v2465, 1
      %v2476 = vsel %vm1650, %v2473, %v2475
      %v2477 = vrot.slane %v2466, 1
      %v2478 = vsel %vm1650, %v2475, %v2477
      %v2479 = vrot.slane %v2467, 1
      %v2480 = vsel %vm1650, %v2477, %v2479
      %v2481 = vrot.slane %v2468, 1
      %v2482 = vsel %vm1650, %v2479, %v2481
      %v2483 = vrot.slane %v2469, 1
      %v2484 = vsel %vm1650, %v2481, %v2483
      %v2485 = vrot.slane %v2470, 1
      %v2486 = vsel %vm1650, %v2483, %v2485
      %v2487 = vrot.slane %v2471, 1
      %v2488 = vsel %vm1650, %v2485, %v2487
      %v2513 = vunpack.c.l.b16 %v2413
      %v2514 = vunpack.c.l.b16 %v2414
      %v2515 = vunpack.c.l.b16 %v2415
      %v2516 = vunpack.c.l.b16 %v2416
      %v2517 = vunpack.c.l.b16 %v2417
      %v2518 = vunpack.c.l.b16 %v2418
      %v2519 = vunpack.c.l.b16 %v2419
      %v2520 = vunpack.c.l.b16 %v2420
      %v2521 = vunpack.c.l.b16 %v2421
      %v2522 = vunpack.c.l.b16 %v2422
      %v2523 = vunpack.c.l.b16 %v2423
      %v2524 = vunpack.c.l.b16 %v2424
      %v2525 = vunpack.c.l.b16 %v2425
      %v2526 = vunpack.c.l.b16 %v2426
      %v2527 = vunpack.c.l.b16 %v2427
      %v2528 = vunpack.c.l.b16 %v2428
      %v2529 = vpack.c.b16 %v2514, %v2513
      %v2530 = vpack.c.b16 %v2516, %v2515
      %v2531 = vpack.c.b16 %v2518, %v2517
      %v2532 = vpack.c.b16 %v2520, %v2519
      %v2533 = vpack.c.b16 %v2522, %v2521
      %v2534 = vpack.c.b16 %v2524, %v2523
      %v2535 = vpack.c.b16 %v2526, %v2525
      %v2536 = vpack.c.b16 %v2528, %v2527
      %2545 = vmatprep.subr.bf16.mxu0 0
      %2546 = vmatpush1.bf16.msra.mxu0 %v2529
      %2547 = vmatprep.subr.bf16.mxu0 0
      %2548 = vmatpush1.bf16.msra.mxu0 %v2530
      %2549 = vmatprep.subr.bf16.mxu0 0
      %2550 = vmatpush1.bf16.msra.mxu0 %v2531
      %2551 = vmatprep.subr.bf16.mxu0 0
      %2552 = vmatpush1.bf16.msra.mxu0 %v2532
      %2553 = vmatprep.subr.bf16.mxu0 0
      %2554 = vmatpush1.bf16.msra.mxu0 %v2533
      %2555 = vmatprep.subr.bf16.mxu0 0
      %2556 = vmatpush1.bf16.msra.mxu0 %v2534
      %2557 = vmatprep.subr.bf16.mxu0 0
      %2558 = vmatpush1.bf16.msra.mxu0 %v2535
      %2559 = vmatprep.subr.bf16.mxu0 0
      %2560 = vmatpush1.bf16.msra.mxu0 %v2536
      %2561 = vmatprep.subr.bf16.mxu0 0
      %2562 = vmatpush1.bf16.msra.mxu0 0
      %2563 = vmatprep.subr.bf16.mxu0 0
      %2564 = vmatpush1.bf16.msra.mxu0 0
      %2565 = vmatprep.subr.bf16.mxu0 0
      %2566 = vmatpush1.bf16.msra.mxu0 0
      %2567 = vmatprep.subr.bf16.mxu0 0
      %2568 = vmatpush1.bf16.msra.mxu0 0
      %2569 = vmatprep.subr.bf16.mxu0 0
      %2570 = vmatpush1.bf16.msra.mxu0 0
      %2571 = vmatprep.subr.bf16.mxu0 0
      %2572 = vmatpush1.bf16.msra.mxu0 0
      %2573 = vmatprep.subr.bf16.mxu0 0
      %2574 = vmatpush1.bf16.msra.mxu0 0
      %2575 = vmatprep.subr.bf16.mxu0 0
      %2576 = vmatpush1.bf16.msra.mxu0 0
      %2577 = vmatprep.mubr.bf16.mxu0 0
      %2578 = vmatmul.mubr.bf16.gmra.mrb[0].mxu0 %v2474
      %v2579 = vpop.f32.mrb[0].mxu0
      %v2580 = vadd.f32 0.0, %v2579
      %v2581 = vpop.f32.mrb[0].mxu0
      %v2582 = vpop.f32.mrb[0].mxu0
      %v2583 = vadd.f32 0.0, %v2582
      %v2584 = vpop.f32.mrb[0].mxu0
      %2585 = vmatprep.mubr.bf16.mxu0 0
      %2586 = vmatmul.mubr.bf16.gmra.mrb[0].mxu0 %v2476
      %v2587 = vpop.f32.mrb[0].mxu0
      %v2588 = vadd.f32 0.0, %v2587
      %v2589 = vpop.f32.mrb[0].mxu0
      %v2590 = vpop.f32.mrb[0].mxu0
      %v2591 = vadd.f32 0.0, %v2590
      %v2592 = vpop.f32.mrb[0].mxu0
      %2593 = vmatprep.mubr.bf16.mxu0 0
      %2594 = vmatmul.mubr.bf16.gmra.mrb[0].mxu0 %v2478
      %v2595 = vpop.f32.mrb[0].mxu0
      %v2596 = vadd.f32 0.0, %v2595
      %v2597 = vpop.f32.mrb[0].mxu0
      %v2598 = vpop.f32.mrb[0].mxu0
      %v2599 = vadd.f32 0.0, %v2598
      %v2600 = vpop.f32.mrb[0].mxu0
      %2601 = vmatprep.mubr.bf16.mxu0 0
      %2602 = vmatmul.mubr.bf16.gmra.mrb[0].mxu0 %v2480
      %v2603 = vpop.f32.mrb[0].mxu0
      %v2604 = vadd.f32 0.0, %v2603
      %v2605 = vpop.f32.mrb[0].mxu0
      %v2606 = vpop.f32.mrb[0].mxu0
      %v2607 = vadd.f32 0.0, %v2606
      %v2608 = vpop.f32.mrb[0].mxu0
      %2609 = vmatprep.mubr.bf16.mxu0 0
      %2610 = vmatmul.mubr.bf16.gmra.mrb[0].mxu0 %v2482
      %v2611 = vpop.f32.mrb[0].mxu0
      %v2612 = vadd.f32 0.0, %v2611
      %v2613 = vpop.f32.mrb[0].mxu0
      %v2614 = vpop.f32.mrb[0].mxu0
      %v2615 = vadd.f32 0.0, %v2614
      %v2616 = vpop.f32.mrb[0].mxu0
      %2617 = vmatprep.mubr.bf16.mxu0 0
      %2618 = vmatmul.mubr.bf16.gmra.mrb[0].mxu0 %v2484
      %v2619 = vpop.f32.mrb[0].mxu0
      %v2620 = vadd.f32 0.0, %v2619
      %v2621 = vpop.f32.mrb[0].mxu0
      %v2622 = vpop.f32.mrb[0].mxu0
      %v2623 = vadd.f32 0.0, %v2622
      %v2624 = vpop.f32.mrb[0].mxu0
      %2625 = vmatprep.mubr.bf16.mxu0 0
      %2626 = vmatmul.mubr.bf16.gmra.mrb[0].mxu0 %v2486
      %v2627 = vpop.f32.mrb[0].mxu0
      %v2628 = vadd.f32 0.0, %v2627
      %v2629 = vpop.f32.mrb[0].mxu0
      %v2630 = vpop.f32.mrb[0].mxu0
      %v2631 = vadd.f32 0.0, %v2630
      %v2632 = vpop.f32.mrb[0].mxu0
      %2633 = vmatprep.mubr.bf16.mxu0 0
      %2634 = vmatmul.mubr.bf16.gmra.mrb[0].mxu0 %v2488
      %v2635 = vpop.f32.mrb[0].mxu0
      %v2636 = vadd.f32 0.0, %v2635
      %v2637 = vpop.f32.mrb[0].mxu0
      %v2638 = vpop.f32.mrb[0].mxu0
      %v2639 = vadd.f32 0.0, %v2638
      %v2640 = vpop.f32.mrb[0].mxu0
      %2641 = vdwg.mxu0
      %v2642 = vadd.f32 %v2378, %v2580
      %v2643 = vadd.f32 %v2379, %v2583
      %v2644 = vadd.f32 %v2380, %v2588
      %v2645 = vadd.f32 %v2381, %v2591
      %v2646 = vadd.f32 %v2382, %v2596
      %v2647 = vadd.f32 %v2383, %v2599
      %v2648 = vadd.f32 %v2384, %v2604
      %v2649 = vadd.f32 %v2385, %v2607
      %v2650 = vadd.f32 %v2386, %v2612
      %v2651 = vadd.f32 %v2387, %v2615
      %v2652 = vadd.f32 %v2388, %v2620
      %v2653 = vadd.f32 %v2389, %v2623
      %v2654 = vadd.f32 %v2390, %v2628
      %v2655 = vadd.f32 %v2391, %v2631
      %v2656 = vadd.f32 %v2392, %v2636
      %v2657 = vadd.f32 %v2393, %v2639
      %v2658 = vld [vmem:[#allocation2 + $0x44] sm:$0xf]
      %v2659 = vsel %vm949, %v2081, 0
      %v2660 = vsel %vm950, %v2082, 0
      %v2661 = vsel %vm951, %v2083, 0
      %v2662 = vsel %vm952, %v2084, 0
      %v2663 = vsel %vm953, %v2085, 0
      %v2664 = vsel %vm954, %v2086, 0
      %v2665 = vsel %vm955, %v2087, 0
      %v2666 = vsel %vm956, %v2088, 0
      %v2667 = vsel %vm957, %v2089, 0
      %v2668 = vsel %vm958, %v2090, 0
      %v2669 = vsel %vm959, %v2091, 0
      %v2670 = vsel %vm960, %v2092, 0
      %v2671 = vsel %vm961, %v2093, 0
      %v2672 = vsel %vm962, %v2094, 0
      %v2673 = vsel %vm963, %v2095, 0
      %v2674 = vsel %vm964, %v2658, 0
      %s2675 = scalar_lea.vmem %s3, 384
      %v2676 = vld [vmem:[%s2675] sm:$0xf]
      %v2677 = vld [vmem:[%s2675 + $0x4] sm:$0xf]
      %v2678 = vld [vmem:[%s2675 + $0x8] sm:$0xf]
      %v2679 = vld [vmem:[%s2675 + $0xc] sm:$0xf]
      %v2680 = vld [vmem:[%s2675 + $0x10] sm:$0xf]
      %v2681 = vld [vmem:[%s2675 + $0x14] sm:$0xf]
      %v2682 = vld [vmem:[%s2675 + $0x18] sm:$0xf]
      %v2683 = vld [vmem:[%s2675 + $0x1c] sm:$0xf]
      %v2684 = vld [vmem:[%s2675 + $0x20] sm:$0xf]
      %v2685 = vld [vmem:[%s2675 + $0x24] sm:$0xf]
      %v2686 = vld [vmem:[%s2675 + $0x28] sm:$0xf]
      %v2687 = vld [vmem:[%s2675 + $0x2c] sm:$0xf]
      %v2688 = vld [vmem:[%s2675 + $0x30] sm:$0xf]
      %v2689 = vld [vmem:[%s2675 + $0x34] sm:$0xf]
      %v2690 = vld [vmem:[%s2675 + $0x38] sm:$0xf]
      %v2691 = vld [vmem:[%s2675 + $0x3c] sm:$0xf]
      %v2708 = vunpack.c.l.b16 %v2659
      %v2709 = vunpack.c.l.b16 %v2660
      %v2710 = vunpack.c.l.b16 %v2661
      %v2711 = vunpack.c.l.b16 %v2662
      %v2712 = vunpack.c.l.b16 %v2663
      %v2713 = vunpack.c.l.b16 %v2664
      %v2714 = vunpack.c.l.b16 %v2665
      %v2715 = vunpack.c.l.b16 %v2666
      %v2716 = vunpack.c.l.b16 %v2667
      %v2717 = vunpack.c.l.b16 %v2668
      %v2718 = vunpack.c.l.b16 %v2669
      %v2719 = vunpack.c.l.b16 %v2670
      %v2720 = vunpack.c.l.b16 %v2671
      %v2721 = vunpack.c.l.b16 %v2672
      %v2722 = vunpack.c.l.b16 %v2673
      %v2723 = vunpack.c.l.b16 %v2674
      %v2724 = vpack.c.b16 %v2709, %v2708
      %v2725 = vpack.c.b16 %v2711, %v2710
      %v2726 = vpack.c.b16 %v2713, %v2712
      %v2727 = vpack.c.b16 %v2715, %v2714
      %v2728 = vpack.c.b16 %v2717, %v2716
      %v2729 = vpack.c.b16 %v2719, %v2718
      %v2730 = vpack.c.b16 %v2721, %v2720
      %v2731 = vpack.c.b16 %v2723, %v2722
      %v2756 = vunpack.c.l.b16 %v2676
      %v2757 = vunpack.c.l.b16 %v2677
      %v2758 = vunpack.c.l.b16 %v2678
      %v2759 = vunpack.c.l.b16 %v2679
      %v2760 = vunpack.c.l.b16 %v2680
      %v2761 = vunpack.c.l.b16 %v2681
      %v2762 = vunpack.c.l.b16 %v2682
      %v2763 = vunpack.c.l.b16 %v2683
      %v2764 = vunpack.c.l.b16 %v2684
      %v2765 = vunpack.c.l.b16 %v2685
      %v2766 = vunpack.c.l.b16 %v2686
      %v2767 = vunpack.c.l.b16 %v2687
      %v2768 = vunpack.c.l.b16 %v2688
      %v2769 = vunpack.c.l.b16 %v2689
      %v2770 = vunpack.c.l.b16 %v2690
      %v2771 = vunpack.c.l.b16 %v2691
      %v2772 = vpack.c.b16 %v2757, %v2756
      %v2773 = vpack.c.b16 %v2759, %v2758
      %v2774 = vpack.c.b16 %v2761, %v2760
      %v2775 = vpack.c.b16 %v2763, %v2762
      %v2776 = vpack.c.b16 %v2765, %v2764
      %v2777 = vpack.c.b16 %v2767, %v2766
      %v2778 = vpack.c.b16 %v2769, %v2768
      %v2779 = vpack.c.b16 %v2771, %v2770
      %2788 = vmatprep.subr.bf16.mxu0 0
      %2789 = vmatpush1.bf16.msra.mxu0 %v2772
      %2790 = vmatprep.subr.bf16.mxu0 0
      %2791 = vmatpush1.bf16.msra.mxu0 %v2773
      %2792 = vmatprep.subr.bf16.mxu0 0
      %2793 = vmatpush1.bf16.msra.mxu0 %v2774
      %2794 = vmatprep.subr.bf16.mxu0 0
      %2795 = vmatpush1.bf16.msra.mxu0 %v2775
      %2796 = vmatprep.subr.bf16.mxu0 0
      %2797 = vmatpush1.bf16.msra.mxu0 %v2776
      %2798 = vmatprep.subr.bf16.mxu0 0
      %2799 = vmatpush1.bf16.msra.mxu0 %v2777
      %2800 = vmatprep.subr.bf16.mxu0 0
      %2801 = vmatpush1.bf16.msra.mxu0 %v2778
      %2802 = vmatprep.subr.bf16.mxu0 0
      %2803 = vmatpush1.bf16.msra.mxu0 %v2779
      %2804 = vmatprep.subr.bf16.mxu0 0
      %2805 = vmatpush1.bf16.msra.mxu0 0
      %2806 = vmatprep.subr.bf16.mxu0 0
      %2807 = vmatpush1.bf16.msra.mxu0 0
      %2808 = vmatprep.subr.bf16.mxu0 0
      %2809 = vmatpush1.bf16.msra.mxu0 0
      %2810 = vmatprep.subr.bf16.mxu0 0
      %2811 = vmatpush1.bf16.msra.mxu0 0
      %2812 = vmatprep.subr.bf16.mxu0 0
      %2813 = vmatpush1.bf16.msra.mxu0 0
      %2814 = vmatprep.subr.bf16.mxu0 0
      %2815 = vmatpush1.bf16.msra.mxu0 0
      %2816 = vmatprep.subr.bf16.mxu0 0
      %2817 = vmatpush1.bf16.msra.mxu0 0
      %2818 = vmatprep.subr.bf16.mxu0 0
      %2819 = vmatpush1.bf16.msra.mxu0 0
      %2820 = vmatprep.mubr.bf16.mxu0 0
      %2821 = vmatmul.mubr.bf16.gmra.mrb[0].mxu0 %v2724
      %v2822 = vpop.f32.mrb[0].mxu0
      %v2823 = vadd.f32 0.0, %v2822
      %v2824 = vpop.f32.mrb[0].mxu0
      %v2825 = vpop.f32.mrb[0].mxu0
      %v2826 = vadd.f32 0.0, %v2825
      %v2827 = vpop.f32.mrb[0].mxu0
      %2828 = vmatprep.mubr.bf16.mxu0 0
      %2829 = vmatmul.mubr.bf16.gmra.mrb[0].mxu0 %v2725
      %v2830 = vpop.f32.mrb[0].mxu0
      %v2831 = vadd.f32 0.0, %v2830
      %v2832 = vpop.f32.mrb[0].mxu0
      %v2833 = vpop.f32.mrb[0].mxu0
      %v2834 = vadd.f32 0.0, %v2833
      %v2835 = vpop.f32.mrb[0].mxu0
      %2836 = vmatprep.mubr.bf16.mxu0 0
      %2837 = vmatmul.mubr.bf16.gmra.mrb[0].mxu0 %v2726
      %v2838 = vpop.f32.mrb[0].mxu0
      %v2839 = vadd.f32 0.0, %v2838
      %v2840 = vpop.f32.mrb[0].mxu0
      %v2841 = vpop.f32.mrb[0].mxu0
      %v2842 = vadd.f32 0.0, %v2841
      %v2843 = vpop.f32.mrb[0].mxu0
      %2844 = vmatprep.mubr.bf16.mxu0 0
      %2845 = vmatmul.mubr.bf16.gmra.mrb[0].mxu0 %v2727
      %v2846 = vpop.f32.mrb[0].mxu0
      %v2847 = vadd.f32 0.0, %v2846
      %v2848 = vpop.f32.mrb[0].mxu0
      %v2849 = vpop.f32.mrb[0].mxu0
      %v2850 = vadd.f32 0.0, %v2849
      %v2851 = vpop.f32.mrb[0].mxu0
      %2852 = vmatprep.mubr.bf16.mxu0 0
      %2853 = vmatmul.mubr.bf16.gmra.mrb[0].mxu0 %v2728
      %v2854 = vpop.f32.mrb[0].mxu0
      %v2855 = vadd.f32 0.0, %v2854
      %v2856 = vpop.f32.mrb[0].mxu0
      %v2857 = vpop.f32.mrb[0].mxu0
      %v2858 = vadd.f32 0.0, %v2857
      %v2859 = vpop.f32.mrb[0].mxu0
      %2860 = vmatprep.mubr.bf16.mxu0 0
      %2861 = vmatmul.mubr.bf16.gmra.mrb[0].mxu0 %v2729
      %v2862 = vpop.f32.mrb[0].mxu0
      %v2863 = vadd.f32 0.0, %v2862
      %v2864 = vpop.f32.mrb[0].mxu0
      %v2865 = vpop.f32.mrb[0].mxu0
      %v2866 = vadd.f32 0.0, %v2865
      %v2867 = vpop.f32.mrb[0].mxu0
      %2868 = vmatprep.mubr.bf16.mxu0 0
      %2869 = vmatmul.mubr.bf16.gmra.mrb[0].mxu0 %v2730
      %v2870 = vpop.f32.mrb[0].mxu0
      %v2871 = vadd.f32 0.0, %v2870
      %v2872 = vpop.f32.mrb[0].mxu0
      %v2873 = vpop.f32.mrb[0].mxu0
      %v2874 = vadd.f32 0.0, %v2873
      %v2875 = vpop.f32.mrb[0].mxu0
      %2876 = vmatprep.mubr.bf16.mxu0 0
      %2877 = vmatmul.mubr.bf16.gmra.mrb[0].mxu0 %v2731
      %v2878 = vpop.f32.mrb[0].mxu0
      %v2879 = vadd.f32 0.0, %v2878
      %v2880 = vpop.f32.mrb[0].mxu0
      %v2881 = vpop.f32.mrb[0].mxu0
      %v2882 = vadd.f32 0.0, %v2881
      %v2883 = vpop.f32.mrb[0].mxu0
      %2884 = vdwg.mxu0
      %v2885 = vadd.f32 %v2642, %v2823
      %v2886 = vadd.f32 %v2643, %v2826
      %v2887 = vadd.f32 %v2644, %v2831
      %v2888 = vadd.f32 %v2645, %v2834
      %v2889 = vadd.f32 %v2646, %v2839
      %v2890 = vadd.f32 %v2647, %v2842
      %v2891 = vadd.f32 %v2648, %v2847
      %v2892 = vadd.f32 %v2649, %v2850
      %v2893 = vadd.f32 %v2650, %v2855
      %v2894 = vadd.f32 %v2651, %v2858
      %v2895 = vadd.f32 %v2652, %v2863
      %v2896 = vadd.f32 %v2653, %v2866
      %v2897 = vadd.f32 %v2654, %v2871
      %v2898 = vadd.f32 %v2655, %v2874
      %v2899 = vadd.f32 %v2656, %v2879
      %v2900 = vadd.f32 %v2657, %v2882
      %v2901 = vld [vmem:[#allocation2 + $0x8] sm:$0xf]
      %v2902 = vld [vmem:[#allocation2 + $0xc] sm:$0xf]
      %v2903 = vld [vmem:[#allocation2 + $0x10] sm:$0xf]
      %v2904 = vld [vmem:[#allocation2 + $0x14] sm:$0xf]
      %v2905 = vld [vmem:[#allocation2 + $0x18] sm:$0xf]
      %v2906 = vld [vmem:[#allocation2 + $0x1c] sm:$0xf]
      %v2907 = vld [vmem:[#allocation2 + $0x20] sm:$0xf]
      %v2908 = vld [vmem:[#allocation2 + $0x24] sm:$0xf]
      %v2909 = vld [vmem:[#allocation2 + $0x28] sm:$0xf]
      %v2910 = vld [vmem:[#allocation2 + $0x2c] sm:$0xf]
      %v2911 = vld [vmem:[#allocation2 + $0x30] sm:$0xf]
      %v2912 = vld [vmem:[#allocation2 + $0x34] sm:$0xf]
      %v2913 = vld [vmem:[#allocation2 + $0x38] sm:$0xf]
      %v2914 = vld [vmem:[#allocation2 + $0x3c] sm:$0xf]
      %v2915 = vld [vmem:[#allocation2 + $0x40] sm:$0xf]
      %v2916 = vld [vmem:[#allocation2 + $0x44] sm:$0xf]
      %v2917 = vld [vmem:[#allocation2 + $0x48] sm:$0x1]
      %s2918 = scalar_lea.vmem %s3, 448
      %v2919 = vld [vmem:[%s2918] sm:$0xf]
      %v2920 = vld [vmem:[%s2918 + $0x4] sm:$0xf]
      %v2921 = vld [vmem:[%s2918 + $0x8] sm:$0xf]
      %v2922 = vld [vmem:[%s2918 + $0xc] sm:$0xf]
      %v2923 = vld [vmem:[%s2918 + $0x10] sm:$0xf]
      %v2924 = vld [vmem:[%s2918 + $0x14] sm:$0xf]
      %v2925 = vld [vmem:[%s2918 + $0x18] sm:$0xf]
      %v2926 = vld [vmem:[%s2918 + $0x1c] sm:$0xf]
      %v2927 = vld [vmem:[%s2918 + $0x20] sm:$0xf]
      %v2928 = vld [vmem:[%s2918 + $0x24] sm:$0xf]
      %v2929 = vld [vmem:[%s2918 + $0x28] sm:$0xf]
      %v2930 = vld [vmem:[%s2918 + $0x2c] sm:$0xf]
      %v2931 = vld [vmem:[%s2918 + $0x30] sm:$0xf]
      %v2932 = vld [vmem:[%s2918 + $0x34] sm:$0xf]
      %v2933 = vld [vmem:[%s2918 + $0x38] sm:$0xf]
      %v2934 = vld [vmem:[%s2918 + $0x3c] sm:$0xf]
      %v2952 = vunpack.c.l.b16 %v2901
      %v2953 = vunpack.c.l.b16 %v2902
      %v2954 = vunpack.c.l.b16 %v2903
      %v2955 = vunpack.c.l.b16 %v2904
      %v2956 = vunpack.c.l.b16 %v2905
      %v2957 = vunpack.c.l.b16 %v2906
      %v2958 = vunpack.c.l.b16 %v2907
      %v2959 = vunpack.c.l.b16 %v2908
      %v2960 = vunpack.c.l.b16 %v2909
      %v2961 = vunpack.c.l.b16 %v2910
      %v2962 = vunpack.c.l.b16 %v2911
      %v2963 = vunpack.c.l.b16 %v2912
      %v2964 = vunpack.c.l.b16 %v2913
      %v2965 = vunpack.c.l.b16 %v2914
      %v2966 = vunpack.c.l.b16 %v2915
      %v2967 = vunpack.c.l.b16 %v2916
      %v2968 = vunpack.c.l.b16 %v2917
      %v2969 = vpack.c.b16 %v2953, %v2952
      %v2970 = vpack.c.b16 %v2955, %v2954
      %v2971 = vpack.c.b16 %v2957, %v2956
      %v2972 = vpack.c.b16 %v2959, %v2958
      %v2973 = vpack.c.b16 %v2961, %v2960
      %v2974 = vpack.c.b16 %v2963, %v2962
      %v2975 = vpack.c.b16 %v2965, %v2964
      %v2976 = vpack.c.b16 %v2967, %v2966
      %v2977 = vpack.c.b16 %v2968, %v2968
      %v2979 = vshrl.u32 %v2969, 16
      %v2981 = vshll.u32 %v2969, 16
      %v2983 = vrot.slane %v2981, 1
      %v2984 = vor.u32 %v2979, %v2983
      %v2986 = vshll.u32 %v2970, 16
      %v2988 = vrot.slane %v2986, 1
      %v2989 = vsel %vm1058, %v2984, %v2988
      %v2990 = vshrl.u32 %v2970, 16
      %v2992 = vor.u32 %v2990, %v2988
      %v2994 = vshll.u32 %v2971, 16
      %v2996 = vrot.slane %v2994, 1
      %v2997 = vsel %vm1058, %v2992, %v2996
      %v2998 = vshrl.u32 %v2971, 16
      %v3000 = vor.u32 %v2998, %v2996
      %v3002 = vshll.u32 %v2972, 16
      %v3004 = vrot.slane %v3002, 1
      %v3005 = vsel %vm1058, %v3000, %v3004
      %v3006 = vshrl.u32 %v2972, 16
      %v3008 = vor.u32 %v3006, %v3004
      %v3010 = vshll.u32 %v2973, 16
      %v3012 = vrot.slane %v3010, 1
      %v3013 = vsel %vm1058, %v3008, %v3012
      %v3014 = vshrl.u32 %v2973, 16
      %v3016 = vor.u32 %v3014, %v3012
      %v3018 = vshll.u32 %v2974, 16
      %v3020 = vrot.slane %v3018, 1
      %v3021 = vsel %vm1058, %v3016, %v3020
      %v3022 = vshrl.u32 %v2974, 16
      %v3024 = vor.u32 %v3022, %v3020
      %v3026 = vshll.u32 %v2975, 16
      %v3028 = vrot.slane %v3026, 1
      %v3029 = vsel %vm1058, %v3024, %v3028
      %v3030 = vshrl.u32 %v2975, 16
      %v3032 = vor.u32 %v3030, %v3028
      %v3034 = vshll.u32 %v2976, 16
      %v3036 = vrot.slane %v3034, 1
      %v3037 = vsel %vm1058, %v3032, %v3036
      %v3038 = vshrl.u32 %v2976, 16
      %v3040 = vor.u32 %v3038, %v3036
      %v3042 = vshll.u32 %v2977, 16
      %v3044 = vrot.slane %v3042, 1
      %v3045 = vsel %vm1058, %v3040, %v3044
      %v3070 = vunpack.c.l.b16 %v2919
      %v3071 = vunpack.c.l.b16 %v2920
      %v3072 = vunpack.c.l.b16 %v2921
      %v3073 = vunpack.c.l.b16 %v2922
      %v3074 = vunpack.c.l.b16 %v2923
      %v3075 = vunpack.c.l.b16 %v2924
      %v3076 = vunpack.c.l.b16 %v2925
      %v3077 = vunpack.c.l.b16 %v2926
      %v3078 = vunpack.c.l.b16 %v2927
      %v3079 = vunpack.c.l.b16 %v2928
      %v3080 = vunpack.c.l.b16 %v2929
      %v3081 = vunpack.c.l.b16 %v2930
      %v3082 = vunpack.c.l.b16 %v2931
      %v3083 = vunpack.c.l.b16 %v2932
      %v3084 = vunpack.c.l.b16 %v2933
      %v3085 = vunpack.c.l.b16 %v2934
      %v3086 = vpack.c.b16 %v3071, %v3070
      %v3087 = vpack.c.b16 %v3073, %v3072
      %v3088 = vpack.c.b16 %v3075, %v3074
      %v3089 = vpack.c.b16 %v3077, %v3076
      %v3090 = vpack.c.b16 %v3079, %v3078
      %v3091 = vpack.c.b16 %v3081, %v3080
      %v3092 = vpack.c.b16 %v3083, %v3082
      %v3093 = vpack.c.b16 %v3085, %v3084
      %3102 = vmatprep.subr.bf16.mxu0 0
      %3103 = vmatpush1.bf16.msra.mxu0 %v3086
      %3104 = vmatprep.subr.bf16.mxu0 0
      %3105 = vmatpush1.bf16.msra.mxu0 %v3087
      %3106 = vmatprep.subr.bf16.mxu0 0
      %3107 = vmatpush1.bf16.msra.mxu0 %v3088
      %3108 = vmatprep.subr.bf16.mxu0 0
      %3109 = vmatpush1.bf16.msra.mxu0 %v3089
      %3110 = vmatprep.subr.bf16.mxu0 0
      %3111 = vmatpush1.bf16.msra.mxu0 %v3090
      %3112 = vmatprep.subr.bf16.mxu0 0
      %3113 = vmatpush1.bf16.msra.mxu0 %v3091
      %3114 = vmatprep.subr.bf16.mxu0 0
      %3115 = vmatpush1.bf16.msra.mxu0 %v3092
      %3116 = vmatprep.subr.bf16.mxu0 0
      %3117 = vmatpush1.bf16.msra.mxu0 %v3093
      %3118 = vmatprep.subr.bf16.mxu0 0
      %3119 = vmatpush1.bf16.msra.mxu0 0
      %3120 = vmatprep.subr.bf16.mxu0 0
      %3121 = vmatpush1.bf16.msra.mxu0 0
      %3122 = vmatprep.subr.bf16.mxu0 0
      %3123 = vmatpush1.bf16.msra.mxu0 0
      %3124 = vmatprep.subr.bf16.mxu0 0
      %3125 = vmatpush1.bf16.msra.mxu0 0
      %3126 = vmatprep.subr.bf16.mxu0 0
      %3127 = vmatpush1.bf16.msra.mxu0 0
      %3128 = vmatprep.subr.bf16.mxu0 0
      %3129 = vmatpush1.bf16.msra.mxu0 0
      %3130 = vmatprep.subr.bf16.mxu0 0
      %3131 = vmatpush1.bf16.msra.mxu0 0
      %3132 = vmatprep.subr.bf16.mxu0 0
      %3133 = vmatpush1.bf16.msra.mxu0 0
      %3134 = vmatprep.mubr.bf16.mxu0 0
      %3135 = vmatmul.mubr.bf16.gmra.mrb[0].mxu0 %v2989
      %v3136 = vpop.f32.mrb[0].mxu0
      %v3137 = vadd.f32 0.0, %v3136
      %v3138 = vpop.f32.mrb[0].mxu0
      %v3139 = vpop.f32.mrb[0].mxu0
      %v3140 = vadd.f32 0.0, %v3139
      %v3141 = vpop.f32.mrb[0].mxu0
      %3142 = vmatprep.mubr.bf16.mxu0 0
      %3143 = vmatmul.mubr.bf16.gmra.mrb[0].mxu0 %v2997
      %v3144 = vpop.f32.mrb[0].mxu0
      %v3145 = vadd.f32 0.0, %v3144
      %v3146 = vpop.f32.mrb[0].mxu0
      %v3147 = vpop.f32.mrb[0].mxu0
      %v3148 = vadd.f32 0.0, %v3147
      %v3149 = vpop.f32.mrb[0].mxu0
      %3150 = vmatprep.mubr.bf16.mxu0 0
      %3151 = vmatmul.mubr.bf16.gmra.mrb[0].mxu0 %v3005
      %v3152 = vpop.f32.mrb[0].mxu0
      %v3153 = vadd.f32 0.0, %v3152
      %v3154 = vpop.f32.mrb[0].mxu0
      %v3155 = vpop.f32.mrb[0].mxu0
      %v3156 = vadd.f32 0.0, %v3155
      %v3157 = vpop.f32.mrb[0].mxu0
      %3158 = vmatprep.mubr.bf16.mxu0 0
      %3159 = vmatmul.mubr.bf16.gmra.mrb[0].mxu0 %v3013
      %v3160 = vpop.f32.mrb[0].mxu0
      %v3161 = vadd.f32 0.0, %v3160
      %v3162 = vpop.f32.mrb[0].mxu0
      %v3163 = vpop.f32.mrb[0].mxu0
      %v3164 = vadd.f32 0.0, %v3163
      %v3165 = vpop.f32.mrb[0].mxu0
      %3166 = vmatprep.mubr.bf16.mxu0 0
      %3167 = vmatmul.mubr.bf16.gmra.mrb[0].mxu0 %v3021
      %v3168 = vpop.f32.mrb[0].mxu0
      %v3169 = vadd.f32 0.0, %v3168
      %v3170 = vpop.f32.mrb[0].mxu0
      %v3171 = vpop.f32.mrb[0].mxu0
      %v3172 = vadd.f32 0.0, %v3171
      %v3173 = vpop.f32.mrb[0].mxu0
      %3174 = vmatprep.mubr.bf16.mxu0 0
      %3175 = vmatmul.mubr.bf16.gmra.mrb[0].mxu0 %v3029
      %v3176 = vpop.f32.mrb[0].mxu0
      %v3177 = vadd.f32 0.0, %v3176
      %v3178 = vpop.f32.mrb[0].mxu0
      %v3179 = vpop.f32.mrb[0].mxu0
      %v3180 = vadd.f32 0.0, %v3179
      %v3181 = vpop.f32.mrb[0].mxu0
      %3182 = vmatprep.mubr.bf16.mxu0 0
      %3183 = vmatmul.mubr.bf16.gmra.mrb[0].mxu0 %v3037
      %v3184 = vpop.f32.mrb[0].mxu0
      %v3185 = vadd.f32 0.0, %v3184
      %v3186 = vpop.f32.mrb[0].mxu0
      %v3187 = vpop.f32.mrb[0].mxu0
      %v3188 = vadd.f32 0.0, %v3187
      %v3189 = vpop.f32.mrb[0].mxu0
      %3190 = vmatprep.mubr.bf16.mxu0 0
      %3191 = vmatmul.mubr.bf16.gmra.mrb[0].mxu0 %v3045
      %v3192 = vpop.f32.mrb[0].mxu0
      %v3193 = vadd.f32 0.0, %v3192
      %v3194 = vpop.f32.mrb[0].mxu0
      %v3195 = vpop.f32.mrb[0].mxu0
      %v3196 = vadd.f32 0.0, %v3195
      %v3197 = vpop.f32.mrb[0].mxu0
      %3198 = vdwg.mxu0
      %v3199 = vadd.f32 %v2885, %v3137
      %v3200 = vadd.f32 %v2886, %v3140
      %v3201 = vadd.f32 %v2887, %v3145
      %v3202 = vadd.f32 %v2888, %v3148
      %v3203 = vadd.f32 %v2889, %v3153
      %v3204 = vadd.f32 %v2890, %v3156
      %v3205 = vadd.f32 %v2891, %v3161
      %v3206 = vadd.f32 %v2892, %v3164
      %v3207 = vadd.f32 %v2893, %v3169
      %v3208 = vadd.f32 %v2894, %v3172
      %v3209 = vadd.f32 %v2895, %v3177
      %v3210 = vadd.f32 %v2896, %v3180
      %v3211 = vadd.f32 %v2897, %v3185
      %v3212 = vadd.f32 %v2898, %v3188
      %v3213 = vadd.f32 %v2899, %v3193
      %v3214 = vadd.f32 %v2900, %v3196
      %v3215 = vld [vmem:[#allocation2 + $0x8] sm:$0xe]
      %v3216 = vsel %vm1556, %v3215, 0
      %v3217 = vsel %vm1557, %v2902, 0
      %v3218 = vsel %vm1558, %v2903, 0
      %v3219 = vsel %vm1559, %v2904, 0
      %v3220 = vsel %vm1560, %v2905, 0
      %v3221 = vsel %vm1561, %v2906, 0
      %v3222 = vsel %vm1562, %v2907, 0
      %v3223 = vsel %vm1563, %v2908, 0
      %v3224 = vsel %vm1564, %v2909, 0
      %v3225 = vsel %vm1565, %v2910, 0
      %v3226 = vsel %vm1566, %v2911, 0
      %v3227 = vsel %vm1567, %v2912, 0
      %v3228 = vsel %vm1568, %v2913, 0
      %v3229 = vsel %vm1569, %v2914, 0
      %v3230 = vsel %vm1570, %v2915, 0
      %v3231 = vsel %vm1571, %v2916, 0
      %v3232 = vsel %vm1572, %v2917, 0
      %s3233 = scalar_lea.vmem %s3, 512
      %v3234 = vld [vmem:[%s3233] sm:$0xf]
      %v3235 = vld [vmem:[%s3233 + $0x4] sm:$0xf]
      %v3236 = vld [vmem:[%s3233 + $0x8] sm:$0xf]
      %v3237 = vld [vmem:[%s3233 + $0xc] sm:$0xf]
      %v3238 = vld [vmem:[%s3233 + $0x10] sm:$0xf]
      %v3239 = vld [vmem:[%s3233 + $0x14] sm:$0xf]
      %v3240 = vld [vmem:[%s3233 + $0x18] sm:$0xf]
      %v3241 = vld [vmem:[%s3233 + $0x1c] sm:$0xf]
      %v3242 = vld [vmem:[%s3233 + $0x20] sm:$0xf]
      %v3243 = vld [vmem:[%s3233 + $0x24] sm:$0xf]
      %v3244 = vld [vmem:[%s3233 + $0x28] sm:$0xf]
      %v3245 = vld [vmem:[%s3233 + $0x2c] sm:$0xf]
      %v3246 = vld [vmem:[%s3233 + $0x30] sm:$0xf]
      %v3247 = vld [vmem:[%s3233 + $0x34] sm:$0xf]
      %v3248 = vld [vmem:[%s3233 + $0x38] sm:$0xf]
      %v3249 = vld [vmem:[%s3233 + $0x3c] sm:$0xf]
      %v3267 = vunpack.c.l.b16 %v3216
      %v3268 = vunpack.c.l.b16 %v3217
      %v3269 = vunpack.c.l.b16 %v3218
      %v3270 = vunpack.c.l.b16 %v3219
      %v3271 = vunpack.c.l.b16 %v3220
      %v3272 = vunpack.c.l.b16 %v3221
      %v3273 = vunpack.c.l.b16 %v3222
      %v3274 = vunpack.c.l.b16 %v3223
      %v3275 = vunpack.c.l.b16 %v3224
      %v3276 = vunpack.c.l.b16 %v3225
      %v3277 = vunpack.c.l.b16 %v3226
      %v3278 = vunpack.c.l.b16 %v3227
      %v3279 = vunpack.c.l.b16 %v3228
      %v3280 = vunpack.c.l.b16 %v3229
      %v3281 = vunpack.c.l.b16 %v3230
      %v3282 = vunpack.c.l.b16 %v3231
      %v3283 = vunpack.c.l.b16 %v3232
      %v3284 = vpack.c.b16 %v3268, %v3267
      %v3285 = vpack.c.b16 %v3270, %v3269
      %v3286 = vpack.c.b16 %v3272, %v3271
      %v3287 = vpack.c.b16 %v3274, %v3273
      %v3288 = vpack.c.b16 %v3276, %v3275
      %v3289 = vpack.c.b16 %v3278, %v3277
      %v3290 = vpack.c.b16 %v3280, %v3279
      %v3291 = vpack.c.b16 %v3282, %v3281
      %v3292 = vpack.c.b16 %v3283, %v3283
      %v3293 = vrot.slane %v3284, 1
      %v3294 = vrot.slane %v3285, 1
      %v3295 = vsel %vm1650, %v3293, %v3294
      %v3296 = vrot.slane %v3286, 1
      %v3297 = vsel %vm1650, %v3294, %v3296
      %v3298 = vrot.slane %v3287, 1
      %v3299 = vsel %vm1650, %v3296, %v3298
      %v3300 = vrot.slane %v3288, 1
      %v3301 = vsel %vm1650, %v3298, %v3300
      %v3302 = vrot.slane %v3289, 1
      %v3303 = vsel %vm1650, %v3300, %v3302
      %v3304 = vrot.slane %v3290, 1
      %v3305 = vsel %vm1650, %v3302, %v3304
      %v3306 = vrot.slane %v3291, 1
      %v3307 = vsel %vm1650, %v3304, %v3306
      %v3308 = vrot.slane %v3292, 1
      %v3309 = vsel %vm1650, %v3306, %v3308
      %v3334 = vunpack.c.l.b16 %v3234
      %v3335 = vunpack.c.l.b16 %v3235
      %v3336 = vunpack.c.l.b16 %v3236
      %v3337 = vunpack.c.l.b16 %v3237
      %v3338 = vunpack.c.l.b16 %v3238
      %v3339 = vunpack.c.l.b16 %v3239
      %v3340 = vunpack.c.l.b16 %v3240
      %v3341 = vunpack.c.l.b16 %v3241
      %v3342 = vunpack.c.l.b16 %v3242
      %v3343 = vunpack.c.l.b16 %v3243
      %v3344 = vunpack.c.l.b16 %v3244
      %v3345 = vunpack.c.l.b16 %v3245
      %v3346 = vunpack.c.l.b16 %v3246
      %v3347 = vunpack.c.l.b16 %v3247
      %v3348 = vunpack.c.l.b16 %v3248
      %v3349 = vunpack.c.l.b16 %v3249
      %v3350 = vpack.c.b16 %v3335, %v3334
      %v3351 = vpack.c.b16 %v3337, %v3336
      %v3352 = vpack.c.b16 %v3339, %v3338
      %v3353 = vpack.c.b16 %v3341, %v3340
      %v3354 = vpack.c.b16 %v3343, %v3342
      %v3355 = vpack.c.b16 %v3345, %v3344
      %v3356 = vpack.c.b16 %v3347, %v3346
      %v3357 = vpack.c.b16 %v3349, %v3348
      %3366 = vmatprep.subr.bf16.mxu0 0
      %3367 = vmatpush1.bf16.msra.mxu0 %v3350
      %3368 = vmatprep.subr.bf16.mxu0 0
      %3369 = vmatpush1.bf16.msra.mxu0 %v3351
      %3370 = vmatprep.subr.bf16.mxu0 0
      %3371 = vmatpush1.bf16.msra.mxu0 %v3352
      %3372 = vmatprep.subr.bf16.mxu0 0
      %3373 = vmatpush1.bf16.msra.mxu0 %v3353
      %3374 = vmatprep.subr.bf16.mxu0 0
      %3375 = vmatpush1.bf16.msra.mxu0 %v3354
      %3376 = vmatprep.subr.bf16.mxu0 0
      %3377 = vmatpush1.bf16.msra.mxu0 %v3355
      %3378 = vmatprep.subr.bf16.mxu0 0
      %3379 = vmatpush1.bf16.msra.mxu0 %v3356
      %3380 = vmatprep.subr.bf16.mxu0 0
      %3381 = vmatpush1.bf16.msra.mxu0 %v3357
      %3382 = vmatprep.subr.bf16.mxu0 0
      %3383 = vmatpush1.bf16.msra.mxu0 0
      %3384 = vmatprep.subr.bf16.mxu0 0
      %3385 = vmatpush1.bf16.msra.mxu0 0
      %3386 = vmatprep.subr.bf16.mxu0 0
      %3387 = vmatpush1.bf16.msra.mxu0 0
      %3388 = vmatprep.subr.bf16.mxu0 0
      %3389 = vmatpush1.bf16.msra.mxu0 0
      %3390 = vmatprep.subr.bf16.mxu0 0
      %3391 = vmatpush1.bf16.msra.mxu0 0
      %3392 = vmatprep.subr.bf16.mxu0 0
      %3393 = vmatpush1.bf16.msra.mxu0 0
      %3394 = vmatprep.subr.bf16.mxu0 0
      %3395 = vmatpush1.bf16.msra.mxu0 0
      %3396 = vmatprep.subr.bf16.mxu0 0
      %3397 = vmatpush1.bf16.msra.mxu0 0
      %3398 = vmatprep.mubr.bf16.mxu0 0
      %3399 = vmatmul.mubr.bf16.gmra.mrb[0].mxu0 %v3295
      %v3400 = vpop.f32.mrb[0].mxu0
      %v3401 = vadd.f32 0.0, %v3400
      %v3402 = vpop.f32.mrb[0].mxu0
      %v3403 = vpop.f32.mrb[0].mxu0
      %v3404 = vadd.f32 0.0, %v3403
      %v3405 = vpop.f32.mrb[0].mxu0
      %3406 = vmatprep.mubr.bf16.mxu0 0
      %3407 = vmatmul.mubr.bf16.gmra.mrb[0].mxu0 %v3297
      %v3408 = vpop.f32.mrb[0].mxu0
      %v3409 = vadd.f32 0.0, %v3408
      %v3410 = vpop.f32.mrb[0].mxu0
      %v3411 = vpop.f32.mrb[0].mxu0
      %v3412 = vadd.f32 0.0, %v3411
      %v3413 = vpop.f32.mrb[0].mxu0
      %3414 = vmatprep.mubr.bf16.mxu0 0
      %3415 = vmatmul.mubr.bf16.gmra.mrb[0].mxu0 %v3299
      %v3416 = vpop.f32.mrb[0].mxu0
      %v3417 = vadd.f32 0.0, %v3416
      %v3418 = vpop.f32.mrb[0].mxu0
      %v3419 = vpop.f32.mrb[0].mxu0
      %v3420 = vadd.f32 0.0, %v3419
      %v3421 = vpop.f32.mrb[0].mxu0
      %3422 = vmatprep.mubr.bf16.mxu0 0
      %3423 = vmatmul.mubr.bf16.gmra.mrb[0].mxu0 %v3301
      %v3424 = vpop.f32.mrb[0].mxu0
      %v3425 = vadd.f32 0.0, %v3424
      %v3426 = vpop.f32.mrb[0].mxu0
      %v3427 = vpop.f32.mrb[0].mxu0
      %v3428 = vadd.f32 0.0, %v3427
      %v3429 = vpop.f32.mrb[0].mxu0
      %3430 = vmatprep.mubr.bf16.mxu0 0
      %3431 = vmatmul.mubr.bf16.gmra.mrb[0].mxu0 %v3303
      %v3432 = vpop.f32.mrb[0].mxu0
      %v3433 = vadd.f32 0.0, %v3432
      %v3434 = vpop.f32.mrb[0].mxu0
      %v3435 = vpop.f32.mrb[0].mxu0
      %v3436 = vadd.f32 0.0, %v3435
      %v3437 = vpop.f32.mrb[0].mxu0
      %3438 = vmatprep.mubr.bf16.mxu0 0
      %3439 = vmatmul.mubr.bf16.gmra.mrb[0].mxu0 %v3305
      %v3440 = vpop.f32.mrb[0].mxu0
      %v3441 = vadd.f32 0.0, %v3440
      %v3442 = vpop.f32.mrb[0].mxu0
      %v3443 = vpop.f32.mrb[0].mxu0
      %v3444 = vadd.f32 0.0, %v3443
      %v3445 = vpop.f32.mrb[0].mxu0
      %3446 = vmatprep.mubr.bf16.mxu0 0
      %3447 = vmatmul.mubr.bf16.gmra.mrb[0].mxu0 %v3307
      %v3448 = vpop.f32.mrb[0].mxu0
      %v3449 = vadd.f32 0.0, %v3448
      %v3450 = vpop.f32.mrb[0].mxu0
      %v3451 = vpop.f32.mrb[0].mxu0
      %v3452 = vadd.f32 0.0, %v3451
      %v3453 = vpop.f32.mrb[0].mxu0
      %3454 = vmatprep.mubr.bf16.mxu0 0
      %3455 = vmatmul.mubr.bf16.gmra.mrb[0].mxu0 %v3309
      %v3456 = vpop.f32.mrb[0].mxu0
      %v3457 = vadd.f32 0.0, %v3456
      %v3458 = vpop.f32.mrb[0].mxu0
      %v3459 = vpop.f32.mrb[0].mxu0
      %v3460 = vadd.f32 0.0, %v3459
      %v3461 = vpop.f32.mrb[0].mxu0
      %3462 = vdwg.mxu0
      %v3463 = vadd.f32 %v3199, %v3401
      %v3464 = vadd.f32 %v3200, %v3404
      %v3465 = vadd.f32 %v3201, %v3409
      %v3466 = vadd.f32 %v3202, %v3412
      %v3467 = vadd.f32 %v3203, %v3417
      %v3468 = vadd.f32 %v3204, %v3420
      %v3469 = vadd.f32 %v3205, %v3425
      %v3470 = vadd.f32 %v3206, %v3428
      %v3471 = vadd.f32 %v3207, %v3433
      %v3472 = vadd.f32 %v3208, %v3436
      %v3473 = vadd.f32 %v3209, %v3441
      %v3474 = vadd.f32 %v3210, %v3444
      %v3475 = vadd.f32 %v3211, %v3449
      %v3476 = vadd.f32 %v3212, %v3452
      %v3477 = vadd.f32 %v3213, %v3457
      %v3478 = vadd.f32 %v3214, %v3460
      %v3479 = vld [vmem:[%s4] sm:$0x1]
      %v3481 = vlaneseq
      %v3482 = vshrl.u32 %v3481, 7
      %v3483 = vsub.s32 0, %v3482
      %v3484 = vrot.slane %v3479, %v3483
      %v3486 = vadd.f32 %v3463, %v3484
      %v3487 = vadd.f32 %v3464, %v3484
      %v3488 = vadd.f32 %v3465, %v3484
      %v3489 = vadd.f32 %v3466, %v3484
      %v3490 = vadd.f32 %v3467, %v3484
      %v3491 = vadd.f32 %v3468, %v3484
      %v3492 = vadd.f32 %v3469, %v3484
      %v3493 = vadd.f32 %v3470, %v3484
      %v3494 = vadd.f32 %v3471, %v3484
      %v3495 = vadd.f32 %v3472, %v3484
      %v3496 = vadd.f32 %v3473, %v3484
      %v3497 = vadd.f32 %v3474, %v3484
      %v3498 = vadd.f32 %v3475, %v3484
      %v3499 = vadd.f32 %v3476, %v3484
      %v3500 = vadd.f32 %v3477, %v3484
      %v3501 = vadd.f32 %v3478, %v3484
      %v3502 = vmax.f32 %v3486, 0.0
      %v3503 = vmax.f32 %v3487, 0.0
      %v3504 = vmax.f32 %v3488, 0.0
      %v3505 = vmax.f32 %v3489, 0.0
      %v3506 = vmax.f32 %v3490, 0.0
      %v3507 = vmax.f32 %v3491, 0.0
      %v3508 = vmax.f32 %v3492, 0.0
      %v3509 = vmax.f32 %v3493, 0.0
      %v3510 = vmax.f32 %v3494, 0.0
      %v3511 = vmax.f32 %v3495, 0.0
      %v3512 = vmax.f32 %v3496, 0.0
      %v3513 = vmax.f32 %v3497, 0.0
      %v3514 = vmax.f32 %v3498, 0.0
      %v3515 = vmax.f32 %v3499, 0.0
      %v3516 = vmax.f32 %v3500, 0.0
      %v3517 = vmax.f32 %v3501, 0.0
      %v3518 = vpack.c.bf16 %v3503, %v3502
      %v3519 = vpack.c.bf16 %v3505, %v3504
      %v3520 = vpack.c.bf16 %v3507, %v3506
      %v3521 = vpack.c.bf16 %v3509, %v3508
      %v3522 = vpack.c.bf16 %v3511, %v3510
      %v3523 = vpack.c.bf16 %v3513, %v3512
      %v3524 = vpack.c.bf16 %v3515, %v3514
      %v3525 = vpack.c.bf16 %v3517, %v3516
      %v3534 = vunpack.c.l.b16 %v3518
      %v3535 = vunpack.c.h.b16 %v3518
      %v3536 = vunpack.c.l.b16 %v3519
      %v3537 = vunpack.c.h.b16 %v3519
      %v3538 = vunpack.c.l.b16 %v3520
      %v3539 = vunpack.c.h.b16 %v3520
      %v3540 = vunpack.c.l.b16 %v3521
      %v3541 = vunpack.c.h.b16 %v3521
      %v3542 = vunpack.c.l.b16 %v3522
      %v3543 = vunpack.c.h.b16 %v3522
      %v3544 = vunpack.c.l.b16 %v3523
      %v3545 = vunpack.c.h.b16 %v3523
      %v3546 = vunpack.c.l.b16 %v3524
      %v3547 = vunpack.c.h.b16 %v3524
      %v3548 = vunpack.c.l.b16 %v3525
      %v3549 = vunpack.c.h.b16 %v3525
      %v3550 = vpack.c.b16 %v3534, %v3534
      %v3551 = vpack.c.b16 %v3535, %v3535
      %v3552 = vpack.c.b16 %v3536, %v3536
      %v3553 = vpack.c.b16 %v3537, %v3537
      %v3554 = vpack.c.b16 %v3538, %v3538
      %v3555 = vpack.c.b16 %v3539, %v3539
      %v3556 = vpack.c.b16 %v3540, %v3540
      %v3557 = vpack.c.b16 %v3541, %v3541
      %v3558 = vpack.c.b16 %v3542, %v3542
      %v3559 = vpack.c.b16 %v3543, %v3543
      %v3560 = vpack.c.b16 %v3544, %v3544
      %v3561 = vpack.c.b16 %v3545, %v3545
      %v3562 = vpack.c.b16 %v3546, %v3546
      %v3563 = vpack.c.b16 %v3547, %v3547
      %v3564 = vpack.c.b16 %v3548, %v3548
      %v3565 = vpack.c.b16 %v3549, %v3549
      %3582 = vst [vmem:[%s246] sm:$0xf] %v3550
      %3583 = vst [vmem:[%s246 + $0x4] sm:$0xf] %v3551
      %3584 = vst [vmem:[%s246 + $0x8] sm:$0xf] %v3552
      %3585 = vst [vmem:[%s246 + $0xc] sm:$0xf] %v3553
      %3586 = vst [vmem:[%s246 + $0x10] sm:$0xf] %v3554
      %3587 = vst [vmem:[%s246 + $0x14] sm:$0xf] %v3555
      %3588 = vst [vmem:[%s246 + $0x18] sm:$0xf] %v3556
      %3589 = vst [vmem:[%s246 + $0x1c] sm:$0xf] %v3557
      %3590 = vst [vmem:[%s246 + $0x20] sm:$0xf] %v3558
      %3591 = vst [vmem:[%s246 + $0x24] sm:$0xf] %v3559
      %3592 = vst [vmem:[%s246 + $0x28] sm:$0xf] %v3560
      %3593 = vst [vmem:[%s246 + $0x2c] sm:$0xf] %v3561
      %3594 = vst [vmem:[%s246 + $0x30] sm:$0xf] %v3562
      %3595 = vst [vmem:[%s246 + $0x34] sm:$0xf] %v3563
      %3596 = vst [vmem:[%s246 + $0x38] sm:$0xf] %v3564
      %3597 = vst [vmem:[%s246 + $0x3c] sm:$0xf] %v3565
      %s3598 = smul.u32 16, %s21
      %p3599 = scmp.lt.s32.totalorder %s20, 1
      %s3600 = scalar_select %p3599, %s20, 1
      %p3601 = scmp.lt.s32.totalorder %s3598, 15
      %s3602 = scalar_select %p3601, %s3598, 15
      %s3603 = smul.addr %s3600, 16
      %s3604 = sadd.s32 %s3602, %s3603
      %s3605 = smul.addr %s3604, 4
      %s3606 = scalar_lea.vmem %s5, %s3605
      // Predicated region
      $region41: #{lan_forward.4} parent=39 // pred_check
        %p3607 = pneg %p158
      $region42: #{lan_forward.4} parent=39 // pred_check_branch
        %3609 = sbr.rel (%p3607) target = $region44
      $region43: #{lan_forward.4} parent=39 // pred_region
        %s3610 = smul.u32 16, %s21
      $region44: #{lan_forward.4} parent=39 // pred_fallthru
        _
    $region40: #{lan_forward.4} parent=5 // pred_fallthru
      _
    %p3611 = scmp.le.s32.totalorder 2, %s11
    // Predicated region
    $region45: #{lan_forward.4} parent=5 // pred_check
      %p3612 = pneg %p3611
    $region46: #{lan_forward.4} parent=5 // pred_check_branch
      %3614 = sbr.rel (%p3612) target = $region48
    $region47: #{lan_forward.4} parent=5 // pred_region
      %s3615 = ssub.s32 %s11, 2
      // Predicated region
      $region49: #{lan_forward.4} parent=47 // pred_check
        %p3616 = pneg %p164
      $region50: #{lan_forward.4} parent=47 // pred_check_branch
        %3618 = sbr.rel (%p3616) target = $region52
      $region51: #{lan_forward.4} parent=47 // pred_region
        %s3619 = smul.u32 16, %s23
        %p3620 = scmp.lt.s32.totalorder %s22, 1
        %s3621 = scalar_select %p3620, %s22, 1
        %p3622 = scmp.lt.s32.totalorder %s3619, 15
        %s3623 = scalar_select %p3622, %s3619, 15
        %s3624 = smul.addr %s3621, 16
        %s3625 = sadd.s32 %s3623, %s3624
        %s3626 = smul.addr %s3625, 4
        %s3627 = scalar_lea.vmem %s5, %s3626
      $region52: #{lan_forward.4} parent=47 // pred_fallthru
        _
    $region48: #{lan_forward.4} parent=5 // pred_fallthru
      _
  $region6: #{lan_forward.4} parent=0 // loop_footer
    %s15 = sadd.s32 1, %s11
  $region7: #{lan_forward.4} parent=0 // loop_footer_branch
    %10 = sbr.rel target = $region3
  $region8: #{lan_forward.4} parent=0 // loop_exit
    _

</llo_original>
